<compile_context>
chip_gen: v5e
topology: v5e:2x2
jax: 0.10.0
libtpu: 0.0.40
codegen_flags: <defaults>
</compile_context>

<pallas_src>
import jax
import jax.numpy as jnp
from jax.experimental import pallas as pl
from jax.experimental.pallas import tpu as pltpu

VOCAB = 11
VOCAB_PAD = 16          # pad embedding rows to a sublane multiple
EMB = 512
ENC1 = 256
LATENT = 128
HEADS = 2 * LATENT      # fused mu|sigma head width (lane-dense 256)
DEC1 = 256
DEC2 = 512
OUT_PAD = 128           # pad 11 output logits to a lane-dense 128 slab
TM = 512                # rows (tokens) per grid step; multiple of 256 (MXU-aligned)


def _vae_kernel(ids_ref, emb_ref,
                w1_ref, b1_ref, w2_ref, b2_ref,
                wms_ref, bms_ref,
                w3_ref, b3_ref, w4_ref, b4_ref,
                wp_ref, bp_ref, eps_ref,
                out_ref):
    ids = ids_ref[...]                                            # (TM, 1) int32
    tm = ids.shape[0]

    # Embedding lookup as one-hot @ table (MXU-friendly gather), bf16 operands.
    onehot = (jax.lax.broadcasted_iota(jnp.int32, (tm, VOCAB_PAD), 1)
              == ids).astype(jnp.bfloat16)                        # (TM, 16)
    e = jnp.dot(onehot, emb_ref[...],
                preferred_element_type=jnp.float32)               # (TM, 512) f32

    # Encoder: Linear(512,256) + ReLU, Linear(256,128) + ReLU (bf16 in, f32 acc)
    h = jnp.maximum(
        jnp.dot(e.astype(jnp.bfloat16), w1_ref[...],
                preferred_element_type=jnp.float32) + b1_ref[...], 0.0)
    h = jnp.maximum(
        jnp.dot(h.astype(jnp.bfloat16), w2_ref[...],
                preferred_element_type=jnp.float32) + b2_ref[...], 0.0)

    # Fused mu|sigma heads: single N=256 matmul, then lane-aligned slice.
    ms = (jnp.dot(h.astype(jnp.bfloat16), wms_ref[...],
                  preferred_element_type=jnp.float32) + bms_ref[...])  # (TM, 256)
    mu = ms[:, :LATENT]
    sg = ms[:, LATENT:]

    # Reparameterization trick: z = mu + exp(0.5 * logvar) * eps
    z = mu + jnp.exp(0.5 * sg) * eps_ref[...].astype(jnp.float32)  # (TM, 128)

    # Decoder: Linear(128,256) + ReLU, Linear(256,512) + ReLU
    d = jnp.maximum(
        jnp.dot(z.astype(jnp.bfloat16), w3_ref[...],
                preferred_element_type=jnp.float32) + b3_ref[...], 0.0)
    d = jnp.maximum(
        jnp.dot(d.astype(jnp.bfloat16), w4_ref[...],
                preferred_element_type=jnp.float32) + b4_ref[...], 0.0)

    # Output projection (padded to 128 lanes; cols >= 11 are zero weights)
    out_ref[...] = (jnp.dot(d.astype(jnp.bfloat16), wp_ref[...],
                            preferred_element_type=jnp.float32) + bp_ref[...])


def _full(shape):
    # Weight / bias resident across the whole grid: constant block index means
    # Pallas copies the block once and keeps it resident (no per-step re-DMA).
    return pl.BlockSpec(shape, lambda i: tuple(0 for _ in shape))


@jax.jit
def vae_forward(x, params, eps):
    """x: (B, 1, 30, 30) int32 token grid. Returns (B, 11, 30, 30) float32."""
    B = x.shape[0]
    n = B * 900
    ids = x.reshape(n, 1).astype(jnp.int32)

    # pad token rows to a multiple of TM
    n_pad = pl.cdiv(n, TM) * TM
    pad = n_pad - n
    ids = jnp.pad(ids, ((0, pad), (0, 0)))
    eps = jnp.pad(eps.astype(jnp.bfloat16), ((0, pad), (0, 0)))

    (emb, w1, b1, w2, b2, wmu, bmu, wsg, bsg, w3, b3, w4, b4, wp, bp) = params

    # Fuse mu/sigma heads into a single (128, 256) weight / (1, 256) bias.
    wms = jnp.concatenate([wmu, wsg], axis=1)      # bf16
    bms = jnp.concatenate([bmu, bsg], axis=1)      # f32

    grid = (n_pad // TM,)
    out = pl.pallas_call(
        _vae_kernel,
        out_shape=jax.ShapeDtypeStruct((n_pad, OUT_PAD), jnp.float32),
        grid_spec=pltpu.PrefetchScalarGridSpec(
            num_scalar_prefetch=0,
            grid=grid,
            in_specs=[
                pl.BlockSpec((TM, 1), lambda i: (i, 0)),          # ids
                _full((VOCAB_PAD, EMB)),                          # embedding table
                _full((EMB, ENC1)), _full((1, ENC1)),             # encoder L1
                _full((ENC1, LATENT)), _full((1, LATENT)),        # encoder L2
                _full((LATENT, HEADS)), _full((1, HEADS)),        # fused mu|sigma
                _full((LATENT, DEC1)), _full((1, DEC1)),          # decoder L1
                _full((DEC1, DEC2)), _full((1, DEC2)),            # decoder L2
                _full((DEC2, OUT_PAD)), _full((1, OUT_PAD)),      # proj (padded)
                pl.BlockSpec((TM, LATENT), lambda i: (i, 0)),     # eps (bf16)
            ],
            out_specs=pl.BlockSpec((TM, OUT_PAD), lambda i: (i, 0)),
        ),
        compiler_params=pltpu.CompilerParams(
            dimension_semantics=("parallel",),   # shards grid across TCs on v7x
            vmem_limit_bytes=32 << 20),
    )(ids, emb, w1, b1, w2, b2, wms, bms, w3, b3, w4, b4, wp, bp, eps)

    logits = out[:n, :VOCAB]                                      # (N, 11)
    logits = logits.reshape(-1, 30, 30, VOCAB)                    # (B, 30, 30, 11)
    return jnp.transpose(logits, (0, 3, 1, 2))                    # (B, 11, 30, 30)


def init_params(key):
    """Deterministic synthetic parameters.

    Weights stored bf16 as (in, out) = W.T (MXU-native); biases kept f32 and
    added after the f32 accumulation.
    """
    ks = jax.random.split(key, 8)
    s = 0.02

    emb = jnp.zeros((VOCAB_PAD, EMB), jnp.float32).at[:VOCAB].set(
        s * jax.random.normal(ks[0], (VOCAB, EMB), jnp.float32)
    ).astype(jnp.bfloat16)

    def lin(k, fin, fout):
        kw, kb = jax.random.split(k)
        w = (s * jax.random.normal(kw, (fin, fout), jnp.float32)).astype(jnp.bfloat16)
        b = s * jax.random.normal(kb, (1, fout), jnp.float32)
        return w, b

    w1, b1 = lin(ks[1], EMB, ENC1)
    w2, b2 = lin(ks[2], ENC1, LATENT)
    wmu, bmu = lin(ks[3], LATENT, LATENT)
    wsg, bsg = lin(ks[4], LATENT, LATENT)
    w3, b3 = lin(ks[5], LATENT, DEC1)
    w4, b4 = lin(ks[6], DEC1, DEC2)

    wp_real, bp_real = lin(ks[7], DEC2, VOCAB)
    wp = jnp.zeros((DEC2, OUT_PAD), jnp.bfloat16).at[:, :VOCAB].set(wp_real)
    bp = jnp.zeros((1, OUT_PAD), jnp.float32).at[:, :VOCAB].set(bp_real[0])

    return (emb, w1, b1, w2, b2, wmu, bmu, wsg, bsg, w3, b3, w4, b4, wp, bp)


if __name__ == "__main__":
    key = jax.random.PRNGKey(0)
    k_x, k_p, k_eps = jax.random.split(key, 3)

    B = 2
    # token grid, values in [0, 11), 4-D so the batched branch of forward() applies
    x = jax.random.randint(k_x, (B, 1, 30, 30), 0, VOCAB, dtype=jnp.int32)
    params = init_params(k_p)
    # eps = randn_like(std): standard normal noise for the reparameterization
    eps = jax.random.normal(k_eps, (B * 900, LATENT), jnp.float32)

    out = vae_forward(x, params, eps)
    out = jax.block_until_ready(out)

    assert out.shape == (B, 11, 30, 30), out.shape
    assert out.dtype == jnp.float32
    print("KERNEL_OK")
</pallas_src>

<mosaic_0001>
module attributes {stable_mosaic.version = 11 : i64} {
  func.func @_vae_kernel(%arg0: i32, %arg1: memref<512x1xi32, #tpu.memory_space<vmem>>, %arg2: memref<16x512xbf16, #tpu.memory_space<vmem>>, %arg3: memref<512x256xbf16, #tpu.memory_space<vmem>>, %arg4: memref<1x256xf32, #tpu.memory_space<vmem>>, %arg5: memref<256x128xbf16, #tpu.memory_space<vmem>>, %arg6: memref<1x128xf32, #tpu.memory_space<vmem>>, %arg7: memref<128x256xbf16, #tpu.memory_space<vmem>>, %arg8: memref<1x256xf32, #tpu.memory_space<vmem>>, %arg9: memref<128x256xbf16, #tpu.memory_space<vmem>>, %arg10: memref<1x256xf32, #tpu.memory_space<vmem>>, %arg11: memref<256x512xbf16, #tpu.memory_space<vmem>>, %arg12: memref<1x512xf32, #tpu.memory_space<vmem>>, %arg13: memref<512x128xbf16, #tpu.memory_space<vmem>>, %arg14: memref<1x128xf32, #tpu.memory_space<vmem>>, %arg15: memref<512x128xbf16, #tpu.memory_space<vmem>>, %arg16: memref<512x128xf32, #tpu.memory_space<vmem>>) attributes {dimension_semantics = [#tpu.dimension_semantics<parallel>], iteration_bounds = array<i64: 4>, scalar_prefetch = 0 : i64, scratch_operands = 0 : i64, tpu.core_type = #tpu.core_type<tc>, window_params = [{transform_indices = @transform_0, window_bounds = array<i64: 512, 1>}, {pipeline_mode = #tpu.pipeline_mode<synchronous>, transform_indices = @transform_1, window_bounds = array<i64: 16, 512>}, {pipeline_mode = #tpu.pipeline_mode<synchronous>, transform_indices = @transform_2, window_bounds = array<i64: 512, 256>}, {pipeline_mode = #tpu.pipeline_mode<synchronous>, transform_indices = @transform_3, window_bounds = array<i64: 1, 256>}, {pipeline_mode = #tpu.pipeline_mode<synchronous>, transform_indices = @transform_4, window_bounds = array<i64: 256, 128>}, {pipeline_mode = #tpu.pipeline_mode<synchronous>, transform_indices = @transform_5, window_bounds = array<i64: 1, 128>}, {pipeline_mode = #tpu.pipeline_mode<synchronous>, transform_indices = @transform_6, window_bounds = array<i64: 128, 256>}, {pipeline_mode = #tpu.pipeline_mode<synchronous>, transform_indices = @transform_7, window_bounds = array<i64: 1, 256>}, {pipeline_mode = #tpu.pipeline_mode<synchronous>, transform_indices = @transform_8, window_bounds = array<i64: 128, 256>}, {pipeline_mode = #tpu.pipeline_mode<synchronous>, transform_indices = @transform_9, window_bounds = array<i64: 1, 256>}, {pipeline_mode = #tpu.pipeline_mode<synchronous>, transform_indices = @transform_10, window_bounds = array<i64: 256, 512>}, {pipeline_mode = #tpu.pipeline_mode<synchronous>, transform_indices = @transform_11, window_bounds = array<i64: 1, 512>}, {pipeline_mode = #tpu.pipeline_mode<synchronous>, transform_indices = @transform_12, window_bounds = array<i64: 512, 128>}, {pipeline_mode = #tpu.pipeline_mode<synchronous>, transform_indices = @transform_13, window_bounds = array<i64: 1, 128>}, {transform_indices = @transform_14, window_bounds = array<i64: 512, 128>}, {transform_indices = @transform_15, window_bounds = array<i64: 512, 128>}]} {
    %c0 = arith.constant 0 : index
    %c0_0 = arith.constant 0 : index
    %0 = vector.load %arg1[%c0, %c0_0] : memref<512x1xi32, #tpu.memory_space<vmem>>, vector<512x1xi32>
    %1 = tpu.iota {dimensions = array<i32: 1>} : vector<512x16xi32>
    %2 = vector.broadcast %0 : vector<512x1xi32> to vector<512x16xi32>
    %3 = arith.cmpi eq, %1, %2 : vector<512x16xi32>
    %4 = arith.extui %3 : vector<512x16xi1> to vector<512x16xi32>
    %5 = arith.sitofp %4 : vector<512x16xi32> to vector<512x16xf32>
    %6 = arith.truncf %5 : vector<512x16xf32> to vector<512x16xbf16>
    %c0_1 = arith.constant 0 : index
    %c0_2 = arith.constant 0 : index
    %7 = vector.load %arg2[%c0_1, %c0_2] : memref<16x512xbf16, #tpu.memory_space<vmem>>, vector<16x512xbf16>
    %cst = arith.constant dense<0.000000e+00> : vector<512x512xf32>
    %8 = tpu.matmul %6, %7, %cst {dimension_numbers = #tpu.dot_dimension_numbers<[1], [0], [0], [1], [0, 0, 1, 1], [], []>} : vector<512x16xbf16>, vector<16x512xbf16>, vector<512x512xf32> -> vector<512x512xf32>
    %9 = arith.truncf %8 : vector<512x512xf32> to vector<512x512xbf16>
    %c0_3 = arith.constant 0 : index
    %c0_4 = arith.constant 0 : index
    %10 = vector.load %arg3[%c0_3, %c0_4] : memref<512x256xbf16, #tpu.memory_space<vmem>>, vector<512x256xbf16>
    %cst_5 = arith.constant dense<0.000000e+00> : vector<512x256xf32>
    %11 = tpu.matmul %9, %10, %cst_5 {dimension_numbers = #tpu.dot_dimension_numbers<[1], [0], [0], [1], [0, 0, 1, 1], [], []>} : vector<512x512xbf16>, vector<512x256xbf16>, vector<512x256xf32> -> vector<512x256xf32>
    %c0_6 = arith.constant 0 : index
    %c0_7 = arith.constant 0 : index
    %12 = vector.load %arg4[%c0_6, %c0_7] : memref<1x256xf32, #tpu.memory_space<vmem>>, vector<1x256xf32>
    %13 = vector.broadcast %12 : vector<1x256xf32> to vector<512x256xf32>
    %14 = arith.addf %11, %13 : vector<512x256xf32>
    %cst_8 = arith.constant 0.000000e+00 : f32
    %15 = vector.broadcast %cst_8 : f32 to vector<512x256xf32>
    %16 = arith.maximumf %14, %15 : vector<512x256xf32>
    %17 = arith.truncf %16 : vector<512x256xf32> to vector<512x256xbf16>
    %c0_9 = arith.constant 0 : index
    %c0_10 = arith.constant 0 : index
    %18 = vector.load %arg5[%c0_9, %c0_10] : memref<256x128xbf16, #tpu.memory_space<vmem>>, vector<256x128xbf16>
    %cst_11 = arith.constant dense<0.000000e+00> : vector<512x128xf32>
    %19 = tpu.matmul %17, %18, %cst_11 {dimension_numbers = #tpu.dot_dimension_numbers<[1], [0], [0], [1], [0, 0, 1, 1], [], []>} : vector<512x256xbf16>, vector<256x128xbf16>, vector<512x128xf32> -> vector<512x128xf32>
    %c0_12 = arith.constant 0 : index
    %c0_13 = arith.constant 0 : index
    %20 = vector.load %arg6[%c0_12, %c0_13] : memref<1x128xf32, #tpu.memory_space<vmem>>, vector<1x128xf32>
    %21 = vector.broadcast %20 : vector<1x128xf32> to vector<512x128xf32>
    %22 = arith.addf %19, %21 : vector<512x128xf32>
    %cst_14 = arith.constant 0.000000e+00 : f32
    %23 = vector.broadcast %cst_14 : f32 to vector<512x128xf32>
    %24 = arith.maximumf %22, %23 : vector<512x128xf32>
    %25 = arith.truncf %24 : vector<512x128xf32> to vector<512x128xbf16>
    %c0_15 = arith.constant 0 : index
    %c0_16 = arith.constant 0 : index
    %26 = vector.load %arg7[%c0_15, %c0_16] : memref<128x256xbf16, #tpu.memory_space<vmem>>, vector<128x256xbf16>
    %cst_17 = arith.constant dense<0.000000e+00> : vector<512x256xf32>
    %27 = tpu.matmul %25, %26, %cst_17 {dimension_numbers = #tpu.dot_dimension_numbers<[1], [0], [0], [1], [0, 0, 1, 1], [], []>} : vector<512x128xbf16>, vector<128x256xbf16>, vector<512x256xf32> -> vector<512x256xf32>
    %c0_18 = arith.constant 0 : index
    %c0_19 = arith.constant 0 : index
    %28 = vector.load %arg8[%c0_18, %c0_19] : memref<1x256xf32, #tpu.memory_space<vmem>>, vector<1x256xf32>
    %29 = vector.broadcast %28 : vector<1x256xf32> to vector<512x256xf32>
    %30 = arith.addf %27, %29 : vector<512x256xf32>
    %31 = vector.extract_strided_slice %30 {offsets = [0, 0], sizes = [512, 128], strides = [1, 1]} : vector<512x256xf32> to vector<512x128xf32>
    %32 = vector.extract_strided_slice %30 {offsets = [0, 128], sizes = [512, 128], strides = [1, 1]} : vector<512x256xf32> to vector<512x128xf32>
    %cst_20 = arith.constant 5.000000e-01 : f32
    %33 = vector.broadcast %cst_20 : f32 to vector<512x128xf32>
    %34 = arith.mulf %33, %32 : vector<512x128xf32>
    %35 = math.exp %34 : vector<512x128xf32>
    %c0_21 = arith.constant 0 : index
    %c0_22 = arith.constant 0 : index
    %36 = vector.load %arg15[%c0_21, %c0_22] : memref<512x128xbf16, #tpu.memory_space<vmem>>, vector<512x128xbf16>
    %37 = arith.extf %36 : vector<512x128xbf16> to vector<512x128xf32>
    %38 = arith.mulf %35, %37 : vector<512x128xf32>
    %39 = arith.addf %31, %38 : vector<512x128xf32>
    %40 = arith.truncf %39 : vector<512x128xf32> to vector<512x128xbf16>
    %c0_23 = arith.constant 0 : index
    %c0_24 = arith.constant 0 : index
    %41 = vector.load %arg9[%c0_23, %c0_24] : memref<128x256xbf16, #tpu.memory_space<vmem>>, vector<128x256xbf16>
    %cst_25 = arith.constant dense<0.000000e+00> : vector<512x256xf32>
    %42 = tpu.matmul %40, %41, %cst_25 {dimension_numbers = #tpu.dot_dimension_numbers<[1], [0], [0], [1], [0, 0, 1, 1], [], []>} : vector<512x128xbf16>, vector<128x256xbf16>, vector<512x256xf32> -> vector<512x256xf32>
    %c0_26 = arith.constant 0 : index
    %c0_27 = arith.constant 0 : index
    %43 = vector.load %arg10[%c0_26, %c0_27] : memref<1x256xf32, #tpu.memory_space<vmem>>, vector<1x256xf32>
    %44 = vector.broadcast %43 : vector<1x256xf32> to vector<512x256xf32>
    %45 = arith.addf %42, %44 : vector<512x256xf32>
    %cst_28 = arith.constant 0.000000e+00 : f32
    %46 = vector.broadcast %cst_28 : f32 to vector<512x256xf32>
    %47 = arith.maximumf %45, %46 : vector<512x256xf32>
    %48 = arith.truncf %47 : vector<512x256xf32> to vector<512x256xbf16>
    %c0_29 = arith.constant 0 : index
    %c0_30 = arith.constant 0 : index
    %49 = vector.load %arg11[%c0_29, %c0_30] : memref<256x512xbf16, #tpu.memory_space<vmem>>, vector<256x512xbf16>
    %cst_31 = arith.constant dense<0.000000e+00> : vector<512x512xf32>
    %50 = tpu.matmul %48, %49, %cst_31 {dimension_numbers = #tpu.dot_dimension_numbers<[1], [0], [0], [1], [0, 0, 1, 1], [], []>} : vector<512x256xbf16>, vector<256x512xbf16>, vector<512x512xf32> -> vector<512x512xf32>
    %c0_32 = arith.constant 0 : index
    %c0_33 = arith.constant 0 : index
    %51 = vector.load %arg12[%c0_32, %c0_33] : memref<1x512xf32, #tpu.memory_space<vmem>>, vector<1x512xf32>
    %52 = vector.broadcast %51 : vector<1x512xf32> to vector<512x512xf32>
    %53 = arith.addf %50, %52 : vector<512x512xf32>
    %cst_34 = arith.constant 0.000000e+00 : f32
    %54 = vector.broadcast %cst_34 : f32 to vector<512x512xf32>
    %55 = arith.maximumf %53, %54 : vector<512x512xf32>
    %56 = arith.truncf %55 : vector<512x512xf32> to vector<512x512xbf16>
    %c0_35 = arith.constant 0 : index
    %c0_36 = arith.constant 0 : index
    %57 = vector.load %arg13[%c0_35, %c0_36] : memref<512x128xbf16, #tpu.memory_space<vmem>>, vector<512x128xbf16>
    %cst_37 = arith.constant dense<0.000000e+00> : vector<512x128xf32>
    %58 = tpu.matmul %56, %57, %cst_37 {dimension_numbers = #tpu.dot_dimension_numbers<[1], [0], [0], [1], [0, 0, 1, 1], [], []>} : vector<512x512xbf16>, vector<512x128xbf16>, vector<512x128xf32> -> vector<512x128xf32>
    %c0_38 = arith.constant 0 : index
    %c0_39 = arith.constant 0 : index
    %59 = vector.load %arg14[%c0_38, %c0_39] : memref<1x128xf32, #tpu.memory_space<vmem>>, vector<1x128xf32>
    %60 = vector.broadcast %59 : vector<1x128xf32> to vector<512x128xf32>
    %61 = arith.addf %58, %60 : vector<512x128xf32>
    %c0_40 = arith.constant 0 : index
    %c0_41 = arith.constant 0 : index
    %62 = vector.load %arg16[%c0_40, %c0_41] : memref<512x128xf32, #tpu.memory_space<vmem>>, vector<512x128xf32>
    tpu.vector_store %arg16[%c0_40, %c0_41], %61 {strides = array<i32>} : memref<512x128xf32, #tpu.memory_space<vmem>>, vector<512x128xf32>,
    return
  }
  func.func @transform_0(%arg0: i32) -> (i32, i32) {
    %c0_i32 = arith.constant 0 : i32
    %c0_i32_0 = arith.constant 0 : i32
    return %arg0, %c0_i32 : i32, i32
  }
  func.func @transform_1(%arg0: i32) -> (i32, i32) {
    %c0_i32 = arith.constant 0 : i32
    %c0_i32_0 = arith.constant 0 : i32
    %c0_i32_1 = arith.constant 0 : i32
    return %c0_i32, %c0_i32_0 : i32, i32
  }
  func.func @transform_2(%arg0: i32) -> (i32, i32) {
    %c0_i32 = arith.constant 0 : i32
    %c0_i32_0 = arith.constant 0 : i32
    %c0_i32_1 = arith.constant 0 : i32
    return %c0_i32, %c0_i32_0 : i32, i32
  }
  func.func @transform_3(%arg0: i32) -> (i32, i32) {
    %c0_i32 = arith.constant 0 : i32
    %c0_i32_0 = arith.constant 0 : i32
    %c0_i32_1 = arith.constant 0 : i32
    return %c0_i32, %c0_i32_0 : i32, i32
  }
  func.func @transform_4(%arg0: i32) -> (i32, i32) {
    %c0_i32 = arith.constant 0 : i32
    %c0_i32_0 = arith.constant 0 : i32
    %c0_i32_1 = arith.constant 0 : i32
    return %c0_i32, %c0_i32_0 : i32, i32
  }
  func.func @transform_5(%arg0: i32) -> (i32, i32) {
    %c0_i32 = arith.constant 0 : i32
    %c0_i32_0 = arith.constant 0 : i32
    %c0_i32_1 = arith.constant 0 : i32
    return %c0_i32, %c0_i32_0 : i32, i32
  }
  func.func @transform_6(%arg0: i32) -> (i32, i32) {
    %c0_i32 = arith.constant 0 : i32
    %c0_i32_0 = arith.constant 0 : i32
    %c0_i32_1 = arith.constant 0 : i32
    return %c0_i32, %c0_i32_0 : i32, i32
  }
  func.func @transform_7(%arg0: i32) -> (i32, i32) {
    %c0_i32 = arith.constant 0 : i32
    %c0_i32_0 = arith.constant 0 : i32
    %c0_i32_1 = arith.constant 0 : i32
    return %c0_i32, %c0_i32_0 : i32, i32
  }
  func.func @transform_8(%arg0: i32) -> (i32, i32) {
    %c0_i32 = arith.constant 0 : i32
    %c0_i32_0 = arith.constant 0 : i32
    %c0_i32_1 = arith.constant 0 : i32
    return %c0_i32, %c0_i32_0 : i32, i32
  }
  func.func @transform_9(%arg0: i32) -> (i32, i32) {
    %c0_i32 = arith.constant 0 : i32
    %c0_i32_0 = arith.constant 0 : i32
    %c0_i32_1 = arith.constant 0 : i32
    return %c0_i32, %c0_i32_0 : i32, i32
  }
  func.func @transform_10(%arg0: i32) -> (i32, i32) {
    %c0_i32 = arith.constant 0 : i32
    %c0_i32_0 = arith.constant 0 : i32
    %c0_i32_1 = arith.constant 0 : i32
    return %c0_i32, %c0_i32_0 : i32, i32
  }
  func.func @transform_11(%arg0: i32) -> (i32, i32) {
    %c0_i32 = arith.constant 0 : i32
    %c0_i32_0 = arith.constant 0 : i32
    %c0_i32_1 = arith.constant 0 : i32
    return %c0_i32, %c0_i32_0 : i32, i32
  }
  func.func @transform_12(%arg0: i32) -> (i32, i32) {
    %c0_i32 = arith.constant 0 : i32
    %c0_i32_0 = arith.constant 0 : i32
    %c0_i32_1 = arith.constant 0 : i32
    return %c0_i32, %c0_i32_0 : i32, i32
  }
  func.func @transform_13(%arg0: i32) -> (i32, i32) {
    %c0_i32 = arith.constant 0 : i32
    %c0_i32_0 = arith.constant 0 : i32
    %c0_i32_1 = arith.constant 0 : i32
    return %c0_i32, %c0_i32_0 : i32, i32
  }
  func.func @transform_14(%arg0: i32) -> (i32, i32) {
    %c0_i32 = arith.constant 0 : i32
    %c0_i32_0 = arith.constant 0 : i32
    return %arg0, %c0_i32 : i32, i32
  }
  func.func @transform_15(%arg0: i32) -> (i32, i32) {
    %c0_i32 = arith.constant 0 : i32
    %c0_i32_0 = arith.constant 0 : i32
    return %arg0, %c0_i32 : i32, i32
  }
}

</mosaic_0001>

<llo_original>
// kernel: vae_forward.1
$region0: #{vae_forward.1}
  #allocation0 [shape = 'u32[]', space=smem, size = 0x4, offset = 0x4, fixed_abs, tag = 'smem constant byte address 0x4 - core index']
  #allocation1 [shape = 'u32[72,128]{1,0:T(1,128)}', space=vmem, size = 0x9000, scoped, tag = 'internal scratch']
  %s0 = inlined_call_operand.vmem [shape: s32[2048,1], index: 0, kind: input, shape index: {}]
  %s1 = inlined_call_operand.vmem [shape: bf16[16,512], index: 1, kind: input, shape index: {}]
  %s2 = inlined_call_operand.vmem [shape: bf16[512,256], index: 2, kind: input, shape index: {}]
  %s3 = inlined_call_operand.vmem [shape: f32[1,256], index: 3, kind: input, shape index: {}]
  %s4 = inlined_call_operand.vmem [shape: bf16[256,128], index: 4, kind: input, shape index: {}]
  %s5 = inlined_call_operand.vmem [shape: f32[1,128], index: 5, kind: input, shape index: {}]
  %s6 = inlined_call_operand.vmem [shape: bf16[128,256], index: 6, kind: input, shape index: {}]
  %s7 = inlined_call_operand.vmem [shape: f32[1,256], index: 7, kind: input, shape index: {}]
  %s8 = inlined_call_operand.vmem [shape: bf16[128,256], index: 8, kind: input, shape index: {}]
  %s9 = inlined_call_operand.vmem [shape: f32[1,256], index: 9, kind: input, shape index: {}]
  %s10 = inlined_call_operand.vmem [shape: bf16[256,512], index: 10, kind: input, shape index: {}]
  %s11 = inlined_call_operand.vmem [shape: f32[1,512], index: 11, kind: input, shape index: {}]
  %s12 = inlined_call_operand.vmem [shape: bf16[512,128], index: 12, kind: input, shape index: {}]
  %s13 = inlined_call_operand.vmem [shape: f32[1,128], index: 13, kind: input, shape index: {}]
  %s14 = inlined_call_operand.vmem [shape: bf16[2048,128], index: 14, kind: input, shape index: {}]
  %s15 = inlined_call_operand.vmem [shape: f32[2048,128], index: 15, kind: output, shape index: {}]
  %s16 = sld [smem:[#allocation0]]
  $region93: #{vae_forward.1} parent=0
    _
  %s18 = ssub.s32 1, %s16
  %s19 = scalar_select 0, %s18, %s16
  loop: start=0, step=1, limit=6
  $region2: #{vae_forward.1} parent=0 // loop_pre_header
    _
  $region3: #{vae_forward.1} parent=0 // loop_header
    %s21 = sphi 0, %s25
    %p22 = scmp.ge.s32.totalorder %s21, 6
    %s31 = sphi 0, %s33
    %s34 = sphi 0, %s31
    %s35 = sphi 0, %s34
    %s51 = sphi 0, %s35
    %s55 = sphi 0, %s55
    %s57 = sphi 0, %s55
    %s58 = sphi 0, %s57
    %s72 = sphi 0, %s58
    %s76 = sphi 0, %s76
    %s78 = sphi 0, %s76
    %s79 = sphi 0, %s78
    %s93 = sphi 0, %s79
    %s97 = sphi 0, %s97
    %s99 = sphi 0, %s97
    %s100 = sphi 0, %s99
    %s114 = sphi 0, %s100
    %s118 = sphi 0, %s118
    %s120 = sphi 0, %s118
    %s121 = sphi 0, %s120
    %s135 = sphi 0, %s121
    %s139 = sphi 0, %s139
    %s141 = sphi 0, %s139
    %s142 = sphi 0, %s141
    %s156 = sphi 0, %s142
    %s160 = sphi 0, %s160
    %s162 = sphi 0, %s160
    %s163 = sphi 0, %s162
    %s177 = sphi 0, %s163
    %s181 = sphi 0, %s181
    %s183 = sphi 0, %s181
    %s184 = sphi 0, %s183
    %s198 = sphi 0, %s184
    %s202 = sphi 0, %s202
    %s204 = sphi 0, %s202
    %s205 = sphi 0, %s204
    %s219 = sphi 0, %s205
    %s223 = sphi 0, %s223
    %s225 = sphi 0, %s223
    %s226 = sphi 0, %s225
    %s240 = sphi 0, %s226
    %s244 = sphi 0, %s244
    %s246 = sphi 0, %s244
    %s247 = sphi 0, %s246
    %s261 = sphi 0, %s247
    %s265 = sphi 0, %s265
    %s267 = sphi 0, %s265
    %s268 = sphi 0, %s267
    %s282 = sphi 0, %s268
    %s286 = sphi 0, %s286
    %s288 = sphi 0, %s286
    %s289 = sphi 0, %s288
    %s303 = sphi 0, %s289
    %s307 = sphi 0, %s307
    %s309 = sphi 0, %s307
    %s310 = sphi 0, %s309
    %s324 = sphi 0, %s310
    %s330 = sphi 0, %s332
    %s333 = sphi 0, %s330
    %s334 = sphi 0, %s333
    %s350 = sphi 0, %s334
    %s356 = sphi 0, %s358
    %s359 = sphi 0, %s356
    %s360 = sphi 0, %s359
    %s376 = sphi 0, %s360
  $region4: #{vae_forward.1} parent=0 // loop_header_branch
    %24 = sbr.rel (%p22) target = $region8
  $region5: #{vae_forward.1} parent=0 // loop_body
    %s26 = ssub.s32 %s21, 1
    %s27 = ssub.s32 %s21, 2
    %s28 = sadd.s32 %s21, 1
    %s29 = ssub.s32 %s21, %s28
    %p30 = scmp.eq.s32.totalorder %s29, 0
    %s32 = sadd.s32 %s31, 1
    %s33 = scalar_select %p30, %s31, %s32
    %p36 = pneg %p30
    %p37 = scmp.eq.s32.totalorder %s21, 3
    %p38 = por %p36, %p37
    %p39 = scmp.ne.s32.totalorder %s31, %s34
    %p40 = scmp.eq.s32.totalorder %s21, 0
    %p41 = por %p39, %p40
    %p42 = scmp.ne.s32.totalorder %s31, %s34
    %p43 = scmp.eq.s32.totalorder %s26, 3
    %p44 = por %p42, %p43
    %p45 = scmp.ne.s32.totalorder %s34, %s35
    %p46 = scmp.eq.s32.totalorder %s26, 0
    %p47 = por %p45, %p46
    %p48 = scmp.ne.s32.totalorder %s34, %s35
    %p49 = scmp.eq.s32.totalorder %s27, 3
    %p50 = por %p48, %p49
    %p52 = scmp.ne.s32.totalorder %s35, %s51
    %p53 = scmp.eq.s32.totalorder %s27, 0
    %p54 = por %p52, %p53
    %s56 = sadd.s32 %s55, 1
    %p59 = scmp.eq.s32.totalorder %s21, 3
    %p60 = scmp.ne.s32.totalorder %s55, %s57
    %p61 = scmp.eq.s32.totalorder %s21, 0
    %p62 = por %p60, %p61
    %p63 = scmp.ne.s32.totalorder %s55, %s57
    %p64 = scmp.eq.s32.totalorder %s26, 3
    %p65 = por %p63, %p64
    %p66 = scmp.ne.s32.totalorder %s57, %s58
    %p67 = scmp.eq.s32.totalorder %s26, 0
    %p68 = por %p66, %p67
    %p69 = scmp.ne.s32.totalorder %s57, %s58
    %p70 = scmp.eq.s32.totalorder %s27, 3
    %p71 = por %p69, %p70
    %p73 = scmp.ne.s32.totalorder %s58, %s72
    %p74 = scmp.eq.s32.totalorder %s27, 0
    %p75 = por %p73, %p74
    %s77 = sadd.s32 %s76, 1
    %p80 = scmp.eq.s32.totalorder %s21, 3
    %p81 = scmp.ne.s32.totalorder %s76, %s78
    %p82 = scmp.eq.s32.totalorder %s21, 0
    %p83 = por %p81, %p82
    %p84 = scmp.ne.s32.totalorder %s76, %s78
    %p85 = scmp.eq.s32.totalorder %s26, 3
    %p86 = por %p84, %p85
    %p87 = scmp.ne.s32.totalorder %s78, %s79
    %p88 = scmp.eq.s32.totalorder %s26, 0
    %p89 = por %p87, %p88
    %p90 = scmp.ne.s32.totalorder %s78, %s79
    %p91 = scmp.eq.s32.totalorder %s27, 3
    %p92 = por %p90, %p91
    %p94 = scmp.ne.s32.totalorder %s79, %s93
    %p95 = scmp.eq.s32.totalorder %s27, 0
    %p96 = por %p94, %p95
    %s98 = sadd.s32 %s97, 1
    %p101 = scmp.eq.s32.totalorder %s21, 3
    %p102 = scmp.ne.s32.totalorder %s97, %s99
    %p103 = scmp.eq.s32.totalorder %s21, 0
    %p104 = por %p102, %p103
    %p105 = scmp.ne.s32.totalorder %s97, %s99
    %p106 = scmp.eq.s32.totalorder %s26, 3
    %p107 = por %p105, %p106
    %p108 = scmp.ne.s32.totalorder %s99, %s100
    %p109 = scmp.eq.s32.totalorder %s26, 0
    %p110 = por %p108, %p109
    %p111 = scmp.ne.s32.totalorder %s99, %s100
    %p112 = scmp.eq.s32.totalorder %s27, 3
    %p113 = por %p111, %p112
    %p115 = scmp.ne.s32.totalorder %s100, %s114
    %p116 = scmp.eq.s32.totalorder %s27, 0
    %p117 = por %p115, %p116
    %s119 = sadd.s32 %s118, 1
    %p122 = scmp.eq.s32.totalorder %s21, 3
    %p123 = scmp.ne.s32.totalorder %s118, %s120
    %p124 = scmp.eq.s32.totalorder %s21, 0
    %p125 = por %p123, %p124
    %p126 = scmp.ne.s32.totalorder %s118, %s120
    %p127 = scmp.eq.s32.totalorder %s26, 3
    %p128 = por %p126, %p127
    %p129 = scmp.ne.s32.totalorder %s120, %s121
    %p130 = scmp.eq.s32.totalorder %s26, 0
    %p131 = por %p129, %p130
    %p132 = scmp.ne.s32.totalorder %s120, %s121
    %p133 = scmp.eq.s32.totalorder %s27, 3
    %p134 = por %p132, %p133
    %p136 = scmp.ne.s32.totalorder %s121, %s135
    %p137 = scmp.eq.s32.totalorder %s27, 0
    %p138 = por %p136, %p137
    %s140 = sadd.s32 %s139, 1
    %p143 = scmp.eq.s32.totalorder %s21, 3
    %p144 = scmp.ne.s32.totalorder %s139, %s141
    %p145 = scmp.eq.s32.totalorder %s21, 0
    %p146 = por %p144, %p145
    %p147 = scmp.ne.s32.totalorder %s139, %s141
    %p148 = scmp.eq.s32.totalorder %s26, 3
    %p149 = por %p147, %p148
    %p150 = scmp.ne.s32.totalorder %s141, %s142
    %p151 = scmp.eq.s32.totalorder %s26, 0
    %p152 = por %p150, %p151
    %p153 = scmp.ne.s32.totalorder %s141, %s142
    %p154 = scmp.eq.s32.totalorder %s27, 3
    %p155 = por %p153, %p154
    %p157 = scmp.ne.s32.totalorder %s142, %s156
    %p158 = scmp.eq.s32.totalorder %s27, 0
    %p159 = por %p157, %p158
    %s161 = sadd.s32 %s160, 1
    %p164 = scmp.eq.s32.totalorder %s21, 3
    %p165 = scmp.ne.s32.totalorder %s160, %s162
    %p166 = scmp.eq.s32.totalorder %s21, 0
    %p167 = por %p165, %p166
    %p168 = scmp.ne.s32.totalorder %s160, %s162
    %p169 = scmp.eq.s32.totalorder %s26, 3
    %p170 = por %p168, %p169
    %p171 = scmp.ne.s32.totalorder %s162, %s163
    %p172 = scmp.eq.s32.totalorder %s26, 0
    %p173 = por %p171, %p172
    %p174 = scmp.ne.s32.totalorder %s162, %s163
    %p175 = scmp.eq.s32.totalorder %s27, 3
    %p176 = por %p174, %p175
    %p178 = scmp.ne.s32.totalorder %s163, %s177
    %p179 = scmp.eq.s32.totalorder %s27, 0
    %p180 = por %p178, %p179
    %s182 = sadd.s32 %s181, 1
    %p185 = scmp.eq.s32.totalorder %s21, 3
    %p186 = scmp.ne.s32.totalorder %s181, %s183
    %p187 = scmp.eq.s32.totalorder %s21, 0
    %p188 = por %p186, %p187
    %p189 = scmp.ne.s32.totalorder %s181, %s183
    %p190 = scmp.eq.s32.totalorder %s26, 3
    %p191 = por %p189, %p190
    %p192 = scmp.ne.s32.totalorder %s183, %s184
    %p193 = scmp.eq.s32.totalorder %s26, 0
    %p194 = por %p192, %p193
    %p195 = scmp.ne.s32.totalorder %s183, %s184
    %p196 = scmp.eq.s32.totalorder %s27, 3
    %p197 = por %p195, %p196
    %p199 = scmp.ne.s32.totalorder %s184, %s198
    %p200 = scmp.eq.s32.totalorder %s27, 0
    %p201 = por %p199, %p200
    %s203 = sadd.s32 %s202, 1
    %p206 = scmp.eq.s32.totalorder %s21, 3
    %p207 = scmp.ne.s32.totalorder %s202, %s204
    %p208 = scmp.eq.s32.totalorder %s21, 0
    %p209 = por %p207, %p208
    %p210 = scmp.ne.s32.totalorder %s202, %s204
    %p211 = scmp.eq.s32.totalorder %s26, 3
    %p212 = por %p210, %p211
    %p213 = scmp.ne.s32.totalorder %s204, %s205
    %p214 = scmp.eq.s32.totalorder %s26, 0
    %p215 = por %p213, %p214
    %p216 = scmp.ne.s32.totalorder %s204, %s205
    %p217 = scmp.eq.s32.totalorder %s27, 3
    %p218 = por %p216, %p217
    %p220 = scmp.ne.s32.totalorder %s205, %s219
    %p221 = scmp.eq.s32.totalorder %s27, 0
    %p222 = por %p220, %p221
    %s224 = sadd.s32 %s223, 1
    %p227 = scmp.eq.s32.totalorder %s21, 3
    %p228 = scmp.ne.s32.totalorder %s223, %s225
    %p229 = scmp.eq.s32.totalorder %s21, 0
    %p230 = por %p228, %p229
    %p231 = scmp.ne.s32.totalorder %s223, %s225
    %p232 = scmp.eq.s32.totalorder %s26, 3
    %p233 = por %p231, %p232
    %p234 = scmp.ne.s32.totalorder %s225, %s226
    %p235 = scmp.eq.s32.totalorder %s26, 0
    %p236 = por %p234, %p235
    %p237 = scmp.ne.s32.totalorder %s225, %s226
    %p238 = scmp.eq.s32.totalorder %s27, 3
    %p239 = por %p237, %p238
    %p241 = scmp.ne.s32.totalorder %s226, %s240
    %p242 = scmp.eq.s32.totalorder %s27, 0
    %p243 = por %p241, %p242
    %s245 = sadd.s32 %s244, 1
    %p248 = scmp.eq.s32.totalorder %s21, 3
    %p249 = scmp.ne.s32.totalorder %s244, %s246
    %p250 = scmp.eq.s32.totalorder %s21, 0
    %p251 = por %p249, %p250
    %p252 = scmp.ne.s32.totalorder %s244, %s246
    %p253 = scmp.eq.s32.totalorder %s26, 3
    %p254 = por %p252, %p253
    %p255 = scmp.ne.s32.totalorder %s246, %s247
    %p256 = scmp.eq.s32.totalorder %s26, 0
    %p257 = por %p255, %p256
    %p258 = scmp.ne.s32.totalorder %s246, %s247
    %p259 = scmp.eq.s32.totalorder %s27, 3
    %p260 = por %p258, %p259
    %p262 = scmp.ne.s32.totalorder %s247, %s261
    %p263 = scmp.eq.s32.totalorder %s27, 0
    %p264 = por %p262, %p263
    %s266 = sadd.s32 %s265, 1
    %p269 = scmp.eq.s32.totalorder %s21, 3
    %p270 = scmp.ne.s32.totalorder %s265, %s267
    %p271 = scmp.eq.s32.totalorder %s21, 0
    %p272 = por %p270, %p271
    %p273 = scmp.ne.s32.totalorder %s265, %s267
    %p274 = scmp.eq.s32.totalorder %s26, 3
    %p275 = por %p273, %p274
    %p276 = scmp.ne.s32.totalorder %s267, %s268
    %p277 = scmp.eq.s32.totalorder %s26, 0
    %p278 = por %p276, %p277
    %p279 = scmp.ne.s32.totalorder %s267, %s268
    %p280 = scmp.eq.s32.totalorder %s27, 3
    %p281 = por %p279, %p280
    %p283 = scmp.ne.s32.totalorder %s268, %s282
    %p284 = scmp.eq.s32.totalorder %s27, 0
    %p285 = por %p283, %p284
    %s287 = sadd.s32 %s286, 1
    %p290 = scmp.eq.s32.totalorder %s21, 3
    %p291 = scmp.ne.s32.totalorder %s286, %s288
    %p292 = scmp.eq.s32.totalorder %s21, 0
    %p293 = por %p291, %p292
    %p294 = scmp.ne.s32.totalorder %s286, %s288
    %p295 = scmp.eq.s32.totalorder %s26, 3
    %p296 = por %p294, %p295
    %p297 = scmp.ne.s32.totalorder %s288, %s289
    %p298 = scmp.eq.s32.totalorder %s26, 0
    %p299 = por %p297, %p298
    %p300 = scmp.ne.s32.totalorder %s288, %s289
    %p301 = scmp.eq.s32.totalorder %s27, 3
    %p302 = por %p300, %p301
    %p304 = scmp.ne.s32.totalorder %s289, %s303
    %p305 = scmp.eq.s32.totalorder %s27, 0
    %p306 = por %p304, %p305
    %s308 = sadd.s32 %s307, 1
    %p311 = scmp.eq.s32.totalorder %s21, 3
    %p312 = scmp.ne.s32.totalorder %s307, %s309
    %p313 = scmp.eq.s32.totalorder %s21, 0
    %p314 = por %p312, %p313
    %p315 = scmp.ne.s32.totalorder %s307, %s309
    %p316 = scmp.eq.s32.totalorder %s26, 3
    %p317 = por %p315, %p316
    %p318 = scmp.ne.s32.totalorder %s309, %s310
    %p319 = scmp.eq.s32.totalorder %s26, 0
    %p320 = por %p318, %p319
    %p321 = scmp.ne.s32.totalorder %s309, %s310
    %p322 = scmp.eq.s32.totalorder %s27, 3
    %p323 = por %p321, %p322
    %p325 = scmp.ne.s32.totalorder %s310, %s324
    %p326 = scmp.eq.s32.totalorder %s27, 0
    %p327 = por %p325, %p326
    %s328 = ssub.s32 %s21, %s28
    %p329 = scmp.eq.s32.totalorder %s328, 0
    %s331 = sadd.s32 %s330, 1
    %s332 = scalar_select %p329, %s330, %s331
    %p335 = pneg %p329
    %p336 = scmp.eq.s32.totalorder %s21, 3
    %p337 = por %p335, %p336
    %p338 = scmp.ne.s32.totalorder %s330, %s333
    %p339 = scmp.eq.s32.totalorder %s21, 0
    %p340 = por %p338, %p339
    %p341 = scmp.ne.s32.totalorder %s330, %s333
    %p342 = scmp.eq.s32.totalorder %s26, 3
    %p343 = por %p341, %p342
    %p344 = scmp.ne.s32.totalorder %s333, %s334
    %p345 = scmp.eq.s32.totalorder %s26, 0
    %p346 = por %p344, %p345
    %p347 = scmp.ne.s32.totalorder %s333, %s334
    %p348 = scmp.eq.s32.totalorder %s27, 3
    %p349 = por %p347, %p348
    %p351 = scmp.ne.s32.totalorder %s334, %s350
    %p352 = scmp.eq.s32.totalorder %s27, 0
    %p353 = por %p351, %p352
    %s354 = ssub.s32 %s21, %s28
    %p355 = scmp.eq.s32.totalorder %s354, 0
    %s357 = sadd.s32 %s356, 1
    %s358 = scalar_select %p355, %s356, %s357
    %p361 = pneg %p355
    %p362 = scmp.eq.s32.totalorder %s21, 3
    %p363 = por %p361, %p362
    %p364 = scmp.ne.s32.totalorder %s356, %s359
    %p365 = scmp.eq.s32.totalorder %s21, 0
    %p366 = por %p364, %p365
    %p367 = scmp.ne.s32.totalorder %s356, %s359
    %p368 = scmp.eq.s32.totalorder %s26, 3
    %p369 = por %p367, %p368
    %p370 = scmp.ne.s32.totalorder %s359, %s360
    %p371 = scmp.eq.s32.totalorder %s26, 0
    %p372 = por %p370, %p371
    %p373 = scmp.ne.s32.totalorder %s359, %s360
    %p374 = scmp.eq.s32.totalorder %s27, 3
    %p375 = por %p373, %p374
    %p377 = scmp.ne.s32.totalorder %s360, %s376
    %p378 = scmp.eq.s32.totalorder %s27, 0
    %p379 = por %p377, %p378
    %p380 = scmp.le.s32.totalorder 1, %s21
    %p381 = scmp.lt.s32.totalorder %s21, 5
    %p382 = pnand %p380, %p381
    %p383 = pneg %p382
    // Predicated region
    $region9: #{vae_forward.1} parent=5 // pred_check
      _
    $region10: #{vae_forward.1} parent=5 // pred_check_branch
      %385 = sbr.rel (%p382) target = $region12
    $region11: #{vae_forward.1} parent=5 // pred_region
      %s386 = ssub.s32 %s21, 1
      // Predicated region
      $region13: #{vae_forward.1} parent=11 // pred_check
        %p387 = pneg %p68
      $region14: #{vae_forward.1} parent=11 // pred_check_branch
        %389 = sbr.rel (%p387) target = $region16
      $region15: #{vae_forward.1} parent=11 // pred_region
        _
      $region16: #{vae_forward.1} parent=11 // pred_fallthru
        _
      // Predicated region
      $region17: #{vae_forward.1} parent=11 // pred_check
        %p390 = pneg %p89
      $region18: #{vae_forward.1} parent=11 // pred_check_branch
        %392 = sbr.rel (%p390) target = $region20
      $region19: #{vae_forward.1} parent=11 // pred_region
        _
      $region20: #{vae_forward.1} parent=11 // pred_fallthru
        _
      // Predicated region
      $region21: #{vae_forward.1} parent=11 // pred_check
        %p393 = pneg %p110
      $region22: #{vae_forward.1} parent=11 // pred_check_branch
        %395 = sbr.rel (%p393) target = $region24
      $region23: #{vae_forward.1} parent=11 // pred_region
        _
      $region24: #{vae_forward.1} parent=11 // pred_fallthru
        _
      // Predicated region
      $region25: #{vae_forward.1} parent=11 // pred_check
        %p396 = pneg %p131
      $region26: #{vae_forward.1} parent=11 // pred_check_branch
        %398 = sbr.rel (%p396) target = $region28
      $region27: #{vae_forward.1} parent=11 // pred_region
        _
      $region28: #{vae_forward.1} parent=11 // pred_fallthru
        _
      // Predicated region
      $region29: #{vae_forward.1} parent=11 // pred_check
        %p399 = pneg %p152
      $region30: #{vae_forward.1} parent=11 // pred_check_branch
        %401 = sbr.rel (%p399) target = $region32
      $region31: #{vae_forward.1} parent=11 // pred_region
        _
      $region32: #{vae_forward.1} parent=11 // pred_fallthru
        _
      // Predicated region
      $region33: #{vae_forward.1} parent=11 // pred_check
        %p402 = pneg %p173
      $region34: #{vae_forward.1} parent=11 // pred_check_branch
        %404 = sbr.rel (%p402) target = $region36
      $region35: #{vae_forward.1} parent=11 // pred_region
        _
      $region36: #{vae_forward.1} parent=11 // pred_fallthru
        _
      // Predicated region
      $region37: #{vae_forward.1} parent=11 // pred_check
        %p405 = pneg %p194
      $region38: #{vae_forward.1} parent=11 // pred_check_branch
        %407 = sbr.rel (%p405) target = $region40
      $region39: #{vae_forward.1} parent=11 // pred_region
        _
      $region40: #{vae_forward.1} parent=11 // pred_fallthru
        _
      // Predicated region
      $region41: #{vae_forward.1} parent=11 // pred_check
        %p408 = pneg %p215
      $region42: #{vae_forward.1} parent=11 // pred_check_branch
        %410 = sbr.rel (%p408) target = $region44
      $region43: #{vae_forward.1} parent=11 // pred_region
        _
      $region44: #{vae_forward.1} parent=11 // pred_fallthru
        _
      // Predicated region
      $region45: #{vae_forward.1} parent=11 // pred_check
        %p411 = pneg %p236
      $region46: #{vae_forward.1} parent=11 // pred_check_branch
        %413 = sbr.rel (%p411) target = $region48
      $region47: #{vae_forward.1} parent=11 // pred_region
        _
      $region48: #{vae_forward.1} parent=11 // pred_fallthru
        _
      // Predicated region
      $region49: #{vae_forward.1} parent=11 // pred_check
        %p414 = pneg %p257
      $region50: #{vae_forward.1} parent=11 // pred_check_branch
        %416 = sbr.rel (%p414) target = $region52
      $region51: #{vae_forward.1} parent=11 // pred_region
        _
      $region52: #{vae_forward.1} parent=11 // pred_fallthru
        _
      // Predicated region
      $region53: #{vae_forward.1} parent=11 // pred_check
        %p417 = pneg %p278
      $region54: #{vae_forward.1} parent=11 // pred_check_branch
        %419 = sbr.rel (%p417) target = $region56
      $region55: #{vae_forward.1} parent=11 // pred_region
        _
      $region56: #{vae_forward.1} parent=11 // pred_fallthru
        _
      // Predicated region
      $region57: #{vae_forward.1} parent=11 // pred_check
        %p420 = pneg %p299
      $region58: #{vae_forward.1} parent=11 // pred_check_branch
        %422 = sbr.rel (%p420) target = $region60
      $region59: #{vae_forward.1} parent=11 // pred_region
        _
      $region60: #{vae_forward.1} parent=11 // pred_fallthru
        _
      // Predicated region
      $region61: #{vae_forward.1} parent=11 // pred_check
        %p423 = pneg %p320
      $region62: #{vae_forward.1} parent=11 // pred_check_branch
        %425 = sbr.rel (%p423) target = $region64
      $region63: #{vae_forward.1} parent=11 // pred_region
        _
      $region64: #{vae_forward.1} parent=11 // pred_fallthru
        _
    $region12: #{vae_forward.1} parent=5 // pred_fallthru
      _
    %p426 = scmp.lt.s32.totalorder %s21, 4
    // Predicated region
    $region65: #{vae_forward.1} parent=5 // pred_check
      %p427 = pneg %p426
    $region66: #{vae_forward.1} parent=5 // pred_check_branch
      %429 = sbr.rel (%p427) target = $region68
    $region67: #{vae_forward.1} parent=5 // pred_region
      // Predicated region
      $region69: #{vae_forward.1} parent=67 // pred_check
        %p430 = pneg %p41
      $region70: #{vae_forward.1} parent=67 // pred_check_branch
        %432 = sbr.rel (%p430) target = $region72
      $region71: #{vae_forward.1} parent=67 // pred_region
        %s433 = smul.u32 64, %s21
        %p434 = scmp.lt.s32.totalorder %s433, 255
        %s435 = scalar_select %p434, %s433, 255
        %s436 = smul.addr %s435, 8
        %s437 = scalar_lea.vmem %s0, %s436
        %s438 = smul.u32 64, %s21
      $region72: #{vae_forward.1} parent=67 // pred_fallthru
        _
      // Predicated region
      $region73: #{vae_forward.1} parent=67 // pred_check
        %p439 = pneg %p340
      $region74: #{vae_forward.1} parent=67 // pred_check_branch
        %441 = sbr.rel (%p439) target = $region76
      $region75: #{vae_forward.1} parent=67 // pred_region
        %s442 = smul.u32 64, %s21
        %p443 = scmp.lt.s32.totalorder %s442, 255
        %s444 = scalar_select %p443, %s442, 255
        %s445 = smul.addr %s444, 4
        %s446 = scalar_lea.vmem %s14, %s445
        %s447 = smul.u32 64, %s21
      $region76: #{vae_forward.1} parent=67 // pred_fallthru
        _
    $region68: #{vae_forward.1} parent=5 // pred_fallthru
      _
    %p448 = scmp.le.s32.totalorder 1, %s21
    %p449 = scmp.lt.s32.totalorder %s21, 5
    %p450 = pnand %p448, %p449
    %p451 = pneg %p450
    // Predicated region
    $region77: #{vae_forward.1} parent=5 // pred_check
      _
    $region78: #{vae_forward.1} parent=5 // pred_check_branch
      %453 = sbr.rel (%p450) target = $region80
    $region79: #{vae_forward.1} parent=5 // pred_region
      %s454 = ssub.s32 %s21, 1
      %s455 = smul.u32 64, %s26
      %p456 = scmp.lt.s32.totalorder %s455, 255
      %s457 = scalar_select %p456, %s455, 255
      %s458 = smul.addr %s457, 8
      %s459 = scalar_lea.vmem %s0, %s458
      %p460 = pneg %p47
      %p461 = pneg %p44
      %p462 = pneg %p68
      %p463 = pneg %p65
      %p464 = pneg %p89
      %p465 = pneg %p86
      %p466 = pneg %p110
      %p467 = pneg %p107
      %p468 = pneg %p131
      %p469 = pneg %p128
      %p470 = pneg %p152
      %p471 = pneg %p149
      %p472 = pneg %p173
      %p473 = pneg %p170
      %p474 = pneg %p194
      %p475 = pneg %p191
      %p476 = pneg %p215
      %p477 = pneg %p212
      %p478 = pneg %p236
      %p479 = pneg %p233
      %p480 = pneg %p257
      %p481 = pneg %p254
      %p482 = pneg %p278
      %p483 = pneg %p275
      %p484 = pneg %p299
      %p485 = pneg %p296
      %p486 = pneg %p320
      %p487 = pneg %p317
      %s488 = smul.u32 64, %s26
      %p489 = scmp.lt.s32.totalorder %s488, 255
      %s490 = scalar_select %p489, %s488, 255
      %s491 = smul.addr %s490, 4
      %s492 = scalar_lea.vmem %s14, %s491
      %p493 = pneg %p346
      %p494 = pneg %p343
      %p495 = pneg %p372
      %p496 = pneg %p369
      %s497 = smul.u32 64, %s26
      %p498 = scmp.lt.s32.totalorder %s497, 255
      %s499 = scalar_select %p498, %s497, 255
      %s500 = smul.addr %s499, 8
      %s501 = scalar_lea.vmem %s15, %s500
      %s502 = smul.u32 64, %s26
      %p503 = scmp.lt.s32.totalorder %s502, 255
      %s504 = scalar_select %p503, %s502, 255
      %s505 = smul.addr %s504, 8
      %s506 = scalar_lea.vmem %s0, %s505
      %s507 = smul.u32 64, %s26
      %s508 = smul.u32 64, %s26
      %p509 = scmp.lt.s32.totalorder %s508, 255
      %s510 = scalar_select %p509, %s508, 255
      %s511 = smul.addr %s510, 4
      %s512 = scalar_lea.vmem %s14, %s511
      %s513 = smul.u32 64, %s26
      %s514 = smul.u32 64, %s26
      %p515 = scmp.lt.s32.totalorder %s514, 255
      %s516 = scalar_select %p515, %s514, 255
      %s517 = smul.addr %s516, 8
      %s518 = scalar_lea.vmem %s15, %s517
      %s519 = smul.u32 64, %s26
      %v521 = vld [vmem:[%s506] sm:$0xff]
      %v522 = vld [vmem:[%s506 + $0x8] sm:$0xff]
      %v523 = vld [vmem:[%s506 + $0x10] sm:$0xff]
      %v524 = vld [vmem:[%s506 + $0x18] sm:$0xff]
      %v525 = vld [vmem:[%s506 + $0x20] sm:$0xff]
      %v526 = vld [vmem:[%s506 + $0x28] sm:$0xff]
      %v527 = vld [vmem:[%s506 + $0x30] sm:$0xff]
      %v528 = vld [vmem:[%s506 + $0x38] sm:$0xff]
      %v529 = vld [vmem:[%s506 + $0x40] sm:$0xff]
      %v530 = vld [vmem:[%s506 + $0x48] sm:$0xff]
      %v531 = vld [vmem:[%s506 + $0x50] sm:$0xff]
      %v532 = vld [vmem:[%s506 + $0x58] sm:$0xff]
      %v533 = vld [vmem:[%s506 + $0x60] sm:$0xff]
      %v534 = vld [vmem:[%s506 + $0x68] sm:$0xff]
      %v535 = vld [vmem:[%s506 + $0x70] sm:$0xff]
      %v536 = vld [vmem:[%s506 + $0x78] sm:$0xff]
      %v537 = vld [vmem:[%s506 + $0x80] sm:$0xff]
      %v538 = vld [vmem:[%s506 + $0x88] sm:$0xff]
      %v539 = vld [vmem:[%s506 + $0x90] sm:$0xff]
      %v540 = vld [vmem:[%s506 + $0x98] sm:$0xff]
      %v541 = vld [vmem:[%s506 + $0xa0] sm:$0xff]
      %v542 = vld [vmem:[%s506 + $0xa8] sm:$0xff]
      %v543 = vld [vmem:[%s506 + $0xb0] sm:$0xff]
      %v544 = vld [vmem:[%s506 + $0xb8] sm:$0xff]
      %v545 = vld [vmem:[%s506 + $0xc0] sm:$0xff]
      %v546 = vld [vmem:[%s506 + $0xc8] sm:$0xff]
      %v547 = vld [vmem:[%s506 + $0xd0] sm:$0xff]
      %v548 = vld [vmem:[%s506 + $0xd8] sm:$0xff]
      %v549 = vld [vmem:[%s506 + $0xe0] sm:$0xff]
      %v550 = vld [vmem:[%s506 + $0xe8] sm:$0xff]
      %v551 = vld [vmem:[%s506 + $0xf0] sm:$0xff]
      %v552 = vld [vmem:[%s506 + $0xf8] sm:$0xff]
      %v553 = vld [vmem:[%s506 + $0x100] sm:$0xff]
      %v554 = vld [vmem:[%s506 + $0x108] sm:$0xff]
      %v555 = vld [vmem:[%s506 + $0x110] sm:$0xff]
      %v556 = vld [vmem:[%s506 + $0x118] sm:$0xff]
      %v557 = vld [vmem:[%s506 + $0x120] sm:$0xff]
      %v558 = vld [vmem:[%s506 + $0x128] sm:$0xff]
      %v559 = vld [vmem:[%s506 + $0x130] sm:$0xff]
      %v560 = vld [vmem:[%s506 + $0x138] sm:$0xff]
      %v561 = vld [vmem:[%s506 + $0x140] sm:$0xff]
      %v562 = vld [vmem:[%s506 + $0x148] sm:$0xff]
      %v563 = vld [vmem:[%s506 + $0x150] sm:$0xff]
      %v564 = vld [vmem:[%s506 + $0x158] sm:$0xff]
      %v565 = vld [vmem:[%s506 + $0x160] sm:$0xff]
      %v566 = vld [vmem:[%s506 + $0x168] sm:$0xff]
      %v567 = vld [vmem:[%s506 + $0x170] sm:$0xff]
      %v568 = vld [vmem:[%s506 + $0x178] sm:$0xff]
      %v569 = vld [vmem:[%s506 + $0x180] sm:$0xff]
      %v570 = vld [vmem:[%s506 + $0x188] sm:$0xff]
      %v571 = vld [vmem:[%s506 + $0x190] sm:$0xff]
      %v572 = vld [vmem:[%s506 + $0x198] sm:$0xff]
      %v573 = vld [vmem:[%s506 + $0x1a0] sm:$0xff]
      %v574 = vld [vmem:[%s506 + $0x1a8] sm:$0xff]
      %v575 = vld [vmem:[%s506 + $0x1b0] sm:$0xff]
      %v576 = vld [vmem:[%s506 + $0x1b8] sm:$0xff]
      %v577 = vld [vmem:[%s506 + $0x1c0] sm:$0xff]
      %v578 = vld [vmem:[%s506 + $0x1c8] sm:$0xff]
      %v579 = vld [vmem:[%s506 + $0x1d0] sm:$0xff]
      %v580 = vld [vmem:[%s506 + $0x1d8] sm:$0xff]
      %v581 = vld [vmem:[%s506 + $0x1e0] sm:$0xff]
      %v582 = vld [vmem:[%s506 + $0x1e8] sm:$0xff]
      %v583 = vld [vmem:[%s506 + $0x1f0] sm:$0xff]
      %v584 = vld [vmem:[%s506 + $0x1f8] sm:$0xff]
      %v585 = vlaneseq
      %v586 = vand.u32 %v585, 127
      %587 = vset.pattern.permute.xlu0 0
      %588 = vperm.xlu0 %587, %v521
      %v589 = vpop.permute.xlu0 %588
      %590 = vset.pattern.permute.xlu0 0
      %591 = vperm.xlu0 %590, %v522
      %v592 = vpop.permute.xlu0 %591
      %593 = vset.pattern.permute.xlu0 0
      %594 = vperm.xlu0 %593, %v523
      %v595 = vpop.permute.xlu0 %594
      %596 = vset.pattern.permute.xlu0 0
      %597 = vperm.xlu0 %596, %v524
      %v598 = vpop.permute.xlu0 %597
      %599 = vset.pattern.permute.xlu0 0
      %600 = vperm.xlu0 %599, %v525
      %v601 = vpop.permute.xlu0 %600
      %602 = vset.pattern.permute.xlu0 0
      %603 = vperm.xlu0 %602, %v526
      %v604 = vpop.permute.xlu0 %603
      %605 = vset.pattern.permute.xlu0 0
      %606 = vperm.xlu0 %605, %v527
      %v607 = vpop.permute.xlu0 %606
      %608 = vset.pattern.permute.xlu0 0
      %609 = vperm.xlu0 %608, %v528
      %v610 = vpop.permute.xlu0 %609
      %611 = vset.pattern.permute.xlu0 0
      %612 = vperm.xlu0 %611, %v529
      %v613 = vpop.permute.xlu0 %612
      %614 = vset.pattern.permute.xlu0 0
      %615 = vperm.xlu0 %614, %v530
      %v616 = vpop.permute.xlu0 %615
      %617 = vset.pattern.permute.xlu0 0
      %618 = vperm.xlu0 %617, %v531
      %v619 = vpop.permute.xlu0 %618
      %620 = vset.pattern.permute.xlu0 0
      %621 = vperm.xlu0 %620, %v532
      %v622 = vpop.permute.xlu0 %621
      %623 = vset.pattern.permute.xlu0 0
      %624 = vperm.xlu0 %623, %v533
      %v625 = vpop.permute.xlu0 %624
      %626 = vset.pattern.permute.xlu0 0
      %627 = vperm.xlu0 %626, %v534
      %v628 = vpop.permute.xlu0 %627
      %629 = vset.pattern.permute.xlu0 0
      %630 = vperm.xlu0 %629, %v535
      %v631 = vpop.permute.xlu0 %630
      %632 = vset.pattern.permute.xlu0 0
      %633 = vperm.xlu0 %632, %v536
      %v634 = vpop.permute.xlu0 %633
      %635 = vset.pattern.permute.xlu0 0
      %636 = vperm.xlu0 %635, %v537
      %v637 = vpop.permute.xlu0 %636
      %638 = vset.pattern.permute.xlu0 0
      %639 = vperm.xlu0 %638, %v538
      %v640 = vpop.permute.xlu0 %639
      %641 = vset.pattern.permute.xlu0 0
      %642 = vperm.xlu0 %641, %v539
      %v643 = vpop.permute.xlu0 %642
      %644 = vset.pattern.permute.xlu0 0
      %645 = vperm.xlu0 %644, %v540
      %v646 = vpop.permute.xlu0 %645
      %647 = vset.pattern.permute.xlu0 0
      %648 = vperm.xlu0 %647, %v541
      %v649 = vpop.permute.xlu0 %648
      %650 = vset.pattern.permute.xlu0 0
      %651 = vperm.xlu0 %650, %v542
      %v652 = vpop.permute.xlu0 %651
      %653 = vset.pattern.permute.xlu0 0
      %654 = vperm.xlu0 %653, %v543
      %v655 = vpop.permute.xlu0 %654
      %656 = vset.pattern.permute.xlu0 0
      %657 = vperm.xlu0 %656, %v544
      %v658 = vpop.permute.xlu0 %657
      %659 = vset.pattern.permute.xlu0 0
      %660 = vperm.xlu0 %659, %v545
      %v661 = vpop.permute.xlu0 %660
      %662 = vset.pattern.permute.xlu0 0
      %663 = vperm.xlu0 %662, %v546
      %v664 = vpop.permute.xlu0 %663
      %665 = vset.pattern.permute.xlu0 0
      %666 = vperm.xlu0 %665, %v547
      %v667 = vpop.permute.xlu0 %666
      %668 = vset.pattern.permute.xlu0 0
      %669 = vperm.xlu0 %668, %v548
      %v670 = vpop.permute.xlu0 %669
      %671 = vset.pattern.permute.xlu0 0
      %672 = vperm.xlu0 %671, %v549
      %v673 = vpop.permute.xlu0 %672
      %674 = vset.pattern.permute.xlu0 0
      %675 = vperm.xlu0 %674, %v550
      %v676 = vpop.permute.xlu0 %675
      %677 = vset.pattern.permute.xlu0 0
      %678 = vperm.xlu0 %677, %v551
      %v679 = vpop.permute.xlu0 %678
      %680 = vset.pattern.permute.xlu0 0
      %681 = vperm.xlu0 %680, %v552
      %v682 = vpop.permute.xlu0 %681
      %683 = vset.pattern.permute.xlu0 0
      %684 = vperm.xlu0 %683, %v553
      %v685 = vpop.permute.xlu0 %684
      %686 = vset.pattern.permute.xlu0 0
      %687 = vperm.xlu0 %686, %v554
      %v688 = vpop.permute.xlu0 %687
      %689 = vset.pattern.permute.xlu0 0
      %690 = vperm.xlu0 %689, %v555
      %v691 = vpop.permute.xlu0 %690
      %692 = vset.pattern.permute.xlu0 0
      %693 = vperm.xlu0 %692, %v556
      %v694 = vpop.permute.xlu0 %693
      %695 = vset.pattern.permute.xlu0 0
      %696 = vperm.xlu0 %695, %v557
      %v697 = vpop.permute.xlu0 %696
      %698 = vset.pattern.permute.xlu0 0
      %699 = vperm.xlu0 %698, %v558
      %v700 = vpop.permute.xlu0 %699
      %701 = vset.pattern.permute.xlu0 0
      %702 = vperm.xlu0 %701, %v559
      %v703 = vpop.permute.xlu0 %702
      %704 = vset.pattern.permute.xlu0 0
      %705 = vperm.xlu0 %704, %v560
      %v706 = vpop.permute.xlu0 %705
      %707 = vset.pattern.permute.xlu0 0
      %708 = vperm.xlu0 %707, %v561
      %v709 = vpop.permute.xlu0 %708
      %710 = vset.pattern.permute.xlu0 0
      %711 = vperm.xlu0 %710, %v562
      %v712 = vpop.permute.xlu0 %711
      %713 = vset.pattern.permute.xlu0 0
      %714 = vperm.xlu0 %713, %v563
      %v715 = vpop.permute.xlu0 %714
      %716 = vset.pattern.permute.xlu0 0
      %717 = vperm.xlu0 %716, %v564
      %v718 = vpop.permute.xlu0 %717
      %719 = vset.pattern.permute.xlu0 0
      %720 = vperm.xlu0 %719, %v565
      %v721 = vpop.permute.xlu0 %720
      %722 = vset.pattern.permute.xlu0 0
      %723 = vperm.xlu0 %722, %v566
      %v724 = vpop.permute.xlu0 %723
      %725 = vset.pattern.permute.xlu0 0
      %726 = vperm.xlu0 %725, %v567
      %v727 = vpop.permute.xlu0 %726
      %728 = vset.pattern.permute.xlu0 0
      %729 = vperm.xlu0 %728, %v568
      %v730 = vpop.permute.xlu0 %729
      %731 = vset.pattern.permute.xlu0 0
      %732 = vperm.xlu0 %731, %v569
      %v733 = vpop.permute.xlu0 %732
      %734 = vset.pattern.permute.xlu0 0
      %735 = vperm.xlu0 %734, %v570
      %v736 = vpop.permute.xlu0 %735
      %737 = vset.pattern.permute.xlu0 0
      %738 = vperm.xlu0 %737, %v571
      %v739 = vpop.permute.xlu0 %738
      %740 = vset.pattern.permute.xlu0 0
      %741 = vperm.xlu0 %740, %v572
      %v742 = vpop.permute.xlu0 %741
      %743 = vset.pattern.permute.xlu0 0
      %744 = vperm.xlu0 %743, %v573
      %v745 = vpop.permute.xlu0 %744
      %746 = vset.pattern.permute.xlu0 0
      %747 = vperm.xlu0 %746, %v574
      %v748 = vpop.permute.xlu0 %747
      %749 = vset.pattern.permute.xlu0 0
      %750 = vperm.xlu0 %749, %v575
      %v751 = vpop.permute.xlu0 %750
      %752 = vset.pattern.permute.xlu0 0
      %753 = vperm.xlu0 %752, %v576
      %v754 = vpop.permute.xlu0 %753
      %755 = vset.pattern.permute.xlu0 0
      %756 = vperm.xlu0 %755, %v577
      %v757 = vpop.permute.xlu0 %756
      %758 = vset.pattern.permute.xlu0 0
      %759 = vperm.xlu0 %758, %v578
      %v760 = vpop.permute.xlu0 %759
      %761 = vset.pattern.permute.xlu0 0
      %762 = vperm.xlu0 %761, %v579
      %v763 = vpop.permute.xlu0 %762
      %764 = vset.pattern.permute.xlu0 0
      %765 = vperm.xlu0 %764, %v580
      %v766 = vpop.permute.xlu0 %765
      %767 = vset.pattern.permute.xlu0 0
      %768 = vperm.xlu0 %767, %v581
      %v769 = vpop.permute.xlu0 %768
      %770 = vset.pattern.permute.xlu0 0
      %771 = vperm.xlu0 %770, %v582
      %v772 = vpop.permute.xlu0 %771
      %773 = vset.pattern.permute.xlu0 0
      %774 = vperm.xlu0 %773, %v583
      %v775 = vpop.permute.xlu0 %774
      %776 = vset.pattern.permute.xlu0 0
      %777 = vperm.xlu0 %776, %v584
      %v778 = vpop.permute.xlu0 %777
      %vm779 = vcmp.eq.s32.totalorder %v586, %v589
      %vm780 = vcmp.eq.s32.totalorder %v586, %v592
      %vm781 = vcmp.eq.s32.totalorder %v586, %v595
      %vm782 = vcmp.eq.s32.totalorder %v586, %v598
      %vm783 = vcmp.eq.s32.totalorder %v586, %v601
      %vm784 = vcmp.eq.s32.totalorder %v586, %v604
      %vm785 = vcmp.eq.s32.totalorder %v586, %v607
      %vm786 = vcmp.eq.s32.totalorder %v586, %v610
      %vm787 = vcmp.eq.s32.totalorder %v586, %v613
      %vm788 = vcmp.eq.s32.totalorder %v586, %v616
      %vm789 = vcmp.eq.s32.totalorder %v586, %v619
      %vm790 = vcmp.eq.s32.totalorder %v586, %v622
      %vm791 = vcmp.eq.s32.totalorder %v586, %v625
      %vm792 = vcmp.eq.s32.totalorder %v586, %v628
      %vm793 = vcmp.eq.s32.totalorder %v586, %v631
      %vm794 = vcmp.eq.s32.totalorder %v586, %v634
      %vm795 = vcmp.eq.s32.totalorder %v586, %v637
      %vm796 = vcmp.eq.s32.totalorder %v586, %v640
      %vm797 = vcmp.eq.s32.totalorder %v586, %v643
      %vm798 = vcmp.eq.s32.totalorder %v586, %v646
      %vm799 = vcmp.eq.s32.totalorder %v586, %v649
      %vm800 = vcmp.eq.s32.totalorder %v586, %v652
      %vm801 = vcmp.eq.s32.totalorder %v586, %v655
      %vm802 = vcmp.eq.s32.totalorder %v586, %v658
      %vm803 = vcmp.eq.s32.totalorder %v586, %v661
      %vm804 = vcmp.eq.s32.totalorder %v586, %v664
      %vm805 = vcmp.eq.s32.totalorder %v586, %v667
      %vm806 = vcmp.eq.s32.totalorder %v586, %v670
      %vm807 = vcmp.eq.s32.totalorder %v586, %v673
      %vm808 = vcmp.eq.s32.totalorder %v586, %v676
      %vm809 = vcmp.eq.s32.totalorder %v586, %v679
      %vm810 = vcmp.eq.s32.totalorder %v586, %v682
      %vm811 = vcmp.eq.s32.totalorder %v586, %v685
      %vm812 = vcmp.eq.s32.totalorder %v586, %v688
      %vm813 = vcmp.eq.s32.totalorder %v586, %v691
      %vm814 = vcmp.eq.s32.totalorder %v586, %v694
      %vm815 = vcmp.eq.s32.totalorder %v586, %v697
      %vm816 = vcmp.eq.s32.totalorder %v586, %v700
      %vm817 = vcmp.eq.s32.totalorder %v586, %v703
      %vm818 = vcmp.eq.s32.totalorder %v586, %v706
      %vm819 = vcmp.eq.s32.totalorder %v586, %v709
      %vm820 = vcmp.eq.s32.totalorder %v586, %v712
      %vm821 = vcmp.eq.s32.totalorder %v586, %v715
      %vm822 = vcmp.eq.s32.totalorder %v586, %v718
      %vm823 = vcmp.eq.s32.totalorder %v586, %v721
      %vm824 = vcmp.eq.s32.totalorder %v586, %v724
      %vm825 = vcmp.eq.s32.totalorder %v586, %v727
      %vm826 = vcmp.eq.s32.totalorder %v586, %v730
      %vm827 = vcmp.eq.s32.totalorder %v586, %v733
      %vm828 = vcmp.eq.s32.totalorder %v586, %v736
      %vm829 = vcmp.eq.s32.totalorder %v586, %v739
      %vm830 = vcmp.eq.s32.totalorder %v586, %v742
      %vm831 = vcmp.eq.s32.totalorder %v586, %v745
      %vm832 = vcmp.eq.s32.totalorder %v586, %v748
      %vm833 = vcmp.eq.s32.totalorder %v586, %v751
      %vm834 = vcmp.eq.s32.totalorder %v586, %v754
      %vm835 = vcmp.eq.s32.totalorder %v586, %v757
      %vm836 = vcmp.eq.s32.totalorder %v586, %v760
      %vm837 = vcmp.eq.s32.totalorder %v586, %v763
      %vm838 = vcmp.eq.s32.totalorder %v586, %v766
      %vm839 = vcmp.eq.s32.totalorder %v586, %v769
      %vm840 = vcmp.eq.s32.totalorder %v586, %v772
      %vm841 = vcmp.eq.s32.totalorder %v586, %v775
      %vm842 = vcmp.eq.s32.totalorder %v586, %v778
      %v843 = vsel %vm779, 1, 0
      %v844 = vsel %vm780, 1, 0
      %v845 = vsel %vm781, 1, 0
      %v846 = vsel %vm782, 1, 0
      %v847 = vsel %vm783, 1, 0
      %v848 = vsel %vm784, 1, 0
      %v849 = vsel %vm785, 1, 0
      %v850 = vsel %vm786, 1, 0
      %v851 = vsel %vm787, 1, 0
      %v852 = vsel %vm788, 1, 0
      %v853 = vsel %vm789, 1, 0
      %v854 = vsel %vm790, 1, 0
      %v855 = vsel %vm791, 1, 0
      %v856 = vsel %vm792, 1, 0
      %v857 = vsel %vm793, 1, 0
      %v858 = vsel %vm794, 1, 0
      %v859 = vsel %vm795, 1, 0
      %v860 = vsel %vm796, 1, 0
      %v861 = vsel %vm797, 1, 0
      %v862 = vsel %vm798, 1, 0
      %v863 = vsel %vm799, 1, 0
      %v864 = vsel %vm800, 1, 0
      %v865 = vsel %vm801, 1, 0
      %v866 = vsel %vm802, 1, 0
      %v867 = vsel %vm803, 1, 0
      %v868 = vsel %vm804, 1, 0
      %v869 = vsel %vm805, 1, 0
      %v870 = vsel %vm806, 1, 0
      %v871 = vsel %vm807, 1, 0
      %v872 = vsel %vm808, 1, 0
      %v873 = vsel %vm809, 1, 0
      %v874 = vsel %vm810, 1, 0
      %v875 = vsel %vm811, 1, 0
      %v876 = vsel %vm812, 1, 0
      %v877 = vsel %vm813, 1, 0
      %v878 = vsel %vm814, 1, 0
      %v879 = vsel %vm815, 1, 0
      %v880 = vsel %vm816, 1, 0
      %v881 = vsel %vm817, 1, 0
      %v882 = vsel %vm818, 1, 0
      %v883 = vsel %vm819, 1, 0
      %v884 = vsel %vm820, 1, 0
      %v885 = vsel %vm821, 1, 0
      %v886 = vsel %vm822, 1, 0
      %v887 = vsel %vm823, 1, 0
      %v888 = vsel %vm824, 1, 0
      %v889 = vsel %vm825, 1, 0
      %v890 = vsel %vm826, 1, 0
      %v891 = vsel %vm827, 1, 0
      %v892 = vsel %vm828, 1, 0
      %v893 = vsel %vm829, 1, 0
      %v894 = vsel %vm830, 1, 0
      %v895 = vsel %vm831, 1, 0
      %v896 = vsel %vm832, 1, 0
      %v897 = vsel %vm833, 1, 0
      %v898 = vsel %vm834, 1, 0
      %v899 = vsel %vm835, 1, 0
      %v900 = vsel %vm836, 1, 0
      %v901 = vsel %vm837, 1, 0
      %v902 = vsel %vm838, 1, 0
      %v903 = vsel %vm839, 1, 0
      %v904 = vsel %vm840, 1, 0
      %v905 = vsel %vm841, 1, 0
      %v906 = vsel %vm842, 1, 0
      %v907 = vcvt.s32.f32 %v843
      %v908 = vcvt.s32.f32 %v844
      %v909 = vcvt.s32.f32 %v845
      %v910 = vcvt.s32.f32 %v846
      %v911 = vcvt.s32.f32 %v847
      %v912 = vcvt.s32.f32 %v848
      %v913 = vcvt.s32.f32 %v849
      %v914 = vcvt.s32.f32 %v850
      %v915 = vcvt.s32.f32 %v851
      %v916 = vcvt.s32.f32 %v852
      %v917 = vcvt.s32.f32 %v853
      %v918 = vcvt.s32.f32 %v854
      %v919 = vcvt.s32.f32 %v855
      %v920 = vcvt.s32.f32 %v856
      %v921 = vcvt.s32.f32 %v857
      %v922 = vcvt.s32.f32 %v858
      %v923 = vcvt.s32.f32 %v859
      %v924 = vcvt.s32.f32 %v860
      %v925 = vcvt.s32.f32 %v861
      %v926 = vcvt.s32.f32 %v862
      %v927 = vcvt.s32.f32 %v863
      %v928 = vcvt.s32.f32 %v864
      %v929 = vcvt.s32.f32 %v865
      %v930 = vcvt.s32.f32 %v866
      %v931 = vcvt.s32.f32 %v867
      %v932 = vcvt.s32.f32 %v868
      %v933 = vcvt.s32.f32 %v869
      %v934 = vcvt.s32.f32 %v870
      %v935 = vcvt.s32.f32 %v871
      %v936 = vcvt.s32.f32 %v872
      %v937 = vcvt.s32.f32 %v873
      %v938 = vcvt.s32.f32 %v874
      %v939 = vcvt.s32.f32 %v875
      %v940 = vcvt.s32.f32 %v876
      %v941 = vcvt.s32.f32 %v877
      %v942 = vcvt.s32.f32 %v878
      %v943 = vcvt.s32.f32 %v879
      %v944 = vcvt.s32.f32 %v880
      %v945 = vcvt.s32.f32 %v881
      %v946 = vcvt.s32.f32 %v882
      %v947 = vcvt.s32.f32 %v883
      %v948 = vcvt.s32.f32 %v884
      %v949 = vcvt.s32.f32 %v885
      %v950 = vcvt.s32.f32 %v886
      %v951 = vcvt.s32.f32 %v887
      %v952 = vcvt.s32.f32 %v888
      %v953 = vcvt.s32.f32 %v889
      %v954 = vcvt.s32.f32 %v890
      %v955 = vcvt.s32.f32 %v891
      %v956 = vcvt.s32.f32 %v892
      %v957 = vcvt.s32.f32 %v893
      %v958 = vcvt.s32.f32 %v894
      %v959 = vcvt.s32.f32 %v895
      %v960 = vcvt.s32.f32 %v896
      %v961 = vcvt.s32.f32 %v897
      %v962 = vcvt.s32.f32 %v898
      %v963 = vcvt.s32.f32 %v899
      %v964 = vcvt.s32.f32 %v900
      %v965 = vcvt.s32.f32 %v901
      %v966 = vcvt.s32.f32 %v902
      %v967 = vcvt.s32.f32 %v903
      %v968 = vcvt.s32.f32 %v904
      %v969 = vcvt.s32.f32 %v905
      %v970 = vcvt.s32.f32 %v906
      %v971 = vpack.c.bf16 %v908, %v907
      %v972 = vpack.c.bf16 %v910, %v909
      %v973 = vpack.c.bf16 %v912, %v911
      %v974 = vpack.c.bf16 %v914, %v913
      %v975 = vpack.c.bf16 %v916, %v915
      %v976 = vpack.c.bf16 %v918, %v917
      %v977 = vpack.c.bf16 %v920, %v919
      %v978 = vpack.c.bf16 %v922, %v921
      %v979 = vpack.c.bf16 %v924, %v923
      %v980 = vpack.c.bf16 %v926, %v925
      %v981 = vpack.c.bf16 %v928, %v927
      %v982 = vpack.c.bf16 %v930, %v929
      %v983 = vpack.c.bf16 %v932, %v931
      %v984 = vpack.c.bf16 %v934, %v933
      %v985 = vpack.c.bf16 %v936, %v935
      %v986 = vpack.c.bf16 %v938, %v937
      %v987 = vpack.c.bf16 %v940, %v939
      %v988 = vpack.c.bf16 %v942, %v941
      %v989 = vpack.c.bf16 %v944, %v943
      %v990 = vpack.c.bf16 %v946, %v945
      %v991 = vpack.c.bf16 %v948, %v947
      %v992 = vpack.c.bf16 %v950, %v949
      %v993 = vpack.c.bf16 %v952, %v951
      %v994 = vpack.c.bf16 %v954, %v953
      %v995 = vpack.c.bf16 %v956, %v955
      %v996 = vpack.c.bf16 %v958, %v957
      %v997 = vpack.c.bf16 %v960, %v959
      %v998 = vpack.c.bf16 %v962, %v961
      %v999 = vpack.c.bf16 %v964, %v963
      %v1000 = vpack.c.bf16 %v966, %v965
      %v1001 = vpack.c.bf16 %v968, %v967
      %v1002 = vpack.c.bf16 %v970, %v969
      %v1003 = vld [vmem:[%s1] sm:$0xff]
      %v1004 = vld [vmem:[%s1 + $0x8] sm:$0xff]
      %v1005 = vld [vmem:[%s1 + $0x10] sm:$0xff]
      %v1006 = vld [vmem:[%s1 + $0x18] sm:$0xff]
      %v1011 = vunpack.c.l.b16 %v1003
      %v1012 = vunpack.c.h.b16 %v1003
      %v1013 = vunpack.c.l.b16 %v1004
      %v1014 = vunpack.c.h.b16 %v1004
      %v1015 = vunpack.c.l.b16 %v1005
      %v1016 = vunpack.c.h.b16 %v1005
      %v1017 = vunpack.c.l.b16 %v1006
      %v1018 = vunpack.c.h.b16 %v1006
      %v1019 = vpack.c.b16 %v1015, %v1011
      %v1020 = vpack.c.b16 %v1016, %v1012
      %v1021 = vpack.c.b16 %v1017, %v1013
      %v1022 = vpack.c.b16 %v1018, %v1014
      %vm1027 = vcmask 130048
      %v1029 = vsel %vm1027, %v971, 0
      %v1032 = vsel %vm1027, %v972, 0
      %v1035 = vsel %vm1027, %v973, 0
      %v1038 = vsel %vm1027, %v974, 0
      %v1041 = vsel %vm1027, %v975, 0
      %v1044 = vsel %vm1027, %v976, 0
      %v1047 = vsel %vm1027, %v977, 0
      %v1050 = vsel %vm1027, %v978, 0
      %v1053 = vsel %vm1027, %v979, 0
      %v1056 = vsel %vm1027, %v980, 0
      %v1059 = vsel %vm1027, %v981, 0
      %v1062 = vsel %vm1027, %v982, 0
      %v1065 = vsel %vm1027, %v983, 0
      %v1068 = vsel %vm1027, %v984, 0
      %v1071 = vsel %vm1027, %v985, 0
      %v1074 = vsel %vm1027, %v986, 0
      %v1077 = vsel %vm1027, %v987, 0
      %v1080 = vsel %vm1027, %v988, 0
      %v1083 = vsel %vm1027, %v989, 0
      %v1086 = vsel %vm1027, %v990, 0
      %v1089 = vsel %vm1027, %v991, 0
      %v1092 = vsel %vm1027, %v992, 0
      %v1095 = vsel %vm1027, %v993, 0
      %v1098 = vsel %vm1027, %v994, 0
      %v1101 = vsel %vm1027, %v995, 0
      %v1104 = vsel %vm1027, %v996, 0
      %v1107 = vsel %vm1027, %v997, 0
      %v1110 = vsel %vm1027, %v998, 0
      %v1113 = vsel %vm1027, %v999, 0
      %v1116 = vsel %vm1027, %v1000, 0
      %v1119 = vsel %vm1027, %v1001, 0
      %v1122 = vsel %vm1027, %v1002, 0
      %1124 = vmatpush.bf16.msra.mxu0 0
      %1125 = vmatpush.bf16.msra.mxu0 0
      %1126 = vmatpush.bf16.msra.mxu0 0
      %1127 = vmatpush.bf16.msra.mxu0 0
      %1128 = vmatpush.bf16.msra.mxu0 0
      %1129 = vmatpush.bf16.msra.mxu0 0
      %1130 = vmatpush.bf16.msra.mxu0 0
      %1131 = vmatpush.bf16.msra.mxu0 %v1019
      %1132 = vmatmul.bf16.gmra.mxu0 %v1029
      %v1133 = vpop.f32.mrf.mxu0
      %v1134 = vadd.f32 0.0, %v1133
      %v1135 = vpop.f32.mrf.mxu0
      %v1136 = vadd.f32 0.0, %v1135
      %1137 = vmatmul.bf16.gmra.mxu0 %v1032
      %v1138 = vpop.f32.mrf.mxu0
      %v1139 = vadd.f32 0.0, %v1138
      %v1140 = vpop.f32.mrf.mxu0
      %v1141 = vadd.f32 0.0, %v1140
      %1142 = vmatmul.bf16.gmra.mxu0 %v1035
      %v1143 = vpop.f32.mrf.mxu0
      %v1144 = vadd.f32 0.0, %v1143
      %v1145 = vpop.f32.mrf.mxu0
      %v1146 = vadd.f32 0.0, %v1145
      %1147 = vmatmul.bf16.gmra.mxu0 %v1038
      %v1148 = vpop.f32.mrf.mxu0
      %v1149 = vadd.f32 0.0, %v1148
      %v1150 = vpop.f32.mrf.mxu0
      %v1151 = vadd.f32 0.0, %v1150
      %1152 = vmatmul.bf16.gmra.mxu0 %v1041
      %v1153 = vpop.f32.mrf.mxu0
      %v1154 = vadd.f32 0.0, %v1153
      %v1155 = vpop.f32.mrf.mxu0
      %v1156 = vadd.f32 0.0, %v1155
      %1157 = vmatmul.bf16.gmra.mxu0 %v1044
      %v1158 = vpop.f32.mrf.mxu0
      %v1159 = vadd.f32 0.0, %v1158
      %v1160 = vpop.f32.mrf.mxu0
      %v1161 = vadd.f32 0.0, %v1160
      %1162 = vmatmul.bf16.gmra.mxu0 %v1047
      %v1163 = vpop.f32.mrf.mxu0
      %v1164 = vadd.f32 0.0, %v1163
      %v1165 = vpop.f32.mrf.mxu0
      %v1166 = vadd.f32 0.0, %v1165
      %1167 = vmatmul.bf16.gmra.mxu0 %v1050
      %v1168 = vpop.f32.mrf.mxu0
      %v1169 = vadd.f32 0.0, %v1168
      %v1170 = vpop.f32.mrf.mxu0
      %v1171 = vadd.f32 0.0, %v1170
      %1172 = vmatmul.bf16.gmra.mxu0 %v1053
      %v1173 = vpop.f32.mrf.mxu0
      %v1174 = vadd.f32 0.0, %v1173
      %v1175 = vpop.f32.mrf.mxu0
      %v1176 = vadd.f32 0.0, %v1175
      %1177 = vmatmul.bf16.gmra.mxu0 %v1056
      %v1178 = vpop.f32.mrf.mxu0
      %v1179 = vadd.f32 0.0, %v1178
      %v1180 = vpop.f32.mrf.mxu0
      %v1181 = vadd.f32 0.0, %v1180
      %1182 = vmatmul.bf16.gmra.mxu0 %v1059
      %v1183 = vpop.f32.mrf.mxu0
      %v1184 = vadd.f32 0.0, %v1183
      %v1185 = vpop.f32.mrf.mxu0
      %v1186 = vadd.f32 0.0, %v1185
      %1187 = vmatmul.bf16.gmra.mxu0 %v1062
      %v1188 = vpop.f32.mrf.mxu0
      %v1189 = vadd.f32 0.0, %v1188
      %v1190 = vpop.f32.mrf.mxu0
      %v1191 = vadd.f32 0.0, %v1190
      %1192 = vmatmul.bf16.gmra.mxu0 %v1065
      %v1193 = vpop.f32.mrf.mxu0
      %v1194 = vadd.f32 0.0, %v1193
      %v1195 = vpop.f32.mrf.mxu0
      %v1196 = vadd.f32 0.0, %v1195
      %1197 = vmatmul.bf16.gmra.mxu0 %v1068
      %v1198 = vpop.f32.mrf.mxu0
      %v1199 = vadd.f32 0.0, %v1198
      %v1200 = vpop.f32.mrf.mxu0
      %v1201 = vadd.f32 0.0, %v1200
      %1202 = vmatmul.bf16.gmra.mxu0 %v1071
      %v1203 = vpop.f32.mrf.mxu0
      %v1204 = vadd.f32 0.0, %v1203
      %v1205 = vpop.f32.mrf.mxu0
      %v1206 = vadd.f32 0.0, %v1205
      %1207 = vmatmul.bf16.gmra.mxu0 %v1074
      %v1208 = vpop.f32.mrf.mxu0
      %v1209 = vadd.f32 0.0, %v1208
      %v1210 = vpop.f32.mrf.mxu0
      %v1211 = vadd.f32 0.0, %v1210
      %1212 = vmatmul.bf16.gmra.mxu0 %v1077
      %v1213 = vpop.f32.mrf.mxu0
      %v1214 = vadd.f32 0.0, %v1213
      %v1215 = vpop.f32.mrf.mxu0
      %v1216 = vadd.f32 0.0, %v1215
      %1217 = vmatmul.bf16.gmra.mxu0 %v1080
      %v1218 = vpop.f32.mrf.mxu0
      %v1219 = vadd.f32 0.0, %v1218
      %v1220 = vpop.f32.mrf.mxu0
      %v1221 = vadd.f32 0.0, %v1220
      %1222 = vmatmul.bf16.gmra.mxu0 %v1083
      %v1223 = vpop.f32.mrf.mxu0
      %v1224 = vadd.f32 0.0, %v1223
      %v1225 = vpop.f32.mrf.mxu0
      %v1226 = vadd.f32 0.0, %v1225
      %1227 = vmatmul.bf16.gmra.mxu0 %v1086
      %v1228 = vpop.f32.mrf.mxu0
      %v1229 = vadd.f32 0.0, %v1228
      %v1230 = vpop.f32.mrf.mxu0
      %v1231 = vadd.f32 0.0, %v1230
      %1232 = vmatmul.bf16.gmra.mxu0 %v1089
      %v1233 = vpop.f32.mrf.mxu0
      %v1234 = vadd.f32 0.0, %v1233
      %v1235 = vpop.f32.mrf.mxu0
      %v1236 = vadd.f32 0.0, %v1235
      %1237 = vmatmul.bf16.gmra.mxu0 %v1092
      %v1238 = vpop.f32.mrf.mxu0
      %v1239 = vadd.f32 0.0, %v1238
      %v1240 = vpop.f32.mrf.mxu0
      %v1241 = vadd.f32 0.0, %v1240
      %1242 = vmatmul.bf16.gmra.mxu0 %v1095
      %v1243 = vpop.f32.mrf.mxu0
      %v1244 = vadd.f32 0.0, %v1243
      %v1245 = vpop.f32.mrf.mxu0
      %v1246 = vadd.f32 0.0, %v1245
      %1247 = vmatmul.bf16.gmra.mxu0 %v1098
      %v1248 = vpop.f32.mrf.mxu0
      %v1249 = vadd.f32 0.0, %v1248
      %v1250 = vpop.f32.mrf.mxu0
      %v1251 = vadd.f32 0.0, %v1250
      %1252 = vmatmul.bf16.gmra.mxu0 %v1101
      %v1253 = vpop.f32.mrf.mxu0
      %v1254 = vadd.f32 0.0, %v1253
      %v1255 = vpop.f32.mrf.mxu0
      %v1256 = vadd.f32 0.0, %v1255
      %1257 = vmatmul.bf16.gmra.mxu0 %v1104
      %v1258 = vpop.f32.mrf.mxu0
      %v1259 = vadd.f32 0.0, %v1258
      %v1260 = vpop.f32.mrf.mxu0
      %v1261 = vadd.f32 0.0, %v1260
      %1262 = vmatmul.bf16.gmra.mxu0 %v1107
      %v1263 = vpop.f32.mrf.mxu0
      %v1264 = vadd.f32 0.0, %v1263
      %v1265 = vpop.f32.mrf.mxu0
      %v1266 = vadd.f32 0.0, %v1265
      %1267 = vmatmul.bf16.gmra.mxu0 %v1110
      %v1268 = vpop.f32.mrf.mxu0
      %v1269 = vadd.f32 0.0, %v1268
      %v1270 = vpop.f32.mrf.mxu0
      %v1271 = vadd.f32 0.0, %v1270
      %1272 = vmatmul.bf16.gmra.mxu0 %v1113
      %v1273 = vpop.f32.mrf.mxu0
      %v1274 = vadd.f32 0.0, %v1273
      %v1275 = vpop.f32.mrf.mxu0
      %v1276 = vadd.f32 0.0, %v1275
      %1277 = vmatmul.bf16.gmra.mxu0 %v1116
      %v1278 = vpop.f32.mrf.mxu0
      %v1279 = vadd.f32 0.0, %v1278
      %v1280 = vpop.f32.mrf.mxu0
      %v1281 = vadd.f32 0.0, %v1280
      %1282 = vmatmul.bf16.gmra.mxu0 %v1119
      %v1283 = vpop.f32.mrf.mxu0
      %v1284 = vadd.f32 0.0, %v1283
      %v1285 = vpop.f32.mrf.mxu0
      %v1286 = vadd.f32 0.0, %v1285
      %1287 = vmatmul.bf16.gmra.mxu0 %v1122
      %v1288 = vpop.f32.mrf.mxu0
      %v1289 = vadd.f32 0.0, %v1288
      %v1290 = vpop.f32.mrf.mxu0
      %v1291 = vadd.f32 0.0, %v1290
      %1292 = vdwg.mxu0
      %1293 = vmatpush.bf16.msra.mxu0 0
      %1294 = vmatpush.bf16.msra.mxu0 0
      %1295 = vmatpush.bf16.msra.mxu0 0
      %1296 = vmatpush.bf16.msra.mxu0 0
      %1297 = vmatpush.bf16.msra.mxu0 0
      %1298 = vmatpush.bf16.msra.mxu0 0
      %1299 = vmatpush.bf16.msra.mxu0 0
      %1300 = vmatpush.bf16.msra.mxu0 %v1020
      %1301 = vmatmul.bf16.gmra.mxu0 %v1029
      %v1302 = vpop.f32.mrf.mxu0
      %v1303 = vadd.f32 0.0, %v1302
      %v1304 = vpop.f32.mrf.mxu0
      %v1305 = vadd.f32 0.0, %v1304
      %1306 = vmatmul.bf16.gmra.mxu0 %v1032
      %v1307 = vpop.f32.mrf.mxu0
      %v1308 = vadd.f32 0.0, %v1307
      %v1309 = vpop.f32.mrf.mxu0
      %v1310 = vadd.f32 0.0, %v1309
      %1311 = vmatmul.bf16.gmra.mxu0 %v1035
      %v1312 = vpop.f32.mrf.mxu0
      %v1313 = vadd.f32 0.0, %v1312
      %v1314 = vpop.f32.mrf.mxu0
      %v1315 = vadd.f32 0.0, %v1314
      %1316 = vmatmul.bf16.gmra.mxu0 %v1038
      %v1317 = vpop.f32.mrf.mxu0
      %v1318 = vadd.f32 0.0, %v1317
      %v1319 = vpop.f32.mrf.mxu0
      %v1320 = vadd.f32 0.0, %v1319
      %1321 = vmatmul.bf16.gmra.mxu0 %v1041
      %v1322 = vpop.f32.mrf.mxu0
      %v1323 = vadd.f32 0.0, %v1322
      %v1324 = vpop.f32.mrf.mxu0
      %v1325 = vadd.f32 0.0, %v1324
      %1326 = vmatmul.bf16.gmra.mxu0 %v1044
      %v1327 = vpop.f32.mrf.mxu0
      %v1328 = vadd.f32 0.0, %v1327
      %v1329 = vpop.f32.mrf.mxu0
      %v1330 = vadd.f32 0.0, %v1329
      %1331 = vmatmul.bf16.gmra.mxu0 %v1047
      %v1332 = vpop.f32.mrf.mxu0
      %v1333 = vadd.f32 0.0, %v1332
      %v1334 = vpop.f32.mrf.mxu0
      %v1335 = vadd.f32 0.0, %v1334
      %1336 = vmatmul.bf16.gmra.mxu0 %v1050
      %v1337 = vpop.f32.mrf.mxu0
      %v1338 = vadd.f32 0.0, %v1337
      %v1339 = vpop.f32.mrf.mxu0
      %v1340 = vadd.f32 0.0, %v1339
      %1341 = vmatmul.bf16.gmra.mxu0 %v1053
      %v1342 = vpop.f32.mrf.mxu0
      %v1343 = vadd.f32 0.0, %v1342
      %v1344 = vpop.f32.mrf.mxu0
      %v1345 = vadd.f32 0.0, %v1344
      %1346 = vmatmul.bf16.gmra.mxu0 %v1056
      %v1347 = vpop.f32.mrf.mxu0
      %v1348 = vadd.f32 0.0, %v1347
      %v1349 = vpop.f32.mrf.mxu0
      %v1350 = vadd.f32 0.0, %v1349
      %1351 = vmatmul.bf16.gmra.mxu0 %v1059
      %v1352 = vpop.f32.mrf.mxu0
      %v1353 = vadd.f32 0.0, %v1352
      %v1354 = vpop.f32.mrf.mxu0
      %v1355 = vadd.f32 0.0, %v1354
      %1356 = vmatmul.bf16.gmra.mxu0 %v1062
      %v1357 = vpop.f32.mrf.mxu0
      %v1358 = vadd.f32 0.0, %v1357
      %v1359 = vpop.f32.mrf.mxu0
      %v1360 = vadd.f32 0.0, %v1359
      %1361 = vmatmul.bf16.gmra.mxu0 %v1065
      %v1362 = vpop.f32.mrf.mxu0
      %v1363 = vadd.f32 0.0, %v1362
      %v1364 = vpop.f32.mrf.mxu0
      %v1365 = vadd.f32 0.0, %v1364
      %1366 = vmatmul.bf16.gmra.mxu0 %v1068
      %v1367 = vpop.f32.mrf.mxu0
      %v1368 = vadd.f32 0.0, %v1367
      %v1369 = vpop.f32.mrf.mxu0
      %v1370 = vadd.f32 0.0, %v1369
      %1371 = vmatmul.bf16.gmra.mxu0 %v1071
      %v1372 = vpop.f32.mrf.mxu0
      %v1373 = vadd.f32 0.0, %v1372
      %v1374 = vpop.f32.mrf.mxu0
      %v1375 = vadd.f32 0.0, %v1374
      %1376 = vmatmul.bf16.gmra.mxu0 %v1074
      %v1377 = vpop.f32.mrf.mxu0
      %v1378 = vadd.f32 0.0, %v1377
      %v1379 = vpop.f32.mrf.mxu0
      %v1380 = vadd.f32 0.0, %v1379
      %1381 = vmatmul.bf16.gmra.mxu0 %v1077
      %v1382 = vpop.f32.mrf.mxu0
      %v1383 = vadd.f32 0.0, %v1382
      %v1384 = vpop.f32.mrf.mxu0
      %v1385 = vadd.f32 0.0, %v1384
      %1386 = vmatmul.bf16.gmra.mxu0 %v1080
      %v1387 = vpop.f32.mrf.mxu0
      %v1388 = vadd.f32 0.0, %v1387
      %v1389 = vpop.f32.mrf.mxu0
      %v1390 = vadd.f32 0.0, %v1389
      %1391 = vmatmul.bf16.gmra.mxu0 %v1083
      %v1392 = vpop.f32.mrf.mxu0
      %v1393 = vadd.f32 0.0, %v1392
      %v1394 = vpop.f32.mrf.mxu0
      %v1395 = vadd.f32 0.0, %v1394
      %1396 = vmatmul.bf16.gmra.mxu0 %v1086
      %v1397 = vpop.f32.mrf.mxu0
      %v1398 = vadd.f32 0.0, %v1397
      %v1399 = vpop.f32.mrf.mxu0
      %v1400 = vadd.f32 0.0, %v1399
      %1401 = vmatmul.bf16.gmra.mxu0 %v1089
      %v1402 = vpop.f32.mrf.mxu0
      %v1403 = vadd.f32 0.0, %v1402
      %v1404 = vpop.f32.mrf.mxu0
      %v1405 = vadd.f32 0.0, %v1404
      %1406 = vmatmul.bf16.gmra.mxu0 %v1092
      %v1407 = vpop.f32.mrf.mxu0
      %v1408 = vadd.f32 0.0, %v1407
      %v1409 = vpop.f32.mrf.mxu0
      %v1410 = vadd.f32 0.0, %v1409
      %1411 = vmatmul.bf16.gmra.mxu0 %v1095
      %v1412 = vpop.f32.mrf.mxu0
      %v1413 = vadd.f32 0.0, %v1412
      %v1414 = vpop.f32.mrf.mxu0
      %v1415 = vadd.f32 0.0, %v1414
      %1416 = vmatmul.bf16.gmra.mxu0 %v1098
      %v1417 = vpop.f32.mrf.mxu0
      %v1418 = vadd.f32 0.0, %v1417
      %v1419 = vpop.f32.mrf.mxu0
      %v1420 = vadd.f32 0.0, %v1419
      %1421 = vmatmul.bf16.gmra.mxu0 %v1101
      %v1422 = vpop.f32.mrf.mxu0
      %v1423 = vadd.f32 0.0, %v1422
      %v1424 = vpop.f32.mrf.mxu0
      %v1425 = vadd.f32 0.0, %v1424
      %1426 = vmatmul.bf16.gmra.mxu0 %v1104
      %v1427 = vpop.f32.mrf.mxu0
      %v1428 = vadd.f32 0.0, %v1427
      %v1429 = vpop.f32.mrf.mxu0
      %v1430 = vadd.f32 0.0, %v1429
      %1431 = vmatmul.bf16.gmra.mxu0 %v1107
      %v1432 = vpop.f32.mrf.mxu0
      %v1433 = vadd.f32 0.0, %v1432
      %v1434 = vpop.f32.mrf.mxu0
      %v1435 = vadd.f32 0.0, %v1434
      %1436 = vmatmul.bf16.gmra.mxu0 %v1110
      %v1437 = vpop.f32.mrf.mxu0
      %v1438 = vadd.f32 0.0, %v1437
      %v1439 = vpop.f32.mrf.mxu0
      %v1440 = vadd.f32 0.0, %v1439
      %1441 = vmatmul.bf16.gmra.mxu0 %v1113
      %v1442 = vpop.f32.mrf.mxu0
      %v1443 = vadd.f32 0.0, %v1442
      %v1444 = vpop.f32.mrf.mxu0
      %v1445 = vadd.f32 0.0, %v1444
      %1446 = vmatmul.bf16.gmra.mxu0 %v1116
      %v1447 = vpop.f32.mrf.mxu0
      %v1448 = vadd.f32 0.0, %v1447
      %v1449 = vpop.f32.mrf.mxu0
      %v1450 = vadd.f32 0.0, %v1449
      %1451 = vmatmul.bf16.gmra.mxu0 %v1119
      %v1452 = vpop.f32.mrf.mxu0
      %v1453 = vadd.f32 0.0, %v1452
      %v1454 = vpop.f32.mrf.mxu0
      %v1455 = vadd.f32 0.0, %v1454
      %1456 = vmatmul.bf16.gmra.mxu0 %v1122
      %v1457 = vpop.f32.mrf.mxu0
      %v1458 = vadd.f32 0.0, %v1457
      %v1459 = vpop.f32.mrf.mxu0
      %v1460 = vadd.f32 0.0, %v1459
      %1461 = vdwg.mxu0
      %1462 = vmatpush.bf16.msra.mxu0 0
      %1463 = vmatpush.bf16.msra.mxu0 0
      %1464 = vmatpush.bf16.msra.mxu0 0
      %1465 = vmatpush.bf16.msra.mxu0 0
      %1466 = vmatpush.bf16.msra.mxu0 0
      %1467 = vmatpush.bf16.msra.mxu0 0
      %1468 = vmatpush.bf16.msra.mxu0 0
      %1469 = vmatpush.bf16.msra.mxu0 %v1021
      %1470 = vmatmul.bf16.gmra.mxu0 %v1029
      %v1471 = vpop.f32.mrf.mxu0
      %v1472 = vadd.f32 0.0, %v1471
      %v1473 = vpop.f32.mrf.mxu0
      %v1474 = vadd.f32 0.0, %v1473
      %1475 = vmatmul.bf16.gmra.mxu0 %v1032
      %v1476 = vpop.f32.mrf.mxu0
      %v1477 = vadd.f32 0.0, %v1476
      %v1478 = vpop.f32.mrf.mxu0
      %v1479 = vadd.f32 0.0, %v1478
      %1480 = vmatmul.bf16.gmra.mxu0 %v1035
      %v1481 = vpop.f32.mrf.mxu0
      %v1482 = vadd.f32 0.0, %v1481
      %v1483 = vpop.f32.mrf.mxu0
      %v1484 = vadd.f32 0.0, %v1483
      %1485 = vmatmul.bf16.gmra.mxu0 %v1038
      %v1486 = vpop.f32.mrf.mxu0
      %v1487 = vadd.f32 0.0, %v1486
      %v1488 = vpop.f32.mrf.mxu0
      %v1489 = vadd.f32 0.0, %v1488
      %1490 = vmatmul.bf16.gmra.mxu0 %v1041
      %v1491 = vpop.f32.mrf.mxu0
      %v1492 = vadd.f32 0.0, %v1491
      %v1493 = vpop.f32.mrf.mxu0
      %v1494 = vadd.f32 0.0, %v1493
      %1495 = vmatmul.bf16.gmra.mxu0 %v1044
      %v1496 = vpop.f32.mrf.mxu0
      %v1497 = vadd.f32 0.0, %v1496
      %v1498 = vpop.f32.mrf.mxu0
      %v1499 = vadd.f32 0.0, %v1498
      %1500 = vmatmul.bf16.gmra.mxu0 %v1047
      %v1501 = vpop.f32.mrf.mxu0
      %v1502 = vadd.f32 0.0, %v1501
      %v1503 = vpop.f32.mrf.mxu0
      %v1504 = vadd.f32 0.0, %v1503
      %1505 = vmatmul.bf16.gmra.mxu0 %v1050
      %v1506 = vpop.f32.mrf.mxu0
      %v1507 = vadd.f32 0.0, %v1506
      %v1508 = vpop.f32.mrf.mxu0
      %v1509 = vadd.f32 0.0, %v1508
      %1510 = vmatmul.bf16.gmra.mxu0 %v1053
      %v1511 = vpop.f32.mrf.mxu0
      %v1512 = vadd.f32 0.0, %v1511
      %v1513 = vpop.f32.mrf.mxu0
      %v1514 = vadd.f32 0.0, %v1513
      %1515 = vmatmul.bf16.gmra.mxu0 %v1056
      %v1516 = vpop.f32.mrf.mxu0
      %v1517 = vadd.f32 0.0, %v1516
      %v1518 = vpop.f32.mrf.mxu0
      %v1519 = vadd.f32 0.0, %v1518
      %1520 = vmatmul.bf16.gmra.mxu0 %v1059
      %v1521 = vpop.f32.mrf.mxu0
      %v1522 = vadd.f32 0.0, %v1521
      %v1523 = vpop.f32.mrf.mxu0
      %v1524 = vadd.f32 0.0, %v1523
      %1525 = vmatmul.bf16.gmra.mxu0 %v1062
      %v1526 = vpop.f32.mrf.mxu0
      %v1527 = vadd.f32 0.0, %v1526
      %v1528 = vpop.f32.mrf.mxu0
      %v1529 = vadd.f32 0.0, %v1528
      %1530 = vmatmul.bf16.gmra.mxu0 %v1065
      %v1531 = vpop.f32.mrf.mxu0
      %v1532 = vadd.f32 0.0, %v1531
      %v1533 = vpop.f32.mrf.mxu0
      %v1534 = vadd.f32 0.0, %v1533
      %1535 = vmatmul.bf16.gmra.mxu0 %v1068
      %v1536 = vpop.f32.mrf.mxu0
      %v1537 = vadd.f32 0.0, %v1536
      %v1538 = vpop.f32.mrf.mxu0
      %v1539 = vadd.f32 0.0, %v1538
      %1540 = vmatmul.bf16.gmra.mxu0 %v1071
      %v1541 = vpop.f32.mrf.mxu0
      %v1542 = vadd.f32 0.0, %v1541
      %v1543 = vpop.f32.mrf.mxu0
      %v1544 = vadd.f32 0.0, %v1543
      %1545 = vmatmul.bf16.gmra.mxu0 %v1074
      %v1546 = vpop.f32.mrf.mxu0
      %v1547 = vadd.f32 0.0, %v1546
      %v1548 = vpop.f32.mrf.mxu0
      %v1549 = vadd.f32 0.0, %v1548
      %1550 = vmatmul.bf16.gmra.mxu0 %v1077
      %v1551 = vpop.f32.mrf.mxu0
      %v1552 = vadd.f32 0.0, %v1551
      %v1553 = vpop.f32.mrf.mxu0
      %v1554 = vadd.f32 0.0, %v1553
      %1555 = vmatmul.bf16.gmra.mxu0 %v1080
      %v1556 = vpop.f32.mrf.mxu0
      %v1557 = vadd.f32 0.0, %v1556
      %v1558 = vpop.f32.mrf.mxu0
      %v1559 = vadd.f32 0.0, %v1558
      %1560 = vmatmul.bf16.gmra.mxu0 %v1083
      %v1561 = vpop.f32.mrf.mxu0
      %v1562 = vadd.f32 0.0, %v1561
      %v1563 = vpop.f32.mrf.mxu0
      %v1564 = vadd.f32 0.0, %v1563
      %1565 = vmatmul.bf16.gmra.mxu0 %v1086
      %v1566 = vpop.f32.mrf.mxu0
      %v1567 = vadd.f32 0.0, %v1566
      %v1568 = vpop.f32.mrf.mxu0
      %v1569 = vadd.f32 0.0, %v1568
      %1570 = vmatmul.bf16.gmra.mxu0 %v1089
      %v1571 = vpop.f32.mrf.mxu0
      %v1572 = vadd.f32 0.0, %v1571
      %v1573 = vpop.f32.mrf.mxu0
      %v1574 = vadd.f32 0.0, %v1573
      %1575 = vmatmul.bf16.gmra.mxu0 %v1092
      %v1576 = vpop.f32.mrf.mxu0
      %v1577 = vadd.f32 0.0, %v1576
      %v1578 = vpop.f32.mrf.mxu0
      %v1579 = vadd.f32 0.0, %v1578
      %1580 = vmatmul.bf16.gmra.mxu0 %v1095
      %v1581 = vpop.f32.mrf.mxu0
      %v1582 = vadd.f32 0.0, %v1581
      %v1583 = vpop.f32.mrf.mxu0
      %v1584 = vadd.f32 0.0, %v1583
      %1585 = vmatmul.bf16.gmra.mxu0 %v1098
      %v1586 = vpop.f32.mrf.mxu0
      %v1587 = vadd.f32 0.0, %v1586
      %v1588 = vpop.f32.mrf.mxu0
      %v1589 = vadd.f32 0.0, %v1588
      %1590 = vmatmul.bf16.gmra.mxu0 %v1101
      %v1591 = vpop.f32.mrf.mxu0
      %v1592 = vadd.f32 0.0, %v1591
      %v1593 = vpop.f32.mrf.mxu0
      %v1594 = vadd.f32 0.0, %v1593
      %1595 = vmatmul.bf16.gmra.mxu0 %v1104
      %v1596 = vpop.f32.mrf.mxu0
      %v1597 = vadd.f32 0.0, %v1596
      %v1598 = vpop.f32.mrf.mxu0
      %v1599 = vadd.f32 0.0, %v1598
      %1600 = vmatmul.bf16.gmra.mxu0 %v1107
      %v1601 = vpop.f32.mrf.mxu0
      %v1602 = vadd.f32 0.0, %v1601
      %v1603 = vpop.f32.mrf.mxu0
      %v1604 = vadd.f32 0.0, %v1603
      %1605 = vmatmul.bf16.gmra.mxu0 %v1110
      %v1606 = vpop.f32.mrf.mxu0
      %v1607 = vadd.f32 0.0, %v1606
      %v1608 = vpop.f32.mrf.mxu0
      %v1609 = vadd.f32 0.0, %v1608
      %1610 = vmatmul.bf16.gmra.mxu0 %v1113
      %v1611 = vpop.f32.mrf.mxu0
      %v1612 = vadd.f32 0.0, %v1611
      %v1613 = vpop.f32.mrf.mxu0
      %v1614 = vadd.f32 0.0, %v1613
      %1615 = vmatmul.bf16.gmra.mxu0 %v1116
      %v1616 = vpop.f32.mrf.mxu0
      %v1617 = vadd.f32 0.0, %v1616
      %v1618 = vpop.f32.mrf.mxu0
      %v1619 = vadd.f32 0.0, %v1618
      %1620 = vmatmul.bf16.gmra.mxu0 %v1119
      %v1621 = vpop.f32.mrf.mxu0
      %v1622 = vadd.f32 0.0, %v1621
      %v1623 = vpop.f32.mrf.mxu0
      %v1624 = vadd.f32 0.0, %v1623
      %1625 = vmatmul.bf16.gmra.mxu0 %v1122
      %v1626 = vpop.f32.mrf.mxu0
      %v1627 = vadd.f32 0.0, %v1626
      %v1628 = vpop.f32.mrf.mxu0
      %v1629 = vadd.f32 0.0, %v1628
      %1630 = vdwg.mxu0
      %1631 = vmatpush.bf16.msra.mxu0 0
      %1632 = vmatpush.bf16.msra.mxu0 0
      %1633 = vmatpush.bf16.msra.mxu0 0
      %1634 = vmatpush.bf16.msra.mxu0 0
      %1635 = vmatpush.bf16.msra.mxu0 0
      %1636 = vmatpush.bf16.msra.mxu0 0
      %1637 = vmatpush.bf16.msra.mxu0 0
      %1638 = vmatpush.bf16.msra.mxu0 %v1022
      %1639 = vmatmul.bf16.gmra.mxu0 %v1029
      %v1640 = vpop.f32.mrf.mxu0
      %v1641 = vadd.f32 0.0, %v1640
      %v1642 = vpop.f32.mrf.mxu0
      %v1643 = vadd.f32 0.0, %v1642
      %1644 = vmatmul.bf16.gmra.mxu0 %v1032
      %v1645 = vpop.f32.mrf.mxu0
      %v1646 = vadd.f32 0.0, %v1645
      %v1647 = vpop.f32.mrf.mxu0
      %v1648 = vadd.f32 0.0, %v1647
      %1649 = vmatmul.bf16.gmra.mxu0 %v1035
      %v1650 = vpop.f32.mrf.mxu0
      %v1651 = vadd.f32 0.0, %v1650
      %v1652 = vpop.f32.mrf.mxu0
      %v1653 = vadd.f32 0.0, %v1652
      %1654 = vmatmul.bf16.gmra.mxu0 %v1038
      %v1655 = vpop.f32.mrf.mxu0
      %v1656 = vadd.f32 0.0, %v1655
      %v1657 = vpop.f32.mrf.mxu0
      %v1658 = vadd.f32 0.0, %v1657
      %1659 = vmatmul.bf16.gmra.mxu0 %v1041
      %v1660 = vpop.f32.mrf.mxu0
      %v1661 = vadd.f32 0.0, %v1660
      %v1662 = vpop.f32.mrf.mxu0
      %v1663 = vadd.f32 0.0, %v1662
      %1664 = vmatmul.bf16.gmra.mxu0 %v1044
      %v1665 = vpop.f32.mrf.mxu0
      %v1666 = vadd.f32 0.0, %v1665
      %v1667 = vpop.f32.mrf.mxu0
      %v1668 = vadd.f32 0.0, %v1667
      %1669 = vmatmul.bf16.gmra.mxu0 %v1047
      %v1670 = vpop.f32.mrf.mxu0
      %v1671 = vadd.f32 0.0, %v1670
      %v1672 = vpop.f32.mrf.mxu0
      %v1673 = vadd.f32 0.0, %v1672
      %1674 = vmatmul.bf16.gmra.mxu0 %v1050
      %v1675 = vpop.f32.mrf.mxu0
      %v1676 = vadd.f32 0.0, %v1675
      %v1677 = vpop.f32.mrf.mxu0
      %v1678 = vadd.f32 0.0, %v1677
      %1679 = vmatmul.bf16.gmra.mxu0 %v1053
      %v1680 = vpop.f32.mrf.mxu0
      %v1681 = vadd.f32 0.0, %v1680
      %v1682 = vpop.f32.mrf.mxu0
      %v1683 = vadd.f32 0.0, %v1682
      %1684 = vmatmul.bf16.gmra.mxu0 %v1056
      %v1685 = vpop.f32.mrf.mxu0
      %v1686 = vadd.f32 0.0, %v1685
      %v1687 = vpop.f32.mrf.mxu0
      %v1688 = vadd.f32 0.0, %v1687
      %1689 = vmatmul.bf16.gmra.mxu0 %v1059
      %v1690 = vpop.f32.mrf.mxu0
      %v1691 = vadd.f32 0.0, %v1690
      %v1692 = vpop.f32.mrf.mxu0
      %v1693 = vadd.f32 0.0, %v1692
      %1694 = vmatmul.bf16.gmra.mxu0 %v1062
      %v1695 = vpop.f32.mrf.mxu0
      %v1696 = vadd.f32 0.0, %v1695
      %v1697 = vpop.f32.mrf.mxu0
      %v1698 = vadd.f32 0.0, %v1697
      %1699 = vmatmul.bf16.gmra.mxu0 %v1065
      %v1700 = vpop.f32.mrf.mxu0
      %v1701 = vadd.f32 0.0, %v1700
      %v1702 = vpop.f32.mrf.mxu0
      %v1703 = vadd.f32 0.0, %v1702
      %1704 = vmatmul.bf16.gmra.mxu0 %v1068
      %v1705 = vpop.f32.mrf.mxu0
      %v1706 = vadd.f32 0.0, %v1705
      %v1707 = vpop.f32.mrf.mxu0
      %v1708 = vadd.f32 0.0, %v1707
      %1709 = vmatmul.bf16.gmra.mxu0 %v1071
      %v1710 = vpop.f32.mrf.mxu0
      %v1711 = vadd.f32 0.0, %v1710
      %v1712 = vpop.f32.mrf.mxu0
      %v1713 = vadd.f32 0.0, %v1712
      %1714 = vmatmul.bf16.gmra.mxu0 %v1074
      %v1715 = vpop.f32.mrf.mxu0
      %v1716 = vadd.f32 0.0, %v1715
      %v1717 = vpop.f32.mrf.mxu0
      %v1718 = vadd.f32 0.0, %v1717
      %1719 = vmatmul.bf16.gmra.mxu0 %v1077
      %v1720 = vpop.f32.mrf.mxu0
      %v1721 = vadd.f32 0.0, %v1720
      %v1722 = vpop.f32.mrf.mxu0
      %v1723 = vadd.f32 0.0, %v1722
      %1724 = vmatmul.bf16.gmra.mxu0 %v1080
      %v1725 = vpop.f32.mrf.mxu0
      %v1726 = vadd.f32 0.0, %v1725
      %v1727 = vpop.f32.mrf.mxu0
      %v1728 = vadd.f32 0.0, %v1727
      %1729 = vmatmul.bf16.gmra.mxu0 %v1083
      %v1730 = vpop.f32.mrf.mxu0
      %v1731 = vadd.f32 0.0, %v1730
      %v1732 = vpop.f32.mrf.mxu0
      %v1733 = vadd.f32 0.0, %v1732
      %1734 = vmatmul.bf16.gmra.mxu0 %v1086
      %v1735 = vpop.f32.mrf.mxu0
      %v1736 = vadd.f32 0.0, %v1735
      %v1737 = vpop.f32.mrf.mxu0
      %v1738 = vadd.f32 0.0, %v1737
      %1739 = vmatmul.bf16.gmra.mxu0 %v1089
      %v1740 = vpop.f32.mrf.mxu0
      %v1741 = vadd.f32 0.0, %v1740
      %v1742 = vpop.f32.mrf.mxu0
      %v1743 = vadd.f32 0.0, %v1742
      %1744 = vmatmul.bf16.gmra.mxu0 %v1092
      %v1745 = vpop.f32.mrf.mxu0
      %v1746 = vadd.f32 0.0, %v1745
      %v1747 = vpop.f32.mrf.mxu0
      %v1748 = vadd.f32 0.0, %v1747
      %1749 = vmatmul.bf16.gmra.mxu0 %v1095
      %v1750 = vpop.f32.mrf.mxu0
      %v1751 = vadd.f32 0.0, %v1750
      %v1752 = vpop.f32.mrf.mxu0
      %v1753 = vadd.f32 0.0, %v1752
      %1754 = vmatmul.bf16.gmra.mxu0 %v1098
      %v1755 = vpop.f32.mrf.mxu0
      %v1756 = vadd.f32 0.0, %v1755
      %v1757 = vpop.f32.mrf.mxu0
      %v1758 = vadd.f32 0.0, %v1757
      %1759 = vmatmul.bf16.gmra.mxu0 %v1101
      %v1760 = vpop.f32.mrf.mxu0
      %v1761 = vadd.f32 0.0, %v1760
      %v1762 = vpop.f32.mrf.mxu0
      %v1763 = vadd.f32 0.0, %v1762
      %1764 = vmatmul.bf16.gmra.mxu0 %v1104
      %v1765 = vpop.f32.mrf.mxu0
      %v1766 = vadd.f32 0.0, %v1765
      %v1767 = vpop.f32.mrf.mxu0
      %v1768 = vadd.f32 0.0, %v1767
      %1769 = vmatmul.bf16.gmra.mxu0 %v1107
      %v1770 = vpop.f32.mrf.mxu0
      %v1771 = vadd.f32 0.0, %v1770
      %v1772 = vpop.f32.mrf.mxu0
      %v1773 = vadd.f32 0.0, %v1772
      %1774 = vmatmul.bf16.gmra.mxu0 %v1110
      %v1775 = vpop.f32.mrf.mxu0
      %v1776 = vadd.f32 0.0, %v1775
      %v1777 = vpop.f32.mrf.mxu0
      %v1778 = vadd.f32 0.0, %v1777
      %1779 = vmatmul.bf16.gmra.mxu0 %v1113
      %v1780 = vpop.f32.mrf.mxu0
      %v1781 = vadd.f32 0.0, %v1780
      %v1782 = vpop.f32.mrf.mxu0
      %v1783 = vadd.f32 0.0, %v1782
      %1784 = vmatmul.bf16.gmra.mxu0 %v1116
      %v1785 = vpop.f32.mrf.mxu0
      %v1786 = vadd.f32 0.0, %v1785
      %v1787 = vpop.f32.mrf.mxu0
      %v1788 = vadd.f32 0.0, %v1787
      %1789 = vmatmul.bf16.gmra.mxu0 %v1119
      %v1790 = vpop.f32.mrf.mxu0
      %v1791 = vadd.f32 0.0, %v1790
      %v1792 = vpop.f32.mrf.mxu0
      %v1793 = vadd.f32 0.0, %v1792
      %1794 = vmatmul.bf16.gmra.mxu0 %v1122
      %v1795 = vpop.f32.mrf.mxu0
      %v1796 = vadd.f32 0.0, %v1795
      %v1797 = vpop.f32.mrf.mxu0
      %v1798 = vadd.f32 0.0, %v1797
      %1799 = vdwg.mxu0
      %v1800 = vpack.c.bf16 %v1136, %v1134
      %v1801 = vpack.c.bf16 %v1305, %v1303
      %v1802 = vpack.c.bf16 %v1474, %v1472
      %v1803 = vpack.c.bf16 %v1643, %v1641
      %v1804 = vpack.c.bf16 %v1141, %v1139
      %v1805 = vpack.c.bf16 %v1310, %v1308
      %v1806 = vpack.c.bf16 %v1479, %v1477
      %v1807 = vpack.c.bf16 %v1648, %v1646
      %v1808 = vpack.c.bf16 %v1146, %v1144
      %v1809 = vpack.c.bf16 %v1315, %v1313
      %v1810 = vpack.c.bf16 %v1484, %v1482
      %v1811 = vpack.c.bf16 %v1653, %v1651
      %v1812 = vpack.c.bf16 %v1151, %v1149
      %v1813 = vpack.c.bf16 %v1320, %v1318
      %v1814 = vpack.c.bf16 %v1489, %v1487
      %v1815 = vpack.c.bf16 %v1658, %v1656
      %v1816 = vpack.c.bf16 %v1156, %v1154
      %v1817 = vpack.c.bf16 %v1325, %v1323
      %v1818 = vpack.c.bf16 %v1494, %v1492
      %v1819 = vpack.c.bf16 %v1663, %v1661
      %v1820 = vpack.c.bf16 %v1161, %v1159
      %v1821 = vpack.c.bf16 %v1330, %v1328
      %v1822 = vpack.c.bf16 %v1499, %v1497
      %v1823 = vpack.c.bf16 %v1668, %v1666
      %v1824 = vpack.c.bf16 %v1166, %v1164
      %v1825 = vpack.c.bf16 %v1335, %v1333
      %v1826 = vpack.c.bf16 %v1504, %v1502
      %v1827 = vpack.c.bf16 %v1673, %v1671
      %v1828 = vpack.c.bf16 %v1171, %v1169
      %v1829 = vpack.c.bf16 %v1340, %v1338
      %v1830 = vpack.c.bf16 %v1509, %v1507
      %v1831 = vpack.c.bf16 %v1678, %v1676
      %v1832 = vpack.c.bf16 %v1176, %v1174
      %v1833 = vpack.c.bf16 %v1345, %v1343
      %v1834 = vpack.c.bf16 %v1514, %v1512
      %v1835 = vpack.c.bf16 %v1683, %v1681
      %v1836 = vpack.c.bf16 %v1181, %v1179
      %v1837 = vpack.c.bf16 %v1350, %v1348
      %v1838 = vpack.c.bf16 %v1519, %v1517
      %v1839 = vpack.c.bf16 %v1688, %v1686
      %v1840 = vpack.c.bf16 %v1186, %v1184
      %v1841 = vpack.c.bf16 %v1355, %v1353
      %v1842 = vpack.c.bf16 %v1524, %v1522
      %v1843 = vpack.c.bf16 %v1693, %v1691
      %v1844 = vpack.c.bf16 %v1191, %v1189
      %v1845 = vpack.c.bf16 %v1360, %v1358
      %v1846 = vpack.c.bf16 %v1529, %v1527
      %v1847 = vpack.c.bf16 %v1698, %v1696
      %v1848 = vpack.c.bf16 %v1196, %v1194
      %v1849 = vpack.c.bf16 %v1365, %v1363
      %v1850 = vpack.c.bf16 %v1534, %v1532
      %v1851 = vpack.c.bf16 %v1703, %v1701
      %v1852 = vpack.c.bf16 %v1201, %v1199
      %v1853 = vpack.c.bf16 %v1370, %v1368
      %v1854 = vpack.c.bf16 %v1539, %v1537
      %v1855 = vpack.c.bf16 %v1708, %v1706
      %v1856 = vpack.c.bf16 %v1206, %v1204
      %v1857 = vpack.c.bf16 %v1375, %v1373
      %v1858 = vpack.c.bf16 %v1544, %v1542
      %v1859 = vpack.c.bf16 %v1713, %v1711
      %v1860 = vpack.c.bf16 %v1211, %v1209
      %v1861 = vpack.c.bf16 %v1380, %v1378
      %v1862 = vpack.c.bf16 %v1549, %v1547
      %v1863 = vpack.c.bf16 %v1718, %v1716
      %v1864 = vpack.c.bf16 %v1216, %v1214
      %v1865 = vpack.c.bf16 %v1385, %v1383
      %v1866 = vpack.c.bf16 %v1554, %v1552
      %v1867 = vpack.c.bf16 %v1723, %v1721
      %v1868 = vpack.c.bf16 %v1221, %v1219
      %v1869 = vpack.c.bf16 %v1390, %v1388
      %v1870 = vpack.c.bf16 %v1559, %v1557
      %v1871 = vpack.c.bf16 %v1728, %v1726
      %v1872 = vpack.c.bf16 %v1226, %v1224
      %v1873 = vpack.c.bf16 %v1395, %v1393
      %v1874 = vpack.c.bf16 %v1564, %v1562
      %v1875 = vpack.c.bf16 %v1733, %v1731
      %v1876 = vpack.c.bf16 %v1231, %v1229
      %v1877 = vpack.c.bf16 %v1400, %v1398
      %v1878 = vpack.c.bf16 %v1569, %v1567
      %v1879 = vpack.c.bf16 %v1738, %v1736
      %v1880 = vpack.c.bf16 %v1236, %v1234
      %v1881 = vpack.c.bf16 %v1405, %v1403
      %v1882 = vpack.c.bf16 %v1574, %v1572
      %v1883 = vpack.c.bf16 %v1743, %v1741
      %v1884 = vpack.c.bf16 %v1241, %v1239
      %v1885 = vpack.c.bf16 %v1410, %v1408
      %v1886 = vpack.c.bf16 %v1579, %v1577
      %v1887 = vpack.c.bf16 %v1748, %v1746
      %v1888 = vpack.c.bf16 %v1246, %v1244
      %v1889 = vpack.c.bf16 %v1415, %v1413
      %v1890 = vpack.c.bf16 %v1584, %v1582
      %v1891 = vpack.c.bf16 %v1753, %v1751
      %v1892 = vpack.c.bf16 %v1251, %v1249
      %v1893 = vpack.c.bf16 %v1420, %v1418
      %v1894 = vpack.c.bf16 %v1589, %v1587
      %v1895 = vpack.c.bf16 %v1758, %v1756
      %v1896 = vpack.c.bf16 %v1256, %v1254
      %v1897 = vpack.c.bf16 %v1425, %v1423
      %v1898 = vpack.c.bf16 %v1594, %v1592
      %v1899 = vpack.c.bf16 %v1763, %v1761
      %v1900 = vpack.c.bf16 %v1261, %v1259
      %v1901 = vpack.c.bf16 %v1430, %v1428
      %v1902 = vpack.c.bf16 %v1599, %v1597
      %v1903 = vpack.c.bf16 %v1768, %v1766
      %v1904 = vpack.c.bf16 %v1266, %v1264
      %v1905 = vpack.c.bf16 %v1435, %v1433
      %v1906 = vpack.c.bf16 %v1604, %v1602
      %v1907 = vpack.c.bf16 %v1773, %v1771
      %v1908 = vpack.c.bf16 %v1271, %v1269
      %v1909 = vpack.c.bf16 %v1440, %v1438
      %v1910 = vpack.c.bf16 %v1609, %v1607
      %v1911 = vpack.c.bf16 %v1778, %v1776
      %v1912 = vpack.c.bf16 %v1276, %v1274
      %v1913 = vpack.c.bf16 %v1445, %v1443
      %v1914 = vpack.c.bf16 %v1614, %v1612
      %v1915 = vpack.c.bf16 %v1783, %v1781
      %v1916 = vpack.c.bf16 %v1281, %v1279
      %v1917 = vpack.c.bf16 %v1450, %v1448
      %v1918 = vpack.c.bf16 %v1619, %v1617
      %v1919 = vpack.c.bf16 %v1788, %v1786
      %v1920 = vpack.c.bf16 %v1286, %v1284
      %v1921 = vpack.c.bf16 %v1455, %v1453
      %v1922 = vpack.c.bf16 %v1624, %v1622
      %v1923 = vpack.c.bf16 %v1793, %v1791
      %v1924 = vpack.c.bf16 %v1291, %v1289
      %v1925 = vpack.c.bf16 %v1460, %v1458
      %v1926 = vpack.c.bf16 %v1629, %v1627
      %v1927 = vpack.c.bf16 %v1798, %v1796
      %v1928 = vld [vmem:[%s2] sm:$0xff]
      %v1929 = vld [vmem:[%s2 + $0x8] sm:$0xff]
      %v1930 = vld [vmem:[%s2 + $0x10] sm:$0xff]
      %v1931 = vld [vmem:[%s2 + $0x18] sm:$0xff]
      %v1932 = vld [vmem:[%s2 + $0x20] sm:$0xff]
      %v1933 = vld [vmem:[%s2 + $0x28] sm:$0xff]
      %v1934 = vld [vmem:[%s2 + $0x30] sm:$0xff]
      %v1935 = vld [vmem:[%s2 + $0x38] sm:$0xff]
      %v1936 = vld [vmem:[%s2 + $0x40] sm:$0xff]
      %v1937 = vld [vmem:[%s2 + $0x48] sm:$0xff]
      %v1938 = vld [vmem:[%s2 + $0x50] sm:$0xff]
      %v1939 = vld [vmem:[%s2 + $0x58] sm:$0xff]
      %v1940 = vld [vmem:[%s2 + $0x60] sm:$0xff]
      %v1941 = vld [vmem:[%s2 + $0x68] sm:$0xff]
      %v1942 = vld [vmem:[%s2 + $0x70] sm:$0xff]
      %v1943 = vld [vmem:[%s2 + $0x78] sm:$0xff]
      %v1944 = vld [vmem:[%s2 + $0x80] sm:$0xff]
      %v1945 = vld [vmem:[%s2 + $0x88] sm:$0xff]
      %v1946 = vld [vmem:[%s2 + $0x90] sm:$0xff]
      %v1947 = vld [vmem:[%s2 + $0x98] sm:$0xff]
      %v1948 = vld [vmem:[%s2 + $0xa0] sm:$0xff]
      %v1949 = vld [vmem:[%s2 + $0xa8] sm:$0xff]
      %v1950 = vld [vmem:[%s2 + $0xb0] sm:$0xff]
      %v1951 = vld [vmem:[%s2 + $0xb8] sm:$0xff]
      %v1952 = vld [vmem:[%s2 + $0xc0] sm:$0xff]
      %v1953 = vld [vmem:[%s2 + $0xc8] sm:$0xff]
      %v1954 = vld [vmem:[%s2 + $0xd0] sm:$0xff]
      %v1955 = vld [vmem:[%s2 + $0xd8] sm:$0xff]
      %v1956 = vld [vmem:[%s2 + $0xe0] sm:$0xff]
      %v1957 = vld [vmem:[%s2 + $0xe8] sm:$0xff]
      %v1958 = vld [vmem:[%s2 + $0xf0] sm:$0xff]
      %v1959 = vld [vmem:[%s2 + $0xf8] sm:$0xff]
      %v1960 = vld [vmem:[%s2 + $0x100] sm:$0xff]
      %v1961 = vld [vmem:[%s2 + $0x108] sm:$0xff]
      %v1962 = vld [vmem:[%s2 + $0x110] sm:$0xff]
      %v1963 = vld [vmem:[%s2 + $0x118] sm:$0xff]
      %v1964 = vld [vmem:[%s2 + $0x120] sm:$0xff]
      %v1965 = vld [vmem:[%s2 + $0x128] sm:$0xff]
      %v1966 = vld [vmem:[%s2 + $0x130] sm:$0xff]
      %v1967 = vld [vmem:[%s2 + $0x138] sm:$0xff]
      %v1968 = vld [vmem:[%s2 + $0x140] sm:$0xff]
      %v1969 = vld [vmem:[%s2 + $0x148] sm:$0xff]
      %v1970 = vld [vmem:[%s2 + $0x150] sm:$0xff]
      %v1971 = vld [vmem:[%s2 + $0x158] sm:$0xff]
      %v1972 = vld [vmem:[%s2 + $0x160] sm:$0xff]
      %v1973 = vld [vmem:[%s2 + $0x168] sm:$0xff]
      %v1974 = vld [vmem:[%s2 + $0x170] sm:$0xff]
      %v1975 = vld [vmem:[%s2 + $0x178] sm:$0xff]
      %v1976 = vld [vmem:[%s2 + $0x180] sm:$0xff]
      %v1977 = vld [vmem:[%s2 + $0x188] sm:$0xff]
      %v1978 = vld [vmem:[%s2 + $0x190] sm:$0xff]
      %v1979 = vld [vmem:[%s2 + $0x198] sm:$0xff]
      %v1980 = vld [vmem:[%s2 + $0x1a0] sm:$0xff]
      %v1981 = vld [vmem:[%s2 + $0x1a8] sm:$0xff]
      %v1982 = vld [vmem:[%s2 + $0x1b0] sm:$0xff]
      %v1983 = vld [vmem:[%s2 + $0x1b8] sm:$0xff]
      %v1984 = vld [vmem:[%s2 + $0x1c0] sm:$0xff]
      %v1985 = vld [vmem:[%s2 + $0x1c8] sm:$0xff]
      %v1986 = vld [vmem:[%s2 + $0x1d0] sm:$0xff]
      %v1987 = vld [vmem:[%s2 + $0x1d8] sm:$0xff]
      %v1988 = vld [vmem:[%s2 + $0x1e0] sm:$0xff]
      %v1989 = vld [vmem:[%s2 + $0x1e8] sm:$0xff]
      %v1990 = vld [vmem:[%s2 + $0x1f0] sm:$0xff]
      %v1991 = vld [vmem:[%s2 + $0x1f8] sm:$0xff]
      %v1992 = vld [vmem:[%s3] sm:$0x3]
      %v1994 = vperm.slane %v1992, 0
      %v1995 = vperm.slane %v1992, 1
      %v2062 = vunpack.c.l.b16 %v1928
      %v2063 = vunpack.c.h.b16 %v1928
      %v2064 = vunpack.c.l.b16 %v1929
      %v2065 = vunpack.c.h.b16 %v1929
      %v2066 = vunpack.c.l.b16 %v1930
      %v2067 = vunpack.c.h.b16 %v1930
      %v2068 = vunpack.c.l.b16 %v1931
      %v2069 = vunpack.c.h.b16 %v1931
      %v2070 = vunpack.c.l.b16 %v1932
      %v2071 = vunpack.c.h.b16 %v1932
      %v2072 = vunpack.c.l.b16 %v1933
      %v2073 = vunpack.c.h.b16 %v1933
      %v2074 = vunpack.c.l.b16 %v1934
      %v2075 = vunpack.c.h.b16 %v1934
      %v2076 = vunpack.c.l.b16 %v1935
      %v2077 = vunpack.c.h.b16 %v1935
      %v2078 = vunpack.c.l.b16 %v1936
      %v2079 = vunpack.c.h.b16 %v1936
      %v2080 = vunpack.c.l.b16 %v1937
      %v2081 = vunpack.c.h.b16 %v1937
      %v2082 = vunpack.c.l.b16 %v1938
      %v2083 = vunpack.c.h.b16 %v1938
      %v2084 = vunpack.c.l.b16 %v1939
      %v2085 = vunpack.c.h.b16 %v1939
      %v2086 = vunpack.c.l.b16 %v1940
      %v2087 = vunpack.c.h.b16 %v1940
      %v2088 = vunpack.c.l.b16 %v1941
      %v2089 = vunpack.c.h.b16 %v1941
      %v2090 = vunpack.c.l.b16 %v1942
      %v2091 = vunpack.c.h.b16 %v1942
      %v2092 = vunpack.c.l.b16 %v1943
      %v2093 = vunpack.c.h.b16 %v1943
      %v2094 = vunpack.c.l.b16 %v1944
      %v2095 = vunpack.c.h.b16 %v1944
      %v2096 = vunpack.c.l.b16 %v1945
      %v2097 = vunpack.c.h.b16 %v1945
      %v2098 = vunpack.c.l.b16 %v1946
      %v2099 = vunpack.c.h.b16 %v1946
      %v2100 = vunpack.c.l.b16 %v1947
      %v2101 = vunpack.c.h.b16 %v1947
      %v2102 = vunpack.c.l.b16 %v1948
      %v2103 = vunpack.c.h.b16 %v1948
      %v2104 = vunpack.c.l.b16 %v1949
      %v2105 = vunpack.c.h.b16 %v1949
      %v2106 = vunpack.c.l.b16 %v1950
      %v2107 = vunpack.c.h.b16 %v1950
      %v2108 = vunpack.c.l.b16 %v1951
      %v2109 = vunpack.c.h.b16 %v1951
      %v2110 = vunpack.c.l.b16 %v1952
      %v2111 = vunpack.c.h.b16 %v1952
      %v2112 = vunpack.c.l.b16 %v1953
      %v2113 = vunpack.c.h.b16 %v1953
      %v2114 = vunpack.c.l.b16 %v1954
      %v2115 = vunpack.c.h.b16 %v1954
      %v2116 = vunpack.c.l.b16 %v1955
      %v2117 = vunpack.c.h.b16 %v1955
      %v2118 = vunpack.c.l.b16 %v1956
      %v2119 = vunpack.c.h.b16 %v1956
      %v2120 = vunpack.c.l.b16 %v1957
      %v2121 = vunpack.c.h.b16 %v1957
      %v2122 = vunpack.c.l.b16 %v1958
      %v2123 = vunpack.c.h.b16 %v1958
      %v2124 = vunpack.c.l.b16 %v1959
      %v2125 = vunpack.c.h.b16 %v1959
      %v2126 = vunpack.c.l.b16 %v1960
      %v2127 = vunpack.c.h.b16 %v1960
      %v2128 = vunpack.c.l.b16 %v1961
      %v2129 = vunpack.c.h.b16 %v1961
      %v2130 = vunpack.c.l.b16 %v1962
      %v2131 = vunpack.c.h.b16 %v1962
      %v2132 = vunpack.c.l.b16 %v1963
      %v2133 = vunpack.c.h.b16 %v1963
      %v2134 = vunpack.c.l.b16 %v1964
      %v2135 = vunpack.c.h.b16 %v1964
      %v2136 = vunpack.c.l.b16 %v1965
      %v2137 = vunpack.c.h.b16 %v1965
      %v2138 = vunpack.c.l.b16 %v1966
      %v2139 = vunpack.c.h.b16 %v1966
      %v2140 = vunpack.c.l.b16 %v1967
      %v2141 = vunpack.c.h.b16 %v1967
      %v2142 = vunpack.c.l.b16 %v1968
      %v2143 = vunpack.c.h.b16 %v1968
      %v2144 = vunpack.c.l.b16 %v1969
      %v2145 = vunpack.c.h.b16 %v1969
      %v2146 = vunpack.c.l.b16 %v1970
      %v2147 = vunpack.c.h.b16 %v1970
      %v2148 = vunpack.c.l.b16 %v1971
      %v2149 = vunpack.c.h.b16 %v1971
      %v2150 = vunpack.c.l.b16 %v1972
      %v2151 = vunpack.c.h.b16 %v1972
      %v2152 = vunpack.c.l.b16 %v1973
      %v2153 = vunpack.c.h.b16 %v1973
      %v2154 = vunpack.c.l.b16 %v1974
      %v2155 = vunpack.c.h.b16 %v1974
      %v2156 = vunpack.c.l.b16 %v1975
      %v2157 = vunpack.c.h.b16 %v1975
      %v2158 = vunpack.c.l.b16 %v1976
      %v2159 = vunpack.c.h.b16 %v1976
      %v2160 = vunpack.c.l.b16 %v1977
      %v2161 = vunpack.c.h.b16 %v1977
      %v2162 = vunpack.c.l.b16 %v1978
      %v2163 = vunpack.c.h.b16 %v1978
      %v2164 = vunpack.c.l.b16 %v1979
      %v2165 = vunpack.c.h.b16 %v1979
      %v2166 = vunpack.c.l.b16 %v1980
      %v2167 = vunpack.c.h.b16 %v1980
      %v2168 = vunpack.c.l.b16 %v1981
      %v2169 = vunpack.c.h.b16 %v1981
      %v2170 = vunpack.c.l.b16 %v1982
      %v2171 = vunpack.c.h.b16 %v1982
      %v2172 = vunpack.c.l.b16 %v1983
      %v2173 = vunpack.c.h.b16 %v1983
      %v2174 = vunpack.c.l.b16 %v1984
      %v2175 = vunpack.c.h.b16 %v1984
      %v2176 = vunpack.c.l.b16 %v1985
      %v2177 = vunpack.c.h.b16 %v1985
      %v2178 = vunpack.c.l.b16 %v1986
      %v2179 = vunpack.c.h.b16 %v1986
      %v2180 = vunpack.c.l.b16 %v1987
      %v2181 = vunpack.c.h.b16 %v1987
      %v2182 = vunpack.c.l.b16 %v1988
      %v2183 = vunpack.c.h.b16 %v1988
      %v2184 = vunpack.c.l.b16 %v1989
      %v2185 = vunpack.c.h.b16 %v1989
      %v2186 = vunpack.c.l.b16 %v1990
      %v2187 = vunpack.c.h.b16 %v1990
      %v2188 = vunpack.c.l.b16 %v1991
      %v2189 = vunpack.c.h.b16 %v1991
      %v2190 = vpack.c.b16 %v2064, %v2062
      %v2191 = vpack.c.b16 %v2065, %v2063
      %v2192 = vpack.c.b16 %v2068, %v2066
      %v2193 = vpack.c.b16 %v2069, %v2067
      %v2194 = vpack.c.b16 %v2072, %v2070
      %v2195 = vpack.c.b16 %v2073, %v2071
      %v2196 = vpack.c.b16 %v2076, %v2074
      %v2197 = vpack.c.b16 %v2077, %v2075
      %v2198 = vpack.c.b16 %v2080, %v2078
      %v2199 = vpack.c.b16 %v2081, %v2079
      %v2200 = vpack.c.b16 %v2084, %v2082
      %v2201 = vpack.c.b16 %v2085, %v2083
      %v2202 = vpack.c.b16 %v2088, %v2086
      %v2203 = vpack.c.b16 %v2089, %v2087
      %v2204 = vpack.c.b16 %v2092, %v2090
      %v2205 = vpack.c.b16 %v2093, %v2091
      %v2206 = vpack.c.b16 %v2096, %v2094
      %v2207 = vpack.c.b16 %v2097, %v2095
      %v2208 = vpack.c.b16 %v2100, %v2098
      %v2209 = vpack.c.b16 %v2101, %v2099
      %v2210 = vpack.c.b16 %v2104, %v2102
      %v2211 = vpack.c.b16 %v2105, %v2103
      %v2212 = vpack.c.b16 %v2108, %v2106
      %v2213 = vpack.c.b16 %v2109, %v2107
      %v2214 = vpack.c.b16 %v2112, %v2110
      %v2215 = vpack.c.b16 %v2113, %v2111
      %v2216 = vpack.c.b16 %v2116, %v2114
      %v2217 = vpack.c.b16 %v2117, %v2115
      %v2218 = vpack.c.b16 %v2120, %v2118
      %v2219 = vpack.c.b16 %v2121, %v2119
      %v2220 = vpack.c.b16 %v2124, %v2122
      %v2221 = vpack.c.b16 %v2125, %v2123
      %v2222 = vpack.c.b16 %v2128, %v2126
      %v2223 = vpack.c.b16 %v2129, %v2127
      %v2224 = vpack.c.b16 %v2132, %v2130
      %v2225 = vpack.c.b16 %v2133, %v2131
      %v2226 = vpack.c.b16 %v2136, %v2134
      %v2227 = vpack.c.b16 %v2137, %v2135
      %v2228 = vpack.c.b16 %v2140, %v2138
      %v2229 = vpack.c.b16 %v2141, %v2139
      %v2230 = vpack.c.b16 %v2144, %v2142
      %v2231 = vpack.c.b16 %v2145, %v2143
      %v2232 = vpack.c.b16 %v2148, %v2146
      %v2233 = vpack.c.b16 %v2149, %v2147
      %v2234 = vpack.c.b16 %v2152, %v2150
      %v2235 = vpack.c.b16 %v2153, %v2151
      %v2236 = vpack.c.b16 %v2156, %v2154
      %v2237 = vpack.c.b16 %v2157, %v2155
      %v2238 = vpack.c.b16 %v2160, %v2158
      %v2239 = vpack.c.b16 %v2161, %v2159
      %v2240 = vpack.c.b16 %v2164, %v2162
      %v2241 = vpack.c.b16 %v2165, %v2163
      %v2242 = vpack.c.b16 %v2168, %v2166
      %v2243 = vpack.c.b16 %v2169, %v2167
      %v2244 = vpack.c.b16 %v2172, %v2170
      %v2245 = vpack.c.b16 %v2173, %v2171
      %v2246 = vpack.c.b16 %v2176, %v2174
      %v2247 = vpack.c.b16 %v2177, %v2175
      %v2248 = vpack.c.b16 %v2180, %v2178
      %v2249 = vpack.c.b16 %v2181, %v2179
      %v2250 = vpack.c.b16 %v2184, %v2182
      %v2251 = vpack.c.b16 %v2185, %v2183
      %v2252 = vpack.c.b16 %v2188, %v2186
      %v2253 = vpack.c.b16 %v2189, %v2187
      %2318 = vmatpush.bf16.msra.mxu0 %v2204
      %2319 = vmatpush.bf16.msra.mxu0 %v2202
      %2320 = vmatpush.bf16.msra.mxu0 %v2200
      %2321 = vmatpush.bf16.msra.mxu0 %v2198
      %2322 = vmatpush.bf16.msra.mxu0 %v2196
      %2323 = vmatpush.bf16.msra.mxu0 %v2194
      %2324 = vmatpush.bf16.msra.mxu0 %v2192
      %2325 = vmatpush.bf16.msra.mxu0 %v2190
      %2326 = vmatmul.bf16.gmra.mxu0 %v1800
      %v2327 = vpop.f32.mrf.mxu0
      %v2328 = vadd.f32 %v1994, %v2327
      %v2329 = vpop.f32.mrf.mxu0
      %v2330 = vadd.f32 %v1994, %v2329
      %2331 = vmatmul.bf16.gmra.mxu0 %v1804
      %v2332 = vpop.f32.mrf.mxu0
      %v2333 = vadd.f32 %v1994, %v2332
      %v2334 = vpop.f32.mrf.mxu0
      %v2335 = vadd.f32 %v1994, %v2334
      %2336 = vmatmul.bf16.gmra.mxu0 %v1808
      %v2337 = vpop.f32.mrf.mxu0
      %v2338 = vadd.f32 %v1994, %v2337
      %v2339 = vpop.f32.mrf.mxu0
      %v2340 = vadd.f32 %v1994, %v2339
      %2341 = vmatmul.bf16.gmra.mxu0 %v1812
      %v2342 = vpop.f32.mrf.mxu0
      %v2343 = vadd.f32 %v1994, %v2342
      %v2344 = vpop.f32.mrf.mxu0
      %v2345 = vadd.f32 %v1994, %v2344
      %2346 = vmatmul.bf16.gmra.mxu0 %v1816
      %v2347 = vpop.f32.mrf.mxu0
      %v2348 = vadd.f32 %v1994, %v2347
      %v2349 = vpop.f32.mrf.mxu0
      %v2350 = vadd.f32 %v1994, %v2349
      %2351 = vmatmul.bf16.gmra.mxu0 %v1820
      %v2352 = vpop.f32.mrf.mxu0
      %v2353 = vadd.f32 %v1994, %v2352
      %v2354 = vpop.f32.mrf.mxu0
      %v2355 = vadd.f32 %v1994, %v2354
      %2356 = vmatmul.bf16.gmra.mxu0 %v1824
      %v2357 = vpop.f32.mrf.mxu0
      %v2358 = vadd.f32 %v1994, %v2357
      %v2359 = vpop.f32.mrf.mxu0
      %v2360 = vadd.f32 %v1994, %v2359
      %2361 = vmatmul.bf16.gmra.mxu0 %v1828
      %v2362 = vpop.f32.mrf.mxu0
      %v2363 = vadd.f32 %v1994, %v2362
      %v2364 = vpop.f32.mrf.mxu0
      %v2365 = vadd.f32 %v1994, %v2364
      %2366 = vmatmul.bf16.gmra.mxu0 %v1832
      %v2367 = vpop.f32.mrf.mxu0
      %v2368 = vadd.f32 %v1994, %v2367
      %v2369 = vpop.f32.mrf.mxu0
      %v2370 = vadd.f32 %v1994, %v2369
      %2371 = vmatmul.bf16.gmra.mxu0 %v1836
      %v2372 = vpop.f32.mrf.mxu0
      %v2373 = vadd.f32 %v1994, %v2372
      %v2374 = vpop.f32.mrf.mxu0
      %v2375 = vadd.f32 %v1994, %v2374
      %2376 = vmatmul.bf16.gmra.mxu0 %v1840
      %v2377 = vpop.f32.mrf.mxu0
      %v2378 = vadd.f32 %v1994, %v2377
      %v2379 = vpop.f32.mrf.mxu0
      %v2380 = vadd.f32 %v1994, %v2379
      %2381 = vmatmul.bf16.gmra.mxu0 %v1844
      %v2382 = vpop.f32.mrf.mxu0
      %v2383 = vadd.f32 %v1994, %v2382
      %v2384 = vpop.f32.mrf.mxu0
      %v2385 = vadd.f32 %v1994, %v2384
      %2386 = vmatmul.bf16.gmra.mxu0 %v1848
      %v2387 = vpop.f32.mrf.mxu0
      %v2388 = vadd.f32 %v1994, %v2387
      %v2389 = vpop.f32.mrf.mxu0
      %v2390 = vadd.f32 %v1994, %v2389
      %2391 = vmatmul.bf16.gmra.mxu0 %v1852
      %v2392 = vpop.f32.mrf.mxu0
      %v2393 = vadd.f32 %v1994, %v2392
      %v2394 = vpop.f32.mrf.mxu0
      %v2395 = vadd.f32 %v1994, %v2394
      %2396 = vmatmul.bf16.gmra.mxu0 %v1856
      %v2397 = vpop.f32.mrf.mxu0
      %v2398 = vadd.f32 %v1994, %v2397
      %v2399 = vpop.f32.mrf.mxu0
      %v2400 = vadd.f32 %v1994, %v2399
      %2401 = vmatmul.bf16.gmra.mxu0 %v1860
      %v2402 = vpop.f32.mrf.mxu0
      %v2403 = vadd.f32 %v1994, %v2402
      %v2404 = vpop.f32.mrf.mxu0
      %v2405 = vadd.f32 %v1994, %v2404
      %2406 = vmatmul.bf16.gmra.mxu0 %v1864
      %v2407 = vpop.f32.mrf.mxu0
      %v2408 = vadd.f32 %v1994, %v2407
      %v2409 = vpop.f32.mrf.mxu0
      %v2410 = vadd.f32 %v1994, %v2409
      %2411 = vmatmul.bf16.gmra.mxu0 %v1868
      %v2412 = vpop.f32.mrf.mxu0
      %v2413 = vadd.f32 %v1994, %v2412
      %v2414 = vpop.f32.mrf.mxu0
      %v2415 = vadd.f32 %v1994, %v2414
      %2416 = vmatmul.bf16.gmra.mxu0 %v1872
      %v2417 = vpop.f32.mrf.mxu0
      %v2418 = vadd.f32 %v1994, %v2417
      %v2419 = vpop.f32.mrf.mxu0
      %v2420 = vadd.f32 %v1994, %v2419
      %2421 = vmatmul.bf16.gmra.mxu0 %v1876
      %v2422 = vpop.f32.mrf.mxu0
      %v2423 = vadd.f32 %v1994, %v2422
      %v2424 = vpop.f32.mrf.mxu0
      %v2425 = vadd.f32 %v1994, %v2424
      %2426 = vmatmul.bf16.gmra.mxu0 %v1880
      %v2427 = vpop.f32.mrf.mxu0
      %v2428 = vadd.f32 %v1994, %v2427
      %v2429 = vpop.f32.mrf.mxu0
      %v2430 = vadd.f32 %v1994, %v2429
      %2431 = vmatmul.bf16.gmra.mxu0 %v1884
      %v2432 = vpop.f32.mrf.mxu0
      %v2433 = vadd.f32 %v1994, %v2432
      %v2434 = vpop.f32.mrf.mxu0
      %v2435 = vadd.f32 %v1994, %v2434
      %2436 = vmatmul.bf16.gmra.mxu0 %v1888
      %v2437 = vpop.f32.mrf.mxu0
      %v2438 = vadd.f32 %v1994, %v2437
      %v2439 = vpop.f32.mrf.mxu0
      %v2440 = vadd.f32 %v1994, %v2439
      %2441 = vmatmul.bf16.gmra.mxu0 %v1892
      %v2442 = vpop.f32.mrf.mxu0
      %v2443 = vadd.f32 %v1994, %v2442
      %v2444 = vpop.f32.mrf.mxu0
      %v2445 = vadd.f32 %v1994, %v2444
      %2446 = vmatmul.bf16.gmra.mxu0 %v1896
      %v2447 = vpop.f32.mrf.mxu0
      %v2448 = vadd.f32 %v1994, %v2447
      %v2449 = vpop.f32.mrf.mxu0
      %v2450 = vadd.f32 %v1994, %v2449
      %2451 = vmatmul.bf16.gmra.mxu0 %v1900
      %v2452 = vpop.f32.mrf.mxu0
      %v2453 = vadd.f32 %v1994, %v2452
      %v2454 = vpop.f32.mrf.mxu0
      %v2455 = vadd.f32 %v1994, %v2454
      %2456 = vmatmul.bf16.gmra.mxu0 %v1904
      %v2457 = vpop.f32.mrf.mxu0
      %v2458 = vadd.f32 %v1994, %v2457
      %v2459 = vpop.f32.mrf.mxu0
      %v2460 = vadd.f32 %v1994, %v2459
      %2461 = vmatmul.bf16.gmra.mxu0 %v1908
      %v2462 = vpop.f32.mrf.mxu0
      %v2463 = vadd.f32 %v1994, %v2462
      %v2464 = vpop.f32.mrf.mxu0
      %v2465 = vadd.f32 %v1994, %v2464
      %2466 = vmatmul.bf16.gmra.mxu0 %v1912
      %v2467 = vpop.f32.mrf.mxu0
      %v2468 = vadd.f32 %v1994, %v2467
      %v2469 = vpop.f32.mrf.mxu0
      %v2470 = vadd.f32 %v1994, %v2469
      %2471 = vmatmul.bf16.gmra.mxu0 %v1916
      %v2472 = vpop.f32.mrf.mxu0
      %v2473 = vadd.f32 %v1994, %v2472
      %v2474 = vpop.f32.mrf.mxu0
      %v2475 = vadd.f32 %v1994, %v2474
      %2476 = vmatmul.bf16.gmra.mxu0 %v1920
      %v2477 = vpop.f32.mrf.mxu0
      %v2478 = vadd.f32 %v1994, %v2477
      %v2479 = vpop.f32.mrf.mxu0
      %v2480 = vadd.f32 %v1994, %v2479
      %2481 = vmatmul.bf16.gmra.mxu0 %v1924
      %v2482 = vpop.f32.mrf.mxu0
      %v2483 = vadd.f32 %v1994, %v2482
      %v2484 = vpop.f32.mrf.mxu0
      %v2485 = vadd.f32 %v1994, %v2484
      %2486 = vdwg.mxu0
      %2487 = vmatpush.bf16.msra.mxu0 %v2220
      %2488 = vmatpush.bf16.msra.mxu0 %v2218
      %2489 = vmatpush.bf16.msra.mxu0 %v2216
      %2490 = vmatpush.bf16.msra.mxu0 %v2214
      %2491 = vmatpush.bf16.msra.mxu0 %v2212
      %2492 = vmatpush.bf16.msra.mxu0 %v2210
      %2493 = vmatpush.bf16.msra.mxu0 %v2208
      %2494 = vmatpush.bf16.msra.mxu0 %v2206
      %2495 = vmatmul.bf16.gmra.mxu0 %v1801
      %v2496 = vpop.f32.mrf.mxu0
      %v2497 = vadd.f32 %v2328, %v2496
      %v2498 = vpop.f32.mrf.mxu0
      %v2499 = vadd.f32 %v2330, %v2498
      %2500 = vmatmul.bf16.gmra.mxu0 %v1805
      %v2501 = vpop.f32.mrf.mxu0
      %v2502 = vadd.f32 %v2333, %v2501
      %v2503 = vpop.f32.mrf.mxu0
      %v2504 = vadd.f32 %v2335, %v2503
      %2505 = vmatmul.bf16.gmra.mxu0 %v1809
      %v2506 = vpop.f32.mrf.mxu0
      %v2507 = vadd.f32 %v2338, %v2506
      %v2508 = vpop.f32.mrf.mxu0
      %v2509 = vadd.f32 %v2340, %v2508
      %2510 = vmatmul.bf16.gmra.mxu0 %v1813
      %v2511 = vpop.f32.mrf.mxu0
      %v2512 = vadd.f32 %v2343, %v2511
      %v2513 = vpop.f32.mrf.mxu0
      %v2514 = vadd.f32 %v2345, %v2513
      %2515 = vmatmul.bf16.gmra.mxu0 %v1817
      %v2516 = vpop.f32.mrf.mxu0
      %v2517 = vadd.f32 %v2348, %v2516
      %v2518 = vpop.f32.mrf.mxu0
      %v2519 = vadd.f32 %v2350, %v2518
      %2520 = vmatmul.bf16.gmra.mxu0 %v1821
      %v2521 = vpop.f32.mrf.mxu0
      %v2522 = vadd.f32 %v2353, %v2521
      %v2523 = vpop.f32.mrf.mxu0
      %v2524 = vadd.f32 %v2355, %v2523
      %2525 = vmatmul.bf16.gmra.mxu0 %v1825
      %v2526 = vpop.f32.mrf.mxu0
      %v2527 = vadd.f32 %v2358, %v2526
      %v2528 = vpop.f32.mrf.mxu0
      %v2529 = vadd.f32 %v2360, %v2528
      %2530 = vmatmul.bf16.gmra.mxu0 %v1829
      %v2531 = vpop.f32.mrf.mxu0
      %v2532 = vadd.f32 %v2363, %v2531
      %v2533 = vpop.f32.mrf.mxu0
      %v2534 = vadd.f32 %v2365, %v2533
      %2535 = vmatmul.bf16.gmra.mxu0 %v1833
      %v2536 = vpop.f32.mrf.mxu0
      %v2537 = vadd.f32 %v2368, %v2536
      %v2538 = vpop.f32.mrf.mxu0
      %v2539 = vadd.f32 %v2370, %v2538
      %2540 = vmatmul.bf16.gmra.mxu0 %v1837
      %v2541 = vpop.f32.mrf.mxu0
      %v2542 = vadd.f32 %v2373, %v2541
      %v2543 = vpop.f32.mrf.mxu0
      %v2544 = vadd.f32 %v2375, %v2543
      %2545 = vmatmul.bf16.gmra.mxu0 %v1841
      %v2546 = vpop.f32.mrf.mxu0
      %v2547 = vadd.f32 %v2378, %v2546
      %v2548 = vpop.f32.mrf.mxu0
      %v2549 = vadd.f32 %v2380, %v2548
      %2550 = vmatmul.bf16.gmra.mxu0 %v1845
      %v2551 = vpop.f32.mrf.mxu0
      %v2552 = vadd.f32 %v2383, %v2551
      %v2553 = vpop.f32.mrf.mxu0
      %v2554 = vadd.f32 %v2385, %v2553
      %2555 = vmatmul.bf16.gmra.mxu0 %v1849
      %v2556 = vpop.f32.mrf.mxu0
      %v2557 = vadd.f32 %v2388, %v2556
      %v2558 = vpop.f32.mrf.mxu0
      %v2559 = vadd.f32 %v2390, %v2558
      %2560 = vmatmul.bf16.gmra.mxu0 %v1853
      %v2561 = vpop.f32.mrf.mxu0
      %v2562 = vadd.f32 %v2393, %v2561
      %v2563 = vpop.f32.mrf.mxu0
      %v2564 = vadd.f32 %v2395, %v2563
      %2565 = vmatmul.bf16.gmra.mxu0 %v1857
      %v2566 = vpop.f32.mrf.mxu0
      %v2567 = vadd.f32 %v2398, %v2566
      %v2568 = vpop.f32.mrf.mxu0
      %v2569 = vadd.f32 %v2400, %v2568
      %2570 = vmatmul.bf16.gmra.mxu0 %v1861
      %v2571 = vpop.f32.mrf.mxu0
      %v2572 = vadd.f32 %v2403, %v2571
      %v2573 = vpop.f32.mrf.mxu0
      %v2574 = vadd.f32 %v2405, %v2573
      %2575 = vmatmul.bf16.gmra.mxu0 %v1865
      %v2576 = vpop.f32.mrf.mxu0
      %v2577 = vadd.f32 %v2408, %v2576
      %v2578 = vpop.f32.mrf.mxu0
      %v2579 = vadd.f32 %v2410, %v2578
      %2580 = vmatmul.bf16.gmra.mxu0 %v1869
      %v2581 = vpop.f32.mrf.mxu0
      %v2582 = vadd.f32 %v2413, %v2581
      %v2583 = vpop.f32.mrf.mxu0
      %v2584 = vadd.f32 %v2415, %v2583
      %2585 = vmatmul.bf16.gmra.mxu0 %v1873
      %v2586 = vpop.f32.mrf.mxu0
      %v2587 = vadd.f32 %v2418, %v2586
      %v2588 = vpop.f32.mrf.mxu0
      %v2589 = vadd.f32 %v2420, %v2588
      %2590 = vmatmul.bf16.gmra.mxu0 %v1877
      %v2591 = vpop.f32.mrf.mxu0
      %v2592 = vadd.f32 %v2423, %v2591
      %v2593 = vpop.f32.mrf.mxu0
      %v2594 = vadd.f32 %v2425, %v2593
      %2595 = vmatmul.bf16.gmra.mxu0 %v1881
      %v2596 = vpop.f32.mrf.mxu0
      %v2597 = vadd.f32 %v2428, %v2596
      %v2598 = vpop.f32.mrf.mxu0
      %v2599 = vadd.f32 %v2430, %v2598
      %2600 = vmatmul.bf16.gmra.mxu0 %v1885
      %v2601 = vpop.f32.mrf.mxu0
      %v2602 = vadd.f32 %v2433, %v2601
      %v2603 = vpop.f32.mrf.mxu0
      %v2604 = vadd.f32 %v2435, %v2603
      %2605 = vmatmul.bf16.gmra.mxu0 %v1889
      %v2606 = vpop.f32.mrf.mxu0
      %v2607 = vadd.f32 %v2438, %v2606
      %v2608 = vpop.f32.mrf.mxu0
      %v2609 = vadd.f32 %v2440, %v2608
      %2610 = vmatmul.bf16.gmra.mxu0 %v1893
      %v2611 = vpop.f32.mrf.mxu0
      %v2612 = vadd.f32 %v2443, %v2611
      %v2613 = vpop.f32.mrf.mxu0
      %v2614 = vadd.f32 %v2445, %v2613
      %2615 = vmatmul.bf16.gmra.mxu0 %v1897
      %v2616 = vpop.f32.mrf.mxu0
      %v2617 = vadd.f32 %v2448, %v2616
      %v2618 = vpop.f32.mrf.mxu0
      %v2619 = vadd.f32 %v2450, %v2618
      %2620 = vmatmul.bf16.gmra.mxu0 %v1901
      %v2621 = vpop.f32.mrf.mxu0
      %v2622 = vadd.f32 %v2453, %v2621
      %v2623 = vpop.f32.mrf.mxu0
      %v2624 = vadd.f32 %v2455, %v2623
      %2625 = vmatmul.bf16.gmra.mxu0 %v1905
      %v2626 = vpop.f32.mrf.mxu0
      %v2627 = vadd.f32 %v2458, %v2626
      %v2628 = vpop.f32.mrf.mxu0
      %v2629 = vadd.f32 %v2460, %v2628
      %2630 = vmatmul.bf16.gmra.mxu0 %v1909
      %v2631 = vpop.f32.mrf.mxu0
      %v2632 = vadd.f32 %v2463, %v2631
      %v2633 = vpop.f32.mrf.mxu0
      %v2634 = vadd.f32 %v2465, %v2633
      %2635 = vmatmul.bf16.gmra.mxu0 %v1913
      %v2636 = vpop.f32.mrf.mxu0
      %v2637 = vadd.f32 %v2468, %v2636
      %v2638 = vpop.f32.mrf.mxu0
      %v2639 = vadd.f32 %v2470, %v2638
      %2640 = vmatmul.bf16.gmra.mxu0 %v1917
      %v2641 = vpop.f32.mrf.mxu0
      %v2642 = vadd.f32 %v2473, %v2641
      %v2643 = vpop.f32.mrf.mxu0
      %v2644 = vadd.f32 %v2475, %v2643
      %2645 = vmatmul.bf16.gmra.mxu0 %v1921
      %v2646 = vpop.f32.mrf.mxu0
      %v2647 = vadd.f32 %v2478, %v2646
      %v2648 = vpop.f32.mrf.mxu0
      %v2649 = vadd.f32 %v2480, %v2648
      %2650 = vmatmul.bf16.gmra.mxu0 %v1925
      %v2651 = vpop.f32.mrf.mxu0
      %v2652 = vadd.f32 %v2483, %v2651
      %v2653 = vpop.f32.mrf.mxu0
      %v2654 = vadd.f32 %v2485, %v2653
      %2655 = vdwg.mxu0
      %2656 = vmatpush.bf16.msra.mxu0 %v2236
      %2657 = vmatpush.bf16.msra.mxu0 %v2234
      %2658 = vmatpush.bf16.msra.mxu0 %v2232
      %2659 = vmatpush.bf16.msra.mxu0 %v2230
      %2660 = vmatpush.bf16.msra.mxu0 %v2228
      %2661 = vmatpush.bf16.msra.mxu0 %v2226
      %2662 = vmatpush.bf16.msra.mxu0 %v2224
      %2663 = vmatpush.bf16.msra.mxu0 %v2222
      %2664 = vmatmul.bf16.gmra.mxu0 %v1802
      %v2665 = vpop.f32.mrf.mxu0
      %v2666 = vadd.f32 %v2497, %v2665
      %v2667 = vpop.f32.mrf.mxu0
      %v2668 = vadd.f32 %v2499, %v2667
      %2669 = vmatmul.bf16.gmra.mxu0 %v1806
      %v2670 = vpop.f32.mrf.mxu0
      %v2671 = vadd.f32 %v2502, %v2670
      %v2672 = vpop.f32.mrf.mxu0
      %v2673 = vadd.f32 %v2504, %v2672
      %2674 = vmatmul.bf16.gmra.mxu0 %v1810
      %v2675 = vpop.f32.mrf.mxu0
      %v2676 = vadd.f32 %v2507, %v2675
      %v2677 = vpop.f32.mrf.mxu0
      %v2678 = vadd.f32 %v2509, %v2677
      %2679 = vmatmul.bf16.gmra.mxu0 %v1814
      %v2680 = vpop.f32.mrf.mxu0
      %v2681 = vadd.f32 %v2512, %v2680
      %v2682 = vpop.f32.mrf.mxu0
      %v2683 = vadd.f32 %v2514, %v2682
      %2684 = vmatmul.bf16.gmra.mxu0 %v1818
      %v2685 = vpop.f32.mrf.mxu0
      %v2686 = vadd.f32 %v2517, %v2685
      %v2687 = vpop.f32.mrf.mxu0
      %v2688 = vadd.f32 %v2519, %v2687
      %2689 = vmatmul.bf16.gmra.mxu0 %v1822
      %v2690 = vpop.f32.mrf.mxu0
      %v2691 = vadd.f32 %v2522, %v2690
      %v2692 = vpop.f32.mrf.mxu0
      %v2693 = vadd.f32 %v2524, %v2692
      %2694 = vmatmul.bf16.gmra.mxu0 %v1826
      %v2695 = vpop.f32.mrf.mxu0
      %v2696 = vadd.f32 %v2527, %v2695
      %v2697 = vpop.f32.mrf.mxu0
      %v2698 = vadd.f32 %v2529, %v2697
      %2699 = vmatmul.bf16.gmra.mxu0 %v1830
      %v2700 = vpop.f32.mrf.mxu0
      %v2701 = vadd.f32 %v2532, %v2700
      %v2702 = vpop.f32.mrf.mxu0
      %v2703 = vadd.f32 %v2534, %v2702
      %2704 = vmatmul.bf16.gmra.mxu0 %v1834
      %v2705 = vpop.f32.mrf.mxu0
      %v2706 = vadd.f32 %v2537, %v2705
      %v2707 = vpop.f32.mrf.mxu0
      %v2708 = vadd.f32 %v2539, %v2707
      %2709 = vmatmul.bf16.gmra.mxu0 %v1838
      %v2710 = vpop.f32.mrf.mxu0
      %v2711 = vadd.f32 %v2542, %v2710
      %v2712 = vpop.f32.mrf.mxu0
      %v2713 = vadd.f32 %v2544, %v2712
      %2714 = vmatmul.bf16.gmra.mxu0 %v1842
      %v2715 = vpop.f32.mrf.mxu0
      %v2716 = vadd.f32 %v2547, %v2715
      %v2717 = vpop.f32.mrf.mxu0
      %v2718 = vadd.f32 %v2549, %v2717
      %2719 = vmatmul.bf16.gmra.mxu0 %v1846
      %v2720 = vpop.f32.mrf.mxu0
      %v2721 = vadd.f32 %v2552, %v2720
      %v2722 = vpop.f32.mrf.mxu0
      %v2723 = vadd.f32 %v2554, %v2722
      %2724 = vmatmul.bf16.gmra.mxu0 %v1850
      %v2725 = vpop.f32.mrf.mxu0
      %v2726 = vadd.f32 %v2557, %v2725
      %v2727 = vpop.f32.mrf.mxu0
      %v2728 = vadd.f32 %v2559, %v2727
      %2729 = vmatmul.bf16.gmra.mxu0 %v1854
      %v2730 = vpop.f32.mrf.mxu0
      %v2731 = vadd.f32 %v2562, %v2730
      %v2732 = vpop.f32.mrf.mxu0
      %v2733 = vadd.f32 %v2564, %v2732
      %2734 = vmatmul.bf16.gmra.mxu0 %v1858
      %v2735 = vpop.f32.mrf.mxu0
      %v2736 = vadd.f32 %v2567, %v2735
      %v2737 = vpop.f32.mrf.mxu0
      %v2738 = vadd.f32 %v2569, %v2737
      %2739 = vmatmul.bf16.gmra.mxu0 %v1862
      %v2740 = vpop.f32.mrf.mxu0
      %v2741 = vadd.f32 %v2572, %v2740
      %v2742 = vpop.f32.mrf.mxu0
      %v2743 = vadd.f32 %v2574, %v2742
      %2744 = vmatmul.bf16.gmra.mxu0 %v1866
      %v2745 = vpop.f32.mrf.mxu0
      %v2746 = vadd.f32 %v2577, %v2745
      %v2747 = vpop.f32.mrf.mxu0
      %v2748 = vadd.f32 %v2579, %v2747
      %2749 = vmatmul.bf16.gmra.mxu0 %v1870
      %v2750 = vpop.f32.mrf.mxu0
      %v2751 = vadd.f32 %v2582, %v2750
      %v2752 = vpop.f32.mrf.mxu0
      %v2753 = vadd.f32 %v2584, %v2752
      %2754 = vmatmul.bf16.gmra.mxu0 %v1874
      %v2755 = vpop.f32.mrf.mxu0
      %v2756 = vadd.f32 %v2587, %v2755
      %v2757 = vpop.f32.mrf.mxu0
      %v2758 = vadd.f32 %v2589, %v2757
      %2759 = vmatmul.bf16.gmra.mxu0 %v1878
      %v2760 = vpop.f32.mrf.mxu0
      %v2761 = vadd.f32 %v2592, %v2760
      %v2762 = vpop.f32.mrf.mxu0
      %v2763 = vadd.f32 %v2594, %v2762
      %2764 = vmatmul.bf16.gmra.mxu0 %v1882
      %v2765 = vpop.f32.mrf.mxu0
      %v2766 = vadd.f32 %v2597, %v2765
      %v2767 = vpop.f32.mrf.mxu0
      %v2768 = vadd.f32 %v2599, %v2767
      %2769 = vmatmul.bf16.gmra.mxu0 %v1886
      %v2770 = vpop.f32.mrf.mxu0
      %v2771 = vadd.f32 %v2602, %v2770
      %v2772 = vpop.f32.mrf.mxu0
      %v2773 = vadd.f32 %v2604, %v2772
      %2774 = vmatmul.bf16.gmra.mxu0 %v1890
      %v2775 = vpop.f32.mrf.mxu0
      %v2776 = vadd.f32 %v2607, %v2775
      %v2777 = vpop.f32.mrf.mxu0
      %v2778 = vadd.f32 %v2609, %v2777
      %2779 = vmatmul.bf16.gmra.mxu0 %v1894
      %v2780 = vpop.f32.mrf.mxu0
      %v2781 = vadd.f32 %v2612, %v2780
      %v2782 = vpop.f32.mrf.mxu0
      %v2783 = vadd.f32 %v2614, %v2782
      %2784 = vmatmul.bf16.gmra.mxu0 %v1898
      %v2785 = vpop.f32.mrf.mxu0
      %v2786 = vadd.f32 %v2617, %v2785
      %v2787 = vpop.f32.mrf.mxu0
      %v2788 = vadd.f32 %v2619, %v2787
      %2789 = vmatmul.bf16.gmra.mxu0 %v1902
      %v2790 = vpop.f32.mrf.mxu0
      %v2791 = vadd.f32 %v2622, %v2790
      %v2792 = vpop.f32.mrf.mxu0
      %v2793 = vadd.f32 %v2624, %v2792
      %2794 = vmatmul.bf16.gmra.mxu0 %v1906
      %v2795 = vpop.f32.mrf.mxu0
      %v2796 = vadd.f32 %v2627, %v2795
      %v2797 = vpop.f32.mrf.mxu0
      %v2798 = vadd.f32 %v2629, %v2797
      %2799 = vmatmul.bf16.gmra.mxu0 %v1910
      %v2800 = vpop.f32.mrf.mxu0
      %v2801 = vadd.f32 %v2632, %v2800
      %v2802 = vpop.f32.mrf.mxu0
      %v2803 = vadd.f32 %v2634, %v2802
      %2804 = vmatmul.bf16.gmra.mxu0 %v1914
      %v2805 = vpop.f32.mrf.mxu0
      %v2806 = vadd.f32 %v2637, %v2805
      %v2807 = vpop.f32.mrf.mxu0
      %v2808 = vadd.f32 %v2639, %v2807
      %2809 = vmatmul.bf16.gmra.mxu0 %v1918
      %v2810 = vpop.f32.mrf.mxu0
      %v2811 = vadd.f32 %v2642, %v2810
      %v2812 = vpop.f32.mrf.mxu0
      %v2813 = vadd.f32 %v2644, %v2812
      %2814 = vmatmul.bf16.gmra.mxu0 %v1922
      %v2815 = vpop.f32.mrf.mxu0
      %v2816 = vadd.f32 %v2647, %v2815
      %v2817 = vpop.f32.mrf.mxu0
      %v2818 = vadd.f32 %v2649, %v2817
      %2819 = vmatmul.bf16.gmra.mxu0 %v1926
      %v2820 = vpop.f32.mrf.mxu0
      %v2821 = vadd.f32 %v2652, %v2820
      %v2822 = vpop.f32.mrf.mxu0
      %v2823 = vadd.f32 %v2654, %v2822
      %2824 = vdwg.mxu0
      %2825 = vmatpush.bf16.msra.mxu0 %v2252
      %2826 = vmatpush.bf16.msra.mxu0 %v2250
      %2827 = vmatpush.bf16.msra.mxu0 %v2248
      %2828 = vmatpush.bf16.msra.mxu0 %v2246
      %2829 = vmatpush.bf16.msra.mxu0 %v2244
      %2830 = vmatpush.bf16.msra.mxu0 %v2242
      %2831 = vmatpush.bf16.msra.mxu0 %v2240
      %2832 = vmatpush.bf16.msra.mxu0 %v2238
      %2833 = vmatmul.bf16.gmra.mxu0 %v1803
      %v2834 = vpop.f32.mrf.mxu0
      %v2835 = vadd.f32 %v2666, %v2834
      %v2836 = vpop.f32.mrf.mxu0
      %v2837 = vadd.f32 %v2668, %v2836
      %2838 = vmatmul.bf16.gmra.mxu0 %v1807
      %v2839 = vpop.f32.mrf.mxu0
      %v2840 = vadd.f32 %v2671, %v2839
      %v2841 = vpop.f32.mrf.mxu0
      %v2842 = vadd.f32 %v2673, %v2841
      %2843 = vmatmul.bf16.gmra.mxu0 %v1811
      %v2844 = vpop.f32.mrf.mxu0
      %v2845 = vadd.f32 %v2676, %v2844
      %v2846 = vpop.f32.mrf.mxu0
      %v2847 = vadd.f32 %v2678, %v2846
      %2848 = vmatmul.bf16.gmra.mxu0 %v1815
      %v2849 = vpop.f32.mrf.mxu0
      %v2850 = vadd.f32 %v2681, %v2849
      %v2851 = vpop.f32.mrf.mxu0
      %v2852 = vadd.f32 %v2683, %v2851
      %2853 = vmatmul.bf16.gmra.mxu0 %v1819
      %v2854 = vpop.f32.mrf.mxu0
      %v2855 = vadd.f32 %v2686, %v2854
      %v2856 = vpop.f32.mrf.mxu0
      %v2857 = vadd.f32 %v2688, %v2856
      %2858 = vmatmul.bf16.gmra.mxu0 %v1823
      %v2859 = vpop.f32.mrf.mxu0
      %v2860 = vadd.f32 %v2691, %v2859
      %v2861 = vpop.f32.mrf.mxu0
      %v2862 = vadd.f32 %v2693, %v2861
      %2863 = vmatmul.bf16.gmra.mxu0 %v1827
      %v2864 = vpop.f32.mrf.mxu0
      %v2865 = vadd.f32 %v2696, %v2864
      %v2866 = vpop.f32.mrf.mxu0
      %v2867 = vadd.f32 %v2698, %v2866
      %2868 = vmatmul.bf16.gmra.mxu0 %v1831
      %v2869 = vpop.f32.mrf.mxu0
      %v2870 = vadd.f32 %v2701, %v2869
      %v2871 = vpop.f32.mrf.mxu0
      %v2872 = vadd.f32 %v2703, %v2871
      %2873 = vmatmul.bf16.gmra.mxu0 %v1835
      %v2874 = vpop.f32.mrf.mxu0
      %v2875 = vadd.f32 %v2706, %v2874
      %v2876 = vpop.f32.mrf.mxu0
      %v2877 = vadd.f32 %v2708, %v2876
      %2878 = vmatmul.bf16.gmra.mxu0 %v1839
      %v2879 = vpop.f32.mrf.mxu0
      %v2880 = vadd.f32 %v2711, %v2879
      %v2881 = vpop.f32.mrf.mxu0
      %v2882 = vadd.f32 %v2713, %v2881
      %2883 = vmatmul.bf16.gmra.mxu0 %v1843
      %v2884 = vpop.f32.mrf.mxu0
      %v2885 = vadd.f32 %v2716, %v2884
      %v2886 = vpop.f32.mrf.mxu0
      %v2887 = vadd.f32 %v2718, %v2886
      %2888 = vmatmul.bf16.gmra.mxu0 %v1847
      %v2889 = vpop.f32.mrf.mxu0
      %v2890 = vadd.f32 %v2721, %v2889
      %v2891 = vpop.f32.mrf.mxu0
      %v2892 = vadd.f32 %v2723, %v2891
      %2893 = vmatmul.bf16.gmra.mxu0 %v1851
      %v2894 = vpop.f32.mrf.mxu0
      %v2895 = vadd.f32 %v2726, %v2894
      %v2896 = vpop.f32.mrf.mxu0
      %v2897 = vadd.f32 %v2728, %v2896
      %2898 = vmatmul.bf16.gmra.mxu0 %v1855
      %v2899 = vpop.f32.mrf.mxu0
      %v2900 = vadd.f32 %v2731, %v2899
      %v2901 = vpop.f32.mrf.mxu0
      %v2902 = vadd.f32 %v2733, %v2901
      %2903 = vmatmul.bf16.gmra.mxu0 %v1859
      %v2904 = vpop.f32.mrf.mxu0
      %v2905 = vadd.f32 %v2736, %v2904
      %v2906 = vpop.f32.mrf.mxu0
      %v2907 = vadd.f32 %v2738, %v2906
      %2908 = vmatmul.bf16.gmra.mxu0 %v1863
      %v2909 = vpop.f32.mrf.mxu0
      %v2910 = vadd.f32 %v2741, %v2909
      %v2911 = vpop.f32.mrf.mxu0
      %v2912 = vadd.f32 %v2743, %v2911
      %2913 = vmatmul.bf16.gmra.mxu0 %v1867
      %v2914 = vpop.f32.mrf.mxu0
      %v2915 = vadd.f32 %v2746, %v2914
      %v2916 = vpop.f32.mrf.mxu0
      %v2917 = vadd.f32 %v2748, %v2916
      %2918 = vmatmul.bf16.gmra.mxu0 %v1871
      %v2919 = vpop.f32.mrf.mxu0
      %v2920 = vadd.f32 %v2751, %v2919
      %v2921 = vpop.f32.mrf.mxu0
      %v2922 = vadd.f32 %v2753, %v2921
      %2923 = vmatmul.bf16.gmra.mxu0 %v1875
      %v2924 = vpop.f32.mrf.mxu0
      %v2925 = vadd.f32 %v2756, %v2924
      %v2926 = vpop.f32.mrf.mxu0
      %v2927 = vadd.f32 %v2758, %v2926
      %2928 = vmatmul.bf16.gmra.mxu0 %v1879
      %v2929 = vpop.f32.mrf.mxu0
      %v2930 = vadd.f32 %v2761, %v2929
      %v2931 = vpop.f32.mrf.mxu0
      %v2932 = vadd.f32 %v2763, %v2931
      %2933 = vmatmul.bf16.gmra.mxu0 %v1883
      %v2934 = vpop.f32.mrf.mxu0
      %v2935 = vadd.f32 %v2766, %v2934
      %v2936 = vpop.f32.mrf.mxu0
      %v2937 = vadd.f32 %v2768, %v2936
      %2938 = vmatmul.bf16.gmra.mxu0 %v1887
      %v2939 = vpop.f32.mrf.mxu0
      %v2940 = vadd.f32 %v2771, %v2939
      %v2941 = vpop.f32.mrf.mxu0
      %v2942 = vadd.f32 %v2773, %v2941
      %2943 = vmatmul.bf16.gmra.mxu0 %v1891
      %v2944 = vpop.f32.mrf.mxu0
      %v2945 = vadd.f32 %v2776, %v2944
      %v2946 = vpop.f32.mrf.mxu0
      %v2947 = vadd.f32 %v2778, %v2946
      %2948 = vmatmul.bf16.gmra.mxu0 %v1895
      %v2949 = vpop.f32.mrf.mxu0
      %v2950 = vadd.f32 %v2781, %v2949
      %v2951 = vpop.f32.mrf.mxu0
      %v2952 = vadd.f32 %v2783, %v2951
      %2953 = vmatmul.bf16.gmra.mxu0 %v1899
      %v2954 = vpop.f32.mrf.mxu0
      %v2955 = vadd.f32 %v2786, %v2954
      %v2956 = vpop.f32.mrf.mxu0
      %v2957 = vadd.f32 %v2788, %v2956
      %2958 = vmatmul.bf16.gmra.mxu0 %v1903
      %v2959 = vpop.f32.mrf.mxu0
      %v2960 = vadd.f32 %v2791, %v2959
      %v2961 = vpop.f32.mrf.mxu0
      %v2962 = vadd.f32 %v2793, %v2961
      %2963 = vmatmul.bf16.gmra.mxu0 %v1907
      %v2964 = vpop.f32.mrf.mxu0
      %v2965 = vadd.f32 %v2796, %v2964
      %v2966 = vpop.f32.mrf.mxu0
      %v2967 = vadd.f32 %v2798, %v2966
      %2968 = vmatmul.bf16.gmra.mxu0 %v1911
      %v2969 = vpop.f32.mrf.mxu0
      %v2970 = vadd.f32 %v2801, %v2969
      %v2971 = vpop.f32.mrf.mxu0
      %v2972 = vadd.f32 %v2803, %v2971
      %2973 = vmatmul.bf16.gmra.mxu0 %v1915
      %v2974 = vpop.f32.mrf.mxu0
      %v2975 = vadd.f32 %v2806, %v2974
      %v2976 = vpop.f32.mrf.mxu0
      %v2977 = vadd.f32 %v2808, %v2976
      %2978 = vmatmul.bf16.gmra.mxu0 %v1919
      %v2979 = vpop.f32.mrf.mxu0
      %v2980 = vadd.f32 %v2811, %v2979
      %v2981 = vpop.f32.mrf.mxu0
      %v2982 = vadd.f32 %v2813, %v2981
      %2983 = vmatmul.bf16.gmra.mxu0 %v1923
      %v2984 = vpop.f32.mrf.mxu0
      %v2985 = vadd.f32 %v2816, %v2984
      %v2986 = vpop.f32.mrf.mxu0
      %v2987 = vadd.f32 %v2818, %v2986
      %2988 = vmatmul.bf16.gmra.mxu0 %v1927
      %v2989 = vpop.f32.mrf.mxu0
      %v2990 = vadd.f32 %v2821, %v2989
      %v2991 = vpop.f32.mrf.mxu0
      %v2992 = vadd.f32 %v2823, %v2991
      %2993 = vdwg.mxu0
      %2994 = vmatpush.bf16.msra.mxu0 %v2205
      %2995 = vmatpush.bf16.msra.mxu0 %v2203
      %2996 = vmatpush.bf16.msra.mxu0 %v2201
      %2997 = vmatpush.bf16.msra.mxu0 %v2199
      %2998 = vmatpush.bf16.msra.mxu0 %v2197
      %2999 = vmatpush.bf16.msra.mxu0 %v2195
      %3000 = vmatpush.bf16.msra.mxu0 %v2193
      %3001 = vmatpush.bf16.msra.mxu0 %v2191
      %3002 = vmatmul.bf16.gmra.mxu0 %v1800
      %v3003 = vpop.f32.mrf.mxu0
      %v3004 = vadd.f32 %v1995, %v3003
      %v3005 = vpop.f32.mrf.mxu0
      %v3006 = vadd.f32 %v1995, %v3005
      %3007 = vmatmul.bf16.gmra.mxu0 %v1804
      %v3008 = vpop.f32.mrf.mxu0
      %v3009 = vadd.f32 %v1995, %v3008
      %v3010 = vpop.f32.mrf.mxu0
      %v3011 = vadd.f32 %v1995, %v3010
      %3012 = vmatmul.bf16.gmra.mxu0 %v1808
      %v3013 = vpop.f32.mrf.mxu0
      %v3014 = vadd.f32 %v1995, %v3013
      %v3015 = vpop.f32.mrf.mxu0
      %v3016 = vadd.f32 %v1995, %v3015
      %3017 = vmatmul.bf16.gmra.mxu0 %v1812
      %v3018 = vpop.f32.mrf.mxu0
      %v3019 = vadd.f32 %v1995, %v3018
      %v3020 = vpop.f32.mrf.mxu0
      %v3021 = vadd.f32 %v1995, %v3020
      %3022 = vmatmul.bf16.gmra.mxu0 %v1816
      %v3023 = vpop.f32.mrf.mxu0
      %v3024 = vadd.f32 %v1995, %v3023
      %v3025 = vpop.f32.mrf.mxu0
      %v3026 = vadd.f32 %v1995, %v3025
      %3027 = vmatmul.bf16.gmra.mxu0 %v1820
      %v3028 = vpop.f32.mrf.mxu0
      %v3029 = vadd.f32 %v1995, %v3028
      %v3030 = vpop.f32.mrf.mxu0
      %v3031 = vadd.f32 %v1995, %v3030
      %3032 = vmatmul.bf16.gmra.mxu0 %v1824
      %v3033 = vpop.f32.mrf.mxu0
      %v3034 = vadd.f32 %v1995, %v3033
      %v3035 = vpop.f32.mrf.mxu0
      %v3036 = vadd.f32 %v1995, %v3035
      %3037 = vmatmul.bf16.gmra.mxu0 %v1828
      %v3038 = vpop.f32.mrf.mxu0
      %v3039 = vadd.f32 %v1995, %v3038
      %v3040 = vpop.f32.mrf.mxu0
      %v3041 = vadd.f32 %v1995, %v3040
      %3042 = vmatmul.bf16.gmra.mxu0 %v1832
      %v3043 = vpop.f32.mrf.mxu0
      %v3044 = vadd.f32 %v1995, %v3043
      %v3045 = vpop.f32.mrf.mxu0
      %v3046 = vadd.f32 %v1995, %v3045
      %3047 = vmatmul.bf16.gmra.mxu0 %v1836
      %v3048 = vpop.f32.mrf.mxu0
      %v3049 = vadd.f32 %v1995, %v3048
      %v3050 = vpop.f32.mrf.mxu0
      %v3051 = vadd.f32 %v1995, %v3050
      %3052 = vmatmul.bf16.gmra.mxu0 %v1840
      %v3053 = vpop.f32.mrf.mxu0
      %v3054 = vadd.f32 %v1995, %v3053
      %v3055 = vpop.f32.mrf.mxu0
      %v3056 = vadd.f32 %v1995, %v3055
      %3057 = vmatmul.bf16.gmra.mxu0 %v1844
      %v3058 = vpop.f32.mrf.mxu0
      %v3059 = vadd.f32 %v1995, %v3058
      %v3060 = vpop.f32.mrf.mxu0
      %v3061 = vadd.f32 %v1995, %v3060
      %3062 = vmatmul.bf16.gmra.mxu0 %v1848
      %v3063 = vpop.f32.mrf.mxu0
      %v3064 = vadd.f32 %v1995, %v3063
      %v3065 = vpop.f32.mrf.mxu0
      %v3066 = vadd.f32 %v1995, %v3065
      %3067 = vmatmul.bf16.gmra.mxu0 %v1852
      %v3068 = vpop.f32.mrf.mxu0
      %v3069 = vadd.f32 %v1995, %v3068
      %v3070 = vpop.f32.mrf.mxu0
      %v3071 = vadd.f32 %v1995, %v3070
      %3072 = vmatmul.bf16.gmra.mxu0 %v1856
      %v3073 = vpop.f32.mrf.mxu0
      %v3074 = vadd.f32 %v1995, %v3073
      %v3075 = vpop.f32.mrf.mxu0
      %v3076 = vadd.f32 %v1995, %v3075
      %3077 = vmatmul.bf16.gmra.mxu0 %v1860
      %v3078 = vpop.f32.mrf.mxu0
      %v3079 = vadd.f32 %v1995, %v3078
      %v3080 = vpop.f32.mrf.mxu0
      %v3081 = vadd.f32 %v1995, %v3080
      %3082 = vmatmul.bf16.gmra.mxu0 %v1864
      %v3083 = vpop.f32.mrf.mxu0
      %v3084 = vadd.f32 %v1995, %v3083
      %v3085 = vpop.f32.mrf.mxu0
      %v3086 = vadd.f32 %v1995, %v3085
      %3087 = vmatmul.bf16.gmra.mxu0 %v1868
      %v3088 = vpop.f32.mrf.mxu0
      %v3089 = vadd.f32 %v1995, %v3088
      %v3090 = vpop.f32.mrf.mxu0
      %v3091 = vadd.f32 %v1995, %v3090
      %3092 = vmatmul.bf16.gmra.mxu0 %v1872
      %v3093 = vpop.f32.mrf.mxu0
      %v3094 = vadd.f32 %v1995, %v3093
      %v3095 = vpop.f32.mrf.mxu0
      %v3096 = vadd.f32 %v1995, %v3095
      %3097 = vmatmul.bf16.gmra.mxu0 %v1876
      %v3098 = vpop.f32.mrf.mxu0
      %v3099 = vadd.f32 %v1995, %v3098
      %v3100 = vpop.f32.mrf.mxu0
      %v3101 = vadd.f32 %v1995, %v3100
      %3102 = vmatmul.bf16.gmra.mxu0 %v1880
      %v3103 = vpop.f32.mrf.mxu0
      %v3104 = vadd.f32 %v1995, %v3103
      %v3105 = vpop.f32.mrf.mxu0
      %v3106 = vadd.f32 %v1995, %v3105
      %3107 = vmatmul.bf16.gmra.mxu0 %v1884
      %v3108 = vpop.f32.mrf.mxu0
      %v3109 = vadd.f32 %v1995, %v3108
      %v3110 = vpop.f32.mrf.mxu0
      %v3111 = vadd.f32 %v1995, %v3110
      %3112 = vmatmul.bf16.gmra.mxu0 %v1888
      %v3113 = vpop.f32.mrf.mxu0
      %v3114 = vadd.f32 %v1995, %v3113
      %v3115 = vpop.f32.mrf.mxu0
      %v3116 = vadd.f32 %v1995, %v3115
      %3117 = vmatmul.bf16.gmra.mxu0 %v1892
      %v3118 = vpop.f32.mrf.mxu0
      %v3119 = vadd.f32 %v1995, %v3118
      %v3120 = vpop.f32.mrf.mxu0
      %v3121 = vadd.f32 %v1995, %v3120
      %3122 = vmatmul.bf16.gmra.mxu0 %v1896
      %v3123 = vpop.f32.mrf.mxu0
      %v3124 = vadd.f32 %v1995, %v3123
      %v3125 = vpop.f32.mrf.mxu0
      %v3126 = vadd.f32 %v1995, %v3125
      %3127 = vmatmul.bf16.gmra.mxu0 %v1900
      %v3128 = vpop.f32.mrf.mxu0
      %v3129 = vadd.f32 %v1995, %v3128
      %v3130 = vpop.f32.mrf.mxu0
      %v3131 = vadd.f32 %v1995, %v3130
      %3132 = vmatmul.bf16.gmra.mxu0 %v1904
      %v3133 = vpop.f32.mrf.mxu0
      %v3134 = vadd.f32 %v1995, %v3133
      %v3135 = vpop.f32.mrf.mxu0
      %v3136 = vadd.f32 %v1995, %v3135
      %3137 = vmatmul.bf16.gmra.mxu0 %v1908
      %v3138 = vpop.f32.mrf.mxu0
      %v3139 = vadd.f32 %v1995, %v3138
      %v3140 = vpop.f32.mrf.mxu0
      %v3141 = vadd.f32 %v1995, %v3140
      %3142 = vmatmul.bf16.gmra.mxu0 %v1912
      %v3143 = vpop.f32.mrf.mxu0
      %v3144 = vadd.f32 %v1995, %v3143
      %v3145 = vpop.f32.mrf.mxu0
      %v3146 = vadd.f32 %v1995, %v3145
      %3147 = vmatmul.bf16.gmra.mxu0 %v1916
      %v3148 = vpop.f32.mrf.mxu0
      %v3149 = vadd.f32 %v1995, %v3148
      %v3150 = vpop.f32.mrf.mxu0
      %v3151 = vadd.f32 %v1995, %v3150
      %3152 = vmatmul.bf16.gmra.mxu0 %v1920
      %v3153 = vpop.f32.mrf.mxu0
      %v3154 = vadd.f32 %v1995, %v3153
      %v3155 = vpop.f32.mrf.mxu0
      %v3156 = vadd.f32 %v1995, %v3155
      %3157 = vmatmul.bf16.gmra.mxu0 %v1924
      %v3158 = vpop.f32.mrf.mxu0
      %v3159 = vadd.f32 %v1995, %v3158
      %v3160 = vpop.f32.mrf.mxu0
      %v3161 = vadd.f32 %v1995, %v3160
      %3162 = vdwg.mxu0
      %3163 = vmatpush.bf16.msra.mxu0 %v2221
      %3164 = vmatpush.bf16.msra.mxu0 %v2219
      %3165 = vmatpush.bf16.msra.mxu0 %v2217
      %3166 = vmatpush.bf16.msra.mxu0 %v2215
      %3167 = vmatpush.bf16.msra.mxu0 %v2213
      %3168 = vmatpush.bf16.msra.mxu0 %v2211
      %3169 = vmatpush.bf16.msra.mxu0 %v2209
      %3170 = vmatpush.bf16.msra.mxu0 %v2207
      %3171 = vmatmul.bf16.gmra.mxu0 %v1801
      %v3172 = vpop.f32.mrf.mxu0
      %v3173 = vadd.f32 %v3004, %v3172
      %v3174 = vpop.f32.mrf.mxu0
      %v3175 = vadd.f32 %v3006, %v3174
      %3176 = vmatmul.bf16.gmra.mxu0 %v1805
      %v3177 = vpop.f32.mrf.mxu0
      %v3178 = vadd.f32 %v3009, %v3177
      %v3179 = vpop.f32.mrf.mxu0
      %v3180 = vadd.f32 %v3011, %v3179
      %3181 = vmatmul.bf16.gmra.mxu0 %v1809
      %v3182 = vpop.f32.mrf.mxu0
      %v3183 = vadd.f32 %v3014, %v3182
      %v3184 = vpop.f32.mrf.mxu0
      %v3185 = vadd.f32 %v3016, %v3184
      %3186 = vmatmul.bf16.gmra.mxu0 %v1813
      %v3187 = vpop.f32.mrf.mxu0
      %v3188 = vadd.f32 %v3019, %v3187
      %v3189 = vpop.f32.mrf.mxu0
      %v3190 = vadd.f32 %v3021, %v3189
      %3191 = vmatmul.bf16.gmra.mxu0 %v1817
      %v3192 = vpop.f32.mrf.mxu0
      %v3193 = vadd.f32 %v3024, %v3192
      %v3194 = vpop.f32.mrf.mxu0
      %v3195 = vadd.f32 %v3026, %v3194
      %3196 = vmatmul.bf16.gmra.mxu0 %v1821
      %v3197 = vpop.f32.mrf.mxu0
      %v3198 = vadd.f32 %v3029, %v3197
      %v3199 = vpop.f32.mrf.mxu0
      %v3200 = vadd.f32 %v3031, %v3199
      %3201 = vmatmul.bf16.gmra.mxu0 %v1825
      %v3202 = vpop.f32.mrf.mxu0
      %v3203 = vadd.f32 %v3034, %v3202
      %v3204 = vpop.f32.mrf.mxu0
      %v3205 = vadd.f32 %v3036, %v3204
      %3206 = vmatmul.bf16.gmra.mxu0 %v1829
      %v3207 = vpop.f32.mrf.mxu0
      %v3208 = vadd.f32 %v3039, %v3207
      %v3209 = vpop.f32.mrf.mxu0
      %v3210 = vadd.f32 %v3041, %v3209
      %3211 = vmatmul.bf16.gmra.mxu0 %v1833
      %v3212 = vpop.f32.mrf.mxu0
      %v3213 = vadd.f32 %v3044, %v3212
      %v3214 = vpop.f32.mrf.mxu0
      %v3215 = vadd.f32 %v3046, %v3214
      %3216 = vmatmul.bf16.gmra.mxu0 %v1837
      %v3217 = vpop.f32.mrf.mxu0
      %v3218 = vadd.f32 %v3049, %v3217
      %v3219 = vpop.f32.mrf.mxu0
      %v3220 = vadd.f32 %v3051, %v3219
      %3221 = vmatmul.bf16.gmra.mxu0 %v1841
      %v3222 = vpop.f32.mrf.mxu0
      %v3223 = vadd.f32 %v3054, %v3222
      %v3224 = vpop.f32.mrf.mxu0
      %v3225 = vadd.f32 %v3056, %v3224
      %3226 = vmatmul.bf16.gmra.mxu0 %v1845
      %v3227 = vpop.f32.mrf.mxu0
      %v3228 = vadd.f32 %v3059, %v3227
      %v3229 = vpop.f32.mrf.mxu0
      %v3230 = vadd.f32 %v3061, %v3229
      %3231 = vmatmul.bf16.gmra.mxu0 %v1849
      %v3232 = vpop.f32.mrf.mxu0
      %v3233 = vadd.f32 %v3064, %v3232
      %v3234 = vpop.f32.mrf.mxu0
      %v3235 = vadd.f32 %v3066, %v3234
      %3236 = vmatmul.bf16.gmra.mxu0 %v1853
      %v3237 = vpop.f32.mrf.mxu0
      %v3238 = vadd.f32 %v3069, %v3237
      %v3239 = vpop.f32.mrf.mxu0
      %v3240 = vadd.f32 %v3071, %v3239
      %3241 = vmatmul.bf16.gmra.mxu0 %v1857
      %v3242 = vpop.f32.mrf.mxu0
      %v3243 = vadd.f32 %v3074, %v3242
      %v3244 = vpop.f32.mrf.mxu0
      %v3245 = vadd.f32 %v3076, %v3244
      %3246 = vmatmul.bf16.gmra.mxu0 %v1861
      %v3247 = vpop.f32.mrf.mxu0
      %v3248 = vadd.f32 %v3079, %v3247
      %v3249 = vpop.f32.mrf.mxu0
      %v3250 = vadd.f32 %v3081, %v3249
      %3251 = vmatmul.bf16.gmra.mxu0 %v1865
      %v3252 = vpop.f32.mrf.mxu0
      %v3253 = vadd.f32 %v3084, %v3252
      %v3254 = vpop.f32.mrf.mxu0
      %v3255 = vadd.f32 %v3086, %v3254
      %3256 = vmatmul.bf16.gmra.mxu0 %v1869
      %v3257 = vpop.f32.mrf.mxu0
      %v3258 = vadd.f32 %v3089, %v3257
      %v3259 = vpop.f32.mrf.mxu0
      %v3260 = vadd.f32 %v3091, %v3259
      %3261 = vmatmul.bf16.gmra.mxu0 %v1873
      %v3262 = vpop.f32.mrf.mxu0
      %v3263 = vadd.f32 %v3094, %v3262
      %v3264 = vpop.f32.mrf.mxu0
      %v3265 = vadd.f32 %v3096, %v3264
      %3266 = vmatmul.bf16.gmra.mxu0 %v1877
      %v3267 = vpop.f32.mrf.mxu0
      %v3268 = vadd.f32 %v3099, %v3267
      %v3269 = vpop.f32.mrf.mxu0
      %v3270 = vadd.f32 %v3101, %v3269
      %3271 = vmatmul.bf16.gmra.mxu0 %v1881
      %v3272 = vpop.f32.mrf.mxu0
      %v3273 = vadd.f32 %v3104, %v3272
      %v3274 = vpop.f32.mrf.mxu0
      %v3275 = vadd.f32 %v3106, %v3274
      %3276 = vmatmul.bf16.gmra.mxu0 %v1885
      %v3277 = vpop.f32.mrf.mxu0
      %v3278 = vadd.f32 %v3109, %v3277
      %v3279 = vpop.f32.mrf.mxu0
      %v3280 = vadd.f32 %v3111, %v3279
      %3281 = vmatmul.bf16.gmra.mxu0 %v1889
      %v3282 = vpop.f32.mrf.mxu0
      %v3283 = vadd.f32 %v3114, %v3282
      %v3284 = vpop.f32.mrf.mxu0
      %v3285 = vadd.f32 %v3116, %v3284
      %3286 = vmatmul.bf16.gmra.mxu0 %v1893
      %v3287 = vpop.f32.mrf.mxu0
      %v3288 = vadd.f32 %v3119, %v3287
      %v3289 = vpop.f32.mrf.mxu0
      %v3290 = vadd.f32 %v3121, %v3289
      %3291 = vmatmul.bf16.gmra.mxu0 %v1897
      %v3292 = vpop.f32.mrf.mxu0
      %v3293 = vadd.f32 %v3124, %v3292
      %v3294 = vpop.f32.mrf.mxu0
      %v3295 = vadd.f32 %v3126, %v3294
      %3296 = vmatmul.bf16.gmra.mxu0 %v1901
      %v3297 = vpop.f32.mrf.mxu0
      %v3298 = vadd.f32 %v3129, %v3297
      %v3299 = vpop.f32.mrf.mxu0
      %v3300 = vadd.f32 %v3131, %v3299
      %3301 = vmatmul.bf16.gmra.mxu0 %v1905
      %v3302 = vpop.f32.mrf.mxu0
      %v3303 = vadd.f32 %v3134, %v3302
      %v3304 = vpop.f32.mrf.mxu0
      %v3305 = vadd.f32 %v3136, %v3304
      %3306 = vmatmul.bf16.gmra.mxu0 %v1909
      %v3307 = vpop.f32.mrf.mxu0
      %v3308 = vadd.f32 %v3139, %v3307
      %v3309 = vpop.f32.mrf.mxu0
      %v3310 = vadd.f32 %v3141, %v3309
      %3311 = vmatmul.bf16.gmra.mxu0 %v1913
      %v3312 = vpop.f32.mrf.mxu0
      %v3313 = vadd.f32 %v3144, %v3312
      %v3314 = vpop.f32.mrf.mxu0
      %v3315 = vadd.f32 %v3146, %v3314
      %3316 = vmatmul.bf16.gmra.mxu0 %v1917
      %v3317 = vpop.f32.mrf.mxu0
      %v3318 = vadd.f32 %v3149, %v3317
      %v3319 = vpop.f32.mrf.mxu0
      %v3320 = vadd.f32 %v3151, %v3319
      %3321 = vmatmul.bf16.gmra.mxu0 %v1921
      %v3322 = vpop.f32.mrf.mxu0
      %v3323 = vadd.f32 %v3154, %v3322
      %v3324 = vpop.f32.mrf.mxu0
      %v3325 = vadd.f32 %v3156, %v3324
      %3326 = vmatmul.bf16.gmra.mxu0 %v1925
      %v3327 = vpop.f32.mrf.mxu0
      %v3328 = vadd.f32 %v3159, %v3327
      %v3329 = vpop.f32.mrf.mxu0
      %v3330 = vadd.f32 %v3161, %v3329
      %3331 = vdwg.mxu0
      %3332 = vmatpush.bf16.msra.mxu0 %v2237
      %3333 = vmatpush.bf16.msra.mxu0 %v2235
      %3334 = vmatpush.bf16.msra.mxu0 %v2233
      %3335 = vmatpush.bf16.msra.mxu0 %v2231
      %3336 = vmatpush.bf16.msra.mxu0 %v2229
      %3337 = vmatpush.bf16.msra.mxu0 %v2227
      %3338 = vmatpush.bf16.msra.mxu0 %v2225
      %3339 = vmatpush.bf16.msra.mxu0 %v2223
      %3340 = vmatmul.bf16.gmra.mxu0 %v1802
      %v3341 = vpop.f32.mrf.mxu0
      %v3342 = vadd.f32 %v3173, %v3341
      %v3343 = vpop.f32.mrf.mxu0
      %v3344 = vadd.f32 %v3175, %v3343
      %3345 = vmatmul.bf16.gmra.mxu0 %v1806
      %v3346 = vpop.f32.mrf.mxu0
      %v3347 = vadd.f32 %v3178, %v3346
      %v3348 = vpop.f32.mrf.mxu0
      %v3349 = vadd.f32 %v3180, %v3348
      %3350 = vmatmul.bf16.gmra.mxu0 %v1810
      %v3351 = vpop.f32.mrf.mxu0
      %v3352 = vadd.f32 %v3183, %v3351
      %v3353 = vpop.f32.mrf.mxu0
      %v3354 = vadd.f32 %v3185, %v3353
      %3355 = vmatmul.bf16.gmra.mxu0 %v1814
      %v3356 = vpop.f32.mrf.mxu0
      %v3357 = vadd.f32 %v3188, %v3356
      %v3358 = vpop.f32.mrf.mxu0
      %v3359 = vadd.f32 %v3190, %v3358
      %3360 = vmatmul.bf16.gmra.mxu0 %v1818
      %v3361 = vpop.f32.mrf.mxu0
      %v3362 = vadd.f32 %v3193, %v3361
      %v3363 = vpop.f32.mrf.mxu0
      %v3364 = vadd.f32 %v3195, %v3363
      %3365 = vmatmul.bf16.gmra.mxu0 %v1822
      %v3366 = vpop.f32.mrf.mxu0
      %v3367 = vadd.f32 %v3198, %v3366
      %v3368 = vpop.f32.mrf.mxu0
      %v3369 = vadd.f32 %v3200, %v3368
      %3370 = vmatmul.bf16.gmra.mxu0 %v1826
      %v3371 = vpop.f32.mrf.mxu0
      %v3372 = vadd.f32 %v3203, %v3371
      %v3373 = vpop.f32.mrf.mxu0
      %v3374 = vadd.f32 %v3205, %v3373
      %3375 = vmatmul.bf16.gmra.mxu0 %v1830
      %v3376 = vpop.f32.mrf.mxu0
      %v3377 = vadd.f32 %v3208, %v3376
      %v3378 = vpop.f32.mrf.mxu0
      %v3379 = vadd.f32 %v3210, %v3378
      %3380 = vmatmul.bf16.gmra.mxu0 %v1834
      %v3381 = vpop.f32.mrf.mxu0
      %v3382 = vadd.f32 %v3213, %v3381
      %v3383 = vpop.f32.mrf.mxu0
      %v3384 = vadd.f32 %v3215, %v3383
      %3385 = vmatmul.bf16.gmra.mxu0 %v1838
      %v3386 = vpop.f32.mrf.mxu0
      %v3387 = vadd.f32 %v3218, %v3386
      %v3388 = vpop.f32.mrf.mxu0
      %v3389 = vadd.f32 %v3220, %v3388
      %3390 = vmatmul.bf16.gmra.mxu0 %v1842
      %v3391 = vpop.f32.mrf.mxu0
      %v3392 = vadd.f32 %v3223, %v3391
      %v3393 = vpop.f32.mrf.mxu0
      %v3394 = vadd.f32 %v3225, %v3393
      %3395 = vmatmul.bf16.gmra.mxu0 %v1846
      %v3396 = vpop.f32.mrf.mxu0
      %v3397 = vadd.f32 %v3228, %v3396
      %v3398 = vpop.f32.mrf.mxu0
      %v3399 = vadd.f32 %v3230, %v3398
      %3400 = vmatmul.bf16.gmra.mxu0 %v1850
      %v3401 = vpop.f32.mrf.mxu0
      %v3402 = vadd.f32 %v3233, %v3401
      %v3403 = vpop.f32.mrf.mxu0
      %v3404 = vadd.f32 %v3235, %v3403
      %3405 = vmatmul.bf16.gmra.mxu0 %v1854
      %v3406 = vpop.f32.mrf.mxu0
      %v3407 = vadd.f32 %v3238, %v3406
      %v3408 = vpop.f32.mrf.mxu0
      %v3409 = vadd.f32 %v3240, %v3408
      %3410 = vmatmul.bf16.gmra.mxu0 %v1858
      %v3411 = vpop.f32.mrf.mxu0
      %v3412 = vadd.f32 %v3243, %v3411
      %v3413 = vpop.f32.mrf.mxu0
      %v3414 = vadd.f32 %v3245, %v3413
      %3415 = vmatmul.bf16.gmra.mxu0 %v1862
      %v3416 = vpop.f32.mrf.mxu0
      %v3417 = vadd.f32 %v3248, %v3416
      %v3418 = vpop.f32.mrf.mxu0
      %v3419 = vadd.f32 %v3250, %v3418
      %3420 = vmatmul.bf16.gmra.mxu0 %v1866
      %v3421 = vpop.f32.mrf.mxu0
      %v3422 = vadd.f32 %v3253, %v3421
      %v3423 = vpop.f32.mrf.mxu0
      %v3424 = vadd.f32 %v3255, %v3423
      %3425 = vmatmul.bf16.gmra.mxu0 %v1870
      %v3426 = vpop.f32.mrf.mxu0
      %v3427 = vadd.f32 %v3258, %v3426
      %v3428 = vpop.f32.mrf.mxu0
      %v3429 = vadd.f32 %v3260, %v3428
      %3430 = vmatmul.bf16.gmra.mxu0 %v1874
      %v3431 = vpop.f32.mrf.mxu0
      %v3432 = vadd.f32 %v3263, %v3431
      %v3433 = vpop.f32.mrf.mxu0
      %v3434 = vadd.f32 %v3265, %v3433
      %3435 = vmatmul.bf16.gmra.mxu0 %v1878
      %v3436 = vpop.f32.mrf.mxu0
      %v3437 = vadd.f32 %v3268, %v3436
      %v3438 = vpop.f32.mrf.mxu0
      %v3439 = vadd.f32 %v3270, %v3438
      %3440 = vmatmul.bf16.gmra.mxu0 %v1882
      %v3441 = vpop.f32.mrf.mxu0
      %v3442 = vadd.f32 %v3273, %v3441
      %v3443 = vpop.f32.mrf.mxu0
      %v3444 = vadd.f32 %v3275, %v3443
      %3445 = vmatmul.bf16.gmra.mxu0 %v1886
      %v3446 = vpop.f32.mrf.mxu0
      %v3447 = vadd.f32 %v3278, %v3446
      %v3448 = vpop.f32.mrf.mxu0
      %v3449 = vadd.f32 %v3280, %v3448
      %3450 = vmatmul.bf16.gmra.mxu0 %v1890
      %v3451 = vpop.f32.mrf.mxu0
      %v3452 = vadd.f32 %v3283, %v3451
      %v3453 = vpop.f32.mrf.mxu0
      %v3454 = vadd.f32 %v3285, %v3453
      %3455 = vmatmul.bf16.gmra.mxu0 %v1894
      %v3456 = vpop.f32.mrf.mxu0
      %v3457 = vadd.f32 %v3288, %v3456
      %v3458 = vpop.f32.mrf.mxu0
      %v3459 = vadd.f32 %v3290, %v3458
      %3460 = vmatmul.bf16.gmra.mxu0 %v1898
      %v3461 = vpop.f32.mrf.mxu0
      %v3462 = vadd.f32 %v3293, %v3461
      %v3463 = vpop.f32.mrf.mxu0
      %v3464 = vadd.f32 %v3295, %v3463
      %3465 = vmatmul.bf16.gmra.mxu0 %v1902
      %v3466 = vpop.f32.mrf.mxu0
      %v3467 = vadd.f32 %v3298, %v3466
      %v3468 = vpop.f32.mrf.mxu0
      %v3469 = vadd.f32 %v3300, %v3468
      %3470 = vmatmul.bf16.gmra.mxu0 %v1906
      %v3471 = vpop.f32.mrf.mxu0
      %v3472 = vadd.f32 %v3303, %v3471
      %v3473 = vpop.f32.mrf.mxu0
      %v3474 = vadd.f32 %v3305, %v3473
      %3475 = vmatmul.bf16.gmra.mxu0 %v1910
      %v3476 = vpop.f32.mrf.mxu0
      %v3477 = vadd.f32 %v3308, %v3476
      %v3478 = vpop.f32.mrf.mxu0
      %v3479 = vadd.f32 %v3310, %v3478
      %3480 = vmatmul.bf16.gmra.mxu0 %v1914
      %v3481 = vpop.f32.mrf.mxu0
      %v3482 = vadd.f32 %v3313, %v3481
      %v3483 = vpop.f32.mrf.mxu0
      %v3484 = vadd.f32 %v3315, %v3483
      %3485 = vmatmul.bf16.gmra.mxu0 %v1918
      %v3486 = vpop.f32.mrf.mxu0
      %v3487 = vadd.f32 %v3318, %v3486
      %v3488 = vpop.f32.mrf.mxu0
      %v3489 = vadd.f32 %v3320, %v3488
      %3490 = vmatmul.bf16.gmra.mxu0 %v1922
      %v3491 = vpop.f32.mrf.mxu0
      %v3492 = vadd.f32 %v3323, %v3491
      %v3493 = vpop.f32.mrf.mxu0
      %v3494 = vadd.f32 %v3325, %v3493
      %3495 = vmatmul.bf16.gmra.mxu0 %v1926
      %v3496 = vpop.f32.mrf.mxu0
      %v3497 = vadd.f32 %v3328, %v3496
      %v3498 = vpop.f32.mrf.mxu0
      %v3499 = vadd.f32 %v3330, %v3498
      %3500 = vdwg.mxu0
      %3501 = vmatpush.bf16.msra.mxu0 %v2253
      %3502 = vmatpush.bf16.msra.mxu0 %v2251
      %3503 = vmatpush.bf16.msra.mxu0 %v2249
      %3504 = vmatpush.bf16.msra.mxu0 %v2247
      %3505 = vmatpush.bf16.msra.mxu0 %v2245
      %3506 = vmatpush.bf16.msra.mxu0 %v2243
      %3507 = vmatpush.bf16.msra.mxu0 %v2241
      %3508 = vmatpush.bf16.msra.mxu0 %v2239
      %3509 = vmatmul.bf16.gmra.mxu0 %v1803
      %v3510 = vpop.f32.mrf.mxu0
      %v3511 = vadd.f32 %v3342, %v3510
      %v3512 = vpop.f32.mrf.mxu0
      %v3513 = vadd.f32 %v3344, %v3512
      %3514 = vmatmul.bf16.gmra.mxu0 %v1807
      %v3515 = vpop.f32.mrf.mxu0
      %v3516 = vadd.f32 %v3347, %v3515
      %v3517 = vpop.f32.mrf.mxu0
      %v3518 = vadd.f32 %v3349, %v3517
      %3519 = vmatmul.bf16.gmra.mxu0 %v1811
      %v3520 = vpop.f32.mrf.mxu0
      %v3521 = vadd.f32 %v3352, %v3520
      %v3522 = vpop.f32.mrf.mxu0
      %v3523 = vadd.f32 %v3354, %v3522
      %3524 = vmatmul.bf16.gmra.mxu0 %v1815
      %v3525 = vpop.f32.mrf.mxu0
      %v3526 = vadd.f32 %v3357, %v3525
      %v3527 = vpop.f32.mrf.mxu0
      %v3528 = vadd.f32 %v3359, %v3527
      %3529 = vmatmul.bf16.gmra.mxu0 %v1819
      %v3530 = vpop.f32.mrf.mxu0
      %v3531 = vadd.f32 %v3362, %v3530
      %v3532 = vpop.f32.mrf.mxu0
      %v3533 = vadd.f32 %v3364, %v3532
      %3534 = vmatmul.bf16.gmra.mxu0 %v1823
      %v3535 = vpop.f32.mrf.mxu0
      %v3536 = vadd.f32 %v3367, %v3535
      %v3537 = vpop.f32.mrf.mxu0
      %v3538 = vadd.f32 %v3369, %v3537
      %3539 = vmatmul.bf16.gmra.mxu0 %v1827
      %v3540 = vpop.f32.mrf.mxu0
      %v3541 = vadd.f32 %v3372, %v3540
      %v3542 = vpop.f32.mrf.mxu0
      %v3543 = vadd.f32 %v3374, %v3542
      %3544 = vmatmul.bf16.gmra.mxu0 %v1831
      %v3545 = vpop.f32.mrf.mxu0
      %v3546 = vadd.f32 %v3377, %v3545
      %v3547 = vpop.f32.mrf.mxu0
      %v3548 = vadd.f32 %v3379, %v3547
      %3549 = vmatmul.bf16.gmra.mxu0 %v1835
      %v3550 = vpop.f32.mrf.mxu0
      %v3551 = vadd.f32 %v3382, %v3550
      %v3552 = vpop.f32.mrf.mxu0
      %v3553 = vadd.f32 %v3384, %v3552
      %3554 = vmatmul.bf16.gmra.mxu0 %v1839
      %v3555 = vpop.f32.mrf.mxu0
      %v3556 = vadd.f32 %v3387, %v3555
      %v3557 = vpop.f32.mrf.mxu0
      %v3558 = vadd.f32 %v3389, %v3557
      %3559 = vmatmul.bf16.gmra.mxu0 %v1843
      %v3560 = vpop.f32.mrf.mxu0
      %v3561 = vadd.f32 %v3392, %v3560
      %v3562 = vpop.f32.mrf.mxu0
      %v3563 = vadd.f32 %v3394, %v3562
      %3564 = vmatmul.bf16.gmra.mxu0 %v1847
      %v3565 = vpop.f32.mrf.mxu0
      %v3566 = vadd.f32 %v3397, %v3565
      %v3567 = vpop.f32.mrf.mxu0
      %v3568 = vadd.f32 %v3399, %v3567
      %3569 = vmatmul.bf16.gmra.mxu0 %v1851
      %v3570 = vpop.f32.mrf.mxu0
      %v3571 = vadd.f32 %v3402, %v3570
      %v3572 = vpop.f32.mrf.mxu0
      %v3573 = vadd.f32 %v3404, %v3572
      %3574 = vmatmul.bf16.gmra.mxu0 %v1855
      %v3575 = vpop.f32.mrf.mxu0
      %v3576 = vadd.f32 %v3407, %v3575
      %v3577 = vpop.f32.mrf.mxu0
      %v3578 = vadd.f32 %v3409, %v3577
      %3579 = vmatmul.bf16.gmra.mxu0 %v1859
      %v3580 = vpop.f32.mrf.mxu0
      %v3581 = vadd.f32 %v3412, %v3580
      %v3582 = vpop.f32.mrf.mxu0
      %v3583 = vadd.f32 %v3414, %v3582
      %3584 = vmatmul.bf16.gmra.mxu0 %v1863
      %v3585 = vpop.f32.mrf.mxu0
      %v3586 = vadd.f32 %v3417, %v3585
      %v3587 = vpop.f32.mrf.mxu0
      %v3588 = vadd.f32 %v3419, %v3587
      %3589 = vmatmul.bf16.gmra.mxu0 %v1867
      %v3590 = vpop.f32.mrf.mxu0
      %v3591 = vadd.f32 %v3422, %v3590
      %v3592 = vpop.f32.mrf.mxu0
      %v3593 = vadd.f32 %v3424, %v3592
      %3594 = vmatmul.bf16.gmra.mxu0 %v1871
      %v3595 = vpop.f32.mrf.mxu0
      %v3596 = vadd.f32 %v3427, %v3595
      %v3597 = vpop.f32.mrf.mxu0
      %v3598 = vadd.f32 %v3429, %v3597
      %3599 = vmatmul.bf16.gmra.mxu0 %v1875
      %v3600 = vpop.f32.mrf.mxu0
      %v3601 = vadd.f32 %v3432, %v3600
      %v3602 = vpop.f32.mrf.mxu0
      %v3603 = vadd.f32 %v3434, %v3602
      %3604 = vmatmul.bf16.gmra.mxu0 %v1879
      %v3605 = vpop.f32.mrf.mxu0
      %v3606 = vadd.f32 %v3437, %v3605
      %v3607 = vpop.f32.mrf.mxu0
      %v3608 = vadd.f32 %v3439, %v3607
      %3609 = vmatmul.bf16.gmra.mxu0 %v1883
      %v3610 = vpop.f32.mrf.mxu0
      %v3611 = vadd.f32 %v3442, %v3610
      %v3612 = vpop.f32.mrf.mxu0
      %v3613 = vadd.f32 %v3444, %v3612
      %3614 = vmatmul.bf16.gmra.mxu0 %v1887
      %v3615 = vpop.f32.mrf.mxu0
      %v3616 = vadd.f32 %v3447, %v3615
      %v3617 = vpop.f32.mrf.mxu0
      %v3618 = vadd.f32 %v3449, %v3617
      %3619 = vmatmul.bf16.gmra.mxu0 %v1891
      %v3620 = vpop.f32.mrf.mxu0
      %v3621 = vadd.f32 %v3452, %v3620
      %v3622 = vpop.f32.mrf.mxu0
      %v3623 = vadd.f32 %v3454, %v3622
      %3624 = vmatmul.bf16.gmra.mxu0 %v1895
      %v3625 = vpop.f32.mrf.mxu0
      %v3626 = vadd.f32 %v3457, %v3625
      %v3627 = vpop.f32.mrf.mxu0
      %v3628 = vadd.f32 %v3459, %v3627
      %3629 = vmatmul.bf16.gmra.mxu0 %v1899
      %v3630 = vpop.f32.mrf.mxu0
      %v3631 = vadd.f32 %v3462, %v3630
      %v3632 = vpop.f32.mrf.mxu0
      %v3633 = vadd.f32 %v3464, %v3632
      %3634 = vmatmul.bf16.gmra.mxu0 %v1903
      %v3635 = vpop.f32.mrf.mxu0
      %v3636 = vadd.f32 %v3467, %v3635
      %v3637 = vpop.f32.mrf.mxu0
      %v3638 = vadd.f32 %v3469, %v3637
      %3639 = vmatmul.bf16.gmra.mxu0 %v1907
      %v3640 = vpop.f32.mrf.mxu0
      %v3641 = vadd.f32 %v3472, %v3640
      %v3642 = vpop.f32.mrf.mxu0
      %v3643 = vadd.f32 %v3474, %v3642
      %3644 = vmatmul.bf16.gmra.mxu0 %v1911
      %v3645 = vpop.f32.mrf.mxu0
      %v3646 = vadd.f32 %v3477, %v3645
      %v3647 = vpop.f32.mrf.mxu0
      %v3648 = vadd.f32 %v3479, %v3647
      %3649 = vmatmul.bf16.gmra.mxu0 %v1915
      %v3650 = vpop.f32.mrf.mxu0
      %v3651 = vadd.f32 %v3482, %v3650
      %v3652 = vpop.f32.mrf.mxu0
      %v3653 = vadd.f32 %v3484, %v3652
      %3654 = vmatmul.bf16.gmra.mxu0 %v1919
      %v3655 = vpop.f32.mrf.mxu0
      %v3656 = vadd.f32 %v3487, %v3655
      %v3657 = vpop.f32.mrf.mxu0
      %v3658 = vadd.f32 %v3489, %v3657
      %3659 = vmatmul.bf16.gmra.mxu0 %v1923
      %v3660 = vpop.f32.mrf.mxu0
      %v3661 = vadd.f32 %v3492, %v3660
      %v3662 = vpop.f32.mrf.mxu0
      %v3663 = vadd.f32 %v3494, %v3662
      %3664 = vmatmul.bf16.gmra.mxu0 %v1927
      %v3665 = vpop.f32.mrf.mxu0
      %v3666 = vadd.f32 %v3497, %v3665
      %v3667 = vpop.f32.mrf.mxu0
      %v3668 = vadd.f32 %v3499, %v3667
      %3669 = vdwg.mxu0
      %v3670 = vmax.f32 %v2835, 0.0
      %v3671 = vmax.f32 %v3511, 0.0
      %v3672 = vmax.f32 %v2837, 0.0
      %v3673 = vmax.f32 %v3513, 0.0
      %v3674 = vmax.f32 %v2840, 0.0
      %v3675 = vmax.f32 %v3516, 0.0
      %v3676 = vmax.f32 %v2842, 0.0
      %v3677 = vmax.f32 %v3518, 0.0
      %v3678 = vmax.f32 %v2845, 0.0
      %v3679 = vmax.f32 %v3521, 0.0
      %v3680 = vmax.f32 %v2847, 0.0
      %v3681 = vmax.f32 %v3523, 0.0
      %v3682 = vmax.f32 %v2850, 0.0
      %v3683 = vmax.f32 %v3526, 0.0
      %v3684 = vmax.f32 %v2852, 0.0
      %v3685 = vmax.f32 %v3528, 0.0
      %v3686 = vmax.f32 %v2855, 0.0
      %v3687 = vmax.f32 %v3531, 0.0
      %v3688 = vmax.f32 %v2857, 0.0
      %v3689 = vmax.f32 %v3533, 0.0
      %v3690 = vmax.f32 %v2860, 0.0
      %v3691 = vmax.f32 %v3536, 0.0
      %v3692 = vmax.f32 %v2862, 0.0
      %v3693 = vmax.f32 %v3538, 0.0
      %v3694 = vmax.f32 %v2865, 0.0
      %v3695 = vmax.f32 %v3541, 0.0
      %v3696 = vmax.f32 %v2867, 0.0
      %v3697 = vmax.f32 %v3543, 0.0
      %v3698 = vmax.f32 %v2870, 0.0
      %v3699 = vmax.f32 %v3546, 0.0
      %v3700 = vmax.f32 %v2872, 0.0
      %v3701 = vmax.f32 %v3548, 0.0
      %v3702 = vmax.f32 %v2875, 0.0
      %v3703 = vmax.f32 %v3551, 0.0
      %v3704 = vmax.f32 %v2877, 0.0
      %v3705 = vmax.f32 %v3553, 0.0
      %v3706 = vmax.f32 %v2880, 0.0
      %v3707 = vmax.f32 %v3556, 0.0
      %v3708 = vmax.f32 %v2882, 0.0
      %v3709 = vmax.f32 %v3558, 0.0
      %v3710 = vmax.f32 %v2885, 0.0
      %v3711 = vmax.f32 %v3561, 0.0
      %v3712 = vmax.f32 %v2887, 0.0
      %v3713 = vmax.f32 %v3563, 0.0
      %v3714 = vmax.f32 %v2890, 0.0
      %v3715 = vmax.f32 %v3566, 0.0
      %v3716 = vmax.f32 %v2892, 0.0
      %v3717 = vmax.f32 %v3568, 0.0
      %v3718 = vmax.f32 %v2895, 0.0
      %v3719 = vmax.f32 %v3571, 0.0
      %v3720 = vmax.f32 %v2897, 0.0
      %v3721 = vmax.f32 %v3573, 0.0
      %v3722 = vmax.f32 %v2900, 0.0
      %v3723 = vmax.f32 %v3576, 0.0
      %v3724 = vmax.f32 %v2902, 0.0
      %v3725 = vmax.f32 %v3578, 0.0
      %v3726 = vmax.f32 %v2905, 0.0
      %v3727 = vmax.f32 %v3581, 0.0
      %v3728 = vmax.f32 %v2907, 0.0
      %v3729 = vmax.f32 %v3583, 0.0
      %v3730 = vmax.f32 %v2910, 0.0
      %v3731 = vmax.f32 %v3586, 0.0
      %v3732 = vmax.f32 %v2912, 0.0
      %v3733 = vmax.f32 %v3588, 0.0
      %v3734 = vmax.f32 %v2915, 0.0
      %v3735 = vmax.f32 %v3591, 0.0
      %v3736 = vmax.f32 %v2917, 0.0
      %v3737 = vmax.f32 %v3593, 0.0
      %v3738 = vmax.f32 %v2920, 0.0
      %v3739 = vmax.f32 %v3596, 0.0
      %v3740 = vmax.f32 %v2922, 0.0
      %v3741 = vmax.f32 %v3598, 0.0
      %v3742 = vmax.f32 %v2925, 0.0
      %v3743 = vmax.f32 %v3601, 0.0
      %v3744 = vmax.f32 %v2927, 0.0
      %v3745 = vmax.f32 %v3603, 0.0
      %v3746 = vmax.f32 %v2930, 0.0
      %v3747 = vmax.f32 %v3606, 0.0
      %v3748 = vmax.f32 %v2932, 0.0
      %v3749 = vmax.f32 %v3608, 0.0
      %v3750 = vmax.f32 %v2935, 0.0
      %v3751 = vmax.f32 %v3611, 0.0
      %v3752 = vmax.f32 %v2937, 0.0
      %v3753 = vmax.f32 %v3613, 0.0
      %v3754 = vmax.f32 %v2940, 0.0
      %v3755 = vmax.f32 %v3616, 0.0
      %v3756 = vmax.f32 %v2942, 0.0
      %v3757 = vmax.f32 %v3618, 0.0
      %v3758 = vmax.f32 %v2945, 0.0
      %v3759 = vmax.f32 %v3621, 0.0
      %v3760 = vmax.f32 %v2947, 0.0
      %v3761 = vmax.f32 %v3623, 0.0
      %v3762 = vmax.f32 %v2950, 0.0
      %v3763 = vmax.f32 %v3626, 0.0
      %v3764 = vmax.f32 %v2952, 0.0
      %v3765 = vmax.f32 %v3628, 0.0
      %v3766 = vmax.f32 %v2955, 0.0
      %v3767 = vmax.f32 %v3631, 0.0
      %v3768 = vmax.f32 %v2957, 0.0
      %v3769 = vmax.f32 %v3633, 0.0
      %v3770 = vmax.f32 %v2960, 0.0
      %v3771 = vmax.f32 %v3636, 0.0
      %v3772 = vmax.f32 %v2962, 0.0
      %v3773 = vmax.f32 %v3638, 0.0
      %v3774 = vmax.f32 %v2965, 0.0
      %v3775 = vmax.f32 %v3641, 0.0
      %v3776 = vmax.f32 %v2967, 0.0
      %v3777 = vmax.f32 %v3643, 0.0
      %v3778 = vmax.f32 %v2970, 0.0
      %v3779 = vmax.f32 %v3646, 0.0
      %v3780 = vmax.f32 %v2972, 0.0
      %v3781 = vmax.f32 %v3648, 0.0
      %v3782 = vmax.f32 %v2975, 0.0
      %v3783 = vmax.f32 %v3651, 0.0
      %v3784 = vmax.f32 %v2977, 0.0
      %v3785 = vmax.f32 %v3653, 0.0
      %v3786 = vmax.f32 %v2980, 0.0
      %v3787 = vmax.f32 %v3656, 0.0
      %v3788 = vmax.f32 %v2982, 0.0
      %v3789 = vmax.f32 %v3658, 0.0
      %v3790 = vmax.f32 %v2985, 0.0
      %v3791 = vmax.f32 %v3661, 0.0
      %v3792 = vmax.f32 %v2987, 0.0
      %v3793 = vmax.f32 %v3663, 0.0
      %v3794 = vmax.f32 %v2990, 0.0
      %v3795 = vmax.f32 %v3666, 0.0
      %v3796 = vmax.f32 %v2992, 0.0
      %v3797 = vmax.f32 %v3668, 0.0
      %v3798 = vpack.c.bf16 %v3672, %v3670
      %v3799 = vpack.c.bf16 %v3673, %v3671
      %v3800 = vpack.c.bf16 %v3676, %v3674
      %v3801 = vpack.c.bf16 %v3677, %v3675
      %v3802 = vpack.c.bf16 %v3680, %v3678
      %v3803 = vpack.c.bf16 %v3681, %v3679
      %v3804 = vpack.c.bf16 %v3684, %v3682
      %v3805 = vpack.c.bf16 %v3685, %v3683
      %v3806 = vpack.c.bf16 %v3688, %v3686
      %v3807 = vpack.c.bf16 %v3689, %v3687
      %v3808 = vpack.c.bf16 %v3692, %v3690
      %v3809 = vpack.c.bf16 %v3693, %v3691
      %v3810 = vpack.c.bf16 %v3696, %v3694
      %v3811 = vpack.c.bf16 %v3697, %v3695
      %v3812 = vpack.c.bf16 %v3700, %v3698
      %v3813 = vpack.c.bf16 %v3701, %v3699
      %v3814 = vpack.c.bf16 %v3704, %v3702
      %v3815 = vpack.c.bf16 %v3705, %v3703
      %v3816 = vpack.c.bf16 %v3708, %v3706
      %v3817 = vpack.c.bf16 %v3709, %v3707
      %v3818 = vpack.c.bf16 %v3712, %v3710
      %v3819 = vpack.c.bf16 %v3713, %v3711
      %v3820 = vpack.c.bf16 %v3716, %v3714
      %v3821 = vpack.c.bf16 %v3717, %v3715
      %v3822 = vpack.c.bf16 %v3720, %v3718
      %v3823 = vpack.c.bf16 %v3721, %v3719
      %v3824 = vpack.c.bf16 %v3724, %v3722
      %v3825 = vpack.c.bf16 %v3725, %v3723
      %v3826 = vpack.c.bf16 %v3728, %v3726
      %v3827 = vpack.c.bf16 %v3729, %v3727
      %v3828 = vpack.c.bf16 %v3732, %v3730
      %v3829 = vpack.c.bf16 %v3733, %v3731
      %v3830 = vpack.c.bf16 %v3736, %v3734
      %v3831 = vpack.c.bf16 %v3737, %v3735
      %v3832 = vpack.c.bf16 %v3740, %v3738
      %v3833 = vpack.c.bf16 %v3741, %v3739
      %v3834 = vpack.c.bf16 %v3744, %v3742
      %v3835 = vpack.c.bf16 %v3745, %v3743
      %v3836 = vpack.c.bf16 %v3748, %v3746
      %v3837 = vpack.c.bf16 %v3749, %v3747
      %v3838 = vpack.c.bf16 %v3752, %v3750
      %v3839 = vpack.c.bf16 %v3753, %v3751
      %v3840 = vpack.c.bf16 %v3756, %v3754
      %v3841 = vpack.c.bf16 %v3757, %v3755
      %v3842 = vpack.c.bf16 %v3760, %v3758
      %v3843 = vpack.c.bf16 %v3761, %v3759
      %v3844 = vpack.c.bf16 %v3764, %v3762
      %v3845 = vpack.c.bf16 %v3765, %v3763
      %v3846 = vpack.c.bf16 %v3768, %v3766
      %v3847 = vpack.c.bf16 %v3769, %v3767
      %v3848 = vpack.c.bf16 %v3772, %v3770
      %v3849 = vpack.c.bf16 %v3773, %v3771
      %v3850 = vpack.c.bf16 %v3776, %v3774
      %v3851 = vpack.c.bf16 %v3777, %v3775
      %v3852 = vpack.c.bf16 %v3780, %v3778
      %v3853 = vpack.c.bf16 %v3781, %v3779
      %v3854 = vpack.c.bf16 %v3784, %v3782
      %v3855 = vpack.c.bf16 %v3785, %v3783
      %v3856 = vpack.c.bf16 %v3788, %v3786
      %v3857 = vpack.c.bf16 %v3789, %v3787
      %v3858 = vpack.c.bf16 %v3792, %v3790
      %v3859 = vpack.c.bf16 %v3793, %v3791
      %v3860 = vpack.c.bf16 %v3796, %v3794
      %v3861 = vpack.c.bf16 %v3797, %v3795
      %v3862 = vld [vmem:[%s4] sm:$0xf]
      %v3863 = vld [vmem:[%s4 + $0x4] sm:$0xf]
      %v3864 = vld [vmem:[%s4 + $0x8] sm:$0xf]
      %v3865 = vld [vmem:[%s4 + $0xc] sm:$0xf]
      %v3866 = vld [vmem:[%s4 + $0x10] sm:$0xf]
      %v3867 = vld [vmem:[%s4 + $0x14] sm:$0xf]
      %v3868 = vld [vmem:[%s4 + $0x18] sm:$0xf]
      %v3869 = vld [vmem:[%s4 + $0x1c] sm:$0xf]
      %v3870 = vld [vmem:[%s4 + $0x20] sm:$0xf]
      %v3871 = vld [vmem:[%s4 + $0x24] sm:$0xf]
      %v3872 = vld [vmem:[%s4 + $0x28] sm:$0xf]
      %v3873 = vld [vmem:[%s4 + $0x2c] sm:$0xf]
      %v3874 = vld [vmem:[%s4 + $0x30] sm:$0xf]
      %v3875 = vld [vmem:[%s4 + $0x34] sm:$0xf]
      %v3876 = vld [vmem:[%s4 + $0x38] sm:$0xf]
      %v3877 = vld [vmem:[%s4 + $0x3c] sm:$0xf]
      %v3878 = vld [vmem:[%s4 + $0x40] sm:$0xf]
      %v3879 = vld [vmem:[%s4 + $0x44] sm:$0xf]
      %v3880 = vld [vmem:[%s4 + $0x48] sm:$0xf]
      %v3881 = vld [vmem:[%s4 + $0x4c] sm:$0xf]
      %v3882 = vld [vmem:[%s4 + $0x50] sm:$0xf]
      %v3883 = vld [vmem:[%s4 + $0x54] sm:$0xf]
      %v3884 = vld [vmem:[%s4 + $0x58] sm:$0xf]
      %v3885 = vld [vmem:[%s4 + $0x5c] sm:$0xf]
      %v3886 = vld [vmem:[%s4 + $0x60] sm:$0xf]
      %v3887 = vld [vmem:[%s4 + $0x64] sm:$0xf]
      %v3888 = vld [vmem:[%s4 + $0x68] sm:$0xf]
      %v3889 = vld [vmem:[%s4 + $0x6c] sm:$0xf]
      %v3890 = vld [vmem:[%s4 + $0x70] sm:$0xf]
      %v3891 = vld [vmem:[%s4 + $0x74] sm:$0xf]
      %v3892 = vld [vmem:[%s4 + $0x78] sm:$0xf]
      %v3893 = vld [vmem:[%s4 + $0x7c] sm:$0xf]
      %v3894 = vld [vmem:[%s5] sm:$0x1]
      %v3896 = vperm.slane %v3894, 0
      %v3930 = vunpack.c.l.b16 %v3862
      %v3931 = vunpack.c.l.b16 %v3863
      %v3932 = vunpack.c.l.b16 %v3864
      %v3933 = vunpack.c.l.b16 %v3865
      %v3934 = vunpack.c.l.b16 %v3866
      %v3935 = vunpack.c.l.b16 %v3867
      %v3936 = vunpack.c.l.b16 %v3868
      %v3937 = vunpack.c.l.b16 %v3869
      %v3938 = vunpack.c.l.b16 %v3870
      %v3939 = vunpack.c.l.b16 %v3871
      %v3940 = vunpack.c.l.b16 %v3872
      %v3941 = vunpack.c.l.b16 %v3873
      %v3942 = vunpack.c.l.b16 %v3874
      %v3943 = vunpack.c.l.b16 %v3875
      %v3944 = vunpack.c.l.b16 %v3876
      %v3945 = vunpack.c.l.b16 %v3877
      %v3946 = vunpack.c.l.b16 %v3878
      %v3947 = vunpack.c.l.b16 %v3879
      %v3948 = vunpack.c.l.b16 %v3880
      %v3949 = vunpack.c.l.b16 %v3881
      %v3950 = vunpack.c.l.b16 %v3882
      %v3951 = vunpack.c.l.b16 %v3883
      %v3952 = vunpack.c.l.b16 %v3884
      %v3953 = vunpack.c.l.b16 %v3885
      %v3954 = vunpack.c.l.b16 %v3886
      %v3955 = vunpack.c.l.b16 %v3887
      %v3956 = vunpack.c.l.b16 %v3888
      %v3957 = vunpack.c.l.b16 %v3889
      %v3958 = vunpack.c.l.b16 %v3890
      %v3959 = vunpack.c.l.b16 %v3891
      %v3960 = vunpack.c.l.b16 %v3892
      %v3961 = vunpack.c.l.b16 %v3893
      %v3962 = vpack.c.b16 %v3931, %v3930
      %v3963 = vpack.c.b16 %v3933, %v3932
      %v3964 = vpack.c.b16 %v3935, %v3934
      %v3965 = vpack.c.b16 %v3937, %v3936
      %v3966 = vpack.c.b16 %v3939, %v3938
      %v3967 = vpack.c.b16 %v3941, %v3940
      %v3968 = vpack.c.b16 %v3943, %v3942
      %v3969 = vpack.c.b16 %v3945, %v3944
      %v3970 = vpack.c.b16 %v3947, %v3946
      %v3971 = vpack.c.b16 %v3949, %v3948
      %v3972 = vpack.c.b16 %v3951, %v3950
      %v3973 = vpack.c.b16 %v3953, %v3952
      %v3974 = vpack.c.b16 %v3955, %v3954
      %v3975 = vpack.c.b16 %v3957, %v3956
      %v3976 = vpack.c.b16 %v3959, %v3958
      %v3977 = vpack.c.b16 %v3961, %v3960
      %3994 = vmatpush.bf16.msra.mxu0 %v3969
      %3995 = vmatpush.bf16.msra.mxu0 %v3968
      %3996 = vmatpush.bf16.msra.mxu0 %v3967
      %3997 = vmatpush.bf16.msra.mxu0 %v3966
      %3998 = vmatpush.bf16.msra.mxu0 %v3965
      %3999 = vmatpush.bf16.msra.mxu0 %v3964
      %4000 = vmatpush.bf16.msra.mxu0 %v3963
      %4001 = vmatpush.bf16.msra.mxu0 %v3962
      %4002 = vmatmul.bf16.gmra.mxu0 %v3798
      %v4003 = vpop.f32.mrf.mxu0
      %v4004 = vadd.f32 %v3896, %v4003
      %v4005 = vpop.f32.mrf.mxu0
      %v4006 = vadd.f32 %v3896, %v4005
      %4007 = vmatmul.bf16.gmra.mxu0 %v3800
      %v4008 = vpop.f32.mrf.mxu0
      %v4009 = vadd.f32 %v3896, %v4008
      %v4010 = vpop.f32.mrf.mxu0
      %v4011 = vadd.f32 %v3896, %v4010
      %4012 = vmatmul.bf16.gmra.mxu0 %v3802
      %v4013 = vpop.f32.mrf.mxu0
      %v4014 = vadd.f32 %v3896, %v4013
      %v4015 = vpop.f32.mrf.mxu0
      %v4016 = vadd.f32 %v3896, %v4015
      %4017 = vmatmul.bf16.gmra.mxu0 %v3804
      %v4018 = vpop.f32.mrf.mxu0
      %v4019 = vadd.f32 %v3896, %v4018
      %v4020 = vpop.f32.mrf.mxu0
      %v4021 = vadd.f32 %v3896, %v4020
      %4022 = vmatmul.bf16.gmra.mxu0 %v3806
      %v4023 = vpop.f32.mrf.mxu0
      %v4024 = vadd.f32 %v3896, %v4023
      %v4025 = vpop.f32.mrf.mxu0
      %v4026 = vadd.f32 %v3896, %v4025
      %4027 = vmatmul.bf16.gmra.mxu0 %v3808
      %v4028 = vpop.f32.mrf.mxu0
      %v4029 = vadd.f32 %v3896, %v4028
      %v4030 = vpop.f32.mrf.mxu0
      %v4031 = vadd.f32 %v3896, %v4030
      %4032 = vmatmul.bf16.gmra.mxu0 %v3810
      %v4033 = vpop.f32.mrf.mxu0
      %v4034 = vadd.f32 %v3896, %v4033
      %v4035 = vpop.f32.mrf.mxu0
      %v4036 = vadd.f32 %v3896, %v4035
      %4037 = vmatmul.bf16.gmra.mxu0 %v3812
      %v4038 = vpop.f32.mrf.mxu0
      %v4039 = vadd.f32 %v3896, %v4038
      %v4040 = vpop.f32.mrf.mxu0
      %v4041 = vadd.f32 %v3896, %v4040
      %4042 = vmatmul.bf16.gmra.mxu0 %v3814
      %v4043 = vpop.f32.mrf.mxu0
      %v4044 = vadd.f32 %v3896, %v4043
      %v4045 = vpop.f32.mrf.mxu0
      %v4046 = vadd.f32 %v3896, %v4045
      %4047 = vmatmul.bf16.gmra.mxu0 %v3816
      %v4048 = vpop.f32.mrf.mxu0
      %v4049 = vadd.f32 %v3896, %v4048
      %v4050 = vpop.f32.mrf.mxu0
      %v4051 = vadd.f32 %v3896, %v4050
      %4052 = vmatmul.bf16.gmra.mxu0 %v3818
      %v4053 = vpop.f32.mrf.mxu0
      %v4054 = vadd.f32 %v3896, %v4053
      %v4055 = vpop.f32.mrf.mxu0
      %v4056 = vadd.f32 %v3896, %v4055
      %4057 = vmatmul.bf16.gmra.mxu0 %v3820
      %v4058 = vpop.f32.mrf.mxu0
      %v4059 = vadd.f32 %v3896, %v4058
      %v4060 = vpop.f32.mrf.mxu0
      %v4061 = vadd.f32 %v3896, %v4060
      %4062 = vmatmul.bf16.gmra.mxu0 %v3822
      %v4063 = vpop.f32.mrf.mxu0
      %v4064 = vadd.f32 %v3896, %v4063
      %v4065 = vpop.f32.mrf.mxu0
      %v4066 = vadd.f32 %v3896, %v4065
      %4067 = vmatmul.bf16.gmra.mxu0 %v3824
      %v4068 = vpop.f32.mrf.mxu0
      %v4069 = vadd.f32 %v3896, %v4068
      %v4070 = vpop.f32.mrf.mxu0
      %v4071 = vadd.f32 %v3896, %v4070
      %4072 = vmatmul.bf16.gmra.mxu0 %v3826
      %v4073 = vpop.f32.mrf.mxu0
      %v4074 = vadd.f32 %v3896, %v4073
      %v4075 = vpop.f32.mrf.mxu0
      %v4076 = vadd.f32 %v3896, %v4075
      %4077 = vmatmul.bf16.gmra.mxu0 %v3828
      %v4078 = vpop.f32.mrf.mxu0
      %v4079 = vadd.f32 %v3896, %v4078
      %v4080 = vpop.f32.mrf.mxu0
      %v4081 = vadd.f32 %v3896, %v4080
      %4082 = vmatmul.bf16.gmra.mxu0 %v3830
      %v4083 = vpop.f32.mrf.mxu0
      %v4084 = vadd.f32 %v3896, %v4083
      %v4085 = vpop.f32.mrf.mxu0
      %v4086 = vadd.f32 %v3896, %v4085
      %4087 = vmatmul.bf16.gmra.mxu0 %v3832
      %v4088 = vpop.f32.mrf.mxu0
      %v4089 = vadd.f32 %v3896, %v4088
      %v4090 = vpop.f32.mrf.mxu0
      %v4091 = vadd.f32 %v3896, %v4090
      %4092 = vmatmul.bf16.gmra.mxu0 %v3834
      %v4093 = vpop.f32.mrf.mxu0
      %v4094 = vadd.f32 %v3896, %v4093
      %v4095 = vpop.f32.mrf.mxu0
      %v4096 = vadd.f32 %v3896, %v4095
      %4097 = vmatmul.bf16.gmra.mxu0 %v3836
      %v4098 = vpop.f32.mrf.mxu0
      %v4099 = vadd.f32 %v3896, %v4098
      %v4100 = vpop.f32.mrf.mxu0
      %v4101 = vadd.f32 %v3896, %v4100
      %4102 = vmatmul.bf16.gmra.mxu0 %v3838
      %v4103 = vpop.f32.mrf.mxu0
      %v4104 = vadd.f32 %v3896, %v4103
      %v4105 = vpop.f32.mrf.mxu0
      %v4106 = vadd.f32 %v3896, %v4105
      %4107 = vmatmul.bf16.gmra.mxu0 %v3840
      %v4108 = vpop.f32.mrf.mxu0
      %v4109 = vadd.f32 %v3896, %v4108
      %v4110 = vpop.f32.mrf.mxu0
      %v4111 = vadd.f32 %v3896, %v4110
      %4112 = vmatmul.bf16.gmra.mxu0 %v3842
      %v4113 = vpop.f32.mrf.mxu0
      %v4114 = vadd.f32 %v3896, %v4113
      %v4115 = vpop.f32.mrf.mxu0
      %v4116 = vadd.f32 %v3896, %v4115
      %4117 = vmatmul.bf16.gmra.mxu0 %v3844
      %v4118 = vpop.f32.mrf.mxu0
      %v4119 = vadd.f32 %v3896, %v4118
      %v4120 = vpop.f32.mrf.mxu0
      %v4121 = vadd.f32 %v3896, %v4120
      %4122 = vmatmul.bf16.gmra.mxu0 %v3846
      %v4123 = vpop.f32.mrf.mxu0
      %v4124 = vadd.f32 %v3896, %v4123
      %v4125 = vpop.f32.mrf.mxu0
      %v4126 = vadd.f32 %v3896, %v4125
      %4127 = vmatmul.bf16.gmra.mxu0 %v3848
      %v4128 = vpop.f32.mrf.mxu0
      %v4129 = vadd.f32 %v3896, %v4128
      %v4130 = vpop.f32.mrf.mxu0
      %v4131 = vadd.f32 %v3896, %v4130
      %4132 = vmatmul.bf16.gmra.mxu0 %v3850
      %v4133 = vpop.f32.mrf.mxu0
      %v4134 = vadd.f32 %v3896, %v4133
      %v4135 = vpop.f32.mrf.mxu0
      %v4136 = vadd.f32 %v3896, %v4135
      %4137 = vmatmul.bf16.gmra.mxu0 %v3852
      %v4138 = vpop.f32.mrf.mxu0
      %v4139 = vadd.f32 %v3896, %v4138
      %v4140 = vpop.f32.mrf.mxu0
      %v4141 = vadd.f32 %v3896, %v4140
      %4142 = vmatmul.bf16.gmra.mxu0 %v3854
      %v4143 = vpop.f32.mrf.mxu0
      %v4144 = vadd.f32 %v3896, %v4143
      %v4145 = vpop.f32.mrf.mxu0
      %v4146 = vadd.f32 %v3896, %v4145
      %4147 = vmatmul.bf16.gmra.mxu0 %v3856
      %v4148 = vpop.f32.mrf.mxu0
      %v4149 = vadd.f32 %v3896, %v4148
      %v4150 = vpop.f32.mrf.mxu0
      %v4151 = vadd.f32 %v3896, %v4150
      %4152 = vmatmul.bf16.gmra.mxu0 %v3858
      %v4153 = vpop.f32.mrf.mxu0
      %v4154 = vadd.f32 %v3896, %v4153
      %v4155 = vpop.f32.mrf.mxu0
      %v4156 = vadd.f32 %v3896, %v4155
      %4157 = vmatmul.bf16.gmra.mxu0 %v3860
      %v4158 = vpop.f32.mrf.mxu0
      %v4159 = vadd.f32 %v3896, %v4158
      %v4160 = vpop.f32.mrf.mxu0
      %v4161 = vadd.f32 %v3896, %v4160
      %4162 = vdwg.mxu0
      %4163 = vmatpush.bf16.msra.mxu0 %v3977
      %4164 = vmatpush.bf16.msra.mxu0 %v3976
      %4165 = vmatpush.bf16.msra.mxu0 %v3975
      %4166 = vmatpush.bf16.msra.mxu0 %v3974
      %4167 = vmatpush.bf16.msra.mxu0 %v3973
      %4168 = vmatpush.bf16.msra.mxu0 %v3972
      %4169 = vmatpush.bf16.msra.mxu0 %v3971
      %4170 = vmatpush.bf16.msra.mxu0 %v3970
      %4171 = vmatmul.bf16.gmra.mxu0 %v3799
      %v4172 = vpop.f32.mrf.mxu0
      %v4173 = vadd.f32 %v4004, %v4172
      %v4174 = vpop.f32.mrf.mxu0
      %v4175 = vadd.f32 %v4006, %v4174
      %4176 = vmatmul.bf16.gmra.mxu0 %v3801
      %v4177 = vpop.f32.mrf.mxu0
      %v4178 = vadd.f32 %v4009, %v4177
      %v4179 = vpop.f32.mrf.mxu0
      %v4180 = vadd.f32 %v4011, %v4179
      %4181 = vmatmul.bf16.gmra.mxu0 %v3803
      %v4182 = vpop.f32.mrf.mxu0
      %v4183 = vadd.f32 %v4014, %v4182
      %v4184 = vpop.f32.mrf.mxu0
      %v4185 = vadd.f32 %v4016, %v4184
      %4186 = vmatmul.bf16.gmra.mxu0 %v3805
      %v4187 = vpop.f32.mrf.mxu0
      %v4188 = vadd.f32 %v4019, %v4187
      %v4189 = vpop.f32.mrf.mxu0
      %v4190 = vadd.f32 %v4021, %v4189
      %4191 = vmatmul.bf16.gmra.mxu0 %v3807
      %v4192 = vpop.f32.mrf.mxu0
      %v4193 = vadd.f32 %v4024, %v4192
      %v4194 = vpop.f32.mrf.mxu0
      %v4195 = vadd.f32 %v4026, %v4194
      %4196 = vmatmul.bf16.gmra.mxu0 %v3809
      %v4197 = vpop.f32.mrf.mxu0
      %v4198 = vadd.f32 %v4029, %v4197
      %v4199 = vpop.f32.mrf.mxu0
      %v4200 = vadd.f32 %v4031, %v4199
      %4201 = vmatmul.bf16.gmra.mxu0 %v3811
      %v4202 = vpop.f32.mrf.mxu0
      %v4203 = vadd.f32 %v4034, %v4202
      %v4204 = vpop.f32.mrf.mxu0
      %v4205 = vadd.f32 %v4036, %v4204
      %4206 = vmatmul.bf16.gmra.mxu0 %v3813
      %v4207 = vpop.f32.mrf.mxu0
      %v4208 = vadd.f32 %v4039, %v4207
      %v4209 = vpop.f32.mrf.mxu0
      %v4210 = vadd.f32 %v4041, %v4209
      %4211 = vmatmul.bf16.gmra.mxu0 %v3815
      %v4212 = vpop.f32.mrf.mxu0
      %v4213 = vadd.f32 %v4044, %v4212
      %v4214 = vpop.f32.mrf.mxu0
      %v4215 = vadd.f32 %v4046, %v4214
      %4216 = vmatmul.bf16.gmra.mxu0 %v3817
      %v4217 = vpop.f32.mrf.mxu0
      %v4218 = vadd.f32 %v4049, %v4217
      %v4219 = vpop.f32.mrf.mxu0
      %v4220 = vadd.f32 %v4051, %v4219
      %4221 = vmatmul.bf16.gmra.mxu0 %v3819
      %v4222 = vpop.f32.mrf.mxu0
      %v4223 = vadd.f32 %v4054, %v4222
      %v4224 = vpop.f32.mrf.mxu0
      %v4225 = vadd.f32 %v4056, %v4224
      %4226 = vmatmul.bf16.gmra.mxu0 %v3821
      %v4227 = vpop.f32.mrf.mxu0
      %v4228 = vadd.f32 %v4059, %v4227
      %v4229 = vpop.f32.mrf.mxu0
      %v4230 = vadd.f32 %v4061, %v4229
      %4231 = vmatmul.bf16.gmra.mxu0 %v3823
      %v4232 = vpop.f32.mrf.mxu0
      %v4233 = vadd.f32 %v4064, %v4232
      %v4234 = vpop.f32.mrf.mxu0
      %v4235 = vadd.f32 %v4066, %v4234
      %4236 = vmatmul.bf16.gmra.mxu0 %v3825
      %v4237 = vpop.f32.mrf.mxu0
      %v4238 = vadd.f32 %v4069, %v4237
      %v4239 = vpop.f32.mrf.mxu0
      %v4240 = vadd.f32 %v4071, %v4239
      %4241 = vmatmul.bf16.gmra.mxu0 %v3827
      %v4242 = vpop.f32.mrf.mxu0
      %v4243 = vadd.f32 %v4074, %v4242
      %v4244 = vpop.f32.mrf.mxu0
      %v4245 = vadd.f32 %v4076, %v4244
      %4246 = vmatmul.bf16.gmra.mxu0 %v3829
      %v4247 = vpop.f32.mrf.mxu0
      %v4248 = vadd.f32 %v4079, %v4247
      %v4249 = vpop.f32.mrf.mxu0
      %v4250 = vadd.f32 %v4081, %v4249
      %4251 = vmatmul.bf16.gmra.mxu0 %v3831
      %v4252 = vpop.f32.mrf.mxu0
      %v4253 = vadd.f32 %v4084, %v4252
      %v4254 = vpop.f32.mrf.mxu0
      %v4255 = vadd.f32 %v4086, %v4254
      %4256 = vmatmul.bf16.gmra.mxu0 %v3833
      %v4257 = vpop.f32.mrf.mxu0
      %v4258 = vadd.f32 %v4089, %v4257
      %v4259 = vpop.f32.mrf.mxu0
      %v4260 = vadd.f32 %v4091, %v4259
      %4261 = vmatmul.bf16.gmra.mxu0 %v3835
      %v4262 = vpop.f32.mrf.mxu0
      %v4263 = vadd.f32 %v4094, %v4262
      %v4264 = vpop.f32.mrf.mxu0
      %v4265 = vadd.f32 %v4096, %v4264
      %4266 = vmatmul.bf16.gmra.mxu0 %v3837
      %v4267 = vpop.f32.mrf.mxu0
      %v4268 = vadd.f32 %v4099, %v4267
      %v4269 = vpop.f32.mrf.mxu0
      %v4270 = vadd.f32 %v4101, %v4269
      %4271 = vmatmul.bf16.gmra.mxu0 %v3839
      %v4272 = vpop.f32.mrf.mxu0
      %v4273 = vadd.f32 %v4104, %v4272
      %v4274 = vpop.f32.mrf.mxu0
      %v4275 = vadd.f32 %v4106, %v4274
      %4276 = vmatmul.bf16.gmra.mxu0 %v3841
      %v4277 = vpop.f32.mrf.mxu0
      %v4278 = vadd.f32 %v4109, %v4277
      %v4279 = vpop.f32.mrf.mxu0
      %v4280 = vadd.f32 %v4111, %v4279
      %4281 = vmatmul.bf16.gmra.mxu0 %v3843
      %v4282 = vpop.f32.mrf.mxu0
      %v4283 = vadd.f32 %v4114, %v4282
      %v4284 = vpop.f32.mrf.mxu0
      %v4285 = vadd.f32 %v4116, %v4284
      %4286 = vmatmul.bf16.gmra.mxu0 %v3845
      %v4287 = vpop.f32.mrf.mxu0
      %v4288 = vadd.f32 %v4119, %v4287
      %v4289 = vpop.f32.mrf.mxu0
      %v4290 = vadd.f32 %v4121, %v4289
      %4291 = vmatmul.bf16.gmra.mxu0 %v3847
      %v4292 = vpop.f32.mrf.mxu0
      %v4293 = vadd.f32 %v4124, %v4292
      %v4294 = vpop.f32.mrf.mxu0
      %v4295 = vadd.f32 %v4126, %v4294
      %4296 = vmatmul.bf16.gmra.mxu0 %v3849
      %v4297 = vpop.f32.mrf.mxu0
      %v4298 = vadd.f32 %v4129, %v4297
      %v4299 = vpop.f32.mrf.mxu0
      %v4300 = vadd.f32 %v4131, %v4299
      %4301 = vmatmul.bf16.gmra.mxu0 %v3851
      %v4302 = vpop.f32.mrf.mxu0
      %v4303 = vadd.f32 %v4134, %v4302
      %v4304 = vpop.f32.mrf.mxu0
      %v4305 = vadd.f32 %v4136, %v4304
      %4306 = vmatmul.bf16.gmra.mxu0 %v3853
      %v4307 = vpop.f32.mrf.mxu0
      %v4308 = vadd.f32 %v4139, %v4307
      %v4309 = vpop.f32.mrf.mxu0
      %v4310 = vadd.f32 %v4141, %v4309
      %4311 = vmatmul.bf16.gmra.mxu0 %v3855
      %v4312 = vpop.f32.mrf.mxu0
      %v4313 = vadd.f32 %v4144, %v4312
      %v4314 = vpop.f32.mrf.mxu0
      %v4315 = vadd.f32 %v4146, %v4314
      %4316 = vmatmul.bf16.gmra.mxu0 %v3857
      %v4317 = vpop.f32.mrf.mxu0
      %v4318 = vadd.f32 %v4149, %v4317
      %v4319 = vpop.f32.mrf.mxu0
      %v4320 = vadd.f32 %v4151, %v4319
      %4321 = vmatmul.bf16.gmra.mxu0 %v3859
      %v4322 = vpop.f32.mrf.mxu0
      %v4323 = vadd.f32 %v4154, %v4322
      %v4324 = vpop.f32.mrf.mxu0
      %v4325 = vadd.f32 %v4156, %v4324
      %4326 = vmatmul.bf16.gmra.mxu0 %v3861
      %v4327 = vpop.f32.mrf.mxu0
      %v4328 = vadd.f32 %v4159, %v4327
      %v4329 = vpop.f32.mrf.mxu0
      %v4330 = vadd.f32 %v4161, %v4329
      %4331 = vdwg.mxu0
      %v4332 = vmax.f32 %v4173, 0.0
      %v4333 = vmax.f32 %v4175, 0.0
      %v4334 = vmax.f32 %v4178, 0.0
      %v4335 = vmax.f32 %v4180, 0.0
      %v4336 = vmax.f32 %v4183, 0.0
      %v4337 = vmax.f32 %v4185, 0.0
      %v4338 = vmax.f32 %v4188, 0.0
      %v4339 = vmax.f32 %v4190, 0.0
      %v4340 = vmax.f32 %v4193, 0.0
      %v4341 = vmax.f32 %v4195, 0.0
      %v4342 = vmax.f32 %v4198, 0.0
      %v4343 = vmax.f32 %v4200, 0.0
      %v4344 = vmax.f32 %v4203, 0.0
      %v4345 = vmax.f32 %v4205, 0.0
      %v4346 = vmax.f32 %v4208, 0.0
      %v4347 = vmax.f32 %v4210, 0.0
      %v4348 = vmax.f32 %v4213, 0.0
      %v4349 = vmax.f32 %v4215, 0.0
      %v4350 = vmax.f32 %v4218, 0.0
      %v4351 = vmax.f32 %v4220, 0.0
      %v4352 = vmax.f32 %v4223, 0.0
      %v4353 = vmax.f32 %v4225, 0.0
      %v4354 = vmax.f32 %v4228, 0.0
      %v4355 = vmax.f32 %v4230, 0.0
      %v4356 = vmax.f32 %v4233, 0.0
      %v4357 = vmax.f32 %v4235, 0.0
      %v4358 = vmax.f32 %v4238, 0.0
      %v4359 = vmax.f32 %v4240, 0.0
      %v4360 = vmax.f32 %v4243, 0.0
      %v4361 = vmax.f32 %v4245, 0.0
      %v4362 = vmax.f32 %v4248, 0.0
      %v4363 = vmax.f32 %v4250, 0.0
      %v4364 = vmax.f32 %v4253, 0.0
      %v4365 = vmax.f32 %v4255, 0.0
      %v4366 = vmax.f32 %v4258, 0.0
      %v4367 = vmax.f32 %v4260, 0.0
      %v4368 = vmax.f32 %v4263, 0.0
      %v4369 = vmax.f32 %v4265, 0.0
      %v4370 = vmax.f32 %v4268, 0.0
      %v4371 = vmax.f32 %v4270, 0.0
      %v4372 = vmax.f32 %v4273, 0.0
      %v4373 = vmax.f32 %v4275, 0.0
      %v4374 = vmax.f32 %v4278, 0.0
      %v4375 = vmax.f32 %v4280, 0.0
      %v4376 = vmax.f32 %v4283, 0.0
      %v4377 = vmax.f32 %v4285, 0.0
      %v4378 = vmax.f32 %v4288, 0.0
      %v4379 = vmax.f32 %v4290, 0.0
      %v4380 = vmax.f32 %v4293, 0.0
      %v4381 = vmax.f32 %v4295, 0.0
      %v4382 = vmax.f32 %v4298, 0.0
      %v4383 = vmax.f32 %v4300, 0.0
      %v4384 = vmax.f32 %v4303, 0.0
      %v4385 = vmax.f32 %v4305, 0.0
      %v4386 = vmax.f32 %v4308, 0.0
      %v4387 = vmax.f32 %v4310, 0.0
      %v4388 = vmax.f32 %v4313, 0.0
      %v4389 = vmax.f32 %v4315, 0.0
      %v4390 = vmax.f32 %v4318, 0.0
      %v4391 = vmax.f32 %v4320, 0.0
      %v4392 = vmax.f32 %v4323, 0.0
      %v4393 = vmax.f32 %v4325, 0.0
      %v4394 = vmax.f32 %v4328, 0.0
      %v4395 = vmax.f32 %v4330, 0.0
      %v4396 = vpack.c.bf16 %v4333, %v4332
      %v4397 = vpack.c.bf16 %v4335, %v4334
      %v4398 = vpack.c.bf16 %v4337, %v4336
      %v4399 = vpack.c.bf16 %v4339, %v4338
      %v4400 = vpack.c.bf16 %v4341, %v4340
      %v4401 = vpack.c.bf16 %v4343, %v4342
      %v4402 = vpack.c.bf16 %v4345, %v4344
      %v4403 = vpack.c.bf16 %v4347, %v4346
      %v4404 = vpack.c.bf16 %v4349, %v4348
      %v4405 = vpack.c.bf16 %v4351, %v4350
      %v4406 = vpack.c.bf16 %v4353, %v4352
      %v4407 = vpack.c.bf16 %v4355, %v4354
      %v4408 = vpack.c.bf16 %v4357, %v4356
      %v4409 = vpack.c.bf16 %v4359, %v4358
      %v4410 = vpack.c.bf16 %v4361, %v4360
      %v4411 = vpack.c.bf16 %v4363, %v4362
      %v4412 = vpack.c.bf16 %v4365, %v4364
      %v4413 = vpack.c.bf16 %v4367, %v4366
      %v4414 = vpack.c.bf16 %v4369, %v4368
      %v4415 = vpack.c.bf16 %v4371, %v4370
      %v4416 = vpack.c.bf16 %v4373, %v4372
      %v4417 = vpack.c.bf16 %v4375, %v4374
      %v4418 = vpack.c.bf16 %v4377, %v4376
      %v4419 = vpack.c.bf16 %v4379, %v4378
      %v4420 = vpack.c.bf16 %v4381, %v4380
      %v4421 = vpack.c.bf16 %v4383, %v4382
      %v4422 = vpack.c.bf16 %v4385, %v4384
      %v4423 = vpack.c.bf16 %v4387, %v4386
      %v4424 = vpack.c.bf16 %v4389, %v4388
      %v4425 = vpack.c.bf16 %v4391, %v4390
      %v4426 = vpack.c.bf16 %v4393, %v4392
      %v4427 = vpack.c.bf16 %v4395, %v4394
      %v4428 = vld [vmem:[%s6] sm:$0xff]
      %v4429 = vld [vmem:[%s6 + $0x8] sm:$0xff]
      %v4430 = vld [vmem:[%s6 + $0x10] sm:$0xff]
      %v4431 = vld [vmem:[%s6 + $0x18] sm:$0xff]
      %v4432 = vld [vmem:[%s6 + $0x20] sm:$0xff]
      %v4433 = vld [vmem:[%s6 + $0x28] sm:$0xff]
      %v4434 = vld [vmem:[%s6 + $0x30] sm:$0xff]
      %v4435 = vld [vmem:[%s6 + $0x38] sm:$0xff]
      %v4436 = vld [vmem:[%s6 + $0x40] sm:$0xff]
      %v4437 = vld [vmem:[%s6 + $0x48] sm:$0xff]
      %v4438 = vld [vmem:[%s6 + $0x50] sm:$0xff]
      %v4439 = vld [vmem:[%s6 + $0x58] sm:$0xff]
      %v4440 = vld [vmem:[%s6 + $0x60] sm:$0xff]
      %v4441 = vld [vmem:[%s6 + $0x68] sm:$0xff]
      %v4442 = vld [vmem:[%s6 + $0x70] sm:$0xff]
      %v4443 = vld [vmem:[%s6 + $0x78] sm:$0xff]
      %v4444 = vld [vmem:[%s7] sm:$0x3]
      %v4446 = vperm.slane %v4444, 0
      %v4447 = vperm.slane %v4444, 1
      %v4466 = vunpack.c.l.b16 %v4428
      %v4467 = vunpack.c.h.b16 %v4428
      %v4468 = vunpack.c.l.b16 %v4429
      %v4469 = vunpack.c.h.b16 %v4429
      %v4470 = vunpack.c.l.b16 %v4430
      %v4471 = vunpack.c.h.b16 %v4430
      %v4472 = vunpack.c.l.b16 %v4431
      %v4473 = vunpack.c.h.b16 %v4431
      %v4474 = vunpack.c.l.b16 %v4432
      %v4475 = vunpack.c.h.b16 %v4432
      %v4476 = vunpack.c.l.b16 %v4433
      %v4477 = vunpack.c.h.b16 %v4433
      %v4478 = vunpack.c.l.b16 %v4434
      %v4479 = vunpack.c.h.b16 %v4434
      %v4480 = vunpack.c.l.b16 %v4435
      %v4481 = vunpack.c.h.b16 %v4435
      %v4482 = vunpack.c.l.b16 %v4436
      %v4483 = vunpack.c.h.b16 %v4436
      %v4484 = vunpack.c.l.b16 %v4437
      %v4485 = vunpack.c.h.b16 %v4437
      %v4486 = vunpack.c.l.b16 %v4438
      %v4487 = vunpack.c.h.b16 %v4438
      %v4488 = vunpack.c.l.b16 %v4439
      %v4489 = vunpack.c.h.b16 %v4439
      %v4490 = vunpack.c.l.b16 %v4440
      %v4491 = vunpack.c.h.b16 %v4440
      %v4492 = vunpack.c.l.b16 %v4441
      %v4493 = vunpack.c.h.b16 %v4441
      %v4494 = vunpack.c.l.b16 %v4442
      %v4495 = vunpack.c.h.b16 %v4442
      %v4496 = vunpack.c.l.b16 %v4443
      %v4497 = vunpack.c.h.b16 %v4443
      %v4498 = vpack.c.b16 %v4468, %v4466
      %v4499 = vpack.c.b16 %v4469, %v4467
      %v4500 = vpack.c.b16 %v4472, %v4470
      %v4501 = vpack.c.b16 %v4473, %v4471
      %v4502 = vpack.c.b16 %v4476, %v4474
      %v4503 = vpack.c.b16 %v4477, %v4475
      %v4504 = vpack.c.b16 %v4480, %v4478
      %v4505 = vpack.c.b16 %v4481, %v4479
      %v4506 = vpack.c.b16 %v4484, %v4482
      %v4507 = vpack.c.b16 %v4485, %v4483
      %v4508 = vpack.c.b16 %v4488, %v4486
      %v4509 = vpack.c.b16 %v4489, %v4487
      %v4510 = vpack.c.b16 %v4492, %v4490
      %v4511 = vpack.c.b16 %v4493, %v4491
      %v4512 = vpack.c.b16 %v4496, %v4494
      %v4513 = vpack.c.b16 %v4497, %v4495
      %4530 = vmatpush.bf16.msra.mxu0 %v4512
      %4531 = vmatpush.bf16.msra.mxu0 %v4510
      %4532 = vmatpush.bf16.msra.mxu0 %v4508
      %4533 = vmatpush.bf16.msra.mxu0 %v4506
      %4534 = vmatpush.bf16.msra.mxu0 %v4504
      %4535 = vmatpush.bf16.msra.mxu0 %v4502
      %4536 = vmatpush.bf16.msra.mxu0 %v4500
      %4537 = vmatpush.bf16.msra.mxu0 %v4498
      %4538 = vmatmul.bf16.gmra.mxu0 %v4396
      %v4539 = vpop.f32.mrf.mxu0
      %v4540 = vadd.f32 %v4446, %v4539
      %v4541 = vpop.f32.mrf.mxu0
      %v4542 = vadd.f32 %v4446, %v4541
      %4543 = vmatmul.bf16.gmra.mxu0 %v4397
      %v4544 = vpop.f32.mrf.mxu0
      %v4545 = vadd.f32 %v4446, %v4544
      %v4546 = vpop.f32.mrf.mxu0
      %v4547 = vadd.f32 %v4446, %v4546
      %4548 = vmatmul.bf16.gmra.mxu0 %v4398
      %v4549 = vpop.f32.mrf.mxu0
      %v4550 = vadd.f32 %v4446, %v4549
      %v4551 = vpop.f32.mrf.mxu0
      %v4552 = vadd.f32 %v4446, %v4551
      %4553 = vmatmul.bf16.gmra.mxu0 %v4399
      %v4554 = vpop.f32.mrf.mxu0
      %v4555 = vadd.f32 %v4446, %v4554
      %v4556 = vpop.f32.mrf.mxu0
      %v4557 = vadd.f32 %v4446, %v4556
      %4558 = vmatmul.bf16.gmra.mxu0 %v4400
      %v4559 = vpop.f32.mrf.mxu0
      %v4560 = vadd.f32 %v4446, %v4559
      %v4561 = vpop.f32.mrf.mxu0
      %v4562 = vadd.f32 %v4446, %v4561
      %4563 = vmatmul.bf16.gmra.mxu0 %v4401
      %v4564 = vpop.f32.mrf.mxu0
      %v4565 = vadd.f32 %v4446, %v4564
      %v4566 = vpop.f32.mrf.mxu0
      %v4567 = vadd.f32 %v4446, %v4566
      %4568 = vmatmul.bf16.gmra.mxu0 %v4402
      %v4569 = vpop.f32.mrf.mxu0
      %v4570 = vadd.f32 %v4446, %v4569
      %v4571 = vpop.f32.mrf.mxu0
      %v4572 = vadd.f32 %v4446, %v4571
      %4573 = vmatmul.bf16.gmra.mxu0 %v4403
      %v4574 = vpop.f32.mrf.mxu0
      %v4575 = vadd.f32 %v4446, %v4574
      %v4576 = vpop.f32.mrf.mxu0
      %v4577 = vadd.f32 %v4446, %v4576
      %4578 = vmatmul.bf16.gmra.mxu0 %v4404
      %v4579 = vpop.f32.mrf.mxu0
      %v4580 = vadd.f32 %v4446, %v4579
      %v4581 = vpop.f32.mrf.mxu0
      %v4582 = vadd.f32 %v4446, %v4581
      %4583 = vmatmul.bf16.gmra.mxu0 %v4405
      %v4584 = vpop.f32.mrf.mxu0
      %v4585 = vadd.f32 %v4446, %v4584
      %v4586 = vpop.f32.mrf.mxu0
      %v4587 = vadd.f32 %v4446, %v4586
      %4588 = vmatmul.bf16.gmra.mxu0 %v4406
      %v4589 = vpop.f32.mrf.mxu0
      %v4590 = vadd.f32 %v4446, %v4589
      %v4591 = vpop.f32.mrf.mxu0
      %v4592 = vadd.f32 %v4446, %v4591
      %4593 = vmatmul.bf16.gmra.mxu0 %v4407
      %v4594 = vpop.f32.mrf.mxu0
      %v4595 = vadd.f32 %v4446, %v4594
      %v4596 = vpop.f32.mrf.mxu0
      %v4597 = vadd.f32 %v4446, %v4596
      %4598 = vmatmul.bf16.gmra.mxu0 %v4408
      %v4599 = vpop.f32.mrf.mxu0
      %v4600 = vadd.f32 %v4446, %v4599
      %v4601 = vpop.f32.mrf.mxu0
      %v4602 = vadd.f32 %v4446, %v4601
      %4603 = vmatmul.bf16.gmra.mxu0 %v4409
      %v4604 = vpop.f32.mrf.mxu0
      %v4605 = vadd.f32 %v4446, %v4604
      %v4606 = vpop.f32.mrf.mxu0
      %v4607 = vadd.f32 %v4446, %v4606
      %4608 = vmatmul.bf16.gmra.mxu0 %v4410
      %v4609 = vpop.f32.mrf.mxu0
      %v4610 = vadd.f32 %v4446, %v4609
      %v4611 = vpop.f32.mrf.mxu0
      %v4612 = vadd.f32 %v4446, %v4611
      %4613 = vmatmul.bf16.gmra.mxu0 %v4411
      %v4614 = vpop.f32.mrf.mxu0
      %v4615 = vadd.f32 %v4446, %v4614
      %v4616 = vpop.f32.mrf.mxu0
      %v4617 = vadd.f32 %v4446, %v4616
      %4618 = vmatmul.bf16.gmra.mxu0 %v4412
      %v4619 = vpop.f32.mrf.mxu0
      %v4620 = vadd.f32 %v4446, %v4619
      %v4621 = vpop.f32.mrf.mxu0
      %v4622 = vadd.f32 %v4446, %v4621
      %4623 = vmatmul.bf16.gmra.mxu0 %v4413
      %v4624 = vpop.f32.mrf.mxu0
      %v4625 = vadd.f32 %v4446, %v4624
      %v4626 = vpop.f32.mrf.mxu0
      %v4627 = vadd.f32 %v4446, %v4626
      %4628 = vmatmul.bf16.gmra.mxu0 %v4414
      %v4629 = vpop.f32.mrf.mxu0
      %v4630 = vadd.f32 %v4446, %v4629
      %v4631 = vpop.f32.mrf.mxu0
      %v4632 = vadd.f32 %v4446, %v4631
      %4633 = vmatmul.bf16.gmra.mxu0 %v4415
      %v4634 = vpop.f32.mrf.mxu0
      %v4635 = vadd.f32 %v4446, %v4634
      %v4636 = vpop.f32.mrf.mxu0
      %v4637 = vadd.f32 %v4446, %v4636
      %4638 = vmatmul.bf16.gmra.mxu0 %v4416
      %v4639 = vpop.f32.mrf.mxu0
      %v4640 = vadd.f32 %v4446, %v4639
      %v4641 = vpop.f32.mrf.mxu0
      %v4642 = vadd.f32 %v4446, %v4641
      %4643 = vmatmul.bf16.gmra.mxu0 %v4417
      %v4644 = vpop.f32.mrf.mxu0
      %v4645 = vadd.f32 %v4446, %v4644
      %v4646 = vpop.f32.mrf.mxu0
      %v4647 = vadd.f32 %v4446, %v4646
      %4648 = vmatmul.bf16.gmra.mxu0 %v4418
      %v4649 = vpop.f32.mrf.mxu0
      %v4650 = vadd.f32 %v4446, %v4649
      %v4651 = vpop.f32.mrf.mxu0
      %v4652 = vadd.f32 %v4446, %v4651
      %4653 = vmatmul.bf16.gmra.mxu0 %v4419
      %v4654 = vpop.f32.mrf.mxu0
      %v4655 = vadd.f32 %v4446, %v4654
      %v4656 = vpop.f32.mrf.mxu0
      %v4657 = vadd.f32 %v4446, %v4656
      %4658 = vmatmul.bf16.gmra.mxu0 %v4420
      %v4659 = vpop.f32.mrf.mxu0
      %v4660 = vadd.f32 %v4446, %v4659
      %v4661 = vpop.f32.mrf.mxu0
      %v4662 = vadd.f32 %v4446, %v4661
      %4663 = vmatmul.bf16.gmra.mxu0 %v4421
      %v4664 = vpop.f32.mrf.mxu0
      %v4665 = vadd.f32 %v4446, %v4664
      %v4666 = vpop.f32.mrf.mxu0
      %v4667 = vadd.f32 %v4446, %v4666
      %4668 = vmatmul.bf16.gmra.mxu0 %v4422
      %v4669 = vpop.f32.mrf.mxu0
      %v4670 = vadd.f32 %v4446, %v4669
      %v4671 = vpop.f32.mrf.mxu0
      %v4672 = vadd.f32 %v4446, %v4671
      %4673 = vmatmul.bf16.gmra.mxu0 %v4423
      %v4674 = vpop.f32.mrf.mxu0
      %v4675 = vadd.f32 %v4446, %v4674
      %v4676 = vpop.f32.mrf.mxu0
      %v4677 = vadd.f32 %v4446, %v4676
      %4678 = vmatmul.bf16.gmra.mxu0 %v4424
      %v4679 = vpop.f32.mrf.mxu0
      %v4680 = vadd.f32 %v4446, %v4679
      %v4681 = vpop.f32.mrf.mxu0
      %v4682 = vadd.f32 %v4446, %v4681
      %4683 = vmatmul.bf16.gmra.mxu0 %v4425
      %v4684 = vpop.f32.mrf.mxu0
      %v4685 = vadd.f32 %v4446, %v4684
      %v4686 = vpop.f32.mrf.mxu0
      %v4687 = vadd.f32 %v4446, %v4686
      %4688 = vmatmul.bf16.gmra.mxu0 %v4426
      %v4689 = vpop.f32.mrf.mxu0
      %v4690 = vadd.f32 %v4446, %v4689
      %v4691 = vpop.f32.mrf.mxu0
      %v4692 = vadd.f32 %v4446, %v4691
      %4693 = vmatmul.bf16.gmra.mxu0 %v4427
      %v4694 = vpop.f32.mrf.mxu0
      %v4695 = vadd.f32 %v4446, %v4694
      %v4696 = vpop.f32.mrf.mxu0
      %v4697 = vadd.f32 %v4446, %v4696
      %4698 = vdwg.mxu0
      %4699 = vmatpush.bf16.msra.mxu0 %v4513
      %4700 = vmatpush.bf16.msra.mxu0 %v4511
      %4701 = vmatpush.bf16.msra.mxu0 %v4509
      %4702 = vmatpush.bf16.msra.mxu0 %v4507
      %4703 = vmatpush.bf16.msra.mxu0 %v4505
      %4704 = vmatpush.bf16.msra.mxu0 %v4503
      %4705 = vmatpush.bf16.msra.mxu0 %v4501
      %4706 = vmatpush.bf16.msra.mxu0 %v4499
      %4707 = vmatmul.bf16.gmra.mxu0 %v4396
      %v4708 = vpop.f32.mrf.mxu0
      %v4709 = vadd.f32 %v4447, %v4708
      %v4710 = vpop.f32.mrf.mxu0
      %v4711 = vadd.f32 %v4447, %v4710
      %4712 = vmatmul.bf16.gmra.mxu0 %v4397
      %v4713 = vpop.f32.mrf.mxu0
      %v4714 = vadd.f32 %v4447, %v4713
      %v4715 = vpop.f32.mrf.mxu0
      %v4716 = vadd.f32 %v4447, %v4715
      %4717 = vmatmul.bf16.gmra.mxu0 %v4398
      %v4718 = vpop.f32.mrf.mxu0
      %v4719 = vadd.f32 %v4447, %v4718
      %v4720 = vpop.f32.mrf.mxu0
      %v4721 = vadd.f32 %v4447, %v4720
      %4722 = vmatmul.bf16.gmra.mxu0 %v4399
      %v4723 = vpop.f32.mrf.mxu0
      %v4724 = vadd.f32 %v4447, %v4723
      %v4725 = vpop.f32.mrf.mxu0
      %v4726 = vadd.f32 %v4447, %v4725
      %4727 = vmatmul.bf16.gmra.mxu0 %v4400
      %v4728 = vpop.f32.mrf.mxu0
      %v4729 = vadd.f32 %v4447, %v4728
      %v4730 = vpop.f32.mrf.mxu0
      %v4731 = vadd.f32 %v4447, %v4730
      %4732 = vmatmul.bf16.gmra.mxu0 %v4401
      %v4733 = vpop.f32.mrf.mxu0
      %v4734 = vadd.f32 %v4447, %v4733
      %v4735 = vpop.f32.mrf.mxu0
      %v4736 = vadd.f32 %v4447, %v4735
      %4737 = vmatmul.bf16.gmra.mxu0 %v4402
      %v4738 = vpop.f32.mrf.mxu0
      %v4739 = vadd.f32 %v4447, %v4738
      %v4740 = vpop.f32.mrf.mxu0
      %v4741 = vadd.f32 %v4447, %v4740
      %4742 = vmatmul.bf16.gmra.mxu0 %v4403
      %v4743 = vpop.f32.mrf.mxu0
      %v4744 = vadd.f32 %v4447, %v4743
      %v4745 = vpop.f32.mrf.mxu0
      %v4746 = vadd.f32 %v4447, %v4745
      %4747 = vmatmul.bf16.gmra.mxu0 %v4404
      %v4748 = vpop.f32.mrf.mxu0
      %v4749 = vadd.f32 %v4447, %v4748
      %v4750 = vpop.f32.mrf.mxu0
      %v4751 = vadd.f32 %v4447, %v4750
      %4752 = vmatmul.bf16.gmra.mxu0 %v4405
      %v4753 = vpop.f32.mrf.mxu0
      %v4754 = vadd.f32 %v4447, %v4753
      %v4755 = vpop.f32.mrf.mxu0
      %v4756 = vadd.f32 %v4447, %v4755
      %4757 = vmatmul.bf16.gmra.mxu0 %v4406
      %v4758 = vpop.f32.mrf.mxu0
      %v4759 = vadd.f32 %v4447, %v4758
      %v4760 = vpop.f32.mrf.mxu0
      %v4761 = vadd.f32 %v4447, %v4760
      %4762 = vmatmul.bf16.gmra.mxu0 %v4407
      %v4763 = vpop.f32.mrf.mxu0
      %v4764 = vadd.f32 %v4447, %v4763
      %v4765 = vpop.f32.mrf.mxu0
      %v4766 = vadd.f32 %v4447, %v4765
      %4767 = vmatmul.bf16.gmra.mxu0 %v4408
      %v4768 = vpop.f32.mrf.mxu0
      %v4769 = vadd.f32 %v4447, %v4768
      %v4770 = vpop.f32.mrf.mxu0
      %v4771 = vadd.f32 %v4447, %v4770
      %4772 = vmatmul.bf16.gmra.mxu0 %v4409
      %v4773 = vpop.f32.mrf.mxu0
      %v4774 = vadd.f32 %v4447, %v4773
      %v4775 = vpop.f32.mrf.mxu0
      %v4776 = vadd.f32 %v4447, %v4775
      %4777 = vmatmul.bf16.gmra.mxu0 %v4410
      %v4778 = vpop.f32.mrf.mxu0
      %v4779 = vadd.f32 %v4447, %v4778
      %v4780 = vpop.f32.mrf.mxu0
      %v4781 = vadd.f32 %v4447, %v4780
      %4782 = vmatmul.bf16.gmra.mxu0 %v4411
      %v4783 = vpop.f32.mrf.mxu0
      %v4784 = vadd.f32 %v4447, %v4783
      %v4785 = vpop.f32.mrf.mxu0
      %v4786 = vadd.f32 %v4447, %v4785
      %4787 = vmatmul.bf16.gmra.mxu0 %v4412
      %v4788 = vpop.f32.mrf.mxu0
      %v4789 = vadd.f32 %v4447, %v4788
      %v4790 = vpop.f32.mrf.mxu0
      %v4791 = vadd.f32 %v4447, %v4790
      %4792 = vmatmul.bf16.gmra.mxu0 %v4413
      %v4793 = vpop.f32.mrf.mxu0
      %v4794 = vadd.f32 %v4447, %v4793
      %v4795 = vpop.f32.mrf.mxu0
      %v4796 = vadd.f32 %v4447, %v4795
      %4797 = vmatmul.bf16.gmra.mxu0 %v4414
      %v4798 = vpop.f32.mrf.mxu0
      %v4799 = vadd.f32 %v4447, %v4798
      %v4800 = vpop.f32.mrf.mxu0
      %v4801 = vadd.f32 %v4447, %v4800
      %4802 = vmatmul.bf16.gmra.mxu0 %v4415
      %v4803 = vpop.f32.mrf.mxu0
      %v4804 = vadd.f32 %v4447, %v4803
      %v4805 = vpop.f32.mrf.mxu0
      %v4806 = vadd.f32 %v4447, %v4805
      %4807 = vmatmul.bf16.gmra.mxu0 %v4416
      %v4808 = vpop.f32.mrf.mxu0
      %v4809 = vadd.f32 %v4447, %v4808
      %v4810 = vpop.f32.mrf.mxu0
      %v4811 = vadd.f32 %v4447, %v4810
      %4812 = vmatmul.bf16.gmra.mxu0 %v4417
      %v4813 = vpop.f32.mrf.mxu0
      %v4814 = vadd.f32 %v4447, %v4813
      %v4815 = vpop.f32.mrf.mxu0
      %v4816 = vadd.f32 %v4447, %v4815
      %4817 = vmatmul.bf16.gmra.mxu0 %v4418
      %v4818 = vpop.f32.mrf.mxu0
      %v4819 = vadd.f32 %v4447, %v4818
      %v4820 = vpop.f32.mrf.mxu0
      %v4821 = vadd.f32 %v4447, %v4820
      %4822 = vmatmul.bf16.gmra.mxu0 %v4419
      %v4823 = vpop.f32.mrf.mxu0
      %v4824 = vadd.f32 %v4447, %v4823
      %v4825 = vpop.f32.mrf.mxu0
      %v4826 = vadd.f32 %v4447, %v4825
      %4827 = vmatmul.bf16.gmra.mxu0 %v4420
      %v4828 = vpop.f32.mrf.mxu0
      %v4829 = vadd.f32 %v4447, %v4828
      %v4830 = vpop.f32.mrf.mxu0
      %v4831 = vadd.f32 %v4447, %v4830
      %4832 = vmatmul.bf16.gmra.mxu0 %v4421
      %v4833 = vpop.f32.mrf.mxu0
      %v4834 = vadd.f32 %v4447, %v4833
      %v4835 = vpop.f32.mrf.mxu0
      %v4836 = vadd.f32 %v4447, %v4835
      %4837 = vmatmul.bf16.gmra.mxu0 %v4422
      %v4838 = vpop.f32.mrf.mxu0
      %v4839 = vadd.f32 %v4447, %v4838
      %v4840 = vpop.f32.mrf.mxu0
      %v4841 = vadd.f32 %v4447, %v4840
      %4842 = vmatmul.bf16.gmra.mxu0 %v4423
      %v4843 = vpop.f32.mrf.mxu0
      %v4844 = vadd.f32 %v4447, %v4843
      %v4845 = vpop.f32.mrf.mxu0
      %v4846 = vadd.f32 %v4447, %v4845
      %4847 = vmatmul.bf16.gmra.mxu0 %v4424
      %v4848 = vpop.f32.mrf.mxu0
      %v4849 = vadd.f32 %v4447, %v4848
      %v4850 = vpop.f32.mrf.mxu0
      %v4851 = vadd.f32 %v4447, %v4850
      %4852 = vmatmul.bf16.gmra.mxu0 %v4425
      %v4853 = vpop.f32.mrf.mxu0
      %v4854 = vadd.f32 %v4447, %v4853
      %v4855 = vpop.f32.mrf.mxu0
      %v4856 = vadd.f32 %v4447, %v4855
      %4857 = vmatmul.bf16.gmra.mxu0 %v4426
      %v4858 = vpop.f32.mrf.mxu0
      %v4859 = vadd.f32 %v4447, %v4858
      %v4860 = vpop.f32.mrf.mxu0
      %v4861 = vadd.f32 %v4447, %v4860
      %4862 = vmatmul.bf16.gmra.mxu0 %v4427
      %v4863 = vpop.f32.mrf.mxu0
      %v4864 = vadd.f32 %v4447, %v4863
      %v4865 = vpop.f32.mrf.mxu0
      %v4866 = vadd.f32 %v4447, %v4865
      %4867 = vdwg.mxu0
      %v4868 = vmul.f32 %v4709, 0.5
      %v4869 = vmul.f32 %v4711, 0.5
      %v4870 = vmul.f32 %v4714, 0.5
      %v4871 = vmul.f32 %v4716, 0.5
      %v4872 = vmul.f32 %v4719, 0.5
      %v4873 = vmul.f32 %v4721, 0.5
      %v4874 = vmul.f32 %v4724, 0.5
      %v4875 = vmul.f32 %v4726, 0.5
      %v4876 = vmul.f32 %v4729, 0.5
      %v4877 = vmul.f32 %v4731, 0.5
      %v4878 = vmul.f32 %v4734, 0.5
      %v4879 = vmul.f32 %v4736, 0.5
      %v4880 = vmul.f32 %v4739, 0.5
      %v4881 = vmul.f32 %v4741, 0.5
      %v4882 = vmul.f32 %v4744, 0.5
      %v4883 = vmul.f32 %v4746, 0.5
      %v4884 = vmul.f32 %v4749, 0.5
      %v4885 = vmul.f32 %v4751, 0.5
      %v4886 = vmul.f32 %v4754, 0.5
      %v4887 = vmul.f32 %v4756, 0.5
      %v4888 = vmul.f32 %v4759, 0.5
      %v4889 = vmul.f32 %v4761, 0.5
      %v4890 = vmul.f32 %v4764, 0.5
      %v4891 = vmul.f32 %v4766, 0.5
      %v4892 = vmul.f32 %v4769, 0.5
      %v4893 = vmul.f32 %v4771, 0.5
      %v4894 = vmul.f32 %v4774, 0.5
      %v4895 = vmul.f32 %v4776, 0.5
      %v4896 = vmul.f32 %v4779, 0.5
      %v4897 = vmul.f32 %v4781, 0.5
      %v4898 = vmul.f32 %v4784, 0.5
      %v4899 = vmul.f32 %v4786, 0.5
      %v4900 = vmul.f32 %v4789, 0.5
      %v4901 = vmul.f32 %v4791, 0.5
      %v4902 = vmul.f32 %v4794, 0.5
      %v4903 = vmul.f32 %v4796, 0.5
      %v4904 = vmul.f32 %v4799, 0.5
      %v4905 = vmul.f32 %v4801, 0.5
      %v4906 = vmul.f32 %v4804, 0.5
      %v4907 = vmul.f32 %v4806, 0.5
      %v4908 = vmul.f32 %v4809, 0.5
      %v4909 = vmul.f32 %v4811, 0.5
      %v4910 = vmul.f32 %v4814, 0.5
      %v4911 = vmul.f32 %v4816, 0.5
      %v4912 = vmul.f32 %v4819, 0.5
      %v4913 = vmul.f32 %v4821, 0.5
      %v4914 = vmul.f32 %v4824, 0.5
      %v4915 = vmul.f32 %v4826, 0.5
      %v4916 = vmul.f32 %v4829, 0.5
      %v4917 = vmul.f32 %v4831, 0.5
      %v4918 = vmul.f32 %v4834, 0.5
      %v4919 = vmul.f32 %v4836, 0.5
      %v4920 = vmul.f32 %v4839, 0.5
      %v4921 = vmul.f32 %v4841, 0.5
      %v4922 = vmul.f32 %v4844, 0.5
      %v4923 = vmul.f32 %v4846, 0.5
      %v4924 = vmul.f32 %v4849, 0.5
      %v4925 = vmul.f32 %v4851, 0.5
      %v4926 = vmul.f32 %v4854, 0.5
      %v4927 = vmul.f32 %v4856, 0.5
      %v4928 = vmul.f32 %v4859, 0.5
      %v4929 = vmul.f32 %v4861, 0.5
      %v4930 = vmul.f32 %v4864, 0.5
      %v4931 = vmul.f32 %v4866, 0.5
      %v4932 = vmul.f32 %v4868, 1.442695
      %v4933 = vpow.pop %v4932
      %v4934 = vmul.f32 %v4869, 1.442695
      %v4935 = vpow.pop %v4934
      %v4936 = vmul.f32 %v4870, 1.442695
      %v4937 = vpow.pop %v4936
      %v4938 = vmul.f32 %v4871, 1.442695
      %v4939 = vpow.pop %v4938
      %v4940 = vmul.f32 %v4872, 1.442695
      %v4941 = vpow.pop %v4940
      %v4942 = vmul.f32 %v4873, 1.442695
      %v4943 = vpow.pop %v4942
      %v4944 = vmul.f32 %v4874, 1.442695
      %v4945 = vpow.pop %v4944
      %v4946 = vmul.f32 %v4875, 1.442695
      %v4947 = vpow.pop %v4946
      %v4948 = vmul.f32 %v4876, 1.442695
      %v4949 = vpow.pop %v4948
      %v4950 = vmul.f32 %v4877, 1.442695
      %v4951 = vpow.pop %v4950
      %v4952 = vmul.f32 %v4878, 1.442695
      %v4953 = vpow.pop %v4952
      %v4954 = vmul.f32 %v4879, 1.442695
      %v4955 = vpow.pop %v4954
      %v4956 = vmul.f32 %v4880, 1.442695
      %v4957 = vpow.pop %v4956
      %v4958 = vmul.f32 %v4881, 1.442695
      %v4959 = vpow.pop %v4958
      %v4960 = vmul.f32 %v4882, 1.442695
      %v4961 = vpow.pop %v4960
      %v4962 = vmul.f32 %v4883, 1.442695
      %v4963 = vpow.pop %v4962
      %v4964 = vmul.f32 %v4884, 1.442695
      %v4965 = vpow.pop %v4964
      %v4966 = vmul.f32 %v4885, 1.442695
      %v4967 = vpow.pop %v4966
      %v4968 = vmul.f32 %v4886, 1.442695
      %v4969 = vpow.pop %v4968
      %v4970 = vmul.f32 %v4887, 1.442695
      %v4971 = vpow.pop %v4970
      %v4972 = vmul.f32 %v4888, 1.442695
      %v4973 = vpow.pop %v4972
      %v4974 = vmul.f32 %v4889, 1.442695
      %v4975 = vpow.pop %v4974
      %v4976 = vmul.f32 %v4890, 1.442695
      %v4977 = vpow.pop %v4976
      %v4978 = vmul.f32 %v4891, 1.442695
      %v4979 = vpow.pop %v4978
      %v4980 = vmul.f32 %v4892, 1.442695
      %v4981 = vpow.pop %v4980
      %v4982 = vmul.f32 %v4893, 1.442695
      %v4983 = vpow.pop %v4982
      %v4984 = vmul.f32 %v4894, 1.442695
      %v4985 = vpow.pop %v4984
      %v4986 = vmul.f32 %v4895, 1.442695
      %v4987 = vpow.pop %v4986
      %v4988 = vmul.f32 %v4896, 1.442695
      %v4989 = vpow.pop %v4988
      %v4990 = vmul.f32 %v4897, 1.442695
      %v4991 = vpow.pop %v4990
      %v4992 = vmul.f32 %v4898, 1.442695
      %v4993 = vpow.pop %v4992
      %v4994 = vmul.f32 %v4899, 1.442695
      %v4995 = vpow.pop %v4994
      %v4996 = vmul.f32 %v4900, 1.442695
      %v4997 = vpow.pop %v4996
      %v4998 = vmul.f32 %v4901, 1.442695
      %v4999 = vpow.pop %v4998
      %v5000 = vmul.f32 %v4902, 1.442695
      %v5001 = vpow.pop %v5000
      %v5002 = vmul.f32 %v4903, 1.442695
      %v5003 = vpow.pop %v5002
      %v5004 = vmul.f32 %v4904, 1.442695
      %v5005 = vpow.pop %v5004
      %v5006 = vmul.f32 %v4905, 1.442695
      %v5007 = vpow.pop %v5006
      %v5008 = vmul.f32 %v4906, 1.442695
      %v5009 = vpow.pop %v5008
      %v5010 = vmul.f32 %v4907, 1.442695
      %v5011 = vpow.pop %v5010
      %v5012 = vmul.f32 %v4908, 1.442695
      %v5013 = vpow.pop %v5012
      %v5014 = vmul.f32 %v4909, 1.442695
      %v5015 = vpow.pop %v5014
      %v5016 = vmul.f32 %v4910, 1.442695
      %v5017 = vpow.pop %v5016
      %v5018 = vmul.f32 %v4911, 1.442695
      %v5019 = vpow.pop %v5018
      %v5020 = vmul.f32 %v4912, 1.442695
      %v5021 = vpow.pop %v5020
      %v5022 = vmul.f32 %v4913, 1.442695
      %v5023 = vpow.pop %v5022
      %v5024 = vmul.f32 %v4914, 1.442695
      %v5025 = vpow.pop %v5024
      %v5026 = vmul.f32 %v4915, 1.442695
      %v5027 = vpow.pop %v5026
      %v5028 = vmul.f32 %v4916, 1.442695
      %v5029 = vpow.pop %v5028
      %v5030 = vmul.f32 %v4917, 1.442695
      %v5031 = vpow.pop %v5030
      %v5032 = vmul.f32 %v4918, 1.442695
      %v5033 = vpow.pop %v5032
      %v5034 = vmul.f32 %v4919, 1.442695
      %v5035 = vpow.pop %v5034
      %v5036 = vmul.f32 %v4920, 1.442695
      %v5037 = vpow.pop %v5036
      %v5038 = vmul.f32 %v4921, 1.442695
      %v5039 = vpow.pop %v5038
      %v5040 = vmul.f32 %v4922, 1.442695
      %v5041 = vpow.pop %v5040
      %v5042 = vmul.f32 %v4923, 1.442695
      %v5043 = vpow.pop %v5042
      %v5044 = vmul.f32 %v4924, 1.442695
      %v5045 = vpow.pop %v5044
      %v5046 = vmul.f32 %v4925, 1.442695
      %v5047 = vpow.pop %v5046
      %v5048 = vmul.f32 %v4926, 1.442695
      %v5049 = vpow.pop %v5048
      %v5050 = vmul.f32 %v4927, 1.442695
      %v5051 = vpow.pop %v5050
      %v5052 = vmul.f32 %v4928, 1.442695
      %v5053 = vpow.pop %v5052
      %v5054 = vmul.f32 %v4929, 1.442695
      %v5055 = vpow.pop %v5054
      %v5056 = vmul.f32 %v4930, 1.442695
      %v5057 = vpow.pop %v5056
      %v5058 = vmul.f32 %v4931, 1.442695
      %v5059 = vpow.pop %v5058
      %v5060 = vld [vmem:[%s512] sm:$0xf]
      %v5061 = vld [vmem:[%s512 + $0x4] sm:$0xf]
      %v5062 = vld [vmem:[%s512 + $0x8] sm:$0xf]
      %v5063 = vld [vmem:[%s512 + $0xc] sm:$0xf]
      %v5064 = vld [vmem:[%s512 + $0x10] sm:$0xf]
      %v5065 = vld [vmem:[%s512 + $0x14] sm:$0xf]
      %v5066 = vld [vmem:[%s512 + $0x18] sm:$0xf]
      %v5067 = vld [vmem:[%s512 + $0x1c] sm:$0xf]
      %v5068 = vld [vmem:[%s512 + $0x20] sm:$0xf]
      %v5069 = vld [vmem:[%s512 + $0x24] sm:$0xf]
      %v5070 = vld [vmem:[%s512 + $0x28] sm:$0xf]
      %v5071 = vld [vmem:[%s512 + $0x2c] sm:$0xf]
      %v5072 = vld [vmem:[%s512 + $0x30] sm:$0xf]
      %v5073 = vld [vmem:[%s512 + $0x34] sm:$0xf]
      %v5074 = vld [vmem:[%s512 + $0x38] sm:$0xf]
      %v5075 = vld [vmem:[%s512 + $0x3c] sm:$0xf]
      %v5076 = vld [vmem:[%s512 + $0x40] sm:$0xf]
      %v5077 = vld [vmem:[%s512 + $0x44] sm:$0xf]
      %v5078 = vld [vmem:[%s512 + $0x48] sm:$0xf]
      %v5079 = vld [vmem:[%s512 + $0x4c] sm:$0xf]
      %v5080 = vld [vmem:[%s512 + $0x50] sm:$0xf]
      %v5081 = vld [vmem:[%s512 + $0x54] sm:$0xf]
      %v5082 = vld [vmem:[%s512 + $0x58] sm:$0xf]
      %v5083 = vld [vmem:[%s512 + $0x5c] sm:$0xf]
      %v5084 = vld [vmem:[%s512 + $0x60] sm:$0xf]
      %v5085 = vld [vmem:[%s512 + $0x64] sm:$0xf]
      %v5086 = vld [vmem:[%s512 + $0x68] sm:$0xf]
      %v5087 = vld [vmem:[%s512 + $0x6c] sm:$0xf]
      %v5088 = vld [vmem:[%s512 + $0x70] sm:$0xf]
      %v5089 = vld [vmem:[%s512 + $0x74] sm:$0xf]
      %v5090 = vld [vmem:[%s512 + $0x78] sm:$0xf]
      %v5091 = vld [vmem:[%s512 + $0x7c] sm:$0xf]
      %v5092 = vld [vmem:[%s512 + $0x80] sm:$0xf]
      %v5093 = vld [vmem:[%s512 + $0x84] sm:$0xf]
      %v5094 = vld [vmem:[%s512 + $0x88] sm:$0xf]
      %v5095 = vld [vmem:[%s512 + $0x8c] sm:$0xf]
      %v5096 = vld [vmem:[%s512 + $0x90] sm:$0xf]
      %v5097 = vld [vmem:[%s512 + $0x94] sm:$0xf]
      %v5098 = vld [vmem:[%s512 + $0x98] sm:$0xf]
      %v5099 = vld [vmem:[%s512 + $0x9c] sm:$0xf]
      %v5100 = vld [vmem:[%s512 + $0xa0] sm:$0xf]
      %v5101 = vld [vmem:[%s512 + $0xa4] sm:$0xf]
      %v5102 = vld [vmem:[%s512 + $0xa8] sm:$0xf]
      %v5103 = vld [vmem:[%s512 + $0xac] sm:$0xf]
      %v5104 = vld [vmem:[%s512 + $0xb0] sm:$0xf]
      %v5105 = vld [vmem:[%s512 + $0xb4] sm:$0xf]
      %v5106 = vld [vmem:[%s512 + $0xb8] sm:$0xf]
      %v5107 = vld [vmem:[%s512 + $0xbc] sm:$0xf]
      %v5108 = vld [vmem:[%s512 + $0xc0] sm:$0xf]
      %v5109 = vld [vmem:[%s512 + $0xc4] sm:$0xf]
      %v5110 = vld [vmem:[%s512 + $0xc8] sm:$0xf]
      %v5111 = vld [vmem:[%s512 + $0xcc] sm:$0xf]
      %v5112 = vld [vmem:[%s512 + $0xd0] sm:$0xf]
      %v5113 = vld [vmem:[%s512 + $0xd4] sm:$0xf]
      %v5114 = vld [vmem:[%s512 + $0xd8] sm:$0xf]
      %v5115 = vld [vmem:[%s512 + $0xdc] sm:$0xf]
      %v5116 = vld [vmem:[%s512 + $0xe0] sm:$0xf]
      %v5117 = vld [vmem:[%s512 + $0xe4] sm:$0xf]
      %v5118 = vld [vmem:[%s512 + $0xe8] sm:$0xf]
      %v5119 = vld [vmem:[%s512 + $0xec] sm:$0xf]
      %v5120 = vld [vmem:[%s512 + $0xf0] sm:$0xf]
      %v5121 = vld [vmem:[%s512 + $0xf4] sm:$0xf]
      %v5122 = vld [vmem:[%s512 + $0xf8] sm:$0xf]
      %v5123 = vld [vmem:[%s512 + $0xfc] sm:$0xf]
      %v5124 = vunpack.c.l.bf16 %v5060
      %v5125 = vunpack.c.l.bf16 %v5061
      %v5126 = vunpack.c.l.bf16 %v5062
      %v5127 = vunpack.c.l.bf16 %v5063
      %v5128 = vunpack.c.l.bf16 %v5064
      %v5129 = vunpack.c.l.bf16 %v5065
      %v5130 = vunpack.c.l.bf16 %v5066
      %v5131 = vunpack.c.l.bf16 %v5067
      %v5132 = vunpack.c.l.bf16 %v5068
      %v5133 = vunpack.c.l.bf16 %v5069
      %v5134 = vunpack.c.l.bf16 %v5070
      %v5135 = vunpack.c.l.bf16 %v5071
      %v5136 = vunpack.c.l.bf16 %v5072
      %v5137 = vunpack.c.l.bf16 %v5073
      %v5138 = vunpack.c.l.bf16 %v5074
      %v5139 = vunpack.c.l.bf16 %v5075
      %v5140 = vunpack.c.l.bf16 %v5076
      %v5141 = vunpack.c.l.bf16 %v5077
      %v5142 = vunpack.c.l.bf16 %v5078
      %v5143 = vunpack.c.l.bf16 %v5079
      %v5144 = vunpack.c.l.bf16 %v5080
      %v5145 = vunpack.c.l.bf16 %v5081
      %v5146 = vunpack.c.l.bf16 %v5082
      %v5147 = vunpack.c.l.bf16 %v5083
      %v5148 = vunpack.c.l.bf16 %v5084
      %v5149 = vunpack.c.l.bf16 %v5085
      %v5150 = vunpack.c.l.bf16 %v5086
      %v5151 = vunpack.c.l.bf16 %v5087
      %v5152 = vunpack.c.l.bf16 %v5088
      %v5153 = vunpack.c.l.bf16 %v5089
      %v5154 = vunpack.c.l.bf16 %v5090
      %v5155 = vunpack.c.l.bf16 %v5091
      %v5156 = vunpack.c.l.bf16 %v5092
      %v5157 = vunpack.c.l.bf16 %v5093
      %v5158 = vunpack.c.l.bf16 %v5094
      %v5159 = vunpack.c.l.bf16 %v5095
      %v5160 = vunpack.c.l.bf16 %v5096
      %v5161 = vunpack.c.l.bf16 %v5097
      %v5162 = vunpack.c.l.bf16 %v5098
      %v5163 = vunpack.c.l.bf16 %v5099
      %v5164 = vunpack.c.l.bf16 %v5100
      %v5165 = vunpack.c.l.bf16 %v5101
      %v5166 = vunpack.c.l.bf16 %v5102
      %v5167 = vunpack.c.l.bf16 %v5103
      %v5168 = vunpack.c.l.bf16 %v5104
      %v5169 = vunpack.c.l.bf16 %v5105
      %v5170 = vunpack.c.l.bf16 %v5106
      %v5171 = vunpack.c.l.bf16 %v5107
      %v5172 = vunpack.c.l.bf16 %v5108
      %v5173 = vunpack.c.l.bf16 %v5109
      %v5174 = vunpack.c.l.bf16 %v5110
      %v5175 = vunpack.c.l.bf16 %v5111
      %v5176 = vunpack.c.l.bf16 %v5112
      %v5177 = vunpack.c.l.bf16 %v5113
      %v5178 = vunpack.c.l.bf16 %v5114
      %v5179 = vunpack.c.l.bf16 %v5115
      %v5180 = vunpack.c.l.bf16 %v5116
      %v5181 = vunpack.c.l.bf16 %v5117
      %v5182 = vunpack.c.l.bf16 %v5118
      %v5183 = vunpack.c.l.bf16 %v5119
      %v5184 = vunpack.c.l.bf16 %v5120
      %v5185 = vunpack.c.l.bf16 %v5121
      %v5186 = vunpack.c.l.bf16 %v5122
      %v5187 = vunpack.c.l.bf16 %v5123
      %v5188 = vmul.f32 %v4933, %v5124
      %v5189 = vmul.f32 %v4935, %v5125
      %v5190 = vmul.f32 %v4937, %v5126
      %v5191 = vmul.f32 %v4939, %v5127
      %v5192 = vmul.f32 %v4941, %v5128
      %v5193 = vmul.f32 %v4943, %v5129
      %v5194 = vmul.f32 %v4945, %v5130
      %v5195 = vmul.f32 %v4947, %v5131
      %v5196 = vmul.f32 %v4949, %v5132
      %v5197 = vmul.f32 %v4951, %v5133
      %v5198 = vmul.f32 %v4953, %v5134
      %v5199 = vmul.f32 %v4955, %v5135
      %v5200 = vmul.f32 %v4957, %v5136
      %v5201 = vmul.f32 %v4959, %v5137
      %v5202 = vmul.f32 %v4961, %v5138
      %v5203 = vmul.f32 %v4963, %v5139
      %v5204 = vmul.f32 %v4965, %v5140
      %v5205 = vmul.f32 %v4967, %v5141
      %v5206 = vmul.f32 %v4969, %v5142
      %v5207 = vmul.f32 %v4971, %v5143
      %v5208 = vmul.f32 %v4973, %v5144
      %v5209 = vmul.f32 %v4975, %v5145
      %v5210 = vmul.f32 %v4977, %v5146
      %v5211 = vmul.f32 %v4979, %v5147
      %v5212 = vmul.f32 %v4981, %v5148
      %v5213 = vmul.f32 %v4983, %v5149
      %v5214 = vmul.f32 %v4985, %v5150
      %v5215 = vmul.f32 %v4987, %v5151
      %v5216 = vmul.f32 %v4989, %v5152
      %v5217 = vmul.f32 %v4991, %v5153
      %v5218 = vmul.f32 %v4993, %v5154
      %v5219 = vmul.f32 %v4995, %v5155
      %v5220 = vmul.f32 %v4997, %v5156
      %v5221 = vmul.f32 %v4999, %v5157
      %v5222 = vmul.f32 %v5001, %v5158
      %v5223 = vmul.f32 %v5003, %v5159
      %v5224 = vmul.f32 %v5005, %v5160
      %v5225 = vmul.f32 %v5007, %v5161
      %v5226 = vmul.f32 %v5009, %v5162
      %v5227 = vmul.f32 %v5011, %v5163
      %v5228 = vmul.f32 %v5013, %v5164
      %v5229 = vmul.f32 %v5015, %v5165
      %v5230 = vmul.f32 %v5017, %v5166
      %v5231 = vmul.f32 %v5019, %v5167
      %v5232 = vmul.f32 %v5021, %v5168
      %v5233 = vmul.f32 %v5023, %v5169
      %v5234 = vmul.f32 %v5025, %v5170
      %v5235 = vmul.f32 %v5027, %v5171
      %v5236 = vmul.f32 %v5029, %v5172
      %v5237 = vmul.f32 %v5031, %v5173
      %v5238 = vmul.f32 %v5033, %v5174
      %v5239 = vmul.f32 %v5035, %v5175
      %v5240 = vmul.f32 %v5037, %v5176
      %v5241 = vmul.f32 %v5039, %v5177
      %v5242 = vmul.f32 %v5041, %v5178
      %v5243 = vmul.f32 %v5043, %v5179
      %v5244 = vmul.f32 %v5045, %v5180
      %v5245 = vmul.f32 %v5047, %v5181
      %v5246 = vmul.f32 %v5049, %v5182
      %v5247 = vmul.f32 %v5051, %v5183
      %v5248 = vmul.f32 %v5053, %v5184
      %v5249 = vmul.f32 %v5055, %v5185
      %v5250 = vmul.f32 %v5057, %v5186
      %v5251 = vmul.f32 %v5059, %v5187
      %v5252 = vadd.f32 %v4540, %v5188
      %v5253 = vadd.f32 %v4542, %v5189
      %v5254 = vadd.f32 %v4545, %v5190
      %v5255 = vadd.f32 %v4547, %v5191
      %v5256 = vadd.f32 %v4550, %v5192
      %v5257 = vadd.f32 %v4552, %v5193
      %v5258 = vadd.f32 %v4555, %v5194
      %v5259 = vadd.f32 %v4557, %v5195
      %v5260 = vadd.f32 %v4560, %v5196
      %v5261 = vadd.f32 %v4562, %v5197
      %v5262 = vadd.f32 %v4565, %v5198
      %v5263 = vadd.f32 %v4567, %v5199
      %v5264 = vadd.f32 %v4570, %v5200
      %v5265 = vadd.f32 %v4572, %v5201
      %v5266 = vadd.f32 %v4575, %v5202
      %v5267 = vadd.f32 %v4577, %v5203
      %v5268 = vadd.f32 %v4580, %v5204
      %v5269 = vadd.f32 %v4582, %v5205
      %v5270 = vadd.f32 %v4585, %v5206
      %v5271 = vadd.f32 %v4587, %v5207
      %v5272 = vadd.f32 %v4590, %v5208
      %v5273 = vadd.f32 %v4592, %v5209
      %v5274 = vadd.f32 %v4595, %v5210
      %v5275 = vadd.f32 %v4597, %v5211
      %v5276 = vadd.f32 %v4600, %v5212
      %v5277 = vadd.f32 %v4602, %v5213
      %v5278 = vadd.f32 %v4605, %v5214
      %v5279 = vadd.f32 %v4607, %v5215
      %v5280 = vadd.f32 %v4610, %v5216
      %v5281 = vadd.f32 %v4612, %v5217
      %v5282 = vadd.f32 %v4615, %v5218
      %v5283 = vadd.f32 %v4617, %v5219
      %v5284 = vadd.f32 %v4620, %v5220
      %v5285 = vadd.f32 %v4622, %v5221
      %v5286 = vadd.f32 %v4625, %v5222
      %v5287 = vadd.f32 %v4627, %v5223
      %v5288 = vadd.f32 %v4630, %v5224
      %v5289 = vadd.f32 %v4632, %v5225
      %v5290 = vadd.f32 %v4635, %v5226
      %v5291 = vadd.f32 %v4637, %v5227
      %v5292 = vadd.f32 %v4640, %v5228
      %v5293 = vadd.f32 %v4642, %v5229
      %v5294 = vadd.f32 %v4645, %v5230
      %v5295 = vadd.f32 %v4647, %v5231
      %v5296 = vadd.f32 %v4650, %v5232
      %v5297 = vadd.f32 %v4652, %v5233
      %v5298 = vadd.f32 %v4655, %v5234
      %v5299 = vadd.f32 %v4657, %v5235
      %v5300 = vadd.f32 %v4660, %v5236
      %v5301 = vadd.f32 %v4662, %v5237
      %v5302 = vadd.f32 %v4665, %v5238
      %v5303 = vadd.f32 %v4667, %v5239
      %v5304 = vadd.f32 %v4670, %v5240
      %v5305 = vadd.f32 %v4672, %v5241
      %v5306 = vadd.f32 %v4675, %v5242
      %v5307 = vadd.f32 %v4677, %v5243
      %v5308 = vadd.f32 %v4680, %v5244
      %v5309 = vadd.f32 %v4682, %v5245
      %v5310 = vadd.f32 %v4685, %v5246
      %v5311 = vadd.f32 %v4687, %v5247
      %v5312 = vadd.f32 %v4690, %v5248
      %v5313 = vadd.f32 %v4692, %v5249
      %v5314 = vadd.f32 %v4695, %v5250
      %v5315 = vadd.f32 %v4697, %v5251
      %v5316 = vpack.c.bf16 %v5253, %v5252
      %v5317 = vpack.c.bf16 %v5255, %v5254
      %v5318 = vpack.c.bf16 %v5257, %v5256
      %v5319 = vpack.c.bf16 %v5259, %v5258
      %v5320 = vpack.c.bf16 %v5261, %v5260
      %v5321 = vpack.c.bf16 %v5263, %v5262
      %v5322 = vpack.c.bf16 %v5265, %v5264
      %v5323 = vpack.c.bf16 %v5267, %v5266
      %v5324 = vpack.c.bf16 %v5269, %v5268
      %v5325 = vpack.c.bf16 %v5271, %v5270
      %v5326 = vpack.c.bf16 %v5273, %v5272
      %v5327 = vpack.c.bf16 %v5275, %v5274
      %v5328 = vpack.c.bf16 %v5277, %v5276
      %v5329 = vpack.c.bf16 %v5279, %v5278
      %v5330 = vpack.c.bf16 %v5281, %v5280
      %v5331 = vpack.c.bf16 %v5283, %v5282
      %v5332 = vpack.c.bf16 %v5285, %v5284
      %v5333 = vpack.c.bf16 %v5287, %v5286
      %v5334 = vpack.c.bf16 %v5289, %v5288
      %v5335 = vpack.c.bf16 %v5291, %v5290
      %v5336 = vpack.c.bf16 %v5293, %v5292
      %v5337 = vpack.c.bf16 %v5295, %v5294
      %v5338 = vpack.c.bf16 %v5297, %v5296
      %v5339 = vpack.c.bf16 %v5299, %v5298
      %v5340 = vpack.c.bf16 %v5301, %v5300
      %v5341 = vpack.c.bf16 %v5303, %v5302
      %v5342 = vpack.c.bf16 %v5305, %v5304
      %v5343 = vpack.c.bf16 %v5307, %v5306
      %v5344 = vpack.c.bf16 %v5309, %v5308
      %v5345 = vpack.c.bf16 %v5311, %v5310
      %v5346 = vpack.c.bf16 %v5313, %v5312
      %v5347 = vpack.c.bf16 %v5315, %v5314
      %v5348 = vld [vmem:[%s8] sm:$0xff]
      %v5349 = vld [vmem:[%s8 + $0x8] sm:$0xff]
      %v5350 = vld [vmem:[%s8 + $0x10] sm:$0xff]
      %v5351 = vld [vmem:[%s8 + $0x18] sm:$0xff]
      %v5352 = vld [vmem:[%s8 + $0x20] sm:$0xff]
      %v5353 = vld [vmem:[%s8 + $0x28] sm:$0xff]
      %v5354 = vld [vmem:[%s8 + $0x30] sm:$0xff]
      %v5355 = vld [vmem:[%s8 + $0x38] sm:$0xff]
      %v5356 = vld [vmem:[%s8 + $0x40] sm:$0xff]
      %v5357 = vld [vmem:[%s8 + $0x48] sm:$0xff]
      %v5358 = vld [vmem:[%s8 + $0x50] sm:$0xff]
      %v5359 = vld [vmem:[%s8 + $0x58] sm:$0xff]
      %v5360 = vld [vmem:[%s8 + $0x60] sm:$0xff]
      %v5361 = vld [vmem:[%s8 + $0x68] sm:$0xff]
      %v5362 = vld [vmem:[%s8 + $0x70] sm:$0xff]
      %v5363 = vld [vmem:[%s8 + $0x78] sm:$0xff]
      %v5364 = vld [vmem:[%s9] sm:$0x3]
      %v5366 = vperm.slane %v5364, 0
      %v5367 = vperm.slane %v5364, 1
      %v5386 = vunpack.c.l.b16 %v5348
      %v5387 = vunpack.c.h.b16 %v5348
      %v5388 = vunpack.c.l.b16 %v5349
      %v5389 = vunpack.c.h.b16 %v5349
      %v5390 = vunpack.c.l.b16 %v5350
      %v5391 = vunpack.c.h.b16 %v5350
      %v5392 = vunpack.c.l.b16 %v5351
      %v5393 = vunpack.c.h.b16 %v5351
      %v5394 = vunpack.c.l.b16 %v5352
      %v5395 = vunpack.c.h.b16 %v5352
      %v5396 = vunpack.c.l.b16 %v5353
      %v5397 = vunpack.c.h.b16 %v5353
      %v5398 = vunpack.c.l.b16 %v5354
      %v5399 = vunpack.c.h.b16 %v5354
      %v5400 = vunpack.c.l.b16 %v5355
      %v5401 = vunpack.c.h.b16 %v5355
      %v5402 = vunpack.c.l.b16 %v5356
      %v5403 = vunpack.c.h.b16 %v5356
      %v5404 = vunpack.c.l.b16 %v5357
      %v5405 = vunpack.c.h.b16 %v5357
      %v5406 = vunpack.c.l.b16 %v5358
      %v5407 = vunpack.c.h.b16 %v5358
      %v5408 = vunpack.c.l.b16 %v5359
      %v5409 = vunpack.c.h.b16 %v5359
      %v5410 = vunpack.c.l.b16 %v5360
      %v5411 = vunpack.c.h.b16 %v5360
      %v5412 = vunpack.c.l.b16 %v5361
      %v5413 = vunpack.c.h.b16 %v5361
      %v5414 = vunpack.c.l.b16 %v5362
      %v5415 = vunpack.c.h.b16 %v5362
      %v5416 = vunpack.c.l.b16 %v5363
      %v5417 = vunpack.c.h.b16 %v5363
      %v5418 = vpack.c.b16 %v5388, %v5386
      %v5419 = vpack.c.b16 %v5389, %v5387
      %v5420 = vpack.c.b16 %v5392, %v5390
      %v5421 = vpack.c.b16 %v5393, %v5391
      %v5422 = vpack.c.b16 %v5396, %v5394
      %v5423 = vpack.c.b16 %v5397, %v5395
      %v5424 = vpack.c.b16 %v5400, %v5398
      %v5425 = vpack.c.b16 %v5401, %v5399
      %v5426 = vpack.c.b16 %v5404, %v5402
      %v5427 = vpack.c.b16 %v5405, %v5403
      %v5428 = vpack.c.b16 %v5408, %v5406
      %v5429 = vpack.c.b16 %v5409, %v5407
      %v5430 = vpack.c.b16 %v5412, %v5410
      %v5431 = vpack.c.b16 %v5413, %v5411
      %v5432 = vpack.c.b16 %v5416, %v5414
      %v5433 = vpack.c.b16 %v5417, %v5415
      %5450 = vmatpush.bf16.msra.mxu0 %v5432
      %5451 = vmatpush.bf16.msra.mxu0 %v5430
      %5452 = vmatpush.bf16.msra.mxu0 %v5428
      %5453 = vmatpush.bf16.msra.mxu0 %v5426
      %5454 = vmatpush.bf16.msra.mxu0 %v5424
      %5455 = vmatpush.bf16.msra.mxu0 %v5422
      %5456 = vmatpush.bf16.msra.mxu0 %v5420
      %5457 = vmatpush.bf16.msra.mxu0 %v5418
      %5458 = vmatmul.bf16.gmra.mxu0 %v5316
      %v5459 = vpop.f32.mrf.mxu0
      %v5460 = vadd.f32 %v5366, %v5459
      %v5461 = vpop.f32.mrf.mxu0
      %v5462 = vadd.f32 %v5366, %v5461
      %5463 = vmatmul.bf16.gmra.mxu0 %v5317
      %v5464 = vpop.f32.mrf.mxu0
      %v5465 = vadd.f32 %v5366, %v5464
      %v5466 = vpop.f32.mrf.mxu0
      %v5467 = vadd.f32 %v5366, %v5466
      %5468 = vmatmul.bf16.gmra.mxu0 %v5318
      %v5469 = vpop.f32.mrf.mxu0
      %v5470 = vadd.f32 %v5366, %v5469
      %v5471 = vpop.f32.mrf.mxu0
      %v5472 = vadd.f32 %v5366, %v5471
      %5473 = vmatmul.bf16.gmra.mxu0 %v5319
      %v5474 = vpop.f32.mrf.mxu0
      %v5475 = vadd.f32 %v5366, %v5474
      %v5476 = vpop.f32.mrf.mxu0
      %v5477 = vadd.f32 %v5366, %v5476
      %5478 = vmatmul.bf16.gmra.mxu0 %v5320
      %v5479 = vpop.f32.mrf.mxu0
      %v5480 = vadd.f32 %v5366, %v5479
      %v5481 = vpop.f32.mrf.mxu0
      %v5482 = vadd.f32 %v5366, %v5481
      %5483 = vmatmul.bf16.gmra.mxu0 %v5321
      %v5484 = vpop.f32.mrf.mxu0
      %v5485 = vadd.f32 %v5366, %v5484
      %v5486 = vpop.f32.mrf.mxu0
      %v5487 = vadd.f32 %v5366, %v5486
      %5488 = vmatmul.bf16.gmra.mxu0 %v5322
      %v5489 = vpop.f32.mrf.mxu0
      %v5490 = vadd.f32 %v5366, %v5489
      %v5491 = vpop.f32.mrf.mxu0
      %v5492 = vadd.f32 %v5366, %v5491
      %5493 = vmatmul.bf16.gmra.mxu0 %v5323
      %v5494 = vpop.f32.mrf.mxu0
      %v5495 = vadd.f32 %v5366, %v5494
      %v5496 = vpop.f32.mrf.mxu0
      %v5497 = vadd.f32 %v5366, %v5496
      %5498 = vmatmul.bf16.gmra.mxu0 %v5324
      %v5499 = vpop.f32.mrf.mxu0
      %v5500 = vadd.f32 %v5366, %v5499
      %v5501 = vpop.f32.mrf.mxu0
      %v5502 = vadd.f32 %v5366, %v5501
      %5503 = vmatmul.bf16.gmra.mxu0 %v5325
      %v5504 = vpop.f32.mrf.mxu0
      %v5505 = vadd.f32 %v5366, %v5504
      %v5506 = vpop.f32.mrf.mxu0
      %v5507 = vadd.f32 %v5366, %v5506
      %5508 = vmatmul.bf16.gmra.mxu0 %v5326
      %v5509 = vpop.f32.mrf.mxu0
      %v5510 = vadd.f32 %v5366, %v5509
      %v5511 = vpop.f32.mrf.mxu0
      %v5512 = vadd.f32 %v5366, %v5511
      %5513 = vmatmul.bf16.gmra.mxu0 %v5327
      %v5514 = vpop.f32.mrf.mxu0
      %v5515 = vadd.f32 %v5366, %v5514
      %v5516 = vpop.f32.mrf.mxu0
      %v5517 = vadd.f32 %v5366, %v5516
      %5518 = vmatmul.bf16.gmra.mxu0 %v5328
      %v5519 = vpop.f32.mrf.mxu0
      %v5520 = vadd.f32 %v5366, %v5519
      %v5521 = vpop.f32.mrf.mxu0
      %v5522 = vadd.f32 %v5366, %v5521
      %5523 = vmatmul.bf16.gmra.mxu0 %v5329
      %v5524 = vpop.f32.mrf.mxu0
      %v5525 = vadd.f32 %v5366, %v5524
      %v5526 = vpop.f32.mrf.mxu0
      %v5527 = vadd.f32 %v5366, %v5526
      %5528 = vmatmul.bf16.gmra.mxu0 %v5330
      %v5529 = vpop.f32.mrf.mxu0
      %v5530 = vadd.f32 %v5366, %v5529
      %v5531 = vpop.f32.mrf.mxu0
      %v5532 = vadd.f32 %v5366, %v5531
      %5533 = vmatmul.bf16.gmra.mxu0 %v5331
      %v5534 = vpop.f32.mrf.mxu0
      %v5535 = vadd.f32 %v5366, %v5534
      %v5536 = vpop.f32.mrf.mxu0
      %v5537 = vadd.f32 %v5366, %v5536
      %5538 = vmatmul.bf16.gmra.mxu0 %v5332
      %v5539 = vpop.f32.mrf.mxu0
      %v5540 = vadd.f32 %v5366, %v5539
      %v5541 = vpop.f32.mrf.mxu0
      %v5542 = vadd.f32 %v5366, %v5541
      %5543 = vmatmul.bf16.gmra.mxu0 %v5333
      %v5544 = vpop.f32.mrf.mxu0
      %v5545 = vadd.f32 %v5366, %v5544
      %v5546 = vpop.f32.mrf.mxu0
      %v5547 = vadd.f32 %v5366, %v5546
      %5548 = vmatmul.bf16.gmra.mxu0 %v5334
      %v5549 = vpop.f32.mrf.mxu0
      %v5550 = vadd.f32 %v5366, %v5549
      %v5551 = vpop.f32.mrf.mxu0
      %v5552 = vadd.f32 %v5366, %v5551
      %5553 = vmatmul.bf16.gmra.mxu0 %v5335
      %v5554 = vpop.f32.mrf.mxu0
      %v5555 = vadd.f32 %v5366, %v5554
      %v5556 = vpop.f32.mrf.mxu0
      %v5557 = vadd.f32 %v5366, %v5556
      %5558 = vmatmul.bf16.gmra.mxu0 %v5336
      %v5559 = vpop.f32.mrf.mxu0
      %v5560 = vadd.f32 %v5366, %v5559
      %v5561 = vpop.f32.mrf.mxu0
      %v5562 = vadd.f32 %v5366, %v5561
      %5563 = vmatmul.bf16.gmra.mxu0 %v5337
      %v5564 = vpop.f32.mrf.mxu0
      %v5565 = vadd.f32 %v5366, %v5564
      %v5566 = vpop.f32.mrf.mxu0
      %v5567 = vadd.f32 %v5366, %v5566
      %5568 = vmatmul.bf16.gmra.mxu0 %v5338
      %v5569 = vpop.f32.mrf.mxu0
      %v5570 = vadd.f32 %v5366, %v5569
      %v5571 = vpop.f32.mrf.mxu0
      %v5572 = vadd.f32 %v5366, %v5571
      %5573 = vmatmul.bf16.gmra.mxu0 %v5339
      %v5574 = vpop.f32.mrf.mxu0
      %v5575 = vadd.f32 %v5366, %v5574
      %v5576 = vpop.f32.mrf.mxu0
      %v5577 = vadd.f32 %v5366, %v5576
      %5578 = vmatmul.bf16.gmra.mxu0 %v5340
      %v5579 = vpop.f32.mrf.mxu0
      %v5580 = vadd.f32 %v5366, %v5579
      %v5581 = vpop.f32.mrf.mxu0
      %v5582 = vadd.f32 %v5366, %v5581
      %5583 = vmatmul.bf16.gmra.mxu0 %v5341
      %v5584 = vpop.f32.mrf.mxu0
      %v5585 = vadd.f32 %v5366, %v5584
      %v5586 = vpop.f32.mrf.mxu0
      %v5587 = vadd.f32 %v5366, %v5586
      %5588 = vmatmul.bf16.gmra.mxu0 %v5342
      %v5589 = vpop.f32.mrf.mxu0
      %v5590 = vadd.f32 %v5366, %v5589
      %v5591 = vpop.f32.mrf.mxu0
      %v5592 = vadd.f32 %v5366, %v5591
      %5593 = vmatmul.bf16.gmra.mxu0 %v5343
      %v5594 = vpop.f32.mrf.mxu0
      %v5595 = vadd.f32 %v5366, %v5594
      %v5596 = vpop.f32.mrf.mxu0
      %v5597 = vadd.f32 %v5366, %v5596
      %5598 = vmatmul.bf16.gmra.mxu0 %v5344
      %v5599 = vpop.f32.mrf.mxu0
      %v5600 = vadd.f32 %v5366, %v5599
      %v5601 = vpop.f32.mrf.mxu0
      %v5602 = vadd.f32 %v5366, %v5601
      %5603 = vmatmul.bf16.gmra.mxu0 %v5345
      %v5604 = vpop.f32.mrf.mxu0
      %v5605 = vadd.f32 %v5366, %v5604
      %v5606 = vpop.f32.mrf.mxu0
      %v5607 = vadd.f32 %v5366, %v5606
      %5608 = vmatmul.bf16.gmra.mxu0 %v5346
      %v5609 = vpop.f32.mrf.mxu0
      %v5610 = vadd.f32 %v5366, %v5609
      %v5611 = vpop.f32.mrf.mxu0
      %v5612 = vadd.f32 %v5366, %v5611
      %5613 = vmatmul.bf16.gmra.mxu0 %v5347
      %v5614 = vpop.f32.mrf.mxu0
      %v5615 = vadd.f32 %v5366, %v5614
      %v5616 = vpop.f32.mrf.mxu0
      %v5617 = vadd.f32 %v5366, %v5616
      %5618 = vdwg.mxu0
      %5619 = vmatpush.bf16.msra.mxu0 %v5433
      %5620 = vmatpush.bf16.msra.mxu0 %v5431
      %5621 = vmatpush.bf16.msra.mxu0 %v5429
      %5622 = vmatpush.bf16.msra.mxu0 %v5427
      %5623 = vmatpush.bf16.msra.mxu0 %v5425
      %5624 = vmatpush.bf16.msra.mxu0 %v5423
      %5625 = vmatpush.bf16.msra.mxu0 %v5421
      %5626 = vmatpush.bf16.msra.mxu0 %v5419
      %5627 = vmatmul.bf16.gmra.mxu0 %v5316
      %v5628 = vpop.f32.mrf.mxu0
      %v5629 = vadd.f32 %v5367, %v5628
      %v5630 = vpop.f32.mrf.mxu0
      %v5631 = vadd.f32 %v5367, %v5630
      %5632 = vmatmul.bf16.gmra.mxu0 %v5317
      %v5633 = vpop.f32.mrf.mxu0
      %v5634 = vadd.f32 %v5367, %v5633
      %v5635 = vpop.f32.mrf.mxu0
      %v5636 = vadd.f32 %v5367, %v5635
      %5637 = vmatmul.bf16.gmra.mxu0 %v5318
      %v5638 = vpop.f32.mrf.mxu0
      %v5639 = vadd.f32 %v5367, %v5638
      %v5640 = vpop.f32.mrf.mxu0
      %v5641 = vadd.f32 %v5367, %v5640
      %5642 = vmatmul.bf16.gmra.mxu0 %v5319
      %v5643 = vpop.f32.mrf.mxu0
      %v5644 = vadd.f32 %v5367, %v5643
      %v5645 = vpop.f32.mrf.mxu0
      %v5646 = vadd.f32 %v5367, %v5645
      %5647 = vmatmul.bf16.gmra.mxu0 %v5320
      %v5648 = vpop.f32.mrf.mxu0
      %v5649 = vadd.f32 %v5367, %v5648
      %v5650 = vpop.f32.mrf.mxu0
      %v5651 = vadd.f32 %v5367, %v5650
      %5652 = vmatmul.bf16.gmra.mxu0 %v5321
      %v5653 = vpop.f32.mrf.mxu0
      %v5654 = vadd.f32 %v5367, %v5653
      %v5655 = vpop.f32.mrf.mxu0
      %v5656 = vadd.f32 %v5367, %v5655
      %5657 = vmatmul.bf16.gmra.mxu0 %v5322
      %v5658 = vpop.f32.mrf.mxu0
      %v5659 = vadd.f32 %v5367, %v5658
      %v5660 = vpop.f32.mrf.mxu0
      %v5661 = vadd.f32 %v5367, %v5660
      %5662 = vmatmul.bf16.gmra.mxu0 %v5323
      %v5663 = vpop.f32.mrf.mxu0
      %v5664 = vadd.f32 %v5367, %v5663
      %v5665 = vpop.f32.mrf.mxu0
      %v5666 = vadd.f32 %v5367, %v5665
      %5667 = vmatmul.bf16.gmra.mxu0 %v5324
      %v5668 = vpop.f32.mrf.mxu0
      %v5669 = vadd.f32 %v5367, %v5668
      %v5670 = vpop.f32.mrf.mxu0
      %v5671 = vadd.f32 %v5367, %v5670
      %5672 = vmatmul.bf16.gmra.mxu0 %v5325
      %v5673 = vpop.f32.mrf.mxu0
      %v5674 = vadd.f32 %v5367, %v5673
      %v5675 = vpop.f32.mrf.mxu0
      %v5676 = vadd.f32 %v5367, %v5675
      %5677 = vmatmul.bf16.gmra.mxu0 %v5326
      %v5678 = vpop.f32.mrf.mxu0
      %v5679 = vadd.f32 %v5367, %v5678
      %v5680 = vpop.f32.mrf.mxu0
      %v5681 = vadd.f32 %v5367, %v5680
      %5682 = vmatmul.bf16.gmra.mxu0 %v5327
      %v5683 = vpop.f32.mrf.mxu0
      %v5684 = vadd.f32 %v5367, %v5683
      %v5685 = vpop.f32.mrf.mxu0
      %v5686 = vadd.f32 %v5367, %v5685
      %5687 = vmatmul.bf16.gmra.mxu0 %v5328
      %v5688 = vpop.f32.mrf.mxu0
      %v5689 = vadd.f32 %v5367, %v5688
      %v5690 = vpop.f32.mrf.mxu0
      %v5691 = vadd.f32 %v5367, %v5690
      %5692 = vmatmul.bf16.gmra.mxu0 %v5329
      %v5693 = vpop.f32.mrf.mxu0
      %v5694 = vadd.f32 %v5367, %v5693
      %v5695 = vpop.f32.mrf.mxu0
      %v5696 = vadd.f32 %v5367, %v5695
      %5697 = vmatmul.bf16.gmra.mxu0 %v5330
      %v5698 = vpop.f32.mrf.mxu0
      %v5699 = vadd.f32 %v5367, %v5698
      %v5700 = vpop.f32.mrf.mxu0
      %v5701 = vadd.f32 %v5367, %v5700
      %5702 = vmatmul.bf16.gmra.mxu0 %v5331
      %v5703 = vpop.f32.mrf.mxu0
      %v5704 = vadd.f32 %v5367, %v5703
      %v5705 = vpop.f32.mrf.mxu0
      %v5706 = vadd.f32 %v5367, %v5705
      %5707 = vmatmul.bf16.gmra.mxu0 %v5332
      %v5708 = vpop.f32.mrf.mxu0
      %v5709 = vadd.f32 %v5367, %v5708
      %v5710 = vpop.f32.mrf.mxu0
      %v5711 = vadd.f32 %v5367, %v5710
      %5712 = vmatmul.bf16.gmra.mxu0 %v5333
      %v5713 = vpop.f32.mrf.mxu0
      %v5714 = vadd.f32 %v5367, %v5713
      %v5715 = vpop.f32.mrf.mxu0
      %v5716 = vadd.f32 %v5367, %v5715
      %5717 = vmatmul.bf16.gmra.mxu0 %v5334
      %v5718 = vpop.f32.mrf.mxu0
      %v5719 = vadd.f32 %v5367, %v5718
      %v5720 = vpop.f32.mrf.mxu0
      %v5721 = vadd.f32 %v5367, %v5720
      %5722 = vmatmul.bf16.gmra.mxu0 %v5335
      %v5723 = vpop.f32.mrf.mxu0
      %v5724 = vadd.f32 %v5367, %v5723
      %v5725 = vpop.f32.mrf.mxu0
      %v5726 = vadd.f32 %v5367, %v5725
      %5727 = vmatmul.bf16.gmra.mxu0 %v5336
      %v5728 = vpop.f32.mrf.mxu0
      %v5729 = vadd.f32 %v5367, %v5728
      %v5730 = vpop.f32.mrf.mxu0
      %v5731 = vadd.f32 %v5367, %v5730
      %5732 = vmatmul.bf16.gmra.mxu0 %v5337
      %v5733 = vpop.f32.mrf.mxu0
      %v5734 = vadd.f32 %v5367, %v5733
      %v5735 = vpop.f32.mrf.mxu0
      %v5736 = vadd.f32 %v5367, %v5735
      %5737 = vmatmul.bf16.gmra.mxu0 %v5338
      %v5738 = vpop.f32.mrf.mxu0
      %v5739 = vadd.f32 %v5367, %v5738
      %v5740 = vpop.f32.mrf.mxu0
      %v5741 = vadd.f32 %v5367, %v5740
      %5742 = vmatmul.bf16.gmra.mxu0 %v5339
      %v5743 = vpop.f32.mrf.mxu0
      %v5744 = vadd.f32 %v5367, %v5743
      %v5745 = vpop.f32.mrf.mxu0
      %v5746 = vadd.f32 %v5367, %v5745
      %5747 = vmatmul.bf16.gmra.mxu0 %v5340
      %v5748 = vpop.f32.mrf.mxu0
      %v5749 = vadd.f32 %v5367, %v5748
      %v5750 = vpop.f32.mrf.mxu0
      %v5751 = vadd.f32 %v5367, %v5750
      %5752 = vmatmul.bf16.gmra.mxu0 %v5341
      %v5753 = vpop.f32.mrf.mxu0
      %v5754 = vadd.f32 %v5367, %v5753
      %v5755 = vpop.f32.mrf.mxu0
      %v5756 = vadd.f32 %v5367, %v5755
      %5757 = vmatmul.bf16.gmra.mxu0 %v5342
      %v5758 = vpop.f32.mrf.mxu0
      %v5759 = vadd.f32 %v5367, %v5758
      %v5760 = vpop.f32.mrf.mxu0
      %v5761 = vadd.f32 %v5367, %v5760
      %5762 = vmatmul.bf16.gmra.mxu0 %v5343
      %v5763 = vpop.f32.mrf.mxu0
      %v5764 = vadd.f32 %v5367, %v5763
      %v5765 = vpop.f32.mrf.mxu0
      %v5766 = vadd.f32 %v5367, %v5765
      %5767 = vmatmul.bf16.gmra.mxu0 %v5344
      %v5768 = vpop.f32.mrf.mxu0
      %v5769 = vadd.f32 %v5367, %v5768
      %v5770 = vpop.f32.mrf.mxu0
      %v5771 = vadd.f32 %v5367, %v5770
      %5772 = vmatmul.bf16.gmra.mxu0 %v5345
      %v5773 = vpop.f32.mrf.mxu0
      %v5774 = vadd.f32 %v5367, %v5773
      %v5775 = vpop.f32.mrf.mxu0
      %v5776 = vadd.f32 %v5367, %v5775
      %5777 = vmatmul.bf16.gmra.mxu0 %v5346
      %v5778 = vpop.f32.mrf.mxu0
      %v5779 = vadd.f32 %v5367, %v5778
      %v5780 = vpop.f32.mrf.mxu0
      %v5781 = vadd.f32 %v5367, %v5780
      %5782 = vmatmul.bf16.gmra.mxu0 %v5347
      %v5783 = vpop.f32.mrf.mxu0
      %v5784 = vadd.f32 %v5367, %v5783
      %v5785 = vpop.f32.mrf.mxu0
      %v5786 = vadd.f32 %v5367, %v5785
      %5787 = vdwg.mxu0
      %v5788 = vmax.f32 %v5460, 0.0
      %v5789 = vmax.f32 %v5629, 0.0
      %v5790 = vmax.f32 %v5462, 0.0
      %v5791 = vmax.f32 %v5631, 0.0
      %v5792 = vmax.f32 %v5465, 0.0
      %v5793 = vmax.f32 %v5634, 0.0
      %v5794 = vmax.f32 %v5467, 0.0
      %v5795 = vmax.f32 %v5636, 0.0
      %v5796 = vmax.f32 %v5470, 0.0
      %v5797 = vmax.f32 %v5639, 0.0
      %v5798 = vmax.f32 %v5472, 0.0
      %v5799 = vmax.f32 %v5641, 0.0
      %v5800 = vmax.f32 %v5475, 0.0
      %v5801 = vmax.f32 %v5644, 0.0
      %v5802 = vmax.f32 %v5477, 0.0
      %v5803 = vmax.f32 %v5646, 0.0
      %v5804 = vmax.f32 %v5480, 0.0
      %v5805 = vmax.f32 %v5649, 0.0
      %v5806 = vmax.f32 %v5482, 0.0
      %v5807 = vmax.f32 %v5651, 0.0
      %v5808 = vmax.f32 %v5485, 0.0
      %v5809 = vmax.f32 %v5654, 0.0
      %v5810 = vmax.f32 %v5487, 0.0
      %v5811 = vmax.f32 %v5656, 0.0
      %v5812 = vmax.f32 %v5490, 0.0
      %v5813 = vmax.f32 %v5659, 0.0
      %v5814 = vmax.f32 %v5492, 0.0
      %v5815 = vmax.f32 %v5661, 0.0
      %v5816 = vmax.f32 %v5495, 0.0
      %v5817 = vmax.f32 %v5664, 0.0
      %v5818 = vmax.f32 %v5497, 0.0
      %v5819 = vmax.f32 %v5666, 0.0
      %v5820 = vmax.f32 %v5500, 0.0
      %v5821 = vmax.f32 %v5669, 0.0
      %v5822 = vmax.f32 %v5502, 0.0
      %v5823 = vmax.f32 %v5671, 0.0
      %v5824 = vmax.f32 %v5505, 0.0
      %v5825 = vmax.f32 %v5674, 0.0
      %v5826 = vmax.f32 %v5507, 0.0
      %v5827 = vmax.f32 %v5676, 0.0
      %v5828 = vmax.f32 %v5510, 0.0
      %v5829 = vmax.f32 %v5679, 0.0
      %v5830 = vmax.f32 %v5512, 0.0
      %v5831 = vmax.f32 %v5681, 0.0
      %v5832 = vmax.f32 %v5515, 0.0
      %v5833 = vmax.f32 %v5684, 0.0
      %v5834 = vmax.f32 %v5517, 0.0
      %v5835 = vmax.f32 %v5686, 0.0
      %v5836 = vmax.f32 %v5520, 0.0
      %v5837 = vmax.f32 %v5689, 0.0
      %v5838 = vmax.f32 %v5522, 0.0
      %v5839 = vmax.f32 %v5691, 0.0
      %v5840 = vmax.f32 %v5525, 0.0
      %v5841 = vmax.f32 %v5694, 0.0
      %v5842 = vmax.f32 %v5527, 0.0
      %v5843 = vmax.f32 %v5696, 0.0
      %v5844 = vmax.f32 %v5530, 0.0
      %v5845 = vmax.f32 %v5699, 0.0
      %v5846 = vmax.f32 %v5532, 0.0
      %v5847 = vmax.f32 %v5701, 0.0
      %v5848 = vmax.f32 %v5535, 0.0
      %v5849 = vmax.f32 %v5704, 0.0
      %v5850 = vmax.f32 %v5537, 0.0
      %v5851 = vmax.f32 %v5706, 0.0
      %v5852 = vmax.f32 %v5540, 0.0
      %v5853 = vmax.f32 %v5709, 0.0
      %v5854 = vmax.f32 %v5542, 0.0
      %v5855 = vmax.f32 %v5711, 0.0
      %v5856 = vmax.f32 %v5545, 0.0
      %v5857 = vmax.f32 %v5714, 0.0
      %v5858 = vmax.f32 %v5547, 0.0
      %v5859 = vmax.f32 %v5716, 0.0
      %v5860 = vmax.f32 %v5550, 0.0
      %v5861 = vmax.f32 %v5719, 0.0
      %v5862 = vmax.f32 %v5552, 0.0
      %v5863 = vmax.f32 %v5721, 0.0
      %v5864 = vmax.f32 %v5555, 0.0
      %v5865 = vmax.f32 %v5724, 0.0
      %v5866 = vmax.f32 %v5557, 0.0
      %v5867 = vmax.f32 %v5726, 0.0
      %v5868 = vmax.f32 %v5560, 0.0
      %v5869 = vmax.f32 %v5729, 0.0
      %v5870 = vmax.f32 %v5562, 0.0
      %v5871 = vmax.f32 %v5731, 0.0
      %v5872 = vmax.f32 %v5565, 0.0
      %v5873 = vmax.f32 %v5734, 0.0
      %v5874 = vmax.f32 %v5567, 0.0
      %v5875 = vmax.f32 %v5736, 0.0
      %v5876 = vmax.f32 %v5570, 0.0
      %v5877 = vmax.f32 %v5739, 0.0
      %v5878 = vmax.f32 %v5572, 0.0
      %v5879 = vmax.f32 %v5741, 0.0
      %v5880 = vmax.f32 %v5575, 0.0
      %v5881 = vmax.f32 %v5744, 0.0
      %v5882 = vmax.f32 %v5577, 0.0
      %v5883 = vmax.f32 %v5746, 0.0
      %v5884 = vmax.f32 %v5580, 0.0
      %v5885 = vmax.f32 %v5749, 0.0
      %v5886 = vmax.f32 %v5582, 0.0
      %v5887 = vmax.f32 %v5751, 0.0
      %v5888 = vmax.f32 %v5585, 0.0
      %v5889 = vmax.f32 %v5754, 0.0
      %v5890 = vmax.f32 %v5587, 0.0
      %v5891 = vmax.f32 %v5756, 0.0
      %v5892 = vmax.f32 %v5590, 0.0
      %v5893 = vmax.f32 %v5759, 0.0
      %v5894 = vmax.f32 %v5592, 0.0
      %v5895 = vmax.f32 %v5761, 0.0
      %v5896 = vmax.f32 %v5595, 0.0
      %v5897 = vmax.f32 %v5764, 0.0
      %v5898 = vmax.f32 %v5597, 0.0
      %v5899 = vmax.f32 %v5766, 0.0
      %v5900 = vmax.f32 %v5600, 0.0
      %v5901 = vmax.f32 %v5769, 0.0
      %v5902 = vmax.f32 %v5602, 0.0
      %v5903 = vmax.f32 %v5771, 0.0
      %v5904 = vmax.f32 %v5605, 0.0
      %v5905 = vmax.f32 %v5774, 0.0
      %v5906 = vmax.f32 %v5607, 0.0
      %v5907 = vmax.f32 %v5776, 0.0
      %v5908 = vmax.f32 %v5610, 0.0
      %v5909 = vmax.f32 %v5779, 0.0
      %v5910 = vmax.f32 %v5612, 0.0
      %v5911 = vmax.f32 %v5781, 0.0
      %v5912 = vmax.f32 %v5615, 0.0
      %v5913 = vmax.f32 %v5784, 0.0
      %v5914 = vmax.f32 %v5617, 0.0
      %v5915 = vmax.f32 %v5786, 0.0
      %v5916 = vpack.c.bf16 %v5790, %v5788
      %v5917 = vpack.c.bf16 %v5791, %v5789
      %v5918 = vpack.c.bf16 %v5794, %v5792
      %v5919 = vpack.c.bf16 %v5795, %v5793
      %v5920 = vpack.c.bf16 %v5798, %v5796
      %v5921 = vpack.c.bf16 %v5799, %v5797
      %v5922 = vpack.c.bf16 %v5802, %v5800
      %v5923 = vpack.c.bf16 %v5803, %v5801
      %v5924 = vpack.c.bf16 %v5806, %v5804
      %v5925 = vpack.c.bf16 %v5807, %v5805
      %v5926 = vpack.c.bf16 %v5810, %v5808
      %v5927 = vpack.c.bf16 %v5811, %v5809
      %v5928 = vpack.c.bf16 %v5814, %v5812
      %v5929 = vpack.c.bf16 %v5815, %v5813
      %v5930 = vpack.c.bf16 %v5818, %v5816
      %v5931 = vpack.c.bf16 %v5819, %v5817
      %v5932 = vpack.c.bf16 %v5822, %v5820
      %v5933 = vpack.c.bf16 %v5823, %v5821
      %v5934 = vpack.c.bf16 %v5826, %v5824
      %v5935 = vpack.c.bf16 %v5827, %v5825
      %v5936 = vpack.c.bf16 %v5830, %v5828
      %v5937 = vpack.c.bf16 %v5831, %v5829
      %v5938 = vpack.c.bf16 %v5834, %v5832
      %v5939 = vpack.c.bf16 %v5835, %v5833
      %v5940 = vpack.c.bf16 %v5838, %v5836
      %v5941 = vpack.c.bf16 %v5839, %v5837
      %v5942 = vpack.c.bf16 %v5842, %v5840
      %v5943 = vpack.c.bf16 %v5843, %v5841
      %v5944 = vpack.c.bf16 %v5846, %v5844
      %v5945 = vpack.c.bf16 %v5847, %v5845
      %v5946 = vpack.c.bf16 %v5850, %v5848
      %v5947 = vpack.c.bf16 %v5851, %v5849
      %v5948 = vpack.c.bf16 %v5854, %v5852
      %v5949 = vpack.c.bf16 %v5855, %v5853
      %v5950 = vpack.c.bf16 %v5858, %v5856
      %v5951 = vpack.c.bf16 %v5859, %v5857
      %v5952 = vpack.c.bf16 %v5862, %v5860
      %v5953 = vpack.c.bf16 %v5863, %v5861
      %v5954 = vpack.c.bf16 %v5866, %v5864
      %v5955 = vpack.c.bf16 %v5867, %v5865
      %v5956 = vpack.c.bf16 %v5870, %v5868
      %v5957 = vpack.c.bf16 %v5871, %v5869
      %v5958 = vpack.c.bf16 %v5874, %v5872
      %v5959 = vpack.c.bf16 %v5875, %v5873
      %v5960 = vpack.c.bf16 %v5878, %v5876
      %v5961 = vpack.c.bf16 %v5879, %v5877
      %v5962 = vpack.c.bf16 %v5882, %v5880
      %v5963 = vpack.c.bf16 %v5883, %v5881
      %v5964 = vpack.c.bf16 %v5886, %v5884
      %v5965 = vpack.c.bf16 %v5887, %v5885
      %v5966 = vpack.c.bf16 %v5890, %v5888
      %v5967 = vpack.c.bf16 %v5891, %v5889
      %v5968 = vpack.c.bf16 %v5894, %v5892
      %v5969 = vpack.c.bf16 %v5895, %v5893
      %v5970 = vpack.c.bf16 %v5898, %v5896
      %v5971 = vpack.c.bf16 %v5899, %v5897
      %v5972 = vpack.c.bf16 %v5902, %v5900
      %v5973 = vpack.c.bf16 %v5903, %v5901
      %v5974 = vpack.c.bf16 %v5906, %v5904
      %v5975 = vpack.c.bf16 %v5907, %v5905
      %v5976 = vpack.c.bf16 %v5910, %v5908
      %v5977 = vpack.c.bf16 %v5911, %v5909
      %v5978 = vpack.c.bf16 %v5914, %v5912
      %v5979 = vpack.c.bf16 %v5915, %v5913
      %v5980 = vld [vmem:[%s10] sm:$0xff]
      %v5981 = vld [vmem:[%s10 + $0x8] sm:$0xff]
      %v5982 = vld [vmem:[%s10 + $0x10] sm:$0xff]
      %v5983 = vld [vmem:[%s10 + $0x18] sm:$0xff]
      %v5984 = vld [vmem:[%s10 + $0x20] sm:$0xff]
      %v5985 = vld [vmem:[%s10 + $0x28] sm:$0xff]
      %v5986 = vld [vmem:[%s10 + $0x30] sm:$0xff]
      %v5987 = vld [vmem:[%s10 + $0x38] sm:$0xff]
      %v5988 = vld [vmem:[%s10 + $0x40] sm:$0xff]
      %v5989 = vld [vmem:[%s10 + $0x48] sm:$0xff]
      %v5990 = vld [vmem:[%s10 + $0x50] sm:$0xff]
      %v5991 = vld [vmem:[%s10 + $0x58] sm:$0xff]
      %v5992 = vld [vmem:[%s10 + $0x60] sm:$0xff]
      %v5993 = vld [vmem:[%s10 + $0x68] sm:$0xff]
      %v5994 = vld [vmem:[%s10 + $0x70] sm:$0xff]
      %v5995 = vld [vmem:[%s10 + $0x78] sm:$0xff]
      %v5996 = vld [vmem:[%s10 + $0x80] sm:$0xff]
      %v5997 = vld [vmem:[%s10 + $0x88] sm:$0xff]
      %v5998 = vld [vmem:[%s10 + $0x90] sm:$0xff]
      %v5999 = vld [vmem:[%s10 + $0x98] sm:$0xff]
      %v6000 = vld [vmem:[%s10 + $0xa0] sm:$0xff]
      %v6001 = vld [vmem:[%s10 + $0xa8] sm:$0xff]
      %v6002 = vld [vmem:[%s10 + $0xb0] sm:$0xff]
      %v6003 = vld [vmem:[%s10 + $0xb8] sm:$0xff]
      %v6004 = vld [vmem:[%s10 + $0xc0] sm:$0xff]
      %v6005 = vld [vmem:[%s10 + $0xc8] sm:$0xff]
      %v6006 = vld [vmem:[%s10 + $0xd0] sm:$0xff]
      %v6007 = vld [vmem:[%s10 + $0xd8] sm:$0xff]
      %v6008 = vld [vmem:[%s10 + $0xe0] sm:$0xff]
      %v6009 = vld [vmem:[%s10 + $0xe8] sm:$0xff]
      %v6010 = vld [vmem:[%s10 + $0xf0] sm:$0xff]
      %v6011 = vld [vmem:[%s10 + $0xf8] sm:$0xff]
      %v6012 = vld [vmem:[%s10 + $0x100] sm:$0xff]
      %v6013 = vld [vmem:[%s10 + $0x108] sm:$0xff]
      %v6014 = vld [vmem:[%s10 + $0x110] sm:$0xff]
      %v6015 = vld [vmem:[%s10 + $0x118] sm:$0xff]
      %v6016 = vld [vmem:[%s10 + $0x120] sm:$0xff]
      %v6017 = vld [vmem:[%s10 + $0x128] sm:$0xff]
      %v6018 = vld [vmem:[%s10 + $0x130] sm:$0xff]
      %v6019 = vld [vmem:[%s10 + $0x138] sm:$0xff]
      %v6020 = vld [vmem:[%s10 + $0x140] sm:$0xff]
      %v6021 = vld [vmem:[%s10 + $0x148] sm:$0xff]
      %v6022 = vld [vmem:[%s10 + $0x150] sm:$0xff]
      %v6023 = vld [vmem:[%s10 + $0x158] sm:$0xff]
      %v6024 = vld [vmem:[%s10 + $0x160] sm:$0xff]
      %v6025 = vld [vmem:[%s10 + $0x168] sm:$0xff]
      %v6026 = vld [vmem:[%s10 + $0x170] sm:$0xff]
      %v6027 = vld [vmem:[%s10 + $0x178] sm:$0xff]
      %v6028 = vld [vmem:[%s10 + $0x180] sm:$0xff]
      %v6029 = vld [vmem:[%s10 + $0x188] sm:$0xff]
      %v6030 = vld [vmem:[%s10 + $0x190] sm:$0xff]
      %v6031 = vld [vmem:[%s10 + $0x198] sm:$0xff]
      %v6032 = vld [vmem:[%s10 + $0x1a0] sm:$0xff]
      %v6033 = vld [vmem:[%s10 + $0x1a8] sm:$0xff]
      %v6034 = vld [vmem:[%s10 + $0x1b0] sm:$0xff]
      %v6035 = vld [vmem:[%s10 + $0x1b8] sm:$0xff]
      %v6036 = vld [vmem:[%s10 + $0x1c0] sm:$0xff]
      %v6037 = vld [vmem:[%s10 + $0x1c8] sm:$0xff]
      %v6038 = vld [vmem:[%s10 + $0x1d0] sm:$0xff]
      %v6039 = vld [vmem:[%s10 + $0x1d8] sm:$0xff]
      %v6040 = vld [vmem:[%s10 + $0x1e0] sm:$0xff]
      %v6041 = vld [vmem:[%s10 + $0x1e8] sm:$0xff]
      %v6042 = vld [vmem:[%s10 + $0x1f0] sm:$0xff]
      %v6043 = vld [vmem:[%s10 + $0x1f8] sm:$0xff]
      %v6044 = vld [vmem:[%s11] sm:$0xf]
      %v6046 = vperm.slane %v6044, 0
      %v6047 = vperm.slane %v6044, 1
      %v6048 = vperm.slane %v6044, 2
      %v6049 = vperm.slane %v6044, 3
      %v6118 = vunpack.c.l.b16 %v5980
      %v6119 = vunpack.c.h.b16 %v5980
      %v6120 = vunpack.c.l.b16 %v5981
      %v6121 = vunpack.c.h.b16 %v5981
      %v6122 = vunpack.c.l.b16 %v5982
      %v6123 = vunpack.c.h.b16 %v5982
      %v6124 = vunpack.c.l.b16 %v5983
      %v6125 = vunpack.c.h.b16 %v5983
      %v6126 = vunpack.c.l.b16 %v5984
      %v6127 = vunpack.c.h.b16 %v5984
      %v6128 = vunpack.c.l.b16 %v5985
      %v6129 = vunpack.c.h.b16 %v5985
      %v6130 = vunpack.c.l.b16 %v5986
      %v6131 = vunpack.c.h.b16 %v5986
      %v6132 = vunpack.c.l.b16 %v5987
      %v6133 = vunpack.c.h.b16 %v5987
      %v6134 = vunpack.c.l.b16 %v5988
      %v6135 = vunpack.c.h.b16 %v5988
      %v6136 = vunpack.c.l.b16 %v5989
      %v6137 = vunpack.c.h.b16 %v5989
      %v6138 = vunpack.c.l.b16 %v5990
      %v6139 = vunpack.c.h.b16 %v5990
      %v6140 = vunpack.c.l.b16 %v5991
      %v6141 = vunpack.c.h.b16 %v5991
      %v6142 = vunpack.c.l.b16 %v5992
      %v6143 = vunpack.c.h.b16 %v5992
      %v6144 = vunpack.c.l.b16 %v5993
      %v6145 = vunpack.c.h.b16 %v5993
      %v6146 = vunpack.c.l.b16 %v5994
      %v6147 = vunpack.c.h.b16 %v5994
      %v6148 = vunpack.c.l.b16 %v5995
      %v6149 = vunpack.c.h.b16 %v5995
      %v6150 = vunpack.c.l.b16 %v5996
      %v6151 = vunpack.c.h.b16 %v5996
      %v6152 = vunpack.c.l.b16 %v5997
      %v6153 = vunpack.c.h.b16 %v5997
      %v6154 = vunpack.c.l.b16 %v5998
      %v6155 = vunpack.c.h.b16 %v5998
      %v6156 = vunpack.c.l.b16 %v5999
      %v6157 = vunpack.c.h.b16 %v5999
      %v6158 = vunpack.c.l.b16 %v6000
      %v6159 = vunpack.c.h.b16 %v6000
      %v6160 = vunpack.c.l.b16 %v6001
      %v6161 = vunpack.c.h.b16 %v6001
      %v6162 = vunpack.c.l.b16 %v6002
      %v6163 = vunpack.c.h.b16 %v6002
      %v6164 = vunpack.c.l.b16 %v6003
      %v6165 = vunpack.c.h.b16 %v6003
      %v6166 = vunpack.c.l.b16 %v6004
      %v6167 = vunpack.c.h.b16 %v6004
      %v6168 = vunpack.c.l.b16 %v6005
      %v6169 = vunpack.c.h.b16 %v6005
      %v6170 = vunpack.c.l.b16 %v6006
      %v6171 = vunpack.c.h.b16 %v6006
      %v6172 = vunpack.c.l.b16 %v6007
      %v6173 = vunpack.c.h.b16 %v6007
      %v6174 = vunpack.c.l.b16 %v6008
      %v6175 = vunpack.c.h.b16 %v6008
      %v6176 = vunpack.c.l.b16 %v6009
      %v6177 = vunpack.c.h.b16 %v6009
      %v6178 = vunpack.c.l.b16 %v6010
      %v6179 = vunpack.c.h.b16 %v6010
      %v6180 = vunpack.c.l.b16 %v6011
      %v6181 = vunpack.c.h.b16 %v6011
      %v6182 = vunpack.c.l.b16 %v6012
      %v6183 = vunpack.c.h.b16 %v6012
      %v6184 = vunpack.c.l.b16 %v6013
      %v6185 = vunpack.c.h.b16 %v6013
      %v6186 = vunpack.c.l.b16 %v6014
      %v6187 = vunpack.c.h.b16 %v6014
      %v6188 = vunpack.c.l.b16 %v6015
      %v6189 = vunpack.c.h.b16 %v6015
      %v6190 = vunpack.c.l.b16 %v6016
      %v6191 = vunpack.c.h.b16 %v6016
      %v6192 = vunpack.c.l.b16 %v6017
      %v6193 = vunpack.c.h.b16 %v6017
      %v6194 = vunpack.c.l.b16 %v6018
      %v6195 = vunpack.c.h.b16 %v6018
      %v6196 = vunpack.c.l.b16 %v6019
      %v6197 = vunpack.c.h.b16 %v6019
      %v6198 = vunpack.c.l.b16 %v6020
      %v6199 = vunpack.c.h.b16 %v6020
      %v6200 = vunpack.c.l.b16 %v6021
      %v6201 = vunpack.c.h.b16 %v6021
      %v6202 = vunpack.c.l.b16 %v6022
      %v6203 = vunpack.c.h.b16 %v6022
      %v6204 = vunpack.c.l.b16 %v6023
      %v6205 = vunpack.c.h.b16 %v6023
      %v6206 = vunpack.c.l.b16 %v6024
      %v6207 = vunpack.c.h.b16 %v6024
      %v6208 = vunpack.c.l.b16 %v6025
      %v6209 = vunpack.c.h.b16 %v6025
      %v6210 = vunpack.c.l.b16 %v6026
      %v6211 = vunpack.c.h.b16 %v6026
      %v6212 = vunpack.c.l.b16 %v6027
      %v6213 = vunpack.c.h.b16 %v6027
      %v6214 = vunpack.c.l.b16 %v6028
      %v6215 = vunpack.c.h.b16 %v6028
      %v6216 = vunpack.c.l.b16 %v6029
      %v6217 = vunpack.c.h.b16 %v6029
      %v6218 = vunpack.c.l.b16 %v6030
      %v6219 = vunpack.c.h.b16 %v6030
      %v6220 = vunpack.c.l.b16 %v6031
      %v6221 = vunpack.c.h.b16 %v6031
      %v6222 = vunpack.c.l.b16 %v6032
      %v6223 = vunpack.c.h.b16 %v6032
      %v6224 = vunpack.c.l.b16 %v6033
      %v6225 = vunpack.c.h.b16 %v6033
      %v6226 = vunpack.c.l.b16 %v6034
      %v6227 = vunpack.c.h.b16 %v6034
      %v6228 = vunpack.c.l.b16 %v6035
      %v6229 = vunpack.c.h.b16 %v6035
      %v6230 = vunpack.c.l.b16 %v6036
      %v6231 = vunpack.c.h.b16 %v6036
      %v6232 = vunpack.c.l.b16 %v6037
      %v6233 = vunpack.c.h.b16 %v6037
      %v6234 = vunpack.c.l.b16 %v6038
      %v6235 = vunpack.c.h.b16 %v6038
      %v6236 = vunpack.c.l.b16 %v6039
      %v6237 = vunpack.c.h.b16 %v6039
      %v6238 = vunpack.c.l.b16 %v6040
      %v6239 = vunpack.c.h.b16 %v6040
      %v6240 = vunpack.c.l.b16 %v6041
      %v6241 = vunpack.c.h.b16 %v6041
      %v6242 = vunpack.c.l.b16 %v6042
      %v6243 = vunpack.c.h.b16 %v6042
      %v6244 = vunpack.c.l.b16 %v6043
      %v6245 = vunpack.c.h.b16 %v6043
      %v6246 = vpack.c.b16 %v6122, %v6118
      %v6247 = vpack.c.b16 %v6123, %v6119
      %v6248 = vpack.c.b16 %v6124, %v6120
      %v6249 = vpack.c.b16 %v6125, %v6121
      %v6250 = vpack.c.b16 %v6130, %v6126
      %v6251 = vpack.c.b16 %v6131, %v6127
      %v6252 = vpack.c.b16 %v6132, %v6128
      %v6253 = vpack.c.b16 %v6133, %v6129
      %v6254 = vpack.c.b16 %v6138, %v6134
      %v6255 = vpack.c.b16 %v6139, %v6135
      %v6256 = vpack.c.b16 %v6140, %v6136
      %v6257 = vpack.c.b16 %v6141, %v6137
      %v6258 = vpack.c.b16 %v6146, %v6142
      %v6259 = vpack.c.b16 %v6147, %v6143
      %v6260 = vpack.c.b16 %v6148, %v6144
      %v6261 = vpack.c.b16 %v6149, %v6145
      %v6262 = vpack.c.b16 %v6154, %v6150
      %v6263 = vpack.c.b16 %v6155, %v6151
      %v6264 = vpack.c.b16 %v6156, %v6152
      %v6265 = vpack.c.b16 %v6157, %v6153
      %v6266 = vpack.c.b16 %v6162, %v6158
      %v6267 = vpack.c.b16 %v6163, %v6159
      %v6268 = vpack.c.b16 %v6164, %v6160
      %v6269 = vpack.c.b16 %v6165, %v6161
      %v6270 = vpack.c.b16 %v6170, %v6166
      %v6271 = vpack.c.b16 %v6171, %v6167
      %v6272 = vpack.c.b16 %v6172, %v6168
      %v6273 = vpack.c.b16 %v6173, %v6169
      %v6274 = vpack.c.b16 %v6178, %v6174
      %v6275 = vpack.c.b16 %v6179, %v6175
      %v6276 = vpack.c.b16 %v6180, %v6176
      %v6277 = vpack.c.b16 %v6181, %v6177
      %v6278 = vpack.c.b16 %v6186, %v6182
      %v6279 = vpack.c.b16 %v6187, %v6183
      %v6280 = vpack.c.b16 %v6188, %v6184
      %v6281 = vpack.c.b16 %v6189, %v6185
      %v6282 = vpack.c.b16 %v6194, %v6190
      %v6283 = vpack.c.b16 %v6195, %v6191
      %v6284 = vpack.c.b16 %v6196, %v6192
      %v6285 = vpack.c.b16 %v6197, %v6193
      %v6286 = vpack.c.b16 %v6202, %v6198
      %v6287 = vpack.c.b16 %v6203, %v6199
      %v6288 = vpack.c.b16 %v6204, %v6200
      %v6289 = vpack.c.b16 %v6205, %v6201
      %v6290 = vpack.c.b16 %v6210, %v6206
      %v6291 = vpack.c.b16 %v6211, %v6207
      %v6292 = vpack.c.b16 %v6212, %v6208
      %v6293 = vpack.c.b16 %v6213, %v6209
      %v6294 = vpack.c.b16 %v6218, %v6214
      %v6295 = vpack.c.b16 %v6219, %v6215
      %v6296 = vpack.c.b16 %v6220, %v6216
      %v6297 = vpack.c.b16 %v6221, %v6217
      %v6298 = vpack.c.b16 %v6226, %v6222
      %v6299 = vpack.c.b16 %v6227, %v6223
      %v6300 = vpack.c.b16 %v6228, %v6224
      %v6301 = vpack.c.b16 %v6229, %v6225
      %v6302 = vpack.c.b16 %v6234, %v6230
      %v6303 = vpack.c.b16 %v6235, %v6231
      %v6304 = vpack.c.b16 %v6236, %v6232
      %v6305 = vpack.c.b16 %v6237, %v6233
      %v6306 = vpack.c.b16 %v6242, %v6238
      %v6307 = vpack.c.b16 %v6243, %v6239
      %v6308 = vpack.c.b16 %v6244, %v6240
      %v6309 = vpack.c.b16 %v6245, %v6241
      %6374 = vmatpush.bf16.msra.mxu0 %v6274
      %6375 = vmatpush.bf16.msra.mxu0 %v6270
      %6376 = vmatpush.bf16.msra.mxu0 %v6266
      %6377 = vmatpush.bf16.msra.mxu0 %v6262
      %6378 = vmatpush.bf16.msra.mxu0 %v6258
      %6379 = vmatpush.bf16.msra.mxu0 %v6254
      %6380 = vmatpush.bf16.msra.mxu0 %v6250
      %6381 = vmatpush.bf16.msra.mxu0 %v6246
      %6382 = vmatmul.bf16.gmra.mxu0 %v5916
      %v6383 = vpop.f32.mrf.mxu0
      %v6384 = vadd.f32 %v6046, %v6383
      %v6385 = vpop.f32.mrf.mxu0
      %v6386 = vadd.f32 %v6046, %v6385
      %6387 = vmatmul.bf16.gmra.mxu0 %v5918
      %v6388 = vpop.f32.mrf.mxu0
      %v6389 = vadd.f32 %v6046, %v6388
      %v6390 = vpop.f32.mrf.mxu0
      %v6391 = vadd.f32 %v6046, %v6390
      %6392 = vmatmul.bf16.gmra.mxu0 %v5920
      %v6393 = vpop.f32.mrf.mxu0
      %v6394 = vadd.f32 %v6046, %v6393
      %v6395 = vpop.f32.mrf.mxu0
      %v6396 = vadd.f32 %v6046, %v6395
      %6397 = vmatmul.bf16.gmra.mxu0 %v5922
      %v6398 = vpop.f32.mrf.mxu0
      %v6399 = vadd.f32 %v6046, %v6398
      %v6400 = vpop.f32.mrf.mxu0
      %v6401 = vadd.f32 %v6046, %v6400
      %6402 = vmatmul.bf16.gmra.mxu0 %v5924
      %v6403 = vpop.f32.mrf.mxu0
      %v6404 = vadd.f32 %v6046, %v6403
      %v6405 = vpop.f32.mrf.mxu0
      %v6406 = vadd.f32 %v6046, %v6405
      %6407 = vmatmul.bf16.gmra.mxu0 %v5926
      %v6408 = vpop.f32.mrf.mxu0
      %v6409 = vadd.f32 %v6046, %v6408
      %v6410 = vpop.f32.mrf.mxu0
      %v6411 = vadd.f32 %v6046, %v6410
      %6412 = vmatmul.bf16.gmra.mxu0 %v5928
      %v6413 = vpop.f32.mrf.mxu0
      %v6414 = vadd.f32 %v6046, %v6413
      %v6415 = vpop.f32.mrf.mxu0
      %v6416 = vadd.f32 %v6046, %v6415
      %6417 = vmatmul.bf16.gmra.mxu0 %v5930
      %v6418 = vpop.f32.mrf.mxu0
      %v6419 = vadd.f32 %v6046, %v6418
      %v6420 = vpop.f32.mrf.mxu0
      %v6421 = vadd.f32 %v6046, %v6420
      %6422 = vmatmul.bf16.gmra.mxu0 %v5932
      %v6423 = vpop.f32.mrf.mxu0
      %v6424 = vadd.f32 %v6046, %v6423
      %v6425 = vpop.f32.mrf.mxu0
      %v6426 = vadd.f32 %v6046, %v6425
      %6427 = vmatmul.bf16.gmra.mxu0 %v5934
      %v6428 = vpop.f32.mrf.mxu0
      %v6429 = vadd.f32 %v6046, %v6428
      %v6430 = vpop.f32.mrf.mxu0
      %v6431 = vadd.f32 %v6046, %v6430
      %6432 = vmatmul.bf16.gmra.mxu0 %v5936
      %v6433 = vpop.f32.mrf.mxu0
      %v6434 = vadd.f32 %v6046, %v6433
      %v6435 = vpop.f32.mrf.mxu0
      %v6436 = vadd.f32 %v6046, %v6435
      %6437 = vmatmul.bf16.gmra.mxu0 %v5938
      %v6438 = vpop.f32.mrf.mxu0
      %v6439 = vadd.f32 %v6046, %v6438
      %v6440 = vpop.f32.mrf.mxu0
      %v6441 = vadd.f32 %v6046, %v6440
      %6442 = vmatmul.bf16.gmra.mxu0 %v5940
      %v6443 = vpop.f32.mrf.mxu0
      %v6444 = vadd.f32 %v6046, %v6443
      %v6445 = vpop.f32.mrf.mxu0
      %v6446 = vadd.f32 %v6046, %v6445
      %6447 = vmatmul.bf16.gmra.mxu0 %v5942
      %v6448 = vpop.f32.mrf.mxu0
      %v6449 = vadd.f32 %v6046, %v6448
      %v6450 = vpop.f32.mrf.mxu0
      %v6451 = vadd.f32 %v6046, %v6450
      %6452 = vmatmul.bf16.gmra.mxu0 %v5944
      %v6453 = vpop.f32.mrf.mxu0
      %v6454 = vadd.f32 %v6046, %v6453
      %v6455 = vpop.f32.mrf.mxu0
      %v6456 = vadd.f32 %v6046, %v6455
      %6457 = vmatmul.bf16.gmra.mxu0 %v5946
      %v6458 = vpop.f32.mrf.mxu0
      %v6459 = vadd.f32 %v6046, %v6458
      %v6460 = vpop.f32.mrf.mxu0
      %v6461 = vadd.f32 %v6046, %v6460
      %6462 = vmatmul.bf16.gmra.mxu0 %v5948
      %v6463 = vpop.f32.mrf.mxu0
      %v6464 = vadd.f32 %v6046, %v6463
      %v6465 = vpop.f32.mrf.mxu0
      %v6466 = vadd.f32 %v6046, %v6465
      %6467 = vmatmul.bf16.gmra.mxu0 %v5950
      %v6468 = vpop.f32.mrf.mxu0
      %v6469 = vadd.f32 %v6046, %v6468
      %v6470 = vpop.f32.mrf.mxu0
      %v6471 = vadd.f32 %v6046, %v6470
      %6472 = vmatmul.bf16.gmra.mxu0 %v5952
      %v6473 = vpop.f32.mrf.mxu0
      %v6474 = vadd.f32 %v6046, %v6473
      %v6475 = vpop.f32.mrf.mxu0
      %v6476 = vadd.f32 %v6046, %v6475
      %6477 = vmatmul.bf16.gmra.mxu0 %v5954
      %v6478 = vpop.f32.mrf.mxu0
      %v6479 = vadd.f32 %v6046, %v6478
      %v6480 = vpop.f32.mrf.mxu0
      %v6481 = vadd.f32 %v6046, %v6480
      %6482 = vmatmul.bf16.gmra.mxu0 %v5956
      %v6483 = vpop.f32.mrf.mxu0
      %v6484 = vadd.f32 %v6046, %v6483
      %v6485 = vpop.f32.mrf.mxu0
      %v6486 = vadd.f32 %v6046, %v6485
      %6487 = vmatmul.bf16.gmra.mxu0 %v5958
      %v6488 = vpop.f32.mrf.mxu0
      %v6489 = vadd.f32 %v6046, %v6488
      %v6490 = vpop.f32.mrf.mxu0
      %v6491 = vadd.f32 %v6046, %v6490
      %6492 = vmatmul.bf16.gmra.mxu0 %v5960
      %v6493 = vpop.f32.mrf.mxu0
      %v6494 = vadd.f32 %v6046, %v6493
      %v6495 = vpop.f32.mrf.mxu0
      %v6496 = vadd.f32 %v6046, %v6495
      %6497 = vmatmul.bf16.gmra.mxu0 %v5962
      %v6498 = vpop.f32.mrf.mxu0
      %v6499 = vadd.f32 %v6046, %v6498
      %v6500 = vpop.f32.mrf.mxu0
      %v6501 = vadd.f32 %v6046, %v6500
      %6502 = vmatmul.bf16.gmra.mxu0 %v5964
      %v6503 = vpop.f32.mrf.mxu0
      %v6504 = vadd.f32 %v6046, %v6503
      %v6505 = vpop.f32.mrf.mxu0
      %v6506 = vadd.f32 %v6046, %v6505
      %6507 = vmatmul.bf16.gmra.mxu0 %v5966
      %v6508 = vpop.f32.mrf.mxu0
      %v6509 = vadd.f32 %v6046, %v6508
      %v6510 = vpop.f32.mrf.mxu0
      %v6511 = vadd.f32 %v6046, %v6510
      %6512 = vmatmul.bf16.gmra.mxu0 %v5968
      %v6513 = vpop.f32.mrf.mxu0
      %v6514 = vadd.f32 %v6046, %v6513
      %v6515 = vpop.f32.mrf.mxu0
      %v6516 = vadd.f32 %v6046, %v6515
      %6517 = vmatmul.bf16.gmra.mxu0 %v5970
      %v6518 = vpop.f32.mrf.mxu0
      %v6519 = vadd.f32 %v6046, %v6518
      %v6520 = vpop.f32.mrf.mxu0
      %v6521 = vadd.f32 %v6046, %v6520
      %6522 = vmatmul.bf16.gmra.mxu0 %v5972
      %v6523 = vpop.f32.mrf.mxu0
      %v6524 = vadd.f32 %v6046, %v6523
      %v6525 = vpop.f32.mrf.mxu0
      %v6526 = vadd.f32 %v6046, %v6525
      %6527 = vmatmul.bf16.gmra.mxu0 %v5974
      %v6528 = vpop.f32.mrf.mxu0
      %v6529 = vadd.f32 %v6046, %v6528
      %v6530 = vpop.f32.mrf.mxu0
      %v6531 = vadd.f32 %v6046, %v6530
      %6532 = vmatmul.bf16.gmra.mxu0 %v5976
      %v6533 = vpop.f32.mrf.mxu0
      %v6534 = vadd.f32 %v6046, %v6533
      %v6535 = vpop.f32.mrf.mxu0
      %v6536 = vadd.f32 %v6046, %v6535
      %6537 = vmatmul.bf16.gmra.mxu0 %v5978
      %v6538 = vpop.f32.mrf.mxu0
      %v6539 = vadd.f32 %v6046, %v6538
      %v6540 = vpop.f32.mrf.mxu0
      %v6541 = vadd.f32 %v6046, %v6540
      %6542 = vdwg.mxu0
      %6543 = vmatpush.bf16.msra.mxu0 %v6306
      %6544 = vmatpush.bf16.msra.mxu0 %v6302
      %6545 = vmatpush.bf16.msra.mxu0 %v6298
      %6546 = vmatpush.bf16.msra.mxu0 %v6294
      %6547 = vmatpush.bf16.msra.mxu0 %v6290
      %6548 = vmatpush.bf16.msra.mxu0 %v6286
      %6549 = vmatpush.bf16.msra.mxu0 %v6282
      %6550 = vmatpush.bf16.msra.mxu0 %v6278
      %6551 = vmatmul.bf16.gmra.mxu0 %v5917
      %v6552 = vpop.f32.mrf.mxu0
      %v6553 = vadd.f32 %v6384, %v6552
      %v6554 = vpop.f32.mrf.mxu0
      %v6555 = vadd.f32 %v6386, %v6554
      %6556 = vmatmul.bf16.gmra.mxu0 %v5919
      %v6557 = vpop.f32.mrf.mxu0
      %v6558 = vadd.f32 %v6389, %v6557
      %v6559 = vpop.f32.mrf.mxu0
      %v6560 = vadd.f32 %v6391, %v6559
      %6561 = vmatmul.bf16.gmra.mxu0 %v5921
      %v6562 = vpop.f32.mrf.mxu0
      %v6563 = vadd.f32 %v6394, %v6562
      %v6564 = vpop.f32.mrf.mxu0
      %v6565 = vadd.f32 %v6396, %v6564
      %6566 = vmatmul.bf16.gmra.mxu0 %v5923
      %v6567 = vpop.f32.mrf.mxu0
      %v6568 = vadd.f32 %v6399, %v6567
      %v6569 = vpop.f32.mrf.mxu0
      %v6570 = vadd.f32 %v6401, %v6569
      %6571 = vmatmul.bf16.gmra.mxu0 %v5925
      %v6572 = vpop.f32.mrf.mxu0
      %v6573 = vadd.f32 %v6404, %v6572
      %v6574 = vpop.f32.mrf.mxu0
      %v6575 = vadd.f32 %v6406, %v6574
      %6576 = vmatmul.bf16.gmra.mxu0 %v5927
      %v6577 = vpop.f32.mrf.mxu0
      %v6578 = vadd.f32 %v6409, %v6577
      %v6579 = vpop.f32.mrf.mxu0
      %v6580 = vadd.f32 %v6411, %v6579
      %6581 = vmatmul.bf16.gmra.mxu0 %v5929
      %v6582 = vpop.f32.mrf.mxu0
      %v6583 = vadd.f32 %v6414, %v6582
      %v6584 = vpop.f32.mrf.mxu0
      %v6585 = vadd.f32 %v6416, %v6584
      %6586 = vmatmul.bf16.gmra.mxu0 %v5931
      %v6587 = vpop.f32.mrf.mxu0
      %v6588 = vadd.f32 %v6419, %v6587
      %v6589 = vpop.f32.mrf.mxu0
      %v6590 = vadd.f32 %v6421, %v6589
      %6591 = vmatmul.bf16.gmra.mxu0 %v5933
      %v6592 = vpop.f32.mrf.mxu0
      %v6593 = vadd.f32 %v6424, %v6592
      %v6594 = vpop.f32.mrf.mxu0
      %v6595 = vadd.f32 %v6426, %v6594
      %6596 = vmatmul.bf16.gmra.mxu0 %v5935
      %v6597 = vpop.f32.mrf.mxu0
      %v6598 = vadd.f32 %v6429, %v6597
      %v6599 = vpop.f32.mrf.mxu0
      %v6600 = vadd.f32 %v6431, %v6599
      %6601 = vmatmul.bf16.gmra.mxu0 %v5937
      %v6602 = vpop.f32.mrf.mxu0
      %v6603 = vadd.f32 %v6434, %v6602
      %v6604 = vpop.f32.mrf.mxu0
      %v6605 = vadd.f32 %v6436, %v6604
      %6606 = vmatmul.bf16.gmra.mxu0 %v5939
      %v6607 = vpop.f32.mrf.mxu0
      %v6608 = vadd.f32 %v6439, %v6607
      %v6609 = vpop.f32.mrf.mxu0
      %v6610 = vadd.f32 %v6441, %v6609
      %6611 = vmatmul.bf16.gmra.mxu0 %v5941
      %v6612 = vpop.f32.mrf.mxu0
      %v6613 = vadd.f32 %v6444, %v6612
      %v6614 = vpop.f32.mrf.mxu0
      %v6615 = vadd.f32 %v6446, %v6614
      %6616 = vmatmul.bf16.gmra.mxu0 %v5943
      %v6617 = vpop.f32.mrf.mxu0
      %v6618 = vadd.f32 %v6449, %v6617
      %v6619 = vpop.f32.mrf.mxu0
      %v6620 = vadd.f32 %v6451, %v6619
      %6621 = vmatmul.bf16.gmra.mxu0 %v5945
      %v6622 = vpop.f32.mrf.mxu0
      %v6623 = vadd.f32 %v6454, %v6622
      %v6624 = vpop.f32.mrf.mxu0
      %v6625 = vadd.f32 %v6456, %v6624
      %6626 = vmatmul.bf16.gmra.mxu0 %v5947
      %v6627 = vpop.f32.mrf.mxu0
      %v6628 = vadd.f32 %v6459, %v6627
      %v6629 = vpop.f32.mrf.mxu0
      %v6630 = vadd.f32 %v6461, %v6629
      %6631 = vmatmul.bf16.gmra.mxu0 %v5949
      %v6632 = vpop.f32.mrf.mxu0
      %v6633 = vadd.f32 %v6464, %v6632
      %v6634 = vpop.f32.mrf.mxu0
      %v6635 = vadd.f32 %v6466, %v6634
      %6636 = vmatmul.bf16.gmra.mxu0 %v5951
      %v6637 = vpop.f32.mrf.mxu0
      %v6638 = vadd.f32 %v6469, %v6637
      %v6639 = vpop.f32.mrf.mxu0
      %v6640 = vadd.f32 %v6471, %v6639
      %6641 = vmatmul.bf16.gmra.mxu0 %v5953
      %v6642 = vpop.f32.mrf.mxu0
      %v6643 = vadd.f32 %v6474, %v6642
      %v6644 = vpop.f32.mrf.mxu0
      %v6645 = vadd.f32 %v6476, %v6644
      %6646 = vmatmul.bf16.gmra.mxu0 %v5955
      %v6647 = vpop.f32.mrf.mxu0
      %v6648 = vadd.f32 %v6479, %v6647
      %v6649 = vpop.f32.mrf.mxu0
      %v6650 = vadd.f32 %v6481, %v6649
      %6651 = vmatmul.bf16.gmra.mxu0 %v5957
      %v6652 = vpop.f32.mrf.mxu0
      %v6653 = vadd.f32 %v6484, %v6652
      %v6654 = vpop.f32.mrf.mxu0
      %v6655 = vadd.f32 %v6486, %v6654
      %6656 = vmatmul.bf16.gmra.mxu0 %v5959
      %v6657 = vpop.f32.mrf.mxu0
      %v6658 = vadd.f32 %v6489, %v6657
      %v6659 = vpop.f32.mrf.mxu0
      %v6660 = vadd.f32 %v6491, %v6659
      %6661 = vmatmul.bf16.gmra.mxu0 %v5961
      %v6662 = vpop.f32.mrf.mxu0
      %v6663 = vadd.f32 %v6494, %v6662
      %v6664 = vpop.f32.mrf.mxu0
      %v6665 = vadd.f32 %v6496, %v6664
      %6666 = vmatmul.bf16.gmra.mxu0 %v5963
      %v6667 = vpop.f32.mrf.mxu0
      %v6668 = vadd.f32 %v6499, %v6667
      %v6669 = vpop.f32.mrf.mxu0
      %v6670 = vadd.f32 %v6501, %v6669
      %6671 = vmatmul.bf16.gmra.mxu0 %v5965
      %v6672 = vpop.f32.mrf.mxu0
      %v6673 = vadd.f32 %v6504, %v6672
      %v6674 = vpop.f32.mrf.mxu0
      %v6675 = vadd.f32 %v6506, %v6674
      %6676 = vmatmul.bf16.gmra.mxu0 %v5967
      %v6677 = vpop.f32.mrf.mxu0
      %v6678 = vadd.f32 %v6509, %v6677
      %v6679 = vpop.f32.mrf.mxu0
      %v6680 = vadd.f32 %v6511, %v6679
      %6681 = vmatmul.bf16.gmra.mxu0 %v5969
      %v6682 = vpop.f32.mrf.mxu0
      %v6683 = vadd.f32 %v6514, %v6682
      %v6684 = vpop.f32.mrf.mxu0
      %v6685 = vadd.f32 %v6516, %v6684
      %6686 = vmatmul.bf16.gmra.mxu0 %v5971
      %v6687 = vpop.f32.mrf.mxu0
      %v6688 = vadd.f32 %v6519, %v6687
      %v6689 = vpop.f32.mrf.mxu0
      %v6690 = vadd.f32 %v6521, %v6689
      %6691 = vmatmul.bf16.gmra.mxu0 %v5973
      %v6692 = vpop.f32.mrf.mxu0
      %v6693 = vadd.f32 %v6524, %v6692
      %v6694 = vpop.f32.mrf.mxu0
      %v6695 = vadd.f32 %v6526, %v6694
      %6696 = vmatmul.bf16.gmra.mxu0 %v5975
      %v6697 = vpop.f32.mrf.mxu0
      %v6698 = vadd.f32 %v6529, %v6697
      %v6699 = vpop.f32.mrf.mxu0
      %v6700 = vadd.f32 %v6531, %v6699
      %6701 = vmatmul.bf16.gmra.mxu0 %v5977
      %v6702 = vpop.f32.mrf.mxu0
      %v6703 = vadd.f32 %v6534, %v6702
      %v6704 = vpop.f32.mrf.mxu0
      %v6705 = vadd.f32 %v6536, %v6704
      %6706 = vmatmul.bf16.gmra.mxu0 %v5979
      %v6707 = vpop.f32.mrf.mxu0
      %v6708 = vadd.f32 %v6539, %v6707
      %v6709 = vpop.f32.mrf.mxu0
      %v6710 = vadd.f32 %v6541, %v6709
      %6711 = vdwg.mxu0
      %6712 = vmatpush.bf16.msra.mxu0 %v6275
      %6713 = vmatpush.bf16.msra.mxu0 %v6271
      %6714 = vmatpush.bf16.msra.mxu0 %v6267
      %6715 = vmatpush.bf16.msra.mxu0 %v6263
      %6716 = vmatpush.bf16.msra.mxu0 %v6259
      %6717 = vmatpush.bf16.msra.mxu0 %v6255
      %6718 = vmatpush.bf16.msra.mxu0 %v6251
      %6719 = vmatpush.bf16.msra.mxu0 %v6247
      %6720 = vmatmul.bf16.gmra.mxu0 %v5916
      %v6721 = vpop.f32.mrf.mxu0
      %v6722 = vadd.f32 %v6047, %v6721
      %v6723 = vpop.f32.mrf.mxu0
      %v6724 = vadd.f32 %v6047, %v6723
      %6725 = vmatmul.bf16.gmra.mxu0 %v5918
      %v6726 = vpop.f32.mrf.mxu0
      %v6727 = vadd.f32 %v6047, %v6726
      %v6728 = vpop.f32.mrf.mxu0
      %v6729 = vadd.f32 %v6047, %v6728
      %6730 = vmatmul.bf16.gmra.mxu0 %v5920
      %v6731 = vpop.f32.mrf.mxu0
      %v6732 = vadd.f32 %v6047, %v6731
      %v6733 = vpop.f32.mrf.mxu0
      %v6734 = vadd.f32 %v6047, %v6733
      %6735 = vmatmul.bf16.gmra.mxu0 %v5922
      %v6736 = vpop.f32.mrf.mxu0
      %v6737 = vadd.f32 %v6047, %v6736
      %v6738 = vpop.f32.mrf.mxu0
      %v6739 = vadd.f32 %v6047, %v6738
      %6740 = vmatmul.bf16.gmra.mxu0 %v5924
      %v6741 = vpop.f32.mrf.mxu0
      %v6742 = vadd.f32 %v6047, %v6741
      %v6743 = vpop.f32.mrf.mxu0
      %v6744 = vadd.f32 %v6047, %v6743
      %6745 = vmatmul.bf16.gmra.mxu0 %v5926
      %v6746 = vpop.f32.mrf.mxu0
      %v6747 = vadd.f32 %v6047, %v6746
      %v6748 = vpop.f32.mrf.mxu0
      %v6749 = vadd.f32 %v6047, %v6748
      %6750 = vmatmul.bf16.gmra.mxu0 %v5928
      %v6751 = vpop.f32.mrf.mxu0
      %v6752 = vadd.f32 %v6047, %v6751
      %v6753 = vpop.f32.mrf.mxu0
      %v6754 = vadd.f32 %v6047, %v6753
      %6755 = vmatmul.bf16.gmra.mxu0 %v5930
      %v6756 = vpop.f32.mrf.mxu0
      %v6757 = vadd.f32 %v6047, %v6756
      %v6758 = vpop.f32.mrf.mxu0
      %v6759 = vadd.f32 %v6047, %v6758
      %6760 = vmatmul.bf16.gmra.mxu0 %v5932
      %v6761 = vpop.f32.mrf.mxu0
      %v6762 = vadd.f32 %v6047, %v6761
      %v6763 = vpop.f32.mrf.mxu0
      %v6764 = vadd.f32 %v6047, %v6763
      %6765 = vmatmul.bf16.gmra.mxu0 %v5934
      %v6766 = vpop.f32.mrf.mxu0
      %v6767 = vadd.f32 %v6047, %v6766
      %v6768 = vpop.f32.mrf.mxu0
      %v6769 = vadd.f32 %v6047, %v6768
      %6770 = vmatmul.bf16.gmra.mxu0 %v5936
      %v6771 = vpop.f32.mrf.mxu0
      %v6772 = vadd.f32 %v6047, %v6771
      %v6773 = vpop.f32.mrf.mxu0
      %v6774 = vadd.f32 %v6047, %v6773
      %6775 = vmatmul.bf16.gmra.mxu0 %v5938
      %v6776 = vpop.f32.mrf.mxu0
      %v6777 = vadd.f32 %v6047, %v6776
      %v6778 = vpop.f32.mrf.mxu0
      %v6779 = vadd.f32 %v6047, %v6778
      %6780 = vmatmul.bf16.gmra.mxu0 %v5940
      %v6781 = vpop.f32.mrf.mxu0
      %v6782 = vadd.f32 %v6047, %v6781
      %v6783 = vpop.f32.mrf.mxu0
      %v6784 = vadd.f32 %v6047, %v6783
      %6785 = vmatmul.bf16.gmra.mxu0 %v5942
      %v6786 = vpop.f32.mrf.mxu0
      %v6787 = vadd.f32 %v6047, %v6786
      %v6788 = vpop.f32.mrf.mxu0
      %v6789 = vadd.f32 %v6047, %v6788
      %6790 = vmatmul.bf16.gmra.mxu0 %v5944
      %v6791 = vpop.f32.mrf.mxu0
      %v6792 = vadd.f32 %v6047, %v6791
      %v6793 = vpop.f32.mrf.mxu0
      %v6794 = vadd.f32 %v6047, %v6793
      %6795 = vmatmul.bf16.gmra.mxu0 %v5946
      %v6796 = vpop.f32.mrf.mxu0
      %v6797 = vadd.f32 %v6047, %v6796
      %v6798 = vpop.f32.mrf.mxu0
      %v6799 = vadd.f32 %v6047, %v6798
      %6800 = vmatmul.bf16.gmra.mxu0 %v5948
      %v6801 = vpop.f32.mrf.mxu0
      %v6802 = vadd.f32 %v6047, %v6801
      %v6803 = vpop.f32.mrf.mxu0
      %v6804 = vadd.f32 %v6047, %v6803
      %6805 = vmatmul.bf16.gmra.mxu0 %v5950
      %v6806 = vpop.f32.mrf.mxu0
      %v6807 = vadd.f32 %v6047, %v6806
      %v6808 = vpop.f32.mrf.mxu0
      %v6809 = vadd.f32 %v6047, %v6808
      %6810 = vmatmul.bf16.gmra.mxu0 %v5952
      %v6811 = vpop.f32.mrf.mxu0
      %v6812 = vadd.f32 %v6047, %v6811
      %v6813 = vpop.f32.mrf.mxu0
      %v6814 = vadd.f32 %v6047, %v6813
      %6815 = vmatmul.bf16.gmra.mxu0 %v5954
      %v6816 = vpop.f32.mrf.mxu0
      %v6817 = vadd.f32 %v6047, %v6816
      %v6818 = vpop.f32.mrf.mxu0
      %v6819 = vadd.f32 %v6047, %v6818
      %6820 = vmatmul.bf16.gmra.mxu0 %v5956
      %v6821 = vpop.f32.mrf.mxu0
      %v6822 = vadd.f32 %v6047, %v6821
      %v6823 = vpop.f32.mrf.mxu0
      %v6824 = vadd.f32 %v6047, %v6823
      %6825 = vmatmul.bf16.gmra.mxu0 %v5958
      %v6826 = vpop.f32.mrf.mxu0
      %v6827 = vadd.f32 %v6047, %v6826
      %v6828 = vpop.f32.mrf.mxu0
      %v6829 = vadd.f32 %v6047, %v6828
      %6830 = vmatmul.bf16.gmra.mxu0 %v5960
      %v6831 = vpop.f32.mrf.mxu0
      %v6832 = vadd.f32 %v6047, %v6831
      %v6833 = vpop.f32.mrf.mxu0
      %v6834 = vadd.f32 %v6047, %v6833
      %6835 = vmatmul.bf16.gmra.mxu0 %v5962
      %v6836 = vpop.f32.mrf.mxu0
      %v6837 = vadd.f32 %v6047, %v6836
      %v6838 = vpop.f32.mrf.mxu0
      %v6839 = vadd.f32 %v6047, %v6838
      %6840 = vmatmul.bf16.gmra.mxu0 %v5964
      %v6841 = vpop.f32.mrf.mxu0
      %v6842 = vadd.f32 %v6047, %v6841
      %v6843 = vpop.f32.mrf.mxu0
      %v6844 = vadd.f32 %v6047, %v6843
      %6845 = vmatmul.bf16.gmra.mxu0 %v5966
      %v6846 = vpop.f32.mrf.mxu0
      %v6847 = vadd.f32 %v6047, %v6846
      %v6848 = vpop.f32.mrf.mxu0
      %v6849 = vadd.f32 %v6047, %v6848
      %6850 = vmatmul.bf16.gmra.mxu0 %v5968
      %v6851 = vpop.f32.mrf.mxu0
      %v6852 = vadd.f32 %v6047, %v6851
      %v6853 = vpop.f32.mrf.mxu0
      %v6854 = vadd.f32 %v6047, %v6853
      %6855 = vmatmul.bf16.gmra.mxu0 %v5970
      %v6856 = vpop.f32.mrf.mxu0
      %v6857 = vadd.f32 %v6047, %v6856
      %v6858 = vpop.f32.mrf.mxu0
      %v6859 = vadd.f32 %v6047, %v6858
      %6860 = vmatmul.bf16.gmra.mxu0 %v5972
      %v6861 = vpop.f32.mrf.mxu0
      %v6862 = vadd.f32 %v6047, %v6861
      %v6863 = vpop.f32.mrf.mxu0
      %v6864 = vadd.f32 %v6047, %v6863
      %6865 = vmatmul.bf16.gmra.mxu0 %v5974
      %v6866 = vpop.f32.mrf.mxu0
      %v6867 = vadd.f32 %v6047, %v6866
      %v6868 = vpop.f32.mrf.mxu0
      %v6869 = vadd.f32 %v6047, %v6868
      %6870 = vmatmul.bf16.gmra.mxu0 %v5976
      %v6871 = vpop.f32.mrf.mxu0
      %v6872 = vadd.f32 %v6047, %v6871
      %v6873 = vpop.f32.mrf.mxu0
      %v6874 = vadd.f32 %v6047, %v6873
      %6875 = vmatmul.bf16.gmra.mxu0 %v5978
      %v6876 = vpop.f32.mrf.mxu0
      %v6877 = vadd.f32 %v6047, %v6876
      %v6878 = vpop.f32.mrf.mxu0
      %v6879 = vadd.f32 %v6047, %v6878
      %6880 = vdwg.mxu0
      %6881 = vmatpush.bf16.msra.mxu0 %v6307
      %6882 = vmatpush.bf16.msra.mxu0 %v6303
      %6883 = vmatpush.bf16.msra.mxu0 %v6299
      %6884 = vmatpush.bf16.msra.mxu0 %v6295
      %6885 = vmatpush.bf16.msra.mxu0 %v6291
      %6886 = vmatpush.bf16.msra.mxu0 %v6287
      %6887 = vmatpush.bf16.msra.mxu0 %v6283
      %6888 = vmatpush.bf16.msra.mxu0 %v6279
      %6889 = vmatmul.bf16.gmra.mxu0 %v5917
      %v6890 = vpop.f32.mrf.mxu0
      %v6891 = vadd.f32 %v6722, %v6890
      %v6892 = vpop.f32.mrf.mxu0
      %v6893 = vadd.f32 %v6724, %v6892
      %6894 = vmatmul.bf16.gmra.mxu0 %v5919
      %v6895 = vpop.f32.mrf.mxu0
      %v6896 = vadd.f32 %v6727, %v6895
      %v6897 = vpop.f32.mrf.mxu0
      %v6898 = vadd.f32 %v6729, %v6897
      %6899 = vmatmul.bf16.gmra.mxu0 %v5921
      %v6900 = vpop.f32.mrf.mxu0
      %v6901 = vadd.f32 %v6732, %v6900
      %v6902 = vpop.f32.mrf.mxu0
      %v6903 = vadd.f32 %v6734, %v6902
      %6904 = vmatmul.bf16.gmra.mxu0 %v5923
      %v6905 = vpop.f32.mrf.mxu0
      %v6906 = vadd.f32 %v6737, %v6905
      %v6907 = vpop.f32.mrf.mxu0
      %v6908 = vadd.f32 %v6739, %v6907
      %6909 = vmatmul.bf16.gmra.mxu0 %v5925
      %v6910 = vpop.f32.mrf.mxu0
      %v6911 = vadd.f32 %v6742, %v6910
      %v6912 = vpop.f32.mrf.mxu0
      %v6913 = vadd.f32 %v6744, %v6912
      %6914 = vmatmul.bf16.gmra.mxu0 %v5927
      %v6915 = vpop.f32.mrf.mxu0
      %v6916 = vadd.f32 %v6747, %v6915
      %v6917 = vpop.f32.mrf.mxu0
      %v6918 = vadd.f32 %v6749, %v6917
      %6919 = vmatmul.bf16.gmra.mxu0 %v5929
      %v6920 = vpop.f32.mrf.mxu0
      %v6921 = vadd.f32 %v6752, %v6920
      %v6922 = vpop.f32.mrf.mxu0
      %v6923 = vadd.f32 %v6754, %v6922
      %6924 = vmatmul.bf16.gmra.mxu0 %v5931
      %v6925 = vpop.f32.mrf.mxu0
      %v6926 = vadd.f32 %v6757, %v6925
      %v6927 = vpop.f32.mrf.mxu0
      %v6928 = vadd.f32 %v6759, %v6927
      %6929 = vmatmul.bf16.gmra.mxu0 %v5933
      %v6930 = vpop.f32.mrf.mxu0
      %v6931 = vadd.f32 %v6762, %v6930
      %v6932 = vpop.f32.mrf.mxu0
      %v6933 = vadd.f32 %v6764, %v6932
      %6934 = vmatmul.bf16.gmra.mxu0 %v5935
      %v6935 = vpop.f32.mrf.mxu0
      %v6936 = vadd.f32 %v6767, %v6935
      %v6937 = vpop.f32.mrf.mxu0
      %v6938 = vadd.f32 %v6769, %v6937
      %6939 = vmatmul.bf16.gmra.mxu0 %v5937
      %v6940 = vpop.f32.mrf.mxu0
      %v6941 = vadd.f32 %v6772, %v6940
      %v6942 = vpop.f32.mrf.mxu0
      %v6943 = vadd.f32 %v6774, %v6942
      %6944 = vmatmul.bf16.gmra.mxu0 %v5939
      %v6945 = vpop.f32.mrf.mxu0
      %v6946 = vadd.f32 %v6777, %v6945
      %v6947 = vpop.f32.mrf.mxu0
      %v6948 = vadd.f32 %v6779, %v6947
      %6949 = vmatmul.bf16.gmra.mxu0 %v5941
      %v6950 = vpop.f32.mrf.mxu0
      %v6951 = vadd.f32 %v6782, %v6950
      %v6952 = vpop.f32.mrf.mxu0
      %v6953 = vadd.f32 %v6784, %v6952
      %6954 = vmatmul.bf16.gmra.mxu0 %v5943
      %v6955 = vpop.f32.mrf.mxu0
      %v6956 = vadd.f32 %v6787, %v6955
      %v6957 = vpop.f32.mrf.mxu0
      %v6958 = vadd.f32 %v6789, %v6957
      %6959 = vmatmul.bf16.gmra.mxu0 %v5945
      %v6960 = vpop.f32.mrf.mxu0
      %v6961 = vadd.f32 %v6792, %v6960
      %v6962 = vpop.f32.mrf.mxu0
      %v6963 = vadd.f32 %v6794, %v6962
      %6964 = vmatmul.bf16.gmra.mxu0 %v5947
      %v6965 = vpop.f32.mrf.mxu0
      %v6966 = vadd.f32 %v6797, %v6965
      %v6967 = vpop.f32.mrf.mxu0
      %v6968 = vadd.f32 %v6799, %v6967
      %6969 = vmatmul.bf16.gmra.mxu0 %v5949
      %v6970 = vpop.f32.mrf.mxu0
      %v6971 = vadd.f32 %v6802, %v6970
      %v6972 = vpop.f32.mrf.mxu0
      %v6973 = vadd.f32 %v6804, %v6972
      %6974 = vmatmul.bf16.gmra.mxu0 %v5951
      %v6975 = vpop.f32.mrf.mxu0
      %v6976 = vadd.f32 %v6807, %v6975
      %v6977 = vpop.f32.mrf.mxu0
      %v6978 = vadd.f32 %v6809, %v6977
      %6979 = vmatmul.bf16.gmra.mxu0 %v5953
      %v6980 = vpop.f32.mrf.mxu0
      %v6981 = vadd.f32 %v6812, %v6980
      %v6982 = vpop.f32.mrf.mxu0
      %v6983 = vadd.f32 %v6814, %v6982
      %6984 = vmatmul.bf16.gmra.mxu0 %v5955
      %v6985 = vpop.f32.mrf.mxu0
      %v6986 = vadd.f32 %v6817, %v6985
      %v6987 = vpop.f32.mrf.mxu0
      %v6988 = vadd.f32 %v6819, %v6987
      %6989 = vmatmul.bf16.gmra.mxu0 %v5957
      %v6990 = vpop.f32.mrf.mxu0
      %v6991 = vadd.f32 %v6822, %v6990
      %v6992 = vpop.f32.mrf.mxu0
      %v6993 = vadd.f32 %v6824, %v6992
      %6994 = vmatmul.bf16.gmra.mxu0 %v5959
      %v6995 = vpop.f32.mrf.mxu0
      %v6996 = vadd.f32 %v6827, %v6995
      %v6997 = vpop.f32.mrf.mxu0
      %v6998 = vadd.f32 %v6829, %v6997
      %6999 = vmatmul.bf16.gmra.mxu0 %v5961
      %v7000 = vpop.f32.mrf.mxu0
      %v7001 = vadd.f32 %v6832, %v7000
      %v7002 = vpop.f32.mrf.mxu0
      %v7003 = vadd.f32 %v6834, %v7002
      %7004 = vmatmul.bf16.gmra.mxu0 %v5963
      %v7005 = vpop.f32.mrf.mxu0
      %v7006 = vadd.f32 %v6837, %v7005
      %v7007 = vpop.f32.mrf.mxu0
      %v7008 = vadd.f32 %v6839, %v7007
      %7009 = vmatmul.bf16.gmra.mxu0 %v5965
      %v7010 = vpop.f32.mrf.mxu0
      %v7011 = vadd.f32 %v6842, %v7010
      %v7012 = vpop.f32.mrf.mxu0
      %v7013 = vadd.f32 %v6844, %v7012
      %7014 = vmatmul.bf16.gmra.mxu0 %v5967
      %v7015 = vpop.f32.mrf.mxu0
      %v7016 = vadd.f32 %v6847, %v7015
      %v7017 = vpop.f32.mrf.mxu0
      %v7018 = vadd.f32 %v6849, %v7017
      %7019 = vmatmul.bf16.gmra.mxu0 %v5969
      %v7020 = vpop.f32.mrf.mxu0
      %v7021 = vadd.f32 %v6852, %v7020
      %v7022 = vpop.f32.mrf.mxu0
      %v7023 = vadd.f32 %v6854, %v7022
      %7024 = vmatmul.bf16.gmra.mxu0 %v5971
      %v7025 = vpop.f32.mrf.mxu0
      %v7026 = vadd.f32 %v6857, %v7025
      %v7027 = vpop.f32.mrf.mxu0
      %v7028 = vadd.f32 %v6859, %v7027
      %7029 = vmatmul.bf16.gmra.mxu0 %v5973
      %v7030 = vpop.f32.mrf.mxu0
      %v7031 = vadd.f32 %v6862, %v7030
      %v7032 = vpop.f32.mrf.mxu0
      %v7033 = vadd.f32 %v6864, %v7032
      %7034 = vmatmul.bf16.gmra.mxu0 %v5975
      %v7035 = vpop.f32.mrf.mxu0
      %v7036 = vadd.f32 %v6867, %v7035
      %v7037 = vpop.f32.mrf.mxu0
      %v7038 = vadd.f32 %v6869, %v7037
      %7039 = vmatmul.bf16.gmra.mxu0 %v5977
      %v7040 = vpop.f32.mrf.mxu0
      %v7041 = vadd.f32 %v6872, %v7040
      %v7042 = vpop.f32.mrf.mxu0
      %v7043 = vadd.f32 %v6874, %v7042
      %7044 = vmatmul.bf16.gmra.mxu0 %v5979
      %v7045 = vpop.f32.mrf.mxu0
      %v7046 = vadd.f32 %v6877, %v7045
      %v7047 = vpop.f32.mrf.mxu0
      %v7048 = vadd.f32 %v6879, %v7047
      %7049 = vdwg.mxu0
      %7050 = vmatpush.bf16.msra.mxu0 %v6276
      %7051 = vmatpush.bf16.msra.mxu0 %v6272
      %7052 = vmatpush.bf16.msra.mxu0 %v6268
      %7053 = vmatpush.bf16.msra.mxu0 %v6264
      %7054 = vmatpush.bf16.msra.mxu0 %v6260
      %7055 = vmatpush.bf16.msra.mxu0 %v6256
      %7056 = vmatpush.bf16.msra.mxu0 %v6252
      %7057 = vmatpush.bf16.msra.mxu0 %v6248
      %7058 = vmatmul.bf16.gmra.mxu0 %v5916
      %v7059 = vpop.f32.mrf.mxu0
      %v7060 = vadd.f32 %v6048, %v7059
      %v7061 = vpop.f32.mrf.mxu0
      %v7062 = vadd.f32 %v6048, %v7061
      %7063 = vmatmul.bf16.gmra.mxu0 %v5918
      %v7064 = vpop.f32.mrf.mxu0
      %v7065 = vadd.f32 %v6048, %v7064
      %v7066 = vpop.f32.mrf.mxu0
      %v7067 = vadd.f32 %v6048, %v7066
      %7068 = vmatmul.bf16.gmra.mxu0 %v5920
      %v7069 = vpop.f32.mrf.mxu0
      %v7070 = vadd.f32 %v6048, %v7069
      %v7071 = vpop.f32.mrf.mxu0
      %v7072 = vadd.f32 %v6048, %v7071
      %7073 = vmatmul.bf16.gmra.mxu0 %v5922
      %v7074 = vpop.f32.mrf.mxu0
      %v7075 = vadd.f32 %v6048, %v7074
      %v7076 = vpop.f32.mrf.mxu0
      %v7077 = vadd.f32 %v6048, %v7076
      %7078 = vmatmul.bf16.gmra.mxu0 %v5924
      %v7079 = vpop.f32.mrf.mxu0
      %v7080 = vadd.f32 %v6048, %v7079
      %v7081 = vpop.f32.mrf.mxu0
      %v7082 = vadd.f32 %v6048, %v7081
      %7083 = vmatmul.bf16.gmra.mxu0 %v5926
      %v7084 = vpop.f32.mrf.mxu0
      %v7085 = vadd.f32 %v6048, %v7084
      %v7086 = vpop.f32.mrf.mxu0
      %v7087 = vadd.f32 %v6048, %v7086
      %7088 = vmatmul.bf16.gmra.mxu0 %v5928
      %v7089 = vpop.f32.mrf.mxu0
      %v7090 = vadd.f32 %v6048, %v7089
      %v7091 = vpop.f32.mrf.mxu0
      %v7092 = vadd.f32 %v6048, %v7091
      %7093 = vmatmul.bf16.gmra.mxu0 %v5930
      %v7094 = vpop.f32.mrf.mxu0
      %v7095 = vadd.f32 %v6048, %v7094
      %v7096 = vpop.f32.mrf.mxu0
      %v7097 = vadd.f32 %v6048, %v7096
      %7098 = vmatmul.bf16.gmra.mxu0 %v5932
      %v7099 = vpop.f32.mrf.mxu0
      %v7100 = vadd.f32 %v6048, %v7099
      %v7101 = vpop.f32.mrf.mxu0
      %v7102 = vadd.f32 %v6048, %v7101
      %7103 = vmatmul.bf16.gmra.mxu0 %v5934
      %v7104 = vpop.f32.mrf.mxu0
      %v7105 = vadd.f32 %v6048, %v7104
      %v7106 = vpop.f32.mrf.mxu0
      %v7107 = vadd.f32 %v6048, %v7106
      %7108 = vmatmul.bf16.gmra.mxu0 %v5936
      %v7109 = vpop.f32.mrf.mxu0
      %v7110 = vadd.f32 %v6048, %v7109
      %v7111 = vpop.f32.mrf.mxu0
      %v7112 = vadd.f32 %v6048, %v7111
      %7113 = vmatmul.bf16.gmra.mxu0 %v5938
      %v7114 = vpop.f32.mrf.mxu0
      %v7115 = vadd.f32 %v6048, %v7114
      %v7116 = vpop.f32.mrf.mxu0
      %v7117 = vadd.f32 %v6048, %v7116
      %7118 = vmatmul.bf16.gmra.mxu0 %v5940
      %v7119 = vpop.f32.mrf.mxu0
      %v7120 = vadd.f32 %v6048, %v7119
      %v7121 = vpop.f32.mrf.mxu0
      %v7122 = vadd.f32 %v6048, %v7121
      %7123 = vmatmul.bf16.gmra.mxu0 %v5942
      %v7124 = vpop.f32.mrf.mxu0
      %v7125 = vadd.f32 %v6048, %v7124
      %v7126 = vpop.f32.mrf.mxu0
      %v7127 = vadd.f32 %v6048, %v7126
      %7128 = vmatmul.bf16.gmra.mxu0 %v5944
      %v7129 = vpop.f32.mrf.mxu0
      %v7130 = vadd.f32 %v6048, %v7129
      %v7131 = vpop.f32.mrf.mxu0
      %v7132 = vadd.f32 %v6048, %v7131
      %7133 = vmatmul.bf16.gmra.mxu0 %v5946
      %v7134 = vpop.f32.mrf.mxu0
      %v7135 = vadd.f32 %v6048, %v7134
      %v7136 = vpop.f32.mrf.mxu0
      %v7137 = vadd.f32 %v6048, %v7136
      %7138 = vmatmul.bf16.gmra.mxu0 %v5948
      %v7139 = vpop.f32.mrf.mxu0
      %v7140 = vadd.f32 %v6048, %v7139
      %v7141 = vpop.f32.mrf.mxu0
      %v7142 = vadd.f32 %v6048, %v7141
      %7143 = vmatmul.bf16.gmra.mxu0 %v5950
      %v7144 = vpop.f32.mrf.mxu0
      %v7145 = vadd.f32 %v6048, %v7144
      %v7146 = vpop.f32.mrf.mxu0
      %v7147 = vadd.f32 %v6048, %v7146
      %7148 = vmatmul.bf16.gmra.mxu0 %v5952
      %v7149 = vpop.f32.mrf.mxu0
      %v7150 = vadd.f32 %v6048, %v7149
      %v7151 = vpop.f32.mrf.mxu0
      %v7152 = vadd.f32 %v6048, %v7151
      %7153 = vmatmul.bf16.gmra.mxu0 %v5954
      %v7154 = vpop.f32.mrf.mxu0
      %v7155 = vadd.f32 %v6048, %v7154
      %v7156 = vpop.f32.mrf.mxu0
      %v7157 = vadd.f32 %v6048, %v7156
      %7158 = vmatmul.bf16.gmra.mxu0 %v5956
      %v7159 = vpop.f32.mrf.mxu0
      %v7160 = vadd.f32 %v6048, %v7159
      %v7161 = vpop.f32.mrf.mxu0
      %v7162 = vadd.f32 %v6048, %v7161
      %7163 = vmatmul.bf16.gmra.mxu0 %v5958
      %v7164 = vpop.f32.mrf.mxu0
      %v7165 = vadd.f32 %v6048, %v7164
      %v7166 = vpop.f32.mrf.mxu0
      %v7167 = vadd.f32 %v6048, %v7166
      %7168 = vmatmul.bf16.gmra.mxu0 %v5960
      %v7169 = vpop.f32.mrf.mxu0
      %v7170 = vadd.f32 %v6048, %v7169
      %v7171 = vpop.f32.mrf.mxu0
      %v7172 = vadd.f32 %v6048, %v7171
      %7173 = vmatmul.bf16.gmra.mxu0 %v5962
      %v7174 = vpop.f32.mrf.mxu0
      %v7175 = vadd.f32 %v6048, %v7174
      %v7176 = vpop.f32.mrf.mxu0
      %v7177 = vadd.f32 %v6048, %v7176
      %7178 = vmatmul.bf16.gmra.mxu0 %v5964
      %v7179 = vpop.f32.mrf.mxu0
      %v7180 = vadd.f32 %v6048, %v7179
      %v7181 = vpop.f32.mrf.mxu0
      %v7182 = vadd.f32 %v6048, %v7181
      %7183 = vmatmul.bf16.gmra.mxu0 %v5966
      %v7184 = vpop.f32.mrf.mxu0
      %v7185 = vadd.f32 %v6048, %v7184
      %v7186 = vpop.f32.mrf.mxu0
      %v7187 = vadd.f32 %v6048, %v7186
      %7188 = vmatmul.bf16.gmra.mxu0 %v5968
      %v7189 = vpop.f32.mrf.mxu0
      %v7190 = vadd.f32 %v6048, %v7189
      %v7191 = vpop.f32.mrf.mxu0
      %v7192 = vadd.f32 %v6048, %v7191
      %7193 = vmatmul.bf16.gmra.mxu0 %v5970
      %v7194 = vpop.f32.mrf.mxu0
      %v7195 = vadd.f32 %v6048, %v7194
      %v7196 = vpop.f32.mrf.mxu0
      %v7197 = vadd.f32 %v6048, %v7196
      %7198 = vmatmul.bf16.gmra.mxu0 %v5972
      %v7199 = vpop.f32.mrf.mxu0
      %v7200 = vadd.f32 %v6048, %v7199
      %v7201 = vpop.f32.mrf.mxu0
      %v7202 = vadd.f32 %v6048, %v7201
      %7203 = vmatmul.bf16.gmra.mxu0 %v5974
      %v7204 = vpop.f32.mrf.mxu0
      %v7205 = vadd.f32 %v6048, %v7204
      %v7206 = vpop.f32.mrf.mxu0
      %v7207 = vadd.f32 %v6048, %v7206
      %7208 = vmatmul.bf16.gmra.mxu0 %v5976
      %v7209 = vpop.f32.mrf.mxu0
      %v7210 = vadd.f32 %v6048, %v7209
      %v7211 = vpop.f32.mrf.mxu0
      %v7212 = vadd.f32 %v6048, %v7211
      %7213 = vmatmul.bf16.gmra.mxu0 %v5978
      %v7214 = vpop.f32.mrf.mxu0
      %v7215 = vadd.f32 %v6048, %v7214
      %v7216 = vpop.f32.mrf.mxu0
      %v7217 = vadd.f32 %v6048, %v7216
      %7218 = vdwg.mxu0
      %7219 = vmatpush.bf16.msra.mxu0 %v6308
      %7220 = vmatpush.bf16.msra.mxu0 %v6304
      %7221 = vmatpush.bf16.msra.mxu0 %v6300
      %7222 = vmatpush.bf16.msra.mxu0 %v6296
      %7223 = vmatpush.bf16.msra.mxu0 %v6292
      %7224 = vmatpush.bf16.msra.mxu0 %v6288
      %7225 = vmatpush.bf16.msra.mxu0 %v6284
      %7226 = vmatpush.bf16.msra.mxu0 %v6280
      %7227 = vmatmul.bf16.gmra.mxu0 %v5917
      %v7228 = vpop.f32.mrf.mxu0
      %v7229 = vadd.f32 %v7060, %v7228
      %v7230 = vpop.f32.mrf.mxu0
      %v7231 = vadd.f32 %v7062, %v7230
      %7232 = vmatmul.bf16.gmra.mxu0 %v5919
      %v7233 = vpop.f32.mrf.mxu0
      %v7234 = vadd.f32 %v7065, %v7233
      %v7235 = vpop.f32.mrf.mxu0
      %v7236 = vadd.f32 %v7067, %v7235
      %7237 = vmatmul.bf16.gmra.mxu0 %v5921
      %v7238 = vpop.f32.mrf.mxu0
      %v7239 = vadd.f32 %v7070, %v7238
      %v7240 = vpop.f32.mrf.mxu0
      %v7241 = vadd.f32 %v7072, %v7240
      %7242 = vmatmul.bf16.gmra.mxu0 %v5923
      %v7243 = vpop.f32.mrf.mxu0
      %v7244 = vadd.f32 %v7075, %v7243
      %v7245 = vpop.f32.mrf.mxu0
      %v7246 = vadd.f32 %v7077, %v7245
      %7247 = vmatmul.bf16.gmra.mxu0 %v5925
      %v7248 = vpop.f32.mrf.mxu0
      %v7249 = vadd.f32 %v7080, %v7248
      %v7250 = vpop.f32.mrf.mxu0
      %v7251 = vadd.f32 %v7082, %v7250
      %7252 = vmatmul.bf16.gmra.mxu0 %v5927
      %v7253 = vpop.f32.mrf.mxu0
      %v7254 = vadd.f32 %v7085, %v7253
      %v7255 = vpop.f32.mrf.mxu0
      %v7256 = vadd.f32 %v7087, %v7255
      %7257 = vmatmul.bf16.gmra.mxu0 %v5929
      %v7258 = vpop.f32.mrf.mxu0
      %v7259 = vadd.f32 %v7090, %v7258
      %v7260 = vpop.f32.mrf.mxu0
      %v7261 = vadd.f32 %v7092, %v7260
      %7262 = vmatmul.bf16.gmra.mxu0 %v5931
      %v7263 = vpop.f32.mrf.mxu0
      %v7264 = vadd.f32 %v7095, %v7263
      %v7265 = vpop.f32.mrf.mxu0
      %v7266 = vadd.f32 %v7097, %v7265
      %7267 = vmatmul.bf16.gmra.mxu0 %v5933
      %v7268 = vpop.f32.mrf.mxu0
      %v7269 = vadd.f32 %v7100, %v7268
      %v7270 = vpop.f32.mrf.mxu0
      %v7271 = vadd.f32 %v7102, %v7270
      %7272 = vmatmul.bf16.gmra.mxu0 %v5935
      %v7273 = vpop.f32.mrf.mxu0
      %v7274 = vadd.f32 %v7105, %v7273
      %v7275 = vpop.f32.mrf.mxu0
      %v7276 = vadd.f32 %v7107, %v7275
      %7277 = vmatmul.bf16.gmra.mxu0 %v5937
      %v7278 = vpop.f32.mrf.mxu0
      %v7279 = vadd.f32 %v7110, %v7278
      %v7280 = vpop.f32.mrf.mxu0
      %v7281 = vadd.f32 %v7112, %v7280
      %7282 = vmatmul.bf16.gmra.mxu0 %v5939
      %v7283 = vpop.f32.mrf.mxu0
      %v7284 = vadd.f32 %v7115, %v7283
      %v7285 = vpop.f32.mrf.mxu0
      %v7286 = vadd.f32 %v7117, %v7285
      %7287 = vmatmul.bf16.gmra.mxu0 %v5941
      %v7288 = vpop.f32.mrf.mxu0
      %v7289 = vadd.f32 %v7120, %v7288
      %v7290 = vpop.f32.mrf.mxu0
      %v7291 = vadd.f32 %v7122, %v7290
      %7292 = vmatmul.bf16.gmra.mxu0 %v5943
      %v7293 = vpop.f32.mrf.mxu0
      %v7294 = vadd.f32 %v7125, %v7293
      %v7295 = vpop.f32.mrf.mxu0
      %v7296 = vadd.f32 %v7127, %v7295
      %7297 = vmatmul.bf16.gmra.mxu0 %v5945
      %v7298 = vpop.f32.mrf.mxu0
      %v7299 = vadd.f32 %v7130, %v7298
      %v7300 = vpop.f32.mrf.mxu0
      %v7301 = vadd.f32 %v7132, %v7300
      %7302 = vmatmul.bf16.gmra.mxu0 %v5947
      %v7303 = vpop.f32.mrf.mxu0
      %v7304 = vadd.f32 %v7135, %v7303
      %v7305 = vpop.f32.mrf.mxu0
      %v7306 = vadd.f32 %v7137, %v7305
      %7307 = vmatmul.bf16.gmra.mxu0 %v5949
      %v7308 = vpop.f32.mrf.mxu0
      %v7309 = vadd.f32 %v7140, %v7308
      %v7310 = vpop.f32.mrf.mxu0
      %v7311 = vadd.f32 %v7142, %v7310
      %7312 = vmatmul.bf16.gmra.mxu0 %v5951
      %v7313 = vpop.f32.mrf.mxu0
      %v7314 = vadd.f32 %v7145, %v7313
      %v7315 = vpop.f32.mrf.mxu0
      %v7316 = vadd.f32 %v7147, %v7315
      %7317 = vmatmul.bf16.gmra.mxu0 %v5953
      %v7318 = vpop.f32.mrf.mxu0
      %v7319 = vadd.f32 %v7150, %v7318
      %v7320 = vpop.f32.mrf.mxu0
      %v7321 = vadd.f32 %v7152, %v7320
      %7322 = vmatmul.bf16.gmra.mxu0 %v5955
      %v7323 = vpop.f32.mrf.mxu0
      %v7324 = vadd.f32 %v7155, %v7323
      %v7325 = vpop.f32.mrf.mxu0
      %v7326 = vadd.f32 %v7157, %v7325
      %7327 = vmatmul.bf16.gmra.mxu0 %v5957
      %v7328 = vpop.f32.mrf.mxu0
      %v7329 = vadd.f32 %v7160, %v7328
      %v7330 = vpop.f32.mrf.mxu0
      %v7331 = vadd.f32 %v7162, %v7330
      %7332 = vmatmul.bf16.gmra.mxu0 %v5959
      %v7333 = vpop.f32.mrf.mxu0
      %v7334 = vadd.f32 %v7165, %v7333
      %v7335 = vpop.f32.mrf.mxu0
      %v7336 = vadd.f32 %v7167, %v7335
      %7337 = vmatmul.bf16.gmra.mxu0 %v5961
      %v7338 = vpop.f32.mrf.mxu0
      %v7339 = vadd.f32 %v7170, %v7338
      %v7340 = vpop.f32.mrf.mxu0
      %v7341 = vadd.f32 %v7172, %v7340
      %7342 = vmatmul.bf16.gmra.mxu0 %v5963
      %v7343 = vpop.f32.mrf.mxu0
      %v7344 = vadd.f32 %v7175, %v7343
      %v7345 = vpop.f32.mrf.mxu0
      %v7346 = vadd.f32 %v7177, %v7345
      %7347 = vmatmul.bf16.gmra.mxu0 %v5965
      %v7348 = vpop.f32.mrf.mxu0
      %v7349 = vadd.f32 %v7180, %v7348
      %v7350 = vpop.f32.mrf.mxu0
      %v7351 = vadd.f32 %v7182, %v7350
      %7352 = vmatmul.bf16.gmra.mxu0 %v5967
      %v7353 = vpop.f32.mrf.mxu0
      %v7354 = vadd.f32 %v7185, %v7353
      %v7355 = vpop.f32.mrf.mxu0
      %v7356 = vadd.f32 %v7187, %v7355
      %7357 = vmatmul.bf16.gmra.mxu0 %v5969
      %v7358 = vpop.f32.mrf.mxu0
      %v7359 = vadd.f32 %v7190, %v7358
      %v7360 = vpop.f32.mrf.mxu0
      %v7361 = vadd.f32 %v7192, %v7360
      %7362 = vmatmul.bf16.gmra.mxu0 %v5971
      %v7363 = vpop.f32.mrf.mxu0
      %v7364 = vadd.f32 %v7195, %v7363
      %v7365 = vpop.f32.mrf.mxu0
      %v7366 = vadd.f32 %v7197, %v7365
      %7367 = vmatmul.bf16.gmra.mxu0 %v5973
      %v7368 = vpop.f32.mrf.mxu0
      %v7369 = vadd.f32 %v7200, %v7368
      %v7370 = vpop.f32.mrf.mxu0
      %v7371 = vadd.f32 %v7202, %v7370
      %7372 = vmatmul.bf16.gmra.mxu0 %v5975
      %v7373 = vpop.f32.mrf.mxu0
      %v7374 = vadd.f32 %v7205, %v7373
      %v7375 = vpop.f32.mrf.mxu0
      %v7376 = vadd.f32 %v7207, %v7375
      %7377 = vmatmul.bf16.gmra.mxu0 %v5977
      %v7378 = vpop.f32.mrf.mxu0
      %v7379 = vadd.f32 %v7210, %v7378
      %v7380 = vpop.f32.mrf.mxu0
      %v7381 = vadd.f32 %v7212, %v7380
      %7382 = vmatmul.bf16.gmra.mxu0 %v5979
      %v7383 = vpop.f32.mrf.mxu0
      %v7384 = vadd.f32 %v7215, %v7383
      %v7385 = vpop.f32.mrf.mxu0
      %v7386 = vadd.f32 %v7217, %v7385
      %7387 = vdwg.mxu0
      %7388 = vmatpush.bf16.msra.mxu0 %v6277
      %7389 = vmatpush.bf16.msra.mxu0 %v6273
      %7390 = vmatpush.bf16.msra.mxu0 %v6269
      %7391 = vmatpush.bf16.msra.mxu0 %v6265
      %7392 = vmatpush.bf16.msra.mxu0 %v6261
      %7393 = vmatpush.bf16.msra.mxu0 %v6257
      %7394 = vmatpush.bf16.msra.mxu0 %v6253
      %7395 = vmatpush.bf16.msra.mxu0 %v6249
      %7396 = vmatmul.bf16.gmra.mxu0 %v5916
      %v7397 = vpop.f32.mrf.mxu0
      %v7398 = vadd.f32 %v6049, %v7397
      %v7399 = vpop.f32.mrf.mxu0
      %v7400 = vadd.f32 %v6049, %v7399
      %7401 = vmatmul.bf16.gmra.mxu0 %v5918
      %v7402 = vpop.f32.mrf.mxu0
      %v7403 = vadd.f32 %v6049, %v7402
      %v7404 = vpop.f32.mrf.mxu0
      %v7405 = vadd.f32 %v6049, %v7404
      %7406 = vmatmul.bf16.gmra.mxu0 %v5920
      %v7407 = vpop.f32.mrf.mxu0
      %v7408 = vadd.f32 %v6049, %v7407
      %v7409 = vpop.f32.mrf.mxu0
      %v7410 = vadd.f32 %v6049, %v7409
      %7411 = vmatmul.bf16.gmra.mxu0 %v5922
      %v7412 = vpop.f32.mrf.mxu0
      %v7413 = vadd.f32 %v6049, %v7412
      %v7414 = vpop.f32.mrf.mxu0
      %v7415 = vadd.f32 %v6049, %v7414
      %7416 = vmatmul.bf16.gmra.mxu0 %v5924
      %v7417 = vpop.f32.mrf.mxu0
      %v7418 = vadd.f32 %v6049, %v7417
      %v7419 = vpop.f32.mrf.mxu0
      %v7420 = vadd.f32 %v6049, %v7419
      %7421 = vmatmul.bf16.gmra.mxu0 %v5926
      %v7422 = vpop.f32.mrf.mxu0
      %v7423 = vadd.f32 %v6049, %v7422
      %v7424 = vpop.f32.mrf.mxu0
      %v7425 = vadd.f32 %v6049, %v7424
      %7426 = vmatmul.bf16.gmra.mxu0 %v5928
      %v7427 = vpop.f32.mrf.mxu0
      %v7428 = vadd.f32 %v6049, %v7427
      %v7429 = vpop.f32.mrf.mxu0
      %v7430 = vadd.f32 %v6049, %v7429
      %7431 = vmatmul.bf16.gmra.mxu0 %v5930
      %v7432 = vpop.f32.mrf.mxu0
      %v7433 = vadd.f32 %v6049, %v7432
      %v7434 = vpop.f32.mrf.mxu0
      %v7435 = vadd.f32 %v6049, %v7434
      %7436 = vmatmul.bf16.gmra.mxu0 %v5932
      %v7437 = vpop.f32.mrf.mxu0
      %v7438 = vadd.f32 %v6049, %v7437
      %v7439 = vpop.f32.mrf.mxu0
      %v7440 = vadd.f32 %v6049, %v7439
      %7441 = vmatmul.bf16.gmra.mxu0 %v5934
      %v7442 = vpop.f32.mrf.mxu0
      %v7443 = vadd.f32 %v6049, %v7442
      %v7444 = vpop.f32.mrf.mxu0
      %v7445 = vadd.f32 %v6049, %v7444
      %7446 = vmatmul.bf16.gmra.mxu0 %v5936
      %v7447 = vpop.f32.mrf.mxu0
      %v7448 = vadd.f32 %v6049, %v7447
      %v7449 = vpop.f32.mrf.mxu0
      %v7450 = vadd.f32 %v6049, %v7449
      %7451 = vmatmul.bf16.gmra.mxu0 %v5938
      %v7452 = vpop.f32.mrf.mxu0
      %v7453 = vadd.f32 %v6049, %v7452
      %v7454 = vpop.f32.mrf.mxu0
      %v7455 = vadd.f32 %v6049, %v7454
      %7456 = vmatmul.bf16.gmra.mxu0 %v5940
      %v7457 = vpop.f32.mrf.mxu0
      %v7458 = vadd.f32 %v6049, %v7457
      %v7459 = vpop.f32.mrf.mxu0
      %v7460 = vadd.f32 %v6049, %v7459
      %7461 = vmatmul.bf16.gmra.mxu0 %v5942
      %v7462 = vpop.f32.mrf.mxu0
      %v7463 = vadd.f32 %v6049, %v7462
      %v7464 = vpop.f32.mrf.mxu0
      %v7465 = vadd.f32 %v6049, %v7464
      %7466 = vmatmul.bf16.gmra.mxu0 %v5944
      %v7467 = vpop.f32.mrf.mxu0
      %v7468 = vadd.f32 %v6049, %v7467
      %v7469 = vpop.f32.mrf.mxu0
      %v7470 = vadd.f32 %v6049, %v7469
      %7471 = vmatmul.bf16.gmra.mxu0 %v5946
      %v7472 = vpop.f32.mrf.mxu0
      %v7473 = vadd.f32 %v6049, %v7472
      %v7474 = vpop.f32.mrf.mxu0
      %v7475 = vadd.f32 %v6049, %v7474
      %7476 = vmatmul.bf16.gmra.mxu0 %v5948
      %v7477 = vpop.f32.mrf.mxu0
      %v7478 = vadd.f32 %v6049, %v7477
      %v7479 = vpop.f32.mrf.mxu0
      %v7480 = vadd.f32 %v6049, %v7479
      %7481 = vmatmul.bf16.gmra.mxu0 %v5950
      %v7482 = vpop.f32.mrf.mxu0
      %v7483 = vadd.f32 %v6049, %v7482
      %v7484 = vpop.f32.mrf.mxu0
      %v7485 = vadd.f32 %v6049, %v7484
      %7486 = vmatmul.bf16.gmra.mxu0 %v5952
      %v7487 = vpop.f32.mrf.mxu0
      %v7488 = vadd.f32 %v6049, %v7487
      %v7489 = vpop.f32.mrf.mxu0
      %v7490 = vadd.f32 %v6049, %v7489
      %7491 = vmatmul.bf16.gmra.mxu0 %v5954
      %v7492 = vpop.f32.mrf.mxu0
      %v7493 = vadd.f32 %v6049, %v7492
      %v7494 = vpop.f32.mrf.mxu0
      %v7495 = vadd.f32 %v6049, %v7494
      %7496 = vmatmul.bf16.gmra.mxu0 %v5956
      %v7497 = vpop.f32.mrf.mxu0
      %v7498 = vadd.f32 %v6049, %v7497
      %v7499 = vpop.f32.mrf.mxu0
      %v7500 = vadd.f32 %v6049, %v7499
      %7501 = vmatmul.bf16.gmra.mxu0 %v5958
      %v7502 = vpop.f32.mrf.mxu0
      %v7503 = vadd.f32 %v6049, %v7502
      %v7504 = vpop.f32.mrf.mxu0
      %v7505 = vadd.f32 %v6049, %v7504
      %7506 = vmatmul.bf16.gmra.mxu0 %v5960
      %v7507 = vpop.f32.mrf.mxu0
      %v7508 = vadd.f32 %v6049, %v7507
      %v7509 = vpop.f32.mrf.mxu0
      %v7510 = vadd.f32 %v6049, %v7509
      %7511 = vmatmul.bf16.gmra.mxu0 %v5962
      %v7512 = vpop.f32.mrf.mxu0
      %v7513 = vadd.f32 %v6049, %v7512
      %v7514 = vpop.f32.mrf.mxu0
      %v7515 = vadd.f32 %v6049, %v7514
      %7516 = vmatmul.bf16.gmra.mxu0 %v5964
      %v7517 = vpop.f32.mrf.mxu0
      %v7518 = vadd.f32 %v6049, %v7517
      %v7519 = vpop.f32.mrf.mxu0
      %v7520 = vadd.f32 %v6049, %v7519
      %7521 = vmatmul.bf16.gmra.mxu0 %v5966
      %v7522 = vpop.f32.mrf.mxu0
      %v7523 = vadd.f32 %v6049, %v7522
      %v7524 = vpop.f32.mrf.mxu0
      %v7525 = vadd.f32 %v6049, %v7524
      %7526 = vmatmul.bf16.gmra.mxu0 %v5968
      %v7527 = vpop.f32.mrf.mxu0
      %v7528 = vadd.f32 %v6049, %v7527
      %v7529 = vpop.f32.mrf.mxu0
      %v7530 = vadd.f32 %v6049, %v7529
      %7531 = vmatmul.bf16.gmra.mxu0 %v5970
      %v7532 = vpop.f32.mrf.mxu0
      %v7533 = vadd.f32 %v6049, %v7532
      %v7534 = vpop.f32.mrf.mxu0
      %v7535 = vadd.f32 %v6049, %v7534
      %7536 = vmatmul.bf16.gmra.mxu0 %v5972
      %v7537 = vpop.f32.mrf.mxu0
      %v7538 = vadd.f32 %v6049, %v7537
      %v7539 = vpop.f32.mrf.mxu0
      %v7540 = vadd.f32 %v6049, %v7539
      %7541 = vmatmul.bf16.gmra.mxu0 %v5974
      %v7542 = vpop.f32.mrf.mxu0
      %v7543 = vadd.f32 %v6049, %v7542
      %v7544 = vpop.f32.mrf.mxu0
      %v7545 = vadd.f32 %v6049, %v7544
      %7546 = vmatmul.bf16.gmra.mxu0 %v5976
      %v7547 = vpop.f32.mrf.mxu0
      %v7548 = vadd.f32 %v6049, %v7547
      %v7549 = vpop.f32.mrf.mxu0
      %v7550 = vadd.f32 %v6049, %v7549
      %7551 = vmatmul.bf16.gmra.mxu0 %v5978
      %v7552 = vpop.f32.mrf.mxu0
      %v7553 = vadd.f32 %v6049, %v7552
      %v7554 = vpop.f32.mrf.mxu0
      %v7555 = vadd.f32 %v6049, %v7554
      %7556 = vdwg.mxu0
      %7557 = vmatpush.bf16.msra.mxu0 %v6309
      %7558 = vmatpush.bf16.msra.mxu0 %v6305
      %7559 = vmatpush.bf16.msra.mxu0 %v6301
      %7560 = vmatpush.bf16.msra.mxu0 %v6297
      %7561 = vmatpush.bf16.msra.mxu0 %v6293
      %7562 = vmatpush.bf16.msra.mxu0 %v6289
      %7563 = vmatpush.bf16.msra.mxu0 %v6285
      %7564 = vmatpush.bf16.msra.mxu0 %v6281
      %7565 = vmatmul.bf16.gmra.mxu0 %v5917
      %v7566 = vpop.f32.mrf.mxu0
      %v7567 = vadd.f32 %v7398, %v7566
      %v7568 = vpop.f32.mrf.mxu0
      %v7569 = vadd.f32 %v7400, %v7568
      %7570 = vmatmul.bf16.gmra.mxu0 %v5919
      %v7571 = vpop.f32.mrf.mxu0
      %v7572 = vadd.f32 %v7403, %v7571
      %v7573 = vpop.f32.mrf.mxu0
      %v7574 = vadd.f32 %v7405, %v7573
      %7575 = vmatmul.bf16.gmra.mxu0 %v5921
      %v7576 = vpop.f32.mrf.mxu0
      %v7577 = vadd.f32 %v7408, %v7576
      %v7578 = vpop.f32.mrf.mxu0
      %v7579 = vadd.f32 %v7410, %v7578
      %7580 = vmatmul.bf16.gmra.mxu0 %v5923
      %v7581 = vpop.f32.mrf.mxu0
      %v7582 = vadd.f32 %v7413, %v7581
      %v7583 = vpop.f32.mrf.mxu0
      %v7584 = vadd.f32 %v7415, %v7583
      %7585 = vmatmul.bf16.gmra.mxu0 %v5925
      %v7586 = vpop.f32.mrf.mxu0
      %v7587 = vadd.f32 %v7418, %v7586
      %v7588 = vpop.f32.mrf.mxu0
      %v7589 = vadd.f32 %v7420, %v7588
      %7590 = vmatmul.bf16.gmra.mxu0 %v5927
      %v7591 = vpop.f32.mrf.mxu0
      %v7592 = vadd.f32 %v7423, %v7591
      %v7593 = vpop.f32.mrf.mxu0
      %v7594 = vadd.f32 %v7425, %v7593
      %7595 = vmatmul.bf16.gmra.mxu0 %v5929
      %v7596 = vpop.f32.mrf.mxu0
      %v7597 = vadd.f32 %v7428, %v7596
      %v7598 = vpop.f32.mrf.mxu0
      %v7599 = vadd.f32 %v7430, %v7598
      %7600 = vmatmul.bf16.gmra.mxu0 %v5931
      %v7601 = vpop.f32.mrf.mxu0
      %v7602 = vadd.f32 %v7433, %v7601
      %v7603 = vpop.f32.mrf.mxu0
      %v7604 = vadd.f32 %v7435, %v7603
      %7605 = vmatmul.bf16.gmra.mxu0 %v5933
      %v7606 = vpop.f32.mrf.mxu0
      %v7607 = vadd.f32 %v7438, %v7606
      %v7608 = vpop.f32.mrf.mxu0
      %v7609 = vadd.f32 %v7440, %v7608
      %7610 = vmatmul.bf16.gmra.mxu0 %v5935
      %v7611 = vpop.f32.mrf.mxu0
      %v7612 = vadd.f32 %v7443, %v7611
      %v7613 = vpop.f32.mrf.mxu0
      %v7614 = vadd.f32 %v7445, %v7613
      %7615 = vmatmul.bf16.gmra.mxu0 %v5937
      %v7616 = vpop.f32.mrf.mxu0
      %v7617 = vadd.f32 %v7448, %v7616
      %v7618 = vpop.f32.mrf.mxu0
      %v7619 = vadd.f32 %v7450, %v7618
      %7620 = vmatmul.bf16.gmra.mxu0 %v5939
      %v7621 = vpop.f32.mrf.mxu0
      %v7622 = vadd.f32 %v7453, %v7621
      %v7623 = vpop.f32.mrf.mxu0
      %v7624 = vadd.f32 %v7455, %v7623
      %7625 = vmatmul.bf16.gmra.mxu0 %v5941
      %v7626 = vpop.f32.mrf.mxu0
      %v7627 = vadd.f32 %v7458, %v7626
      %v7628 = vpop.f32.mrf.mxu0
      %v7629 = vadd.f32 %v7460, %v7628
      %7630 = vmatmul.bf16.gmra.mxu0 %v5943
      %v7631 = vpop.f32.mrf.mxu0
      %v7632 = vadd.f32 %v7463, %v7631
      %v7633 = vpop.f32.mrf.mxu0
      %v7634 = vadd.f32 %v7465, %v7633
      %7635 = vmatmul.bf16.gmra.mxu0 %v5945
      %v7636 = vpop.f32.mrf.mxu0
      %v7637 = vadd.f32 %v7468, %v7636
      %v7638 = vpop.f32.mrf.mxu0
      %v7639 = vadd.f32 %v7470, %v7638
      %7640 = vmatmul.bf16.gmra.mxu0 %v5947
      %v7641 = vpop.f32.mrf.mxu0
      %v7642 = vadd.f32 %v7473, %v7641
      %v7643 = vpop.f32.mrf.mxu0
      %v7644 = vadd.f32 %v7475, %v7643
      %7645 = vmatmul.bf16.gmra.mxu0 %v5949
      %v7646 = vpop.f32.mrf.mxu0
      %v7647 = vadd.f32 %v7478, %v7646
      %v7648 = vpop.f32.mrf.mxu0
      %v7649 = vadd.f32 %v7480, %v7648
      %7650 = vmatmul.bf16.gmra.mxu0 %v5951
      %v7651 = vpop.f32.mrf.mxu0
      %v7652 = vadd.f32 %v7483, %v7651
      %v7653 = vpop.f32.mrf.mxu0
      %v7654 = vadd.f32 %v7485, %v7653
      %7655 = vmatmul.bf16.gmra.mxu0 %v5953
      %v7656 = vpop.f32.mrf.mxu0
      %v7657 = vadd.f32 %v7488, %v7656
      %v7658 = vpop.f32.mrf.mxu0
      %v7659 = vadd.f32 %v7490, %v7658
      %7660 = vmatmul.bf16.gmra.mxu0 %v5955
      %v7661 = vpop.f32.mrf.mxu0
      %v7662 = vadd.f32 %v7493, %v7661
      %v7663 = vpop.f32.mrf.mxu0
      %v7664 = vadd.f32 %v7495, %v7663
      %7665 = vmatmul.bf16.gmra.mxu0 %v5957
      %v7666 = vpop.f32.mrf.mxu0
      %v7667 = vadd.f32 %v7498, %v7666
      %v7668 = vpop.f32.mrf.mxu0
      %v7669 = vadd.f32 %v7500, %v7668
      %7670 = vmatmul.bf16.gmra.mxu0 %v5959
      %v7671 = vpop.f32.mrf.mxu0
      %v7672 = vadd.f32 %v7503, %v7671
      %v7673 = vpop.f32.mrf.mxu0
      %v7674 = vadd.f32 %v7505, %v7673
      %7675 = vmatmul.bf16.gmra.mxu0 %v5961
      %v7676 = vpop.f32.mrf.mxu0
      %v7677 = vadd.f32 %v7508, %v7676
      %v7678 = vpop.f32.mrf.mxu0
      %v7679 = vadd.f32 %v7510, %v7678
      %7680 = vmatmul.bf16.gmra.mxu0 %v5963
      %v7681 = vpop.f32.mrf.mxu0
      %v7682 = vadd.f32 %v7513, %v7681
      %v7683 = vpop.f32.mrf.mxu0
      %v7684 = vadd.f32 %v7515, %v7683
      %7685 = vmatmul.bf16.gmra.mxu0 %v5965
      %v7686 = vpop.f32.mrf.mxu0
      %v7687 = vadd.f32 %v7518, %v7686
      %v7688 = vpop.f32.mrf.mxu0
      %v7689 = vadd.f32 %v7520, %v7688
      %7690 = vmatmul.bf16.gmra.mxu0 %v5967
      %v7691 = vpop.f32.mrf.mxu0
      %v7692 = vadd.f32 %v7523, %v7691
      %v7693 = vpop.f32.mrf.mxu0
      %v7694 = vadd.f32 %v7525, %v7693
      %7695 = vmatmul.bf16.gmra.mxu0 %v5969
      %v7696 = vpop.f32.mrf.mxu0
      %v7697 = vadd.f32 %v7528, %v7696
      %v7698 = vpop.f32.mrf.mxu0
      %v7699 = vadd.f32 %v7530, %v7698
      %7700 = vmatmul.bf16.gmra.mxu0 %v5971
      %v7701 = vpop.f32.mrf.mxu0
      %v7702 = vadd.f32 %v7533, %v7701
      %v7703 = vpop.f32.mrf.mxu0
      %v7704 = vadd.f32 %v7535, %v7703
      %7705 = vmatmul.bf16.gmra.mxu0 %v5973
      %v7706 = vpop.f32.mrf.mxu0
      %v7707 = vadd.f32 %v7538, %v7706
      %v7708 = vpop.f32.mrf.mxu0
      %v7709 = vadd.f32 %v7540, %v7708
      %7710 = vmatmul.bf16.gmra.mxu0 %v5975
      %v7711 = vpop.f32.mrf.mxu0
      %v7712 = vadd.f32 %v7543, %v7711
      %v7713 = vpop.f32.mrf.mxu0
      %v7714 = vadd.f32 %v7545, %v7713
      %7715 = vmatmul.bf16.gmra.mxu0 %v5977
      %v7716 = vpop.f32.mrf.mxu0
      %v7717 = vadd.f32 %v7548, %v7716
      %v7718 = vpop.f32.mrf.mxu0
      %v7719 = vadd.f32 %v7550, %v7718
      %7720 = vmatmul.bf16.gmra.mxu0 %v5979
      %v7721 = vpop.f32.mrf.mxu0
      %v7722 = vadd.f32 %v7553, %v7721
      %v7723 = vpop.f32.mrf.mxu0
      %v7724 = vadd.f32 %v7555, %v7723
      %7725 = vdwg.mxu0
      %v7726 = vmax.f32 %v6553, 0.0
      %v7727 = vmax.f32 %v6891, 0.0
      %v7728 = vmax.f32 %v7229, 0.0
      %v7729 = vmax.f32 %v7567, 0.0
      %v7730 = vmax.f32 %v6555, 0.0
      %v7731 = vmax.f32 %v6893, 0.0
      %v7732 = vmax.f32 %v7231, 0.0
      %v7733 = vmax.f32 %v7569, 0.0
      %v7734 = vmax.f32 %v6558, 0.0
      %v7735 = vmax.f32 %v6896, 0.0
      %v7736 = vmax.f32 %v7234, 0.0
      %v7737 = vmax.f32 %v7572, 0.0
      %v7738 = vmax.f32 %v6560, 0.0
      %v7739 = vmax.f32 %v6898, 0.0
      %v7740 = vmax.f32 %v7236, 0.0
      %v7741 = vmax.f32 %v7574, 0.0
      %v7742 = vmax.f32 %v6563, 0.0
      %v7743 = vmax.f32 %v6901, 0.0
      %v7744 = vmax.f32 %v7239, 0.0
      %v7745 = vmax.f32 %v7577, 0.0
      %v7746 = vmax.f32 %v6565, 0.0
      %v7747 = vmax.f32 %v6903, 0.0
      %v7748 = vmax.f32 %v7241, 0.0
      %v7749 = vmax.f32 %v7579, 0.0
      %v7750 = vmax.f32 %v6568, 0.0
      %v7751 = vmax.f32 %v6906, 0.0
      %v7752 = vmax.f32 %v7244, 0.0
      %v7753 = vmax.f32 %v7582, 0.0
      %v7754 = vmax.f32 %v6570, 0.0
      %v7755 = vmax.f32 %v6908, 0.0
      %v7756 = vmax.f32 %v7246, 0.0
      %v7757 = vmax.f32 %v7584, 0.0
      %v7758 = vmax.f32 %v6573, 0.0
      %v7759 = vmax.f32 %v6911, 0.0
      %v7760 = vmax.f32 %v7249, 0.0
      %v7761 = vmax.f32 %v7587, 0.0
      %v7762 = vmax.f32 %v6575, 0.0
      %v7763 = vmax.f32 %v6913, 0.0
      %v7764 = vmax.f32 %v7251, 0.0
      %v7765 = vmax.f32 %v7589, 0.0
      %v7766 = vmax.f32 %v6578, 0.0
      %v7767 = vmax.f32 %v6916, 0.0
      %v7768 = vmax.f32 %v7254, 0.0
      %v7769 = vmax.f32 %v7592, 0.0
      %v7770 = vmax.f32 %v6580, 0.0
      %v7771 = vmax.f32 %v6918, 0.0
      %v7772 = vmax.f32 %v7256, 0.0
      %v7773 = vmax.f32 %v7594, 0.0
      %v7774 = vmax.f32 %v6583, 0.0
      %v7775 = vmax.f32 %v6921, 0.0
      %v7776 = vmax.f32 %v7259, 0.0
      %v7777 = vmax.f32 %v7597, 0.0
      %v7778 = vmax.f32 %v6585, 0.0
      %v7779 = vmax.f32 %v6923, 0.0
      %v7780 = vmax.f32 %v7261, 0.0
      %v7781 = vmax.f32 %v7599, 0.0
      %v7782 = vmax.f32 %v6588, 0.0
      %v7783 = vmax.f32 %v6926, 0.0
      %v7784 = vmax.f32 %v7264, 0.0
      %v7785 = vmax.f32 %v7602, 0.0
      %v7786 = vmax.f32 %v6590, 0.0
      %v7787 = vmax.f32 %v6928, 0.0
      %v7788 = vmax.f32 %v7266, 0.0
      %v7789 = vmax.f32 %v7604, 0.0
      %v7790 = vmax.f32 %v6593, 0.0
      %v7791 = vmax.f32 %v6931, 0.0
      %v7792 = vmax.f32 %v7269, 0.0
      %v7793 = vmax.f32 %v7607, 0.0
      %v7794 = vmax.f32 %v6595, 0.0
      %v7795 = vmax.f32 %v6933, 0.0
      %v7796 = vmax.f32 %v7271, 0.0
      %v7797 = vmax.f32 %v7609, 0.0
      %v7798 = vmax.f32 %v6598, 0.0
      %v7799 = vmax.f32 %v6936, 0.0
      %v7800 = vmax.f32 %v7274, 0.0
      %v7801 = vmax.f32 %v7612, 0.0
      %v7802 = vmax.f32 %v6600, 0.0
      %v7803 = vmax.f32 %v6938, 0.0
      %v7804 = vmax.f32 %v7276, 0.0
      %v7805 = vmax.f32 %v7614, 0.0
      %v7806 = vmax.f32 %v6603, 0.0
      %v7807 = vmax.f32 %v6941, 0.0
      %v7808 = vmax.f32 %v7279, 0.0
      %v7809 = vmax.f32 %v7617, 0.0
      %v7810 = vmax.f32 %v6605, 0.0
      %v7811 = vmax.f32 %v6943, 0.0
      %v7812 = vmax.f32 %v7281, 0.0
      %v7813 = vmax.f32 %v7619, 0.0
      %v7814 = vmax.f32 %v6608, 0.0
      %v7815 = vmax.f32 %v6946, 0.0
      %v7816 = vmax.f32 %v7284, 0.0
      %v7817 = vmax.f32 %v7622, 0.0
      %v7818 = vmax.f32 %v6610, 0.0
      %v7819 = vmax.f32 %v6948, 0.0
      %v7820 = vmax.f32 %v7286, 0.0
      %v7821 = vmax.f32 %v7624, 0.0
      %v7822 = vmax.f32 %v6613, 0.0
      %v7823 = vmax.f32 %v6951, 0.0
      %v7824 = vmax.f32 %v7289, 0.0
      %v7825 = vmax.f32 %v7627, 0.0
      %v7826 = vmax.f32 %v6615, 0.0
      %v7827 = vmax.f32 %v6953, 0.0
      %v7828 = vmax.f32 %v7291, 0.0
      %v7829 = vmax.f32 %v7629, 0.0
      %v7830 = vmax.f32 %v6618, 0.0
      %v7831 = vmax.f32 %v6956, 0.0
      %v7832 = vmax.f32 %v7294, 0.0
      %v7833 = vmax.f32 %v7632, 0.0
      %v7834 = vmax.f32 %v6620, 0.0
      %v7835 = vmax.f32 %v6958, 0.0
      %v7836 = vmax.f32 %v7296, 0.0
      %v7837 = vmax.f32 %v7634, 0.0
      %v7838 = vmax.f32 %v6623, 0.0
      %v7839 = vmax.f32 %v6961, 0.0
      %v7840 = vmax.f32 %v7299, 0.0
      %v7841 = vmax.f32 %v7637, 0.0
      %v7842 = vmax.f32 %v6625, 0.0
      %v7843 = vmax.f32 %v6963, 0.0
      %v7844 = vmax.f32 %v7301, 0.0
      %v7845 = vmax.f32 %v7639, 0.0
      %v7846 = vmax.f32 %v6628, 0.0
      %v7847 = vmax.f32 %v6966, 0.0
      %v7848 = vmax.f32 %v7304, 0.0
      %v7849 = vmax.f32 %v7642, 0.0
      %v7850 = vmax.f32 %v6630, 0.0
      %v7851 = vmax.f32 %v6968, 0.0
      %v7852 = vmax.f32 %v7306, 0.0
      %v7853 = vmax.f32 %v7644, 0.0
      %v7854 = vmax.f32 %v6633, 0.0
      %v7855 = vmax.f32 %v6971, 0.0
      %v7856 = vmax.f32 %v7309, 0.0
      %v7857 = vmax.f32 %v7647, 0.0
      %v7858 = vmax.f32 %v6635, 0.0
      %v7859 = vmax.f32 %v6973, 0.0
      %v7860 = vmax.f32 %v7311, 0.0
      %v7861 = vmax.f32 %v7649, 0.0
      %v7862 = vmax.f32 %v6638, 0.0
      %v7863 = vmax.f32 %v6976, 0.0
      %v7864 = vmax.f32 %v7314, 0.0
      %v7865 = vmax.f32 %v7652, 0.0
      %v7866 = vmax.f32 %v6640, 0.0
      %v7867 = vmax.f32 %v6978, 0.0
      %v7868 = vmax.f32 %v7316, 0.0
      %v7869 = vmax.f32 %v7654, 0.0
      %v7870 = vmax.f32 %v6643, 0.0
      %v7871 = vmax.f32 %v6981, 0.0
      %v7872 = vmax.f32 %v7319, 0.0
      %v7873 = vmax.f32 %v7657, 0.0
      %v7874 = vmax.f32 %v6645, 0.0
      %v7875 = vmax.f32 %v6983, 0.0
      %v7876 = vmax.f32 %v7321, 0.0
      %v7877 = vmax.f32 %v7659, 0.0
      %v7878 = vmax.f32 %v6648, 0.0
      %v7879 = vmax.f32 %v6986, 0.0
      %v7880 = vmax.f32 %v7324, 0.0
      %v7881 = vmax.f32 %v7662, 0.0
      %v7882 = vmax.f32 %v6650, 0.0
      %v7883 = vmax.f32 %v6988, 0.0
      %v7884 = vmax.f32 %v7326, 0.0
      %v7885 = vmax.f32 %v7664, 0.0
      %v7886 = vmax.f32 %v6653, 0.0
      %v7887 = vmax.f32 %v6991, 0.0
      %v7888 = vmax.f32 %v7329, 0.0
      %v7889 = vmax.f32 %v7667, 0.0
      %v7890 = vmax.f32 %v6655, 0.0
      %v7891 = vmax.f32 %v6993, 0.0
      %v7892 = vmax.f32 %v7331, 0.0
      %v7893 = vmax.f32 %v7669, 0.0
      %v7894 = vmax.f32 %v6658, 0.0
      %v7895 = vmax.f32 %v6996, 0.0
      %v7896 = vmax.f32 %v7334, 0.0
      %v7897 = vmax.f32 %v7672, 0.0
      %v7898 = vmax.f32 %v6660, 0.0
      %v7899 = vmax.f32 %v6998, 0.0
      %v7900 = vmax.f32 %v7336, 0.0
      %v7901 = vmax.f32 %v7674, 0.0
      %v7902 = vmax.f32 %v6663, 0.0
      %v7903 = vmax.f32 %v7001, 0.0
      %v7904 = vmax.f32 %v7339, 0.0
      %v7905 = vmax.f32 %v7677, 0.0
      %v7906 = vmax.f32 %v6665, 0.0
      %v7907 = vmax.f32 %v7003, 0.0
      %v7908 = vmax.f32 %v7341, 0.0
      %v7909 = vmax.f32 %v7679, 0.0
      %v7910 = vmax.f32 %v6668, 0.0
      %v7911 = vmax.f32 %v7006, 0.0
      %v7912 = vmax.f32 %v7344, 0.0
      %v7913 = vmax.f32 %v7682, 0.0
      %v7914 = vmax.f32 %v6670, 0.0
      %v7915 = vmax.f32 %v7008, 0.0
      %v7916 = vmax.f32 %v7346, 0.0
      %v7917 = vmax.f32 %v7684, 0.0
      %v7918 = vmax.f32 %v6673, 0.0
      %v7919 = vmax.f32 %v7011, 0.0
      %v7920 = vmax.f32 %v7349, 0.0
      %v7921 = vmax.f32 %v7687, 0.0
      %v7922 = vmax.f32 %v6675, 0.0
      %v7923 = vmax.f32 %v7013, 0.0
      %v7924 = vmax.f32 %v7351, 0.0
      %v7925 = vmax.f32 %v7689, 0.0
      %v7926 = vmax.f32 %v6678, 0.0
      %v7927 = vmax.f32 %v7016, 0.0
      %v7928 = vmax.f32 %v7354, 0.0
      %v7929 = vmax.f32 %v7692, 0.0
      %v7930 = vmax.f32 %v6680, 0.0
      %v7931 = vmax.f32 %v7018, 0.0
      %v7932 = vmax.f32 %v7356, 0.0
      %v7933 = vmax.f32 %v7694, 0.0
      %v7934 = vmax.f32 %v6683, 0.0
      %v7935 = vmax.f32 %v7021, 0.0
      %v7936 = vmax.f32 %v7359, 0.0
      %v7937 = vmax.f32 %v7697, 0.0
      %v7938 = vmax.f32 %v6685, 0.0
      %v7939 = vmax.f32 %v7023, 0.0
      %v7940 = vmax.f32 %v7361, 0.0
      %v7941 = vmax.f32 %v7699, 0.0
      %v7942 = vmax.f32 %v6688, 0.0
      %v7943 = vmax.f32 %v7026, 0.0
      %v7944 = vmax.f32 %v7364, 0.0
      %v7945 = vmax.f32 %v7702, 0.0
      %v7946 = vmax.f32 %v6690, 0.0
      %v7947 = vmax.f32 %v7028, 0.0
      %v7948 = vmax.f32 %v7366, 0.0
      %v7949 = vmax.f32 %v7704, 0.0
      %v7950 = vmax.f32 %v6693, 0.0
      %v7951 = vmax.f32 %v7031, 0.0
      %v7952 = vmax.f32 %v7369, 0.0
      %v7953 = vmax.f32 %v7707, 0.0
      %v7954 = vmax.f32 %v6695, 0.0
      %v7955 = vmax.f32 %v7033, 0.0
      %v7956 = vmax.f32 %v7371, 0.0
      %v7957 = vmax.f32 %v7709, 0.0
      %v7958 = vmax.f32 %v6698, 0.0
      %v7959 = vmax.f32 %v7036, 0.0
      %v7960 = vmax.f32 %v7374, 0.0
      %v7961 = vmax.f32 %v7712, 0.0
      %v7962 = vmax.f32 %v6700, 0.0
      %v7963 = vmax.f32 %v7038, 0.0
      %v7964 = vmax.f32 %v7376, 0.0
      %v7965 = vmax.f32 %v7714, 0.0
      %v7966 = vmax.f32 %v6703, 0.0
      %v7967 = vmax.f32 %v7041, 0.0
      %v7968 = vmax.f32 %v7379, 0.0
      %v7969 = vmax.f32 %v7717, 0.0
      %v7970 = vmax.f32 %v6705, 0.0
      %v7971 = vmax.f32 %v7043, 0.0
      %v7972 = vmax.f32 %v7381, 0.0
      %v7973 = vmax.f32 %v7719, 0.0
      %v7974 = vmax.f32 %v6708, 0.0
      %v7975 = vmax.f32 %v7046, 0.0
      %v7976 = vmax.f32 %v7384, 0.0
      %v7977 = vmax.f32 %v7722, 0.0
      %v7978 = vmax.f32 %v6710, 0.0
      %v7979 = vmax.f32 %v7048, 0.0
      %v7980 = vmax.f32 %v7386, 0.0
      %v7981 = vmax.f32 %v7724, 0.0
      %v7982 = vpack.c.bf16 %v7730, %v7726
      %v7983 = vpack.c.bf16 %v7731, %v7727
      %v7984 = vpack.c.bf16 %v7732, %v7728
      %v7985 = vpack.c.bf16 %v7733, %v7729
      %v7986 = vpack.c.bf16 %v7738, %v7734
      %v7987 = vpack.c.bf16 %v7739, %v7735
      %v7988 = vpack.c.bf16 %v7740, %v7736
      %v7989 = vpack.c.bf16 %v7741, %v7737
      %v7990 = vpack.c.bf16 %v7746, %v7742
      %v7991 = vpack.c.bf16 %v7747, %v7743
      %v7992 = vpack.c.bf16 %v7748, %v7744
      %v7993 = vpack.c.bf16 %v7749, %v7745
      %v7994 = vpack.c.bf16 %v7754, %v7750
      %v7995 = vpack.c.bf16 %v7755, %v7751
      %v7996 = vpack.c.bf16 %v7756, %v7752
      %v7997 = vpack.c.bf16 %v7757, %v7753
      %v7998 = vpack.c.bf16 %v7762, %v7758
      %v7999 = vpack.c.bf16 %v7763, %v7759
      %v8000 = vpack.c.bf16 %v7764, %v7760
      %v8001 = vpack.c.bf16 %v7765, %v7761
      %v8002 = vpack.c.bf16 %v7770, %v7766
      %v8003 = vpack.c.bf16 %v7771, %v7767
      %v8004 = vpack.c.bf16 %v7772, %v7768
      %v8005 = vpack.c.bf16 %v7773, %v7769
      %v8006 = vpack.c.bf16 %v7778, %v7774
      %v8007 = vpack.c.bf16 %v7779, %v7775
      %v8008 = vpack.c.bf16 %v7780, %v7776
      %v8009 = vpack.c.bf16 %v7781, %v7777
      %v8010 = vpack.c.bf16 %v7786, %v7782
      %v8011 = vpack.c.bf16 %v7787, %v7783
      %v8012 = vpack.c.bf16 %v7788, %v7784
      %v8013 = vpack.c.bf16 %v7789, %v7785
      %v8014 = vpack.c.bf16 %v7794, %v7790
      %v8015 = vpack.c.bf16 %v7795, %v7791
      %v8016 = vpack.c.bf16 %v7796, %v7792
      %v8017 = vpack.c.bf16 %v7797, %v7793
      %v8018 = vpack.c.bf16 %v7802, %v7798
      %v8019 = vpack.c.bf16 %v7803, %v7799
      %v8020 = vpack.c.bf16 %v7804, %v7800
      %v8021 = vpack.c.bf16 %v7805, %v7801
      %v8022 = vpack.c.bf16 %v7810, %v7806
      %v8023 = vpack.c.bf16 %v7811, %v7807
      %v8024 = vpack.c.bf16 %v7812, %v7808
      %v8025 = vpack.c.bf16 %v7813, %v7809
      %v8026 = vpack.c.bf16 %v7818, %v7814
      %v8027 = vpack.c.bf16 %v7819, %v7815
      %v8028 = vpack.c.bf16 %v7820, %v7816
      %v8029 = vpack.c.bf16 %v7821, %v7817
      %v8030 = vpack.c.bf16 %v7826, %v7822
      %v8031 = vpack.c.bf16 %v7827, %v7823
      %v8032 = vpack.c.bf16 %v7828, %v7824
      %v8033 = vpack.c.bf16 %v7829, %v7825
      %v8034 = vpack.c.bf16 %v7834, %v7830
      %v8035 = vpack.c.bf16 %v7835, %v7831
      %v8036 = vpack.c.bf16 %v7836, %v7832
      %v8037 = vpack.c.bf16 %v7837, %v7833
      %v8038 = vpack.c.bf16 %v7842, %v7838
      %v8039 = vpack.c.bf16 %v7843, %v7839
      %v8040 = vpack.c.bf16 %v7844, %v7840
      %v8041 = vpack.c.bf16 %v7845, %v7841
      %v8042 = vpack.c.bf16 %v7850, %v7846
      %v8043 = vpack.c.bf16 %v7851, %v7847
      %v8044 = vpack.c.bf16 %v7852, %v7848
      %v8045 = vpack.c.bf16 %v7853, %v7849
      %v8046 = vpack.c.bf16 %v7858, %v7854
      %v8047 = vpack.c.bf16 %v7859, %v7855
      %v8048 = vpack.c.bf16 %v7860, %v7856
      %v8049 = vpack.c.bf16 %v7861, %v7857
      %v8050 = vpack.c.bf16 %v7866, %v7862
      %v8051 = vpack.c.bf16 %v7867, %v7863
      %v8052 = vpack.c.bf16 %v7868, %v7864
      %v8053 = vpack.c.bf16 %v7869, %v7865
      %v8054 = vpack.c.bf16 %v7874, %v7870
      %v8055 = vpack.c.bf16 %v7875, %v7871
      %v8056 = vpack.c.bf16 %v7876, %v7872
      %v8057 = vpack.c.bf16 %v7877, %v7873
      %v8058 = vpack.c.bf16 %v7882, %v7878
      %v8059 = vpack.c.bf16 %v7883, %v7879
      %v8060 = vpack.c.bf16 %v7884, %v7880
      %v8061 = vpack.c.bf16 %v7885, %v7881
      %v8062 = vpack.c.bf16 %v7890, %v7886
      %v8063 = vpack.c.bf16 %v7891, %v7887
      %v8064 = vpack.c.bf16 %v7892, %v7888
      %v8065 = vpack.c.bf16 %v7893, %v7889
      %v8066 = vpack.c.bf16 %v7898, %v7894
      %v8067 = vpack.c.bf16 %v7899, %v7895
      %v8068 = vpack.c.bf16 %v7900, %v7896
      %v8069 = vpack.c.bf16 %v7901, %v7897
      %v8070 = vpack.c.bf16 %v7906, %v7902
      %v8071 = vpack.c.bf16 %v7907, %v7903
      %v8072 = vpack.c.bf16 %v7908, %v7904
      %v8073 = vpack.c.bf16 %v7909, %v7905
      %v8074 = vpack.c.bf16 %v7914, %v7910
      %v8075 = vpack.c.bf16 %v7915, %v7911
      %v8076 = vpack.c.bf16 %v7916, %v7912
      %v8077 = vpack.c.bf16 %v7917, %v7913
      %v8078 = vpack.c.bf16 %v7922, %v7918
      %v8079 = vpack.c.bf16 %v7923, %v7919
      %v8080 = vpack.c.bf16 %v7924, %v7920
      %v8081 = vpack.c.bf16 %v7925, %v7921
      %v8082 = vpack.c.bf16 %v7930, %v7926
      %v8083 = vpack.c.bf16 %v7931, %v7927
      %v8084 = vpack.c.bf16 %v7932, %v7928
      %v8085 = vpack.c.bf16 %v7933, %v7929
      %v8086 = vpack.c.bf16 %v7938, %v7934
      %v8087 = vpack.c.bf16 %v7939, %v7935
      %v8088 = vpack.c.bf16 %v7940, %v7936
      %v8089 = vpack.c.bf16 %v7941, %v7937
      %v8090 = vpack.c.bf16 %v7946, %v7942
      %v8091 = vpack.c.bf16 %v7947, %v7943
      %v8092 = vpack.c.bf16 %v7948, %v7944
      %v8093 = vpack.c.bf16 %v7949, %v7945
      %v8094 = vpack.c.bf16 %v7954, %v7950
      %v8095 = vpack.c.bf16 %v7955, %v7951
      %v8096 = vpack.c.bf16 %v7956, %v7952
      %v8097 = vpack.c.bf16 %v7957, %v7953
      %v8098 = vpack.c.bf16 %v7962, %v7958
      %v8099 = vpack.c.bf16 %v7963, %v7959
      %v8100 = vpack.c.bf16 %v7964, %v7960
      %v8101 = vpack.c.bf16 %v7965, %v7961
      %v8102 = vpack.c.bf16 %v7970, %v7966
      %v8103 = vpack.c.bf16 %v7971, %v7967
      %v8104 = vpack.c.bf16 %v7972, %v7968
      %v8105 = vpack.c.bf16 %v7973, %v7969
      %v8106 = vpack.c.bf16 %v7978, %v7974
      %v8107 = vpack.c.bf16 %v7979, %v7975
      %v8108 = vpack.c.bf16 %v7980, %v7976
      %v8109 = vpack.c.bf16 %v7981, %v7977
      %v8110 = vld [vmem:[%s12] sm:$0xf]
      %v8111 = vld [vmem:[%s12 + $0x4] sm:$0xf]
      %v8112 = vld [vmem:[%s12 + $0x8] sm:$0xf]
      %v8113 = vld [vmem:[%s12 + $0xc] sm:$0xf]
      %v8114 = vld [vmem:[%s12 + $0x10] sm:$0xf]
      %v8115 = vld [vmem:[%s12 + $0x14] sm:$0xf]
      %v8116 = vld [vmem:[%s12 + $0x18] sm:$0xf]
      %v8117 = vld [vmem:[%s12 + $0x1c] sm:$0xf]
      %v8118 = vld [vmem:[%s12 + $0x20] sm:$0xf]
      %v8119 = vld [vmem:[%s12 + $0x24] sm:$0xf]
      %v8120 = vld [vmem:[%s12 + $0x28] sm:$0xf]
      %v8121 = vld [vmem:[%s12 + $0x2c] sm:$0xf]
      %v8122 = vld [vmem:[%s12 + $0x30] sm:$0xf]
      %v8123 = vld [vmem:[%s12 + $0x34] sm:$0xf]
      %v8124 = vld [vmem:[%s12 + $0x38] sm:$0xf]
      %v8125 = vld [vmem:[%s12 + $0x3c] sm:$0xf]
      %v8126 = vld [vmem:[%s12 + $0x40] sm:$0xf]
      %v8127 = vld [vmem:[%s12 + $0x44] sm:$0xf]
      %v8128 = vld [vmem:[%s12 + $0x48] sm:$0xf]
      %v8129 = vld [vmem:[%s12 + $0x4c] sm:$0xf]
      %v8130 = vld [vmem:[%s12 + $0x50] sm:$0xf]
      %v8131 = vld [vmem:[%s12 + $0x54] sm:$0xf]
      %v8132 = vld [vmem:[%s12 + $0x58] sm:$0xf]
      %v8133 = vld [vmem:[%s12 + $0x5c] sm:$0xf]
      %v8134 = vld [vmem:[%s12 + $0x60] sm:$0xf]
      %v8135 = vld [vmem:[%s12 + $0x64] sm:$0xf]
      %v8136 = vld [vmem:[%s12 + $0x68] sm:$0xf]
      %v8137 = vld [vmem:[%s12 + $0x6c] sm:$0xf]
      %v8138 = vld [vmem:[%s12 + $0x70] sm:$0xf]
      %v8139 = vld [vmem:[%s12 + $0x74] sm:$0xf]
      %v8140 = vld [vmem:[%s12 + $0x78] sm:$0xf]
      %v8141 = vld [vmem:[%s12 + $0x7c] sm:$0xf]
      %v8142 = vld [vmem:[%s12 + $0x80] sm:$0xf]
      %v8143 = vld [vmem:[%s12 + $0x84] sm:$0xf]
      %v8144 = vld [vmem:[%s12 + $0x88] sm:$0xf]
      %v8145 = vld [vmem:[%s12 + $0x8c] sm:$0xf]
      %v8146 = vld [vmem:[%s12 + $0x90] sm:$0xf]
      %v8147 = vld [vmem:[%s12 + $0x94] sm:$0xf]
      %v8148 = vld [vmem:[%s12 + $0x98] sm:$0xf]
      %v8149 = vld [vmem:[%s12 + $0x9c] sm:$0xf]
      %v8150 = vld [vmem:[%s12 + $0xa0] sm:$0xf]
      %v8151 = vld [vmem:[%s12 + $0xa4] sm:$0xf]
      %v8152 = vld [vmem:[%s12 + $0xa8] sm:$0xf]
      %v8153 = vld [vmem:[%s12 + $0xac] sm:$0xf]
      %v8154 = vld [vmem:[%s12 + $0xb0] sm:$0xf]
      %v8155 = vld [vmem:[%s12 + $0xb4] sm:$0xf]
      %v8156 = vld [vmem:[%s12 + $0xb8] sm:$0xf]
      %v8157 = vld [vmem:[%s12 + $0xbc] sm:$0xf]
      %v8158 = vld [vmem:[%s12 + $0xc0] sm:$0xf]
      %v8159 = vld [vmem:[%s12 + $0xc4] sm:$0xf]
      %v8160 = vld [vmem:[%s12 + $0xc8] sm:$0xf]
      %v8161 = vld [vmem:[%s12 + $0xcc] sm:$0xf]
      %v8162 = vld [vmem:[%s12 + $0xd0] sm:$0xf]
      %v8163 = vld [vmem:[%s12 + $0xd4] sm:$0xf]
      %v8164 = vld [vmem:[%s12 + $0xd8] sm:$0xf]
      %v8165 = vld [vmem:[%s12 + $0xdc] sm:$0xf]
      %v8166 = vld [vmem:[%s12 + $0xe0] sm:$0xf]
      %v8167 = vld [vmem:[%s12 + $0xe4] sm:$0xf]
      %v8168 = vld [vmem:[%s12 + $0xe8] sm:$0xf]
      %v8169 = vld [vmem:[%s12 + $0xec] sm:$0xf]
      %v8170 = vld [vmem:[%s12 + $0xf0] sm:$0xf]
      %v8171 = vld [vmem:[%s12 + $0xf4] sm:$0xf]
      %v8172 = vld [vmem:[%s12 + $0xf8] sm:$0xf]
      %v8173 = vld [vmem:[%s12 + $0xfc] sm:$0xf]
      %v8174 = vld [vmem:[%s13] sm:$0x1]
      %v8176 = vperm.slane %v8174, 0
      %v8242 = vunpack.c.l.b16 %v8110
      %v8243 = vunpack.c.l.b16 %v8111
      %v8244 = vunpack.c.l.b16 %v8112
      %v8245 = vunpack.c.l.b16 %v8113
      %v8246 = vunpack.c.l.b16 %v8114
      %v8247 = vunpack.c.l.b16 %v8115
      %v8248 = vunpack.c.l.b16 %v8116
      %v8249 = vunpack.c.l.b16 %v8117
      %v8250 = vunpack.c.l.b16 %v8118
      %v8251 = vunpack.c.l.b16 %v8119
      %v8252 = vunpack.c.l.b16 %v8120
      %v8253 = vunpack.c.l.b16 %v8121
      %v8254 = vunpack.c.l.b16 %v8122
      %v8255 = vunpack.c.l.b16 %v8123
      %v8256 = vunpack.c.l.b16 %v8124
      %v8257 = vunpack.c.l.b16 %v8125
      %v8258 = vunpack.c.l.b16 %v8126
      %v8259 = vunpack.c.l.b16 %v8127
      %v8260 = vunpack.c.l.b16 %v8128
      %v8261 = vunpack.c.l.b16 %v8129
      %v8262 = vunpack.c.l.b16 %v8130
      %v8263 = vunpack.c.l.b16 %v8131
      %v8264 = vunpack.c.l.b16 %v8132
      %v8265 = vunpack.c.l.b16 %v8133
      %v8266 = vunpack.c.l.b16 %v8134
      %v8267 = vunpack.c.l.b16 %v8135
      %v8268 = vunpack.c.l.b16 %v8136
      %v8269 = vunpack.c.l.b16 %v8137
      %v8270 = vunpack.c.l.b16 %v8138
      %v8271 = vunpack.c.l.b16 %v8139
      %v8272 = vunpack.c.l.b16 %v8140
      %v8273 = vunpack.c.l.b16 %v8141
      %v8274 = vunpack.c.l.b16 %v8142
      %v8275 = vunpack.c.l.b16 %v8143
      %v8276 = vunpack.c.l.b16 %v8144
      %v8277 = vunpack.c.l.b16 %v8145
      %v8278 = vunpack.c.l.b16 %v8146
      %v8279 = vunpack.c.l.b16 %v8147
      %v8280 = vunpack.c.l.b16 %v8148
      %v8281 = vunpack.c.l.b16 %v8149
      %v8282 = vunpack.c.l.b16 %v8150
      %v8283 = vunpack.c.l.b16 %v8151
      %v8284 = vunpack.c.l.b16 %v8152
      %v8285 = vunpack.c.l.b16 %v8153
      %v8286 = vunpack.c.l.b16 %v8154
      %v8287 = vunpack.c.l.b16 %v8155
      %v8288 = vunpack.c.l.b16 %v8156
      %v8289 = vunpack.c.l.b16 %v8157
      %v8290 = vunpack.c.l.b16 %v8158
      %v8291 = vunpack.c.l.b16 %v8159
      %v8292 = vunpack.c.l.b16 %v8160
      %v8293 = vunpack.c.l.b16 %v8161
      %v8294 = vunpack.c.l.b16 %v8162
      %v8295 = vunpack.c.l.b16 %v8163
      %v8296 = vunpack.c.l.b16 %v8164
      %v8297 = vunpack.c.l.b16 %v8165
      %v8298 = vunpack.c.l.b16 %v8166
      %v8299 = vunpack.c.l.b16 %v8167
      %v8300 = vunpack.c.l.b16 %v8168
      %v8301 = vunpack.c.l.b16 %v8169
      %v8302 = vunpack.c.l.b16 %v8170
      %v8303 = vunpack.c.l.b16 %v8171
      %v8304 = vunpack.c.l.b16 %v8172
      %v8305 = vunpack.c.l.b16 %v8173
      %v8306 = vpack.c.b16 %v8243, %v8242
      %v8307 = vpack.c.b16 %v8245, %v8244
      %v8308 = vpack.c.b16 %v8247, %v8246
      %v8309 = vpack.c.b16 %v8249, %v8248
      %v8310 = vpack.c.b16 %v8251, %v8250
      %v8311 = vpack.c.b16 %v8253, %v8252
      %v8312 = vpack.c.b16 %v8255, %v8254
      %v8313 = vpack.c.b16 %v8257, %v8256
      %v8314 = vpack.c.b16 %v8259, %v8258
      %v8315 = vpack.c.b16 %v8261, %v8260
      %v8316 = vpack.c.b16 %v8263, %v8262
      %v8317 = vpack.c.b16 %v8265, %v8264
      %v8318 = vpack.c.b16 %v8267, %v8266
      %v8319 = vpack.c.b16 %v8269, %v8268
      %v8320 = vpack.c.b16 %v8271, %v8270
      %v8321 = vpack.c.b16 %v8273, %v8272
      %v8322 = vpack.c.b16 %v8275, %v8274
      %v8323 = vpack.c.b16 %v8277, %v8276
      %v8324 = vpack.c.b16 %v8279, %v8278
      %v8325 = vpack.c.b16 %v8281, %v8280
      %v8326 = vpack.c.b16 %v8283, %v8282
      %v8327 = vpack.c.b16 %v8285, %v8284
      %v8328 = vpack.c.b16 %v8287, %v8286
      %v8329 = vpack.c.b16 %v8289, %v8288
      %v8330 = vpack.c.b16 %v8291, %v8290
      %v8331 = vpack.c.b16 %v8293, %v8292
      %v8332 = vpack.c.b16 %v8295, %v8294
      %v8333 = vpack.c.b16 %v8297, %v8296
      %v8334 = vpack.c.b16 %v8299, %v8298
      %v8335 = vpack.c.b16 %v8301, %v8300
      %v8336 = vpack.c.b16 %v8303, %v8302
      %v8337 = vpack.c.b16 %v8305, %v8304
      %8370 = vmatpush.bf16.msra.mxu0 %v8313
      %8371 = vmatpush.bf16.msra.mxu0 %v8312
      %8372 = vmatpush.bf16.msra.mxu0 %v8311
      %8373 = vmatpush.bf16.msra.mxu0 %v8310
      %8374 = vmatpush.bf16.msra.mxu0 %v8309
      %8375 = vmatpush.bf16.msra.mxu0 %v8308
      %8376 = vmatpush.bf16.msra.mxu0 %v8307
      %8377 = vmatpush.bf16.msra.mxu0 %v8306
      %8378 = vmatmul.bf16.gmra.mxu0 %v7982
      %v8379 = vpop.f32.mrf.mxu0
      %v8380 = vadd.f32 %v8176, %v8379
      %v8381 = vpop.f32.mrf.mxu0
      %v8382 = vadd.f32 %v8176, %v8381
      %8383 = vmatmul.bf16.gmra.mxu0 %v7986
      %v8384 = vpop.f32.mrf.mxu0
      %v8385 = vadd.f32 %v8176, %v8384
      %v8386 = vpop.f32.mrf.mxu0
      %v8387 = vadd.f32 %v8176, %v8386
      %8388 = vmatmul.bf16.gmra.mxu0 %v7990
      %v8389 = vpop.f32.mrf.mxu0
      %v8390 = vadd.f32 %v8176, %v8389
      %v8391 = vpop.f32.mrf.mxu0
      %v8392 = vadd.f32 %v8176, %v8391
      %8393 = vmatmul.bf16.gmra.mxu0 %v7994
      %v8394 = vpop.f32.mrf.mxu0
      %v8395 = vadd.f32 %v8176, %v8394
      %v8396 = vpop.f32.mrf.mxu0
      %v8397 = vadd.f32 %v8176, %v8396
      %8398 = vmatmul.bf16.gmra.mxu0 %v7998
      %v8399 = vpop.f32.mrf.mxu0
      %v8400 = vadd.f32 %v8176, %v8399
      %v8401 = vpop.f32.mrf.mxu0
      %v8402 = vadd.f32 %v8176, %v8401
      %8403 = vmatmul.bf16.gmra.mxu0 %v8002
      %v8404 = vpop.f32.mrf.mxu0
      %v8405 = vadd.f32 %v8176, %v8404
      %v8406 = vpop.f32.mrf.mxu0
      %v8407 = vadd.f32 %v8176, %v8406
      %8408 = vmatmul.bf16.gmra.mxu0 %v8006
      %v8409 = vpop.f32.mrf.mxu0
      %v8410 = vadd.f32 %v8176, %v8409
      %v8411 = vpop.f32.mrf.mxu0
      %v8412 = vadd.f32 %v8176, %v8411
      %8413 = vmatmul.bf16.gmra.mxu0 %v8010
      %v8414 = vpop.f32.mrf.mxu0
      %v8415 = vadd.f32 %v8176, %v8414
      %v8416 = vpop.f32.mrf.mxu0
      %v8417 = vadd.f32 %v8176, %v8416
      %8418 = vmatmul.bf16.gmra.mxu0 %v8014
      %v8419 = vpop.f32.mrf.mxu0
      %v8420 = vadd.f32 %v8176, %v8419
      %v8421 = vpop.f32.mrf.mxu0
      %v8422 = vadd.f32 %v8176, %v8421
      %8423 = vmatmul.bf16.gmra.mxu0 %v8018
      %v8424 = vpop.f32.mrf.mxu0
      %v8425 = vadd.f32 %v8176, %v8424
      %v8426 = vpop.f32.mrf.mxu0
      %v8427 = vadd.f32 %v8176, %v8426
      %8428 = vmatmul.bf16.gmra.mxu0 %v8022
      %v8429 = vpop.f32.mrf.mxu0
      %v8430 = vadd.f32 %v8176, %v8429
      %v8431 = vpop.f32.mrf.mxu0
      %v8432 = vadd.f32 %v8176, %v8431
      %8433 = vmatmul.bf16.gmra.mxu0 %v8026
      %v8434 = vpop.f32.mrf.mxu0
      %v8435 = vadd.f32 %v8176, %v8434
      %v8436 = vpop.f32.mrf.mxu0
      %v8437 = vadd.f32 %v8176, %v8436
      %8438 = vmatmul.bf16.gmra.mxu0 %v8030
      %v8439 = vpop.f32.mrf.mxu0
      %v8440 = vadd.f32 %v8176, %v8439
      %v8441 = vpop.f32.mrf.mxu0
      %v8442 = vadd.f32 %v8176, %v8441
      %8443 = vmatmul.bf16.gmra.mxu0 %v8034
      %v8444 = vpop.f32.mrf.mxu0
      %v8445 = vadd.f32 %v8176, %v8444
      %v8446 = vpop.f32.mrf.mxu0
      %v8447 = vadd.f32 %v8176, %v8446
      %8448 = vmatmul.bf16.gmra.mxu0 %v8038
      %v8449 = vpop.f32.mrf.mxu0
      %v8450 = vadd.f32 %v8176, %v8449
      %v8451 = vpop.f32.mrf.mxu0
      %v8452 = vadd.f32 %v8176, %v8451
      %8453 = vmatmul.bf16.gmra.mxu0 %v8042
      %v8454 = vpop.f32.mrf.mxu0
      %v8455 = vadd.f32 %v8176, %v8454
      %v8456 = vpop.f32.mrf.mxu0
      %v8457 = vadd.f32 %v8176, %v8456
      %8458 = vmatmul.bf16.gmra.mxu0 %v8046
      %v8459 = vpop.f32.mrf.mxu0
      %v8460 = vadd.f32 %v8176, %v8459
      %v8461 = vpop.f32.mrf.mxu0
      %v8462 = vadd.f32 %v8176, %v8461
      %8463 = vmatmul.bf16.gmra.mxu0 %v8050
      %v8464 = vpop.f32.mrf.mxu0
      %v8465 = vadd.f32 %v8176, %v8464
      %v8466 = vpop.f32.mrf.mxu0
      %v8467 = vadd.f32 %v8176, %v8466
      %8468 = vmatmul.bf16.gmra.mxu0 %v8054
      %v8469 = vpop.f32.mrf.mxu0
      %v8470 = vadd.f32 %v8176, %v8469
      %v8471 = vpop.f32.mrf.mxu0
      %v8472 = vadd.f32 %v8176, %v8471
      %8473 = vmatmul.bf16.gmra.mxu0 %v8058
      %v8474 = vpop.f32.mrf.mxu0
      %v8475 = vadd.f32 %v8176, %v8474
      %v8476 = vpop.f32.mrf.mxu0
      %v8477 = vadd.f32 %v8176, %v8476
      %8478 = vmatmul.bf16.gmra.mxu0 %v8062
      %v8479 = vpop.f32.mrf.mxu0
      %v8480 = vadd.f32 %v8176, %v8479
      %v8481 = vpop.f32.mrf.mxu0
      %v8482 = vadd.f32 %v8176, %v8481
      %8483 = vmatmul.bf16.gmra.mxu0 %v8066
      %v8484 = vpop.f32.mrf.mxu0
      %v8485 = vadd.f32 %v8176, %v8484
      %v8486 = vpop.f32.mrf.mxu0
      %v8487 = vadd.f32 %v8176, %v8486
      %8488 = vmatmul.bf16.gmra.mxu0 %v8070
      %v8489 = vpop.f32.mrf.mxu0
      %v8490 = vadd.f32 %v8176, %v8489
      %v8491 = vpop.f32.mrf.mxu0
      %v8492 = vadd.f32 %v8176, %v8491
      %8493 = vmatmul.bf16.gmra.mxu0 %v8074
      %v8494 = vpop.f32.mrf.mxu0
      %v8495 = vadd.f32 %v8176, %v8494
      %v8496 = vpop.f32.mrf.mxu0
      %v8497 = vadd.f32 %v8176, %v8496
      %8498 = vmatmul.bf16.gmra.mxu0 %v8078
      %v8499 = vpop.f32.mrf.mxu0
      %v8500 = vadd.f32 %v8176, %v8499
      %v8501 = vpop.f32.mrf.mxu0
      %v8502 = vadd.f32 %v8176, %v8501
      %8503 = vmatmul.bf16.gmra.mxu0 %v8082
      %v8504 = vpop.f32.mrf.mxu0
      %v8505 = vadd.f32 %v8176, %v8504
      %v8506 = vpop.f32.mrf.mxu0
      %v8507 = vadd.f32 %v8176, %v8506
      %8508 = vmatmul.bf16.gmra.mxu0 %v8086
      %v8509 = vpop.f32.mrf.mxu0
      %v8510 = vadd.f32 %v8176, %v8509
      %v8511 = vpop.f32.mrf.mxu0
      %v8512 = vadd.f32 %v8176, %v8511
      %8513 = vmatmul.bf16.gmra.mxu0 %v8090
      %v8514 = vpop.f32.mrf.mxu0
      %v8515 = vadd.f32 %v8176, %v8514
      %v8516 = vpop.f32.mrf.mxu0
      %v8517 = vadd.f32 %v8176, %v8516
      %8518 = vmatmul.bf16.gmra.mxu0 %v8094
      %v8519 = vpop.f32.mrf.mxu0
      %v8520 = vadd.f32 %v8176, %v8519
      %v8521 = vpop.f32.mrf.mxu0
      %v8522 = vadd.f32 %v8176, %v8521
      %8523 = vmatmul.bf16.gmra.mxu0 %v8098
      %v8524 = vpop.f32.mrf.mxu0
      %v8525 = vadd.f32 %v8176, %v8524
      %v8526 = vpop.f32.mrf.mxu0
      %v8527 = vadd.f32 %v8176, %v8526
      %8528 = vmatmul.bf16.gmra.mxu0 %v8102
      %v8529 = vpop.f32.mrf.mxu0
      %v8530 = vadd.f32 %v8176, %v8529
      %v8531 = vpop.f32.mrf.mxu0
      %v8532 = vadd.f32 %v8176, %v8531
      %8533 = vmatmul.bf16.gmra.mxu0 %v8106
      %v8534 = vpop.f32.mrf.mxu0
      %v8535 = vadd.f32 %v8176, %v8534
      %v8536 = vpop.f32.mrf.mxu0
      %v8537 = vadd.f32 %v8176, %v8536
      %8538 = vdwg.mxu0
      %8539 = vmatpush.bf16.msra.mxu0 %v8321
      %8540 = vmatpush.bf16.msra.mxu0 %v8320
      %8541 = vmatpush.bf16.msra.mxu0 %v8319
      %8542 = vmatpush.bf16.msra.mxu0 %v8318
      %8543 = vmatpush.bf16.msra.mxu0 %v8317
      %8544 = vmatpush.bf16.msra.mxu0 %v8316
      %8545 = vmatpush.bf16.msra.mxu0 %v8315
      %8546 = vmatpush.bf16.msra.mxu0 %v8314
      %8547 = vmatmul.bf16.gmra.mxu0 %v7983
      %v8548 = vpop.f32.mrf.mxu0
      %v8549 = vadd.f32 %v8380, %v8548
      %v8550 = vpop.f32.mrf.mxu0
      %v8551 = vadd.f32 %v8382, %v8550
      %8552 = vmatmul.bf16.gmra.mxu0 %v7987
      %v8553 = vpop.f32.mrf.mxu0
      %v8554 = vadd.f32 %v8385, %v8553
      %v8555 = vpop.f32.mrf.mxu0
      %v8556 = vadd.f32 %v8387, %v8555
      %8557 = vmatmul.bf16.gmra.mxu0 %v7991
      %v8558 = vpop.f32.mrf.mxu0
      %v8559 = vadd.f32 %v8390, %v8558
      %v8560 = vpop.f32.mrf.mxu0
      %v8561 = vadd.f32 %v8392, %v8560
      %8562 = vmatmul.bf16.gmra.mxu0 %v7995
      %v8563 = vpop.f32.mrf.mxu0
      %v8564 = vadd.f32 %v8395, %v8563
      %v8565 = vpop.f32.mrf.mxu0
      %v8566 = vadd.f32 %v8397, %v8565
      %8567 = vmatmul.bf16.gmra.mxu0 %v7999
      %v8568 = vpop.f32.mrf.mxu0
      %v8569 = vadd.f32 %v8400, %v8568
      %v8570 = vpop.f32.mrf.mxu0
      %v8571 = vadd.f32 %v8402, %v8570
      %8572 = vmatmul.bf16.gmra.mxu0 %v8003
      %v8573 = vpop.f32.mrf.mxu0
      %v8574 = vadd.f32 %v8405, %v8573
      %v8575 = vpop.f32.mrf.mxu0
      %v8576 = vadd.f32 %v8407, %v8575
      %8577 = vmatmul.bf16.gmra.mxu0 %v8007
      %v8578 = vpop.f32.mrf.mxu0
      %v8579 = vadd.f32 %v8410, %v8578
      %v8580 = vpop.f32.mrf.mxu0
      %v8581 = vadd.f32 %v8412, %v8580
      %8582 = vmatmul.bf16.gmra.mxu0 %v8011
      %v8583 = vpop.f32.mrf.mxu0
      %v8584 = vadd.f32 %v8415, %v8583
      %v8585 = vpop.f32.mrf.mxu0
      %v8586 = vadd.f32 %v8417, %v8585
      %8587 = vmatmul.bf16.gmra.mxu0 %v8015
      %v8588 = vpop.f32.mrf.mxu0
      %v8589 = vadd.f32 %v8420, %v8588
      %v8590 = vpop.f32.mrf.mxu0
      %v8591 = vadd.f32 %v8422, %v8590
      %8592 = vmatmul.bf16.gmra.mxu0 %v8019
      %v8593 = vpop.f32.mrf.mxu0
      %v8594 = vadd.f32 %v8425, %v8593
      %v8595 = vpop.f32.mrf.mxu0
      %v8596 = vadd.f32 %v8427, %v8595
      %8597 = vmatmul.bf16.gmra.mxu0 %v8023
      %v8598 = vpop.f32.mrf.mxu0
      %v8599 = vadd.f32 %v8430, %v8598
      %v8600 = vpop.f32.mrf.mxu0
      %v8601 = vadd.f32 %v8432, %v8600
      %8602 = vmatmul.bf16.gmra.mxu0 %v8027
      %v8603 = vpop.f32.mrf.mxu0
      %v8604 = vadd.f32 %v8435, %v8603
      %v8605 = vpop.f32.mrf.mxu0
      %v8606 = vadd.f32 %v8437, %v8605
      %8607 = vmatmul.bf16.gmra.mxu0 %v8031
      %v8608 = vpop.f32.mrf.mxu0
      %v8609 = vadd.f32 %v8440, %v8608
      %v8610 = vpop.f32.mrf.mxu0
      %v8611 = vadd.f32 %v8442, %v8610
      %8612 = vmatmul.bf16.gmra.mxu0 %v8035
      %v8613 = vpop.f32.mrf.mxu0
      %v8614 = vadd.f32 %v8445, %v8613
      %v8615 = vpop.f32.mrf.mxu0
      %v8616 = vadd.f32 %v8447, %v8615
      %8617 = vmatmul.bf16.gmra.mxu0 %v8039
      %v8618 = vpop.f32.mrf.mxu0
      %v8619 = vadd.f32 %v8450, %v8618
      %v8620 = vpop.f32.mrf.mxu0
      %v8621 = vadd.f32 %v8452, %v8620
      %8622 = vmatmul.bf16.gmra.mxu0 %v8043
      %v8623 = vpop.f32.mrf.mxu0
      %v8624 = vadd.f32 %v8455, %v8623
      %v8625 = vpop.f32.mrf.mxu0
      %v8626 = vadd.f32 %v8457, %v8625
      %8627 = vmatmul.bf16.gmra.mxu0 %v8047
      %v8628 = vpop.f32.mrf.mxu0
      %v8629 = vadd.f32 %v8460, %v8628
      %v8630 = vpop.f32.mrf.mxu0
      %v8631 = vadd.f32 %v8462, %v8630
      %8632 = vmatmul.bf16.gmra.mxu0 %v8051
      %v8633 = vpop.f32.mrf.mxu0
      %v8634 = vadd.f32 %v8465, %v8633
      %v8635 = vpop.f32.mrf.mxu0
      %v8636 = vadd.f32 %v8467, %v8635
      %8637 = vmatmul.bf16.gmra.mxu0 %v8055
      %v8638 = vpop.f32.mrf.mxu0
      %v8639 = vadd.f32 %v8470, %v8638
      %v8640 = vpop.f32.mrf.mxu0
      %v8641 = vadd.f32 %v8472, %v8640
      %8642 = vmatmul.bf16.gmra.mxu0 %v8059
      %v8643 = vpop.f32.mrf.mxu0
      %v8644 = vadd.f32 %v8475, %v8643
      %v8645 = vpop.f32.mrf.mxu0
      %v8646 = vadd.f32 %v8477, %v8645
      %8647 = vmatmul.bf16.gmra.mxu0 %v8063
      %v8648 = vpop.f32.mrf.mxu0
      %v8649 = vadd.f32 %v8480, %v8648
      %v8650 = vpop.f32.mrf.mxu0
      %v8651 = vadd.f32 %v8482, %v8650
      %8652 = vmatmul.bf16.gmra.mxu0 %v8067
      %v8653 = vpop.f32.mrf.mxu0
      %v8654 = vadd.f32 %v8485, %v8653
      %v8655 = vpop.f32.mrf.mxu0
      %v8656 = vadd.f32 %v8487, %v8655
      %8657 = vmatmul.bf16.gmra.mxu0 %v8071
      %v8658 = vpop.f32.mrf.mxu0
      %v8659 = vadd.f32 %v8490, %v8658
      %v8660 = vpop.f32.mrf.mxu0
      %v8661 = vadd.f32 %v8492, %v8660
      %8662 = vmatmul.bf16.gmra.mxu0 %v8075
      %v8663 = vpop.f32.mrf.mxu0
      %v8664 = vadd.f32 %v8495, %v8663
      %v8665 = vpop.f32.mrf.mxu0
      %v8666 = vadd.f32 %v8497, %v8665
      %8667 = vmatmul.bf16.gmra.mxu0 %v8079
      %v8668 = vpop.f32.mrf.mxu0
      %v8669 = vadd.f32 %v8500, %v8668
      %v8670 = vpop.f32.mrf.mxu0
      %v8671 = vadd.f32 %v8502, %v8670
      %8672 = vmatmul.bf16.gmra.mxu0 %v8083
      %v8673 = vpop.f32.mrf.mxu0
      %v8674 = vadd.f32 %v8505, %v8673
      %v8675 = vpop.f32.mrf.mxu0
      %v8676 = vadd.f32 %v8507, %v8675
      %8677 = vmatmul.bf16.gmra.mxu0 %v8087
      %v8678 = vpop.f32.mrf.mxu0
      %v8679 = vadd.f32 %v8510, %v8678
      %v8680 = vpop.f32.mrf.mxu0
      %v8681 = vadd.f32 %v8512, %v8680
      %8682 = vmatmul.bf16.gmra.mxu0 %v8091
      %v8683 = vpop.f32.mrf.mxu0
      %v8684 = vadd.f32 %v8515, %v8683
      %v8685 = vpop.f32.mrf.mxu0
      %v8686 = vadd.f32 %v8517, %v8685
      %8687 = vmatmul.bf16.gmra.mxu0 %v8095
      %v8688 = vpop.f32.mrf.mxu0
      %v8689 = vadd.f32 %v8520, %v8688
      %v8690 = vpop.f32.mrf.mxu0
      %v8691 = vadd.f32 %v8522, %v8690
      %8692 = vmatmul.bf16.gmra.mxu0 %v8099
      %v8693 = vpop.f32.mrf.mxu0
      %v8694 = vadd.f32 %v8525, %v8693
      %v8695 = vpop.f32.mrf.mxu0
      %v8696 = vadd.f32 %v8527, %v8695
      %8697 = vmatmul.bf16.gmra.mxu0 %v8103
      %v8698 = vpop.f32.mrf.mxu0
      %v8699 = vadd.f32 %v8530, %v8698
      %v8700 = vpop.f32.mrf.mxu0
      %v8701 = vadd.f32 %v8532, %v8700
      %8702 = vmatmul.bf16.gmra.mxu0 %v8107
      %v8703 = vpop.f32.mrf.mxu0
      %v8704 = vadd.f32 %v8535, %v8703
      %v8705 = vpop.f32.mrf.mxu0
      %v8706 = vadd.f32 %v8537, %v8705
      %8707 = vdwg.mxu0
      %8708 = vmatpush.bf16.msra.mxu0 %v8329
      %8709 = vmatpush.bf16.msra.mxu0 %v8328
      %8710 = vmatpush.bf16.msra.mxu0 %v8327
      %8711 = vmatpush.bf16.msra.mxu0 %v8326
      %8712 = vmatpush.bf16.msra.mxu0 %v8325
      %8713 = vmatpush.bf16.msra.mxu0 %v8324
      %8714 = vmatpush.bf16.msra.mxu0 %v8323
      %8715 = vmatpush.bf16.msra.mxu0 %v8322
      %8716 = vmatmul.bf16.gmra.mxu0 %v7984
      %v8717 = vpop.f32.mrf.mxu0
      %v8718 = vadd.f32 %v8549, %v8717
      %v8719 = vpop.f32.mrf.mxu0
      %v8720 = vadd.f32 %v8551, %v8719
      %8721 = vmatmul.bf16.gmra.mxu0 %v7988
      %v8722 = vpop.f32.mrf.mxu0
      %v8723 = vadd.f32 %v8554, %v8722
      %v8724 = vpop.f32.mrf.mxu0
      %v8725 = vadd.f32 %v8556, %v8724
      %8726 = vmatmul.bf16.gmra.mxu0 %v7992
      %v8727 = vpop.f32.mrf.mxu0
      %v8728 = vadd.f32 %v8559, %v8727
      %v8729 = vpop.f32.mrf.mxu0
      %v8730 = vadd.f32 %v8561, %v8729
      %8731 = vmatmul.bf16.gmra.mxu0 %v7996
      %v8732 = vpop.f32.mrf.mxu0
      %v8733 = vadd.f32 %v8564, %v8732
      %v8734 = vpop.f32.mrf.mxu0
      %v8735 = vadd.f32 %v8566, %v8734
      %8736 = vmatmul.bf16.gmra.mxu0 %v8000
      %v8737 = vpop.f32.mrf.mxu0
      %v8738 = vadd.f32 %v8569, %v8737
      %v8739 = vpop.f32.mrf.mxu0
      %v8740 = vadd.f32 %v8571, %v8739
      %8741 = vmatmul.bf16.gmra.mxu0 %v8004
      %v8742 = vpop.f32.mrf.mxu0
      %v8743 = vadd.f32 %v8574, %v8742
      %v8744 = vpop.f32.mrf.mxu0
      %v8745 = vadd.f32 %v8576, %v8744
      %8746 = vmatmul.bf16.gmra.mxu0 %v8008
      %v8747 = vpop.f32.mrf.mxu0
      %v8748 = vadd.f32 %v8579, %v8747
      %v8749 = vpop.f32.mrf.mxu0
      %v8750 = vadd.f32 %v8581, %v8749
      %8751 = vmatmul.bf16.gmra.mxu0 %v8012
      %v8752 = vpop.f32.mrf.mxu0
      %v8753 = vadd.f32 %v8584, %v8752
      %v8754 = vpop.f32.mrf.mxu0
      %v8755 = vadd.f32 %v8586, %v8754
      %8756 = vmatmul.bf16.gmra.mxu0 %v8016
      %v8757 = vpop.f32.mrf.mxu0
      %v8758 = vadd.f32 %v8589, %v8757
      %v8759 = vpop.f32.mrf.mxu0
      %v8760 = vadd.f32 %v8591, %v8759
      %8761 = vmatmul.bf16.gmra.mxu0 %v8020
      %v8762 = vpop.f32.mrf.mxu0
      %v8763 = vadd.f32 %v8594, %v8762
      %v8764 = vpop.f32.mrf.mxu0
      %v8765 = vadd.f32 %v8596, %v8764
      %8766 = vmatmul.bf16.gmra.mxu0 %v8024
      %v8767 = vpop.f32.mrf.mxu0
      %v8768 = vadd.f32 %v8599, %v8767
      %v8769 = vpop.f32.mrf.mxu0
      %v8770 = vadd.f32 %v8601, %v8769
      %8771 = vmatmul.bf16.gmra.mxu0 %v8028
      %v8772 = vpop.f32.mrf.mxu0
      %v8773 = vadd.f32 %v8604, %v8772
      %v8774 = vpop.f32.mrf.mxu0
      %v8775 = vadd.f32 %v8606, %v8774
      %8776 = vmatmul.bf16.gmra.mxu0 %v8032
      %v8777 = vpop.f32.mrf.mxu0
      %v8778 = vadd.f32 %v8609, %v8777
      %v8779 = vpop.f32.mrf.mxu0
      %v8780 = vadd.f32 %v8611, %v8779
      %8781 = vmatmul.bf16.gmra.mxu0 %v8036
      %v8782 = vpop.f32.mrf.mxu0
      %v8783 = vadd.f32 %v8614, %v8782
      %v8784 = vpop.f32.mrf.mxu0
      %v8785 = vadd.f32 %v8616, %v8784
      %8786 = vmatmul.bf16.gmra.mxu0 %v8040
      %v8787 = vpop.f32.mrf.mxu0
      %v8788 = vadd.f32 %v8619, %v8787
      %v8789 = vpop.f32.mrf.mxu0
      %v8790 = vadd.f32 %v8621, %v8789
      %8791 = vmatmul.bf16.gmra.mxu0 %v8044
      %v8792 = vpop.f32.mrf.mxu0
      %v8793 = vadd.f32 %v8624, %v8792
      %v8794 = vpop.f32.mrf.mxu0
      %v8795 = vadd.f32 %v8626, %v8794
      %8796 = vmatmul.bf16.gmra.mxu0 %v8048
      %v8797 = vpop.f32.mrf.mxu0
      %v8798 = vadd.f32 %v8629, %v8797
      %v8799 = vpop.f32.mrf.mxu0
      %v8800 = vadd.f32 %v8631, %v8799
      %8801 = vmatmul.bf16.gmra.mxu0 %v8052
      %v8802 = vpop.f32.mrf.mxu0
      %v8803 = vadd.f32 %v8634, %v8802
      %v8804 = vpop.f32.mrf.mxu0
      %v8805 = vadd.f32 %v8636, %v8804
      %8806 = vmatmul.bf16.gmra.mxu0 %v8056
      %v8807 = vpop.f32.mrf.mxu0
      %v8808 = vadd.f32 %v8639, %v8807
      %v8809 = vpop.f32.mrf.mxu0
      %v8810 = vadd.f32 %v8641, %v8809
      %8811 = vmatmul.bf16.gmra.mxu0 %v8060
      %v8812 = vpop.f32.mrf.mxu0
      %v8813 = vadd.f32 %v8644, %v8812
      %v8814 = vpop.f32.mrf.mxu0
      %v8815 = vadd.f32 %v8646, %v8814
      %8816 = vmatmul.bf16.gmra.mxu0 %v8064
      %v8817 = vpop.f32.mrf.mxu0
      %v8818 = vadd.f32 %v8649, %v8817
      %v8819 = vpop.f32.mrf.mxu0
      %v8820 = vadd.f32 %v8651, %v8819
      %8821 = vmatmul.bf16.gmra.mxu0 %v8068
      %v8822 = vpop.f32.mrf.mxu0
      %v8823 = vadd.f32 %v8654, %v8822
      %v8824 = vpop.f32.mrf.mxu0
      %v8825 = vadd.f32 %v8656, %v8824
      %8826 = vmatmul.bf16.gmra.mxu0 %v8072
      %v8827 = vpop.f32.mrf.mxu0
      %v8828 = vadd.f32 %v8659, %v8827
      %v8829 = vpop.f32.mrf.mxu0
      %v8830 = vadd.f32 %v8661, %v8829
      %8831 = vmatmul.bf16.gmra.mxu0 %v8076
      %v8832 = vpop.f32.mrf.mxu0
      %v8833 = vadd.f32 %v8664, %v8832
      %v8834 = vpop.f32.mrf.mxu0
      %v8835 = vadd.f32 %v8666, %v8834
      %8836 = vmatmul.bf16.gmra.mxu0 %v8080
      %v8837 = vpop.f32.mrf.mxu0
      %v8838 = vadd.f32 %v8669, %v8837
      %v8839 = vpop.f32.mrf.mxu0
      %v8840 = vadd.f32 %v8671, %v8839
      %8841 = vmatmul.bf16.gmra.mxu0 %v8084
      %v8842 = vpop.f32.mrf.mxu0
      %v8843 = vadd.f32 %v8674, %v8842
      %v8844 = vpop.f32.mrf.mxu0
      %v8845 = vadd.f32 %v8676, %v8844
      %8846 = vmatmul.bf16.gmra.mxu0 %v8088
      %v8847 = vpop.f32.mrf.mxu0
      %v8848 = vadd.f32 %v8679, %v8847
      %v8849 = vpop.f32.mrf.mxu0
      %v8850 = vadd.f32 %v8681, %v8849
      %8851 = vmatmul.bf16.gmra.mxu0 %v8092
      %v8852 = vpop.f32.mrf.mxu0
      %v8853 = vadd.f32 %v8684, %v8852
      %v8854 = vpop.f32.mrf.mxu0
      %v8855 = vadd.f32 %v8686, %v8854
      %8856 = vmatmul.bf16.gmra.mxu0 %v8096
      %v8857 = vpop.f32.mrf.mxu0
      %v8858 = vadd.f32 %v8689, %v8857
      %v8859 = vpop.f32.mrf.mxu0
      %v8860 = vadd.f32 %v8691, %v8859
      %8861 = vmatmul.bf16.gmra.mxu0 %v8100
      %v8862 = vpop.f32.mrf.mxu0
      %v8863 = vadd.f32 %v8694, %v8862
      %v8864 = vpop.f32.mrf.mxu0
      %v8865 = vadd.f32 %v8696, %v8864
      %8866 = vmatmul.bf16.gmra.mxu0 %v8104
      %v8867 = vpop.f32.mrf.mxu0
      %v8868 = vadd.f32 %v8699, %v8867
      %v8869 = vpop.f32.mrf.mxu0
      %v8870 = vadd.f32 %v8701, %v8869
      %8871 = vmatmul.bf16.gmra.mxu0 %v8108
      %v8872 = vpop.f32.mrf.mxu0
      %v8873 = vadd.f32 %v8704, %v8872
      %v8874 = vpop.f32.mrf.mxu0
      %v8875 = vadd.f32 %v8706, %v8874
      %8876 = vdwg.mxu0
      %8877 = vmatpush.bf16.msra.mxu0 %v8337
      %8878 = vmatpush.bf16.msra.mxu0 %v8336
      %8879 = vmatpush.bf16.msra.mxu0 %v8335
      %8880 = vmatpush.bf16.msra.mxu0 %v8334
      %8881 = vmatpush.bf16.msra.mxu0 %v8333
      %8882 = vmatpush.bf16.msra.mxu0 %v8332
      %8883 = vmatpush.bf16.msra.mxu0 %v8331
      %8884 = vmatpush.bf16.msra.mxu0 %v8330
      %8885 = vmatmul.bf16.gmra.mxu0 %v7985
      %v8886 = vpop.f32.mrf.mxu0
      %v8887 = vadd.f32 %v8718, %v8886
      %v8888 = vpop.f32.mrf.mxu0
      %v8889 = vadd.f32 %v8720, %v8888
      %8890 = vmatmul.bf16.gmra.mxu0 %v7989
      %v8891 = vpop.f32.mrf.mxu0
      %v8892 = vadd.f32 %v8723, %v8891
      %v8893 = vpop.f32.mrf.mxu0
      %v8894 = vadd.f32 %v8725, %v8893
      %8895 = vmatmul.bf16.gmra.mxu0 %v7993
      %v8896 = vpop.f32.mrf.mxu0
      %v8897 = vadd.f32 %v8728, %v8896
      %v8898 = vpop.f32.mrf.mxu0
      %v8899 = vadd.f32 %v8730, %v8898
      %8900 = vmatmul.bf16.gmra.mxu0 %v7997
      %v8901 = vpop.f32.mrf.mxu0
      %v8902 = vadd.f32 %v8733, %v8901
      %v8903 = vpop.f32.mrf.mxu0
      %v8904 = vadd.f32 %v8735, %v8903
      %8905 = vmatmul.bf16.gmra.mxu0 %v8001
      %v8906 = vpop.f32.mrf.mxu0
      %v8907 = vadd.f32 %v8738, %v8906
      %v8908 = vpop.f32.mrf.mxu0
      %v8909 = vadd.f32 %v8740, %v8908
      %8910 = vmatmul.bf16.gmra.mxu0 %v8005
      %v8911 = vpop.f32.mrf.mxu0
      %v8912 = vadd.f32 %v8743, %v8911
      %v8913 = vpop.f32.mrf.mxu0
      %v8914 = vadd.f32 %v8745, %v8913
      %8915 = vmatmul.bf16.gmra.mxu0 %v8009
      %v8916 = vpop.f32.mrf.mxu0
      %v8917 = vadd.f32 %v8748, %v8916
      %v8918 = vpop.f32.mrf.mxu0
      %v8919 = vadd.f32 %v8750, %v8918
      %8920 = vmatmul.bf16.gmra.mxu0 %v8013
      %v8921 = vpop.f32.mrf.mxu0
      %v8922 = vadd.f32 %v8753, %v8921
      %v8923 = vpop.f32.mrf.mxu0
      %v8924 = vadd.f32 %v8755, %v8923
      %8925 = vmatmul.bf16.gmra.mxu0 %v8017
      %v8926 = vpop.f32.mrf.mxu0
      %v8927 = vadd.f32 %v8758, %v8926
      %v8928 = vpop.f32.mrf.mxu0
      %v8929 = vadd.f32 %v8760, %v8928
      %8930 = vmatmul.bf16.gmra.mxu0 %v8021
      %v8931 = vpop.f32.mrf.mxu0
      %v8932 = vadd.f32 %v8763, %v8931
      %v8933 = vpop.f32.mrf.mxu0
      %v8934 = vadd.f32 %v8765, %v8933
      %8935 = vmatmul.bf16.gmra.mxu0 %v8025
      %v8936 = vpop.f32.mrf.mxu0
      %v8937 = vadd.f32 %v8768, %v8936
      %v8938 = vpop.f32.mrf.mxu0
      %v8939 = vadd.f32 %v8770, %v8938
      %8940 = vmatmul.bf16.gmra.mxu0 %v8029
      %v8941 = vpop.f32.mrf.mxu0
      %v8942 = vadd.f32 %v8773, %v8941
      %v8943 = vpop.f32.mrf.mxu0
      %v8944 = vadd.f32 %v8775, %v8943
      %8945 = vmatmul.bf16.gmra.mxu0 %v8033
      %v8946 = vpop.f32.mrf.mxu0
      %v8947 = vadd.f32 %v8778, %v8946
      %v8948 = vpop.f32.mrf.mxu0
      %v8949 = vadd.f32 %v8780, %v8948
      %8950 = vmatmul.bf16.gmra.mxu0 %v8037
      %v8951 = vpop.f32.mrf.mxu0
      %v8952 = vadd.f32 %v8783, %v8951
      %v8953 = vpop.f32.mrf.mxu0
      %v8954 = vadd.f32 %v8785, %v8953
      %8955 = vmatmul.bf16.gmra.mxu0 %v8041
      %v8956 = vpop.f32.mrf.mxu0
      %v8957 = vadd.f32 %v8788, %v8956
      %v8958 = vpop.f32.mrf.mxu0
      %v8959 = vadd.f32 %v8790, %v8958
      %8960 = vmatmul.bf16.gmra.mxu0 %v8045
      %v8961 = vpop.f32.mrf.mxu0
      %v8962 = vadd.f32 %v8793, %v8961
      %v8963 = vpop.f32.mrf.mxu0
      %v8964 = vadd.f32 %v8795, %v8963
      %8965 = vmatmul.bf16.gmra.mxu0 %v8049
      %v8966 = vpop.f32.mrf.mxu0
      %v8967 = vadd.f32 %v8798, %v8966
      %v8968 = vpop.f32.mrf.mxu0
      %v8969 = vadd.f32 %v8800, %v8968
      %8970 = vmatmul.bf16.gmra.mxu0 %v8053
      %v8971 = vpop.f32.mrf.mxu0
      %v8972 = vadd.f32 %v8803, %v8971
      %v8973 = vpop.f32.mrf.mxu0
      %v8974 = vadd.f32 %v8805, %v8973
      %8975 = vmatmul.bf16.gmra.mxu0 %v8057
      %v8976 = vpop.f32.mrf.mxu0
      %v8977 = vadd.f32 %v8808, %v8976
      %v8978 = vpop.f32.mrf.mxu0
      %v8979 = vadd.f32 %v8810, %v8978
      %8980 = vmatmul.bf16.gmra.mxu0 %v8061
      %v8981 = vpop.f32.mrf.mxu0
      %v8982 = vadd.f32 %v8813, %v8981
      %v8983 = vpop.f32.mrf.mxu0
      %v8984 = vadd.f32 %v8815, %v8983
      %8985 = vmatmul.bf16.gmra.mxu0 %v8065
      %v8986 = vpop.f32.mrf.mxu0
      %v8987 = vadd.f32 %v8818, %v8986
      %v8988 = vpop.f32.mrf.mxu0
      %v8989 = vadd.f32 %v8820, %v8988
      %8990 = vmatmul.bf16.gmra.mxu0 %v8069
      %v8991 = vpop.f32.mrf.mxu0
      %v8992 = vadd.f32 %v8823, %v8991
      %v8993 = vpop.f32.mrf.mxu0
      %v8994 = vadd.f32 %v8825, %v8993
      %8995 = vmatmul.bf16.gmra.mxu0 %v8073
      %v8996 = vpop.f32.mrf.mxu0
      %v8997 = vadd.f32 %v8828, %v8996
      %v8998 = vpop.f32.mrf.mxu0
      %v8999 = vadd.f32 %v8830, %v8998
      %9000 = vmatmul.bf16.gmra.mxu0 %v8077
      %v9001 = vpop.f32.mrf.mxu0
      %v9002 = vadd.f32 %v8833, %v9001
      %v9003 = vpop.f32.mrf.mxu0
      %v9004 = vadd.f32 %v8835, %v9003
      %9005 = vmatmul.bf16.gmra.mxu0 %v8081
      %v9006 = vpop.f32.mrf.mxu0
      %v9007 = vadd.f32 %v8838, %v9006
      %v9008 = vpop.f32.mrf.mxu0
      %v9009 = vadd.f32 %v8840, %v9008
      %9010 = vmatmul.bf16.gmra.mxu0 %v8085
      %v9011 = vpop.f32.mrf.mxu0
      %v9012 = vadd.f32 %v8843, %v9011
      %v9013 = vpop.f32.mrf.mxu0
      %v9014 = vadd.f32 %v8845, %v9013
      %9015 = vmatmul.bf16.gmra.mxu0 %v8089
      %v9016 = vpop.f32.mrf.mxu0
      %v9017 = vadd.f32 %v8848, %v9016
      %v9018 = vpop.f32.mrf.mxu0
      %v9019 = vadd.f32 %v8850, %v9018
      %9020 = vmatmul.bf16.gmra.mxu0 %v8093
      %v9021 = vpop.f32.mrf.mxu0
      %v9022 = vadd.f32 %v8853, %v9021
      %v9023 = vpop.f32.mrf.mxu0
      %v9024 = vadd.f32 %v8855, %v9023
      %9025 = vmatmul.bf16.gmra.mxu0 %v8097
      %v9026 = vpop.f32.mrf.mxu0
      %v9027 = vadd.f32 %v8858, %v9026
      %v9028 = vpop.f32.mrf.mxu0
      %v9029 = vadd.f32 %v8860, %v9028
      %9030 = vmatmul.bf16.gmra.mxu0 %v8101
      %v9031 = vpop.f32.mrf.mxu0
      %v9032 = vadd.f32 %v8863, %v9031
      %v9033 = vpop.f32.mrf.mxu0
      %v9034 = vadd.f32 %v8865, %v9033
      %9035 = vmatmul.bf16.gmra.mxu0 %v8105
      %v9036 = vpop.f32.mrf.mxu0
      %v9037 = vadd.f32 %v8868, %v9036
      %v9038 = vpop.f32.mrf.mxu0
      %v9039 = vadd.f32 %v8870, %v9038
      %9040 = vmatmul.bf16.gmra.mxu0 %v8109
      %v9041 = vpop.f32.mrf.mxu0
      %v9042 = vadd.f32 %v8873, %v9041
      %v9043 = vpop.f32.mrf.mxu0
      %v9044 = vadd.f32 %v8875, %v9043
      %9045 = vdwg.mxu0
      %9046 = vst [vmem:[%s518] sm:$0xff] %v8887
      %9047 = vst [vmem:[%s518 + $0x8] sm:$0xff] %v8889
      %9048 = vst [vmem:[%s518 + $0x10] sm:$0xff] %v8892
      %9049 = vst [vmem:[%s518 + $0x18] sm:$0xff] %v8894
      %9050 = vst [vmem:[%s518 + $0x20] sm:$0xff] %v8897
      %9051 = vst [vmem:[%s518 + $0x28] sm:$0xff] %v8899
      %9052 = vst [vmem:[%s518 + $0x30] sm:$0xff] %v8902
      %9053 = vst [vmem:[%s518 + $0x38] sm:$0xff] %v8904
      %9054 = vst [vmem:[%s518 + $0x40] sm:$0xff] %v8907
      %9055 = vst [vmem:[%s518 + $0x48] sm:$0xff] %v8909
      %9056 = vst [vmem:[%s518 + $0x50] sm:$0xff] %v8912
      %9057 = vst [vmem:[%s518 + $0x58] sm:$0xff] %v8914
      %9058 = vst [vmem:[%s518 + $0x60] sm:$0xff] %v8917
      %9059 = vst [vmem:[%s518 + $0x68] sm:$0xff] %v8919
      %9060 = vst [vmem:[%s518 + $0x70] sm:$0xff] %v8922
      %9061 = vst [vmem:[%s518 + $0x78] sm:$0xff] %v8924
      %9062 = vst [vmem:[%s518 + $0x80] sm:$0xff] %v8927
      %9063 = vst [vmem:[%s518 + $0x88] sm:$0xff] %v8929
      %9064 = vst [vmem:[%s518 + $0x90] sm:$0xff] %v8932
      %9065 = vst [vmem:[%s518 + $0x98] sm:$0xff] %v8934
      %9066 = vst [vmem:[%s518 + $0xa0] sm:$0xff] %v8937
      %9067 = vst [vmem:[%s518 + $0xa8] sm:$0xff] %v8939
      %9068 = vst [vmem:[%s518 + $0xb0] sm:$0xff] %v8942
      %9069 = vst [vmem:[%s518 + $0xb8] sm:$0xff] %v8944
      %9070 = vst [vmem:[%s518 + $0xc0] sm:$0xff] %v8947
      %9071 = vst [vmem:[%s518 + $0xc8] sm:$0xff] %v8949
      %9072 = vst [vmem:[%s518 + $0xd0] sm:$0xff] %v8952
      %9073 = vst [vmem:[%s518 + $0xd8] sm:$0xff] %v8954
      %9074 = vst [vmem:[%s518 + $0xe0] sm:$0xff] %v8957
      %9075 = vst [vmem:[%s518 + $0xe8] sm:$0xff] %v8959
      %9076 = vst [vmem:[%s518 + $0xf0] sm:$0xff] %v8962
      %9077 = vst [vmem:[%s518 + $0xf8] sm:$0xff] %v8964
      %9078 = vst [vmem:[%s518 + $0x100] sm:$0xff] %v8967
      %9079 = vst [vmem:[%s518 + $0x108] sm:$0xff] %v8969
      %9080 = vst [vmem:[%s518 + $0x110] sm:$0xff] %v8972
      %9081 = vst [vmem:[%s518 + $0x118] sm:$0xff] %v8974
      %9082 = vst [vmem:[%s518 + $0x120] sm:$0xff] %v8977
      %9083 = vst [vmem:[%s518 + $0x128] sm:$0xff] %v8979
      %9084 = vst [vmem:[%s518 + $0x130] sm:$0xff] %v8982
      %9085 = vst [vmem:[%s518 + $0x138] sm:$0xff] %v8984
      %9086 = vst [vmem:[%s518 + $0x140] sm:$0xff] %v8987
      %9087 = vst [vmem:[%s518 + $0x148] sm:$0xff] %v8989
      %9088 = vst [vmem:[%s518 + $0x150] sm:$0xff] %v8992
      %9089 = vst [vmem:[%s518 + $0x158] sm:$0xff] %v8994
      %9090 = vst [vmem:[%s518 + $0x160] sm:$0xff] %v8997
      %9091 = vst [vmem:[%s518 + $0x168] sm:$0xff] %v8999
      %9092 = vst [vmem:[%s518 + $0x170] sm:$0xff] %v9002
      %9093 = vst [vmem:[%s518 + $0x178] sm:$0xff] %v9004
      %9094 = vst [vmem:[%s518 + $0x180] sm:$0xff] %v9007
      %9095 = vst [vmem:[%s518 + $0x188] sm:$0xff] %v9009
      %9096 = vst [vmem:[%s518 + $0x190] sm:$0xff] %v9012
      %9097 = vst [vmem:[%s518 + $0x198] sm:$0xff] %v9014
      %9098 = vst [vmem:[%s518 + $0x1a0] sm:$0xff] %v9017
      %9099 = vst [vmem:[%s518 + $0x1a8] sm:$0xff] %v9019
      %9100 = vst [vmem:[%s518 + $0x1b0] sm:$0xff] %v9022
      %9101 = vst [vmem:[%s518 + $0x1b8] sm:$0xff] %v9024
      %9102 = vst [vmem:[%s518 + $0x1c0] sm:$0xff] %v9027
      %9103 = vst [vmem:[%s518 + $0x1c8] sm:$0xff] %v9029
      %9104 = vst [vmem:[%s518 + $0x1d0] sm:$0xff] %v9032
      %9105 = vst [vmem:[%s518 + $0x1d8] sm:$0xff] %v9034
      %9106 = vst [vmem:[%s518 + $0x1e0] sm:$0xff] %v9037
      %9107 = vst [vmem:[%s518 + $0x1e8] sm:$0xff] %v9039
      %9108 = vst [vmem:[%s518 + $0x1f0] sm:$0xff] %v9042
      %9109 = vst [vmem:[%s518 + $0x1f8] sm:$0xff] %v9044
      %s9110 = smul.u32 64, %s26
      %p9111 = scmp.lt.s32.totalorder %s9110, 255
      %s9112 = scalar_select %p9111, %s9110, 255
      %s9113 = smul.addr %s9112, 8
      %s9114 = scalar_lea.vmem %s15, %s9113
      // Predicated region
      $region81: #{vae_forward.1} parent=79 // pred_check
        %p9115 = pneg %p369
      $region82: #{vae_forward.1} parent=79 // pred_check_branch
        %9117 = sbr.rel (%p9115) target = $region84
      $region83: #{vae_forward.1} parent=79 // pred_region
        %s9118 = smul.u32 64, %s26
      $region84: #{vae_forward.1} parent=79 // pred_fallthru
        _
    $region80: #{vae_forward.1} parent=5 // pred_fallthru
      _
    %p9119 = scmp.le.s32.totalorder 2, %s21
    // Predicated region
    $region85: #{vae_forward.1} parent=5 // pred_check
      %p9120 = pneg %p9119
    $region86: #{vae_forward.1} parent=5 // pred_check_branch
      %9122 = sbr.rel (%p9120) target = $region88
    $region87: #{vae_forward.1} parent=5 // pred_region
      %s9123 = ssub.s32 %s21, 2
      // Predicated region
      $region89: #{vae_forward.1} parent=87 // pred_check
        %p9124 = pneg %p375
      $region90: #{vae_forward.1} parent=87 // pred_check_branch
        %9126 = sbr.rel (%p9124) target = $region92
      $region91: #{vae_forward.1} parent=87 // pred_region
        %s9127 = smul.u32 64, %s27
        %p9128 = scmp.lt.s32.totalorder %s9127, 255
        %s9129 = scalar_select %p9128, %s9127, 255
        %s9130 = smul.addr %s9129, 8
        %s9131 = scalar_lea.vmem %s15, %s9130
      $region92: #{vae_forward.1} parent=87 // pred_fallthru
        _
    $region88: #{vae_forward.1} parent=5 // pred_fallthru
      _
  $region6: #{vae_forward.1} parent=0 // loop_footer
    %s25 = sadd.s32 1, %s21
  $region7: #{vae_forward.1} parent=0 // loop_footer_branch
    %20 = sbr.rel target = $region3
  $region8: #{vae_forward.1} parent=0 // loop_exit
    _

</llo_original>
